<compile_context>
chip_gen: v7x
topology: tpu7x:2x2x1
jax: 0.10.0
libtpu: 0.0.40
codegen_flags: <defaults>
</compile_context>

<pallas_src>
import jax
import jax.numpy as jnp
from jax.experimental import pallas as pl
from jax.experimental.pallas import tpu as pltpu


# ----------------------------------------------------------------------------
# Fused ResBlock kernel (one grid step == Btile samples)
# ----------------------------------------------------------------------------
def _make_resblock_kernel(Bt, Cp, H, W, eps):
    HW = H * W
    M = Bt * HW          # matmul M dimension
    K = 9 * Cp           # matmul K dimension (9 taps concatenated)

    def kernel(x_ref, w1_ref, b1_ref, w2_ref, b2_ref, o_ref, halo_ref, patch_ref):
        # x_ref    : (Bt, H, W, Cp)        f32  NHWC, channel-padded (lane dense)
        # w*_ref   : (9*Cp, Cp)            bf16 tap-major rows, zero-padded
        # b*_ref   : (1, Cp)               f32
        # o_ref    : (Bt, H, W, Cp)        f32
        # halo_ref : (Bt, H+2, W+2, Cp)    f32  VMEM zero-pad halo
        # patch_ref: (Bt, H, W, 9*Cp)      bf16 VMEM im2col patches

        # --- zero the 1-pixel pad ring ONCE per grid step -------------------
        # The (H, W) interior is fully overwritten before each conv and the
        # ring is never written elsewhere, so no full-buffer re-zeroing.
        zrow = jnp.zeros((Bt, 1, W + 2, Cp), jnp.float32)
        halo_ref[:, 0:1, :, :] = zrow
        halo_ref[:, H + 1:H + 2, :, :] = zrow
        zcol = jnp.zeros((Bt, H + 2, 1, Cp), jnp.float32)
        halo_ref[:, :, 0:1, :] = zcol
        halo_ref[:, :, W + 1:W + 2, :] = zcol

        def conv3x3(act_bhwc, w_ref, b_ref):
            # Zero-pad halo lives only in VMEM; never materialized in HBM.
            halo_ref[:, 1:H + 1, 1:W + 1, :] = act_bhwc
            # Fused im2col: scatter the 9 shifted windows into the lane-aligned
            # bf16 patch scratch (single f32->bf16 pass over each element).
            for t in range(9):
                dy, dx = t // 3, t % 3
                patch_ref[:, :, :, t * Cp:(t + 1) * Cp] = (
                    halo_ref[:, dy:dy + H, dx:dx + W, :].astype(jnp.bfloat16))
            # ONE MXU matmul with K = 9*Cp and full-width N = Cp (f32 accum).
            y = jnp.dot(patch_ref[...].reshape(M, K), w_ref[...],
                        preferred_element_type=jnp.float32)
            return y + b_ref[...]          # bias added once, post-accumulation

        def inst_norm(y_mc):
            # nn.InstanceNorm2d(affine=False, track_running_stats=False):
            # per-(sample, channel) stats over H*W, biased variance.
            y = y_mc.reshape(Bt, HW, Cp)
            mean = jnp.mean(y, axis=1, keepdims=True)
            cen = y - mean
            var = jnp.mean(cen * cen, axis=1, keepdims=True)
            return (cen * jax.lax.rsqrt(var + eps)).reshape(M, Cp)   # EUP rsqrt

        y1 = conv3x3(x_ref[...], w1_ref, b1_ref)                 # Conv2dBlock #1
        a1 = jnp.maximum(inst_norm(y1), 0.0)                     # IN + ReLU
        y2 = conv3x3(a1.reshape(Bt, H, W, Cp), w2_ref, b2_ref)   # Conv2dBlock #2
        # Residual re-read from VMEM (not kept live across both convs).
        out = inst_norm(y2).reshape(Bt, H, W, Cp) + x_ref[...]
        o_ref[...] = out.astype(o_ref.dtype)

    return kernel


# ----------------------------------------------------------------------------
# Wrapper: layout prep, channel padding, batch tiling, pallas_call
# ----------------------------------------------------------------------------
def resblock_forward(x_nchw, w1, b1, w2, b2, eps=1e-5, target_block_bytes=1 << 20):
    """ResBlock forward. x: NCHW float32, conv weights in PyTorch OIHW layout."""
    B, C, H, W = x_nchw.shape
    Cp = ((C + 127) // 128) * 128    # lane-dense channel padding (multiple of 128)

    x = jnp.transpose(x_nchw, (0, 2, 3, 1)).astype(jnp.float32)   # NHWC
    if Cp != C:
        x = jnp.pad(x, ((0, 0), (0, 0), (0, 0), (0, Cp - C)))

    def prep_w(w):   # [Cout, Cin, 3, 3] -> (9*Cp, Cp), tap-major rows, bf16
        wm = jnp.transpose(w, (2, 3, 1, 0)).astype(jnp.float32)   # (3,3,Cin,Cout)
        wm = jnp.pad(wm, ((0, 0), (0, 0), (0, Cp - C), (0, Cp - C)))
        return wm.reshape(9 * Cp, Cp).astype(jnp.bfloat16)

    def prep_b(b):
        return jnp.pad(b.astype(jnp.float32), (0, Cp - C)).reshape(1, Cp)

    w1m, w2m = prep_w(w1), prep_w(w2)
    b1m, b2m = prep_b(b1), prep_b(b2)

    # Batch tile: target ~target_block_bytes per input block (amortizes the
    # ~0.35us per-step overhead and grows the matmul M dim), but keep the grid
    # length >= 2 so ("parallel",) can shard across both v7x TensorCores.
    per_sample = H * W * Cp * 4
    bt = 1
    for d in range(1, B + 1):
        if (B % d == 0 and d * per_sample <= target_block_bytes
                and (B < 2 or B // d >= 2)):
            bt = d
    grid = (B // bt,)

    blk = pl.BlockSpec((bt, H, W, Cp), lambda i: (i, 0, 0, 0))
    wspec = pl.BlockSpec((9 * Cp, Cp), lambda i: (0, 0))
    bspec = pl.BlockSpec((1, Cp), lambda i: (0, 0))

    out = pl.pallas_call(
        _make_resblock_kernel(bt, Cp, H, W, eps),
        out_shape=jax.ShapeDtypeStruct((B, H, W, Cp), jnp.float32),
        grid=grid,
        in_specs=[blk, wspec, bspec, wspec, bspec],
        out_specs=blk,
        scratch_shapes=[
            pltpu.VMEM((bt, H + 2, W + 2, Cp), jnp.float32),    # zero-pad halo
            pltpu.VMEM((bt, H, W, 9 * Cp), jnp.bfloat16),       # im2col patches
        ],
        compiler_params=pltpu.CompilerParams(
            dimension_semantics=("parallel",),   # megacore sharding on v7x
            vmem_limit_bytes=32 * 1024 * 1024,
        ),
    )(x, w1m, b1m, w2m, b2m)

    out = out[..., :C]                          # drop channel padding
    return jnp.transpose(out, (0, 3, 1, 2))     # back to NCHW


# ----------------------------------------------------------------------------
# Pure-JAX reference (same bf16-input / f32-accumulate contract as the kernel)
# ----------------------------------------------------------------------------
def resblock_reference(x_nchw, w1, b1, w2, b2, eps=1e-5):
    def conv3x3(a_nhwc, w_oihw, bias):
        B, H, W, Cin = a_nhwc.shape
        Cout = w_oihw.shape[0]
        ap = jnp.pad(a_nhwc.astype(jnp.bfloat16),
                     ((0, 0), (1, 1), (1, 1), (0, 0)))
        wm = jnp.transpose(w_oihw, (2, 3, 1, 0)).astype(jnp.bfloat16)
        acc = jnp.zeros((B * H * W, Cout), jnp.float32)
        for dy in range(3):
            for dx in range(3):
                win = ap[:, dy:dy + H, dx:dx + W, :].reshape(B * H * W, Cin)
                acc = acc + jnp.dot(win, wm[dy, dx],
                                    preferred_element_type=jnp.float32)
        acc = acc + bias[None, :].astype(jnp.float32)
        return acc.reshape(B, H, W, Cout)

    def inst_norm(y):
        mean = jnp.mean(y, axis=(1, 2), keepdims=True)
        cen = y - mean
        var = jnp.mean(cen * cen, axis=(1, 2), keepdims=True)
        return cen * (1.0 / jnp.sqrt(var + eps))

    x_nhwc = jnp.transpose(x_nchw, (0, 2, 3, 1)).astype(jnp.float32)
    y1 = conv3x3(x_nhwc, w1, b1)
    a1 = jnp.maximum(inst_norm(y1), 0.0)
    y2 = conv3x3(a1, w2, b2)
    out = inst_norm(y2) + x_nhwc
    return jnp.transpose(out, (0, 3, 1, 2))


if __name__ == "__main__":
    key = jax.random.PRNGKey(0)
    kx, kw1, kb1, kw2, kb2 = jax.random.split(key, 5)

    # ResBlock(dim=32) on a small NCHW input (B=4 exercises batch tiling).
    B, dim, H, W = 4, 32, 16, 16
    scale = 1.0 / (dim * 3 * 3) ** 0.5     # PyTorch Conv2d default init range

    x = jax.random.normal(kx, (B, dim, H, W), jnp.float32)
    w1 = jax.random.uniform(kw1, (dim, dim, 3, 3), jnp.float32, -scale, scale)
    b1 = jax.random.uniform(kb1, (dim,), jnp.float32, -scale, scale)
    w2 = jax.random.uniform(kw2, (dim, dim, 3, 3), jnp.float32, -scale, scale)
    b2 = jax.random.uniform(kb2, (dim,), jnp.float32, -scale, scale)

    out = jax.jit(resblock_forward)(x, w1, b1, w2, b2)
    out = jax.block_until_ready(out)
    assert out.shape == (B, dim, H, W), out.shape

    ref = resblock_reference(x, w1, b1, w2, b2)
    assert jnp.allclose(out, ref, rtol=1e-3, atol=1e-3), float(
        jnp.max(jnp.abs(out - ref)))

    print("KERNEL_OK")
</pallas_src>

<mosaic_0001>
module attributes {stable_mosaic.version = 11 : i64} {
  func.func @kernel(%arg0: i32, %arg1: memref<2x16x16x128xf32, #tpu.memory_space<vmem>>, %arg2: memref<1152x128xbf16, #tpu.memory_space<vmem>>, %arg3: memref<1x128xf32, #tpu.memory_space<vmem>>, %arg4: memref<1152x128xbf16, #tpu.memory_space<vmem>>, %arg5: memref<1x128xf32, #tpu.memory_space<vmem>>, %arg6: memref<2x16x16x128xf32, #tpu.memory_space<vmem>>, %arg7: memref<2x18x18x128xf32, #tpu.memory_space<vmem>>, %arg8: memref<2x16x16x1152xbf16, #tpu.memory_space<vmem>>) attributes {dimension_semantics = [#tpu.dimension_semantics<parallel>], iteration_bounds = array<i64: 2>, scalar_prefetch = 0 : i64, scratch_operands = 2 : i64, tpu.core_type = #tpu.core_type<tc>, window_params = [{transform_indices = @transform_0, window_bounds = array<i64: 2, 16, 16, 128>}, {pipeline_mode = #tpu.pipeline_mode<synchronous>, transform_indices = @transform_1, window_bounds = array<i64: 1152, 128>}, {pipeline_mode = #tpu.pipeline_mode<synchronous>, transform_indices = @transform_2, window_bounds = array<i64: 1, 128>}, {pipeline_mode = #tpu.pipeline_mode<synchronous>, transform_indices = @transform_3, window_bounds = array<i64: 1152, 128>}, {pipeline_mode = #tpu.pipeline_mode<synchronous>, transform_indices = @transform_4, window_bounds = array<i64: 1, 128>}, {transform_indices = @transform_5, window_bounds = array<i64: 2, 16, 16, 128>}]} {
    %cst = arith.constant 0.000000e+00 : f32
    %0 = vector.broadcast %cst : f32 to vector<2x1x18x128xf32>
    %c0 = arith.constant 0 : index
    %c0_0 = arith.constant 0 : index
    %c0_1 = arith.constant 0 : index
    %c0_2 = arith.constant 0 : index
    %1 = vector.load %arg7[%c0, %c0_0, %c0_1, %c0_2] : memref<2x18x18x128xf32, #tpu.memory_space<vmem>>, vector<2x1x18x128xf32>
    tpu.vector_store %arg7[%c0, %c0_0, %c0_1, %c0_2], %0 {strides = array<i32>} : memref<2x18x18x128xf32, #tpu.memory_space<vmem>>, vector<2x1x18x128xf32>,
    %c0_3 = arith.constant 0 : index
    %c17 = arith.constant 17 : index
    %c0_4 = arith.constant 0 : index
    %c0_5 = arith.constant 0 : index
    %2 = vector.load %arg7[%c0_3, %c17, %c0_4, %c0_5] : memref<2x18x18x128xf32, #tpu.memory_space<vmem>>, vector<2x1x18x128xf32>
    tpu.vector_store %arg7[%c0_3, %c17, %c0_4, %c0_5], %0 {strides = array<i32>} : memref<2x18x18x128xf32, #tpu.memory_space<vmem>>, vector<2x1x18x128xf32>,
    %cst_6 = arith.constant 0.000000e+00 : f32
    %3 = vector.broadcast %cst_6 : f32 to vector<2x18x1x128xf32>
    %c0_7 = arith.constant 0 : index
    %c0_8 = arith.constant 0 : index
    %c0_9 = arith.constant 0 : index
    %c0_10 = arith.constant 0 : index
    %4 = vector.load %arg7[%c0_7, %c0_8, %c0_9, %c0_10] : memref<2x18x18x128xf32, #tpu.memory_space<vmem>>, vector<2x18x1x128xf32>
    tpu.vector_store %arg7[%c0_7, %c0_8, %c0_9, %c0_10], %3 {strides = array<i32>} : memref<2x18x18x128xf32, #tpu.memory_space<vmem>>, vector<2x18x1x128xf32>,
    %c0_11 = arith.constant 0 : index
    %c0_12 = arith.constant 0 : index
    %c17_13 = arith.constant 17 : index
    %c0_14 = arith.constant 0 : index
    %5 = vector.load %arg7[%c0_11, %c0_12, %c17_13, %c0_14] : memref<2x18x18x128xf32, #tpu.memory_space<vmem>>, vector<2x18x1x128xf32>
    tpu.vector_store %arg7[%c0_11, %c0_12, %c17_13, %c0_14], %3 {strides = array<i32>} : memref<2x18x18x128xf32, #tpu.memory_space<vmem>>, vector<2x18x1x128xf32>,
    %c0_15 = arith.constant 0 : index
    %c0_16 = arith.constant 0 : index
    %c0_17 = arith.constant 0 : index
    %c0_18 = arith.constant 0 : index
    %6 = vector.load %arg1[%c0_15, %c0_16, %c0_17, %c0_18] : memref<2x16x16x128xf32, #tpu.memory_space<vmem>>, vector<2x16x16x128xf32>
    %c0_19 = arith.constant 0 : index
    %c1 = arith.constant 1 : index
    %c1_20 = arith.constant 1 : index
    %c0_21 = arith.constant 0 : index
    %7 = vector.load %arg7[%c0_19, %c1, %c1_20, %c0_21] : memref<2x18x18x128xf32, #tpu.memory_space<vmem>>, vector<2x16x16x128xf32>
    tpu.vector_store %arg7[%c0_19, %c1, %c1_20, %c0_21], %6 {strides = array<i32>} : memref<2x18x18x128xf32, #tpu.memory_space<vmem>>, vector<2x16x16x128xf32>,
    %c0_22 = arith.constant 0 : index
    %c0_23 = arith.constant 0 : index
    %c0_24 = arith.constant 0 : index
    %c0_25 = arith.constant 0 : index
    %8 = vector.load %arg7[%c0_22, %c0_23, %c0_24, %c0_25] : memref<2x18x18x128xf32, #tpu.memory_space<vmem>>, vector<2x16x16x128xf32>
    %9 = arith.truncf %8 : vector<2x16x16x128xf32> to vector<2x16x16x128xbf16>
    %c0_26 = arith.constant 0 : index
    %c0_27 = arith.constant 0 : index
    %c0_28 = arith.constant 0 : index
    %c0_29 = arith.constant 0 : index
    %10 = vector.load %arg8[%c0_26, %c0_27, %c0_28, %c0_29] : memref<2x16x16x1152xbf16, #tpu.memory_space<vmem>>, vector<2x16x16x128xbf16>
    tpu.vector_store %arg8[%c0_26, %c0_27, %c0_28, %c0_29], %9 {strides = array<i32>} : memref<2x16x16x1152xbf16, #tpu.memory_space<vmem>>, vector<2x16x16x128xbf16>,
    %c0_30 = arith.constant 0 : index
    %c0_31 = arith.constant 0 : index
    %c1_32 = arith.constant 1 : index
    %c0_33 = arith.constant 0 : index
    %11 = vector.load %arg7[%c0_30, %c0_31, %c1_32, %c0_33] : memref<2x18x18x128xf32, #tpu.memory_space<vmem>>, vector<2x16x16x128xf32>
    %12 = arith.truncf %11 : vector<2x16x16x128xf32> to vector<2x16x16x128xbf16>
    %c0_34 = arith.constant 0 : index
    %c0_35 = arith.constant 0 : index
    %c0_36 = arith.constant 0 : index
    %c128 = arith.constant 128 : index
    %13 = vector.load %arg8[%c0_34, %c0_35, %c0_36, %c128] : memref<2x16x16x1152xbf16, #tpu.memory_space<vmem>>, vector<2x16x16x128xbf16>
    tpu.vector_store %arg8[%c0_34, %c0_35, %c0_36, %c128], %12 {strides = array<i32>} : memref<2x16x16x1152xbf16, #tpu.memory_space<vmem>>, vector<2x16x16x128xbf16>,
    %c0_37 = arith.constant 0 : index
    %c0_38 = arith.constant 0 : index
    %c2 = arith.constant 2 : index
    %c0_39 = arith.constant 0 : index
    %14 = vector.load %arg7[%c0_37, %c0_38, %c2, %c0_39] : memref<2x18x18x128xf32, #tpu.memory_space<vmem>>, vector<2x16x16x128xf32>
    %15 = arith.truncf %14 : vector<2x16x16x128xf32> to vector<2x16x16x128xbf16>
    %c0_40 = arith.constant 0 : index
    %c0_41 = arith.constant 0 : index
    %c0_42 = arith.constant 0 : index
    %c256 = arith.constant 256 : index
    %16 = vector.load %arg8[%c0_40, %c0_41, %c0_42, %c256] : memref<2x16x16x1152xbf16, #tpu.memory_space<vmem>>, vector<2x16x16x128xbf16>
    tpu.vector_store %arg8[%c0_40, %c0_41, %c0_42, %c256], %15 {strides = array<i32>} : memref<2x16x16x1152xbf16, #tpu.memory_space<vmem>>, vector<2x16x16x128xbf16>,
    %c0_43 = arith.constant 0 : index
    %c1_44 = arith.constant 1 : index
    %c0_45 = arith.constant 0 : index
    %c0_46 = arith.constant 0 : index
    %17 = vector.load %arg7[%c0_43, %c1_44, %c0_45, %c0_46] : memref<2x18x18x128xf32, #tpu.memory_space<vmem>>, vector<2x16x16x128xf32>
    %18 = arith.truncf %17 : vector<2x16x16x128xf32> to vector<2x16x16x128xbf16>
    %c0_47 = arith.constant 0 : index
    %c0_48 = arith.constant 0 : index
    %c0_49 = arith.constant 0 : index
    %c384 = arith.constant 384 : index
    %19 = vector.load %arg8[%c0_47, %c0_48, %c0_49, %c384] : memref<2x16x16x1152xbf16, #tpu.memory_space<vmem>>, vector<2x16x16x128xbf16>
    tpu.vector_store %arg8[%c0_47, %c0_48, %c0_49, %c384], %18 {strides = array<i32>} : memref<2x16x16x1152xbf16, #tpu.memory_space<vmem>>, vector<2x16x16x128xbf16>,
    %c0_50 = arith.constant 0 : index
    %c1_51 = arith.constant 1 : index
    %c1_52 = arith.constant 1 : index
    %c0_53 = arith.constant 0 : index
    %20 = vector.load %arg7[%c0_50, %c1_51, %c1_52, %c0_53] : memref<2x18x18x128xf32, #tpu.memory_space<vmem>>, vector<2x16x16x128xf32>
    %21 = arith.truncf %20 : vector<2x16x16x128xf32> to vector<2x16x16x128xbf16>
    %c0_54 = arith.constant 0 : index
    %c0_55 = arith.constant 0 : index
    %c0_56 = arith.constant 0 : index
    %c512 = arith.constant 512 : index
    %22 = vector.load %arg8[%c0_54, %c0_55, %c0_56, %c512] : memref<2x16x16x1152xbf16, #tpu.memory_space<vmem>>, vector<2x16x16x128xbf16>
    tpu.vector_store %arg8[%c0_54, %c0_55, %c0_56, %c512], %21 {strides = array<i32>} : memref<2x16x16x1152xbf16, #tpu.memory_space<vmem>>, vector<2x16x16x128xbf16>,
    %c0_57 = arith.constant 0 : index
    %c1_58 = arith.constant 1 : index
    %c2_59 = arith.constant 2 : index
    %c0_60 = arith.constant 0 : index
    %23 = vector.load %arg7[%c0_57, %c1_58, %c2_59, %c0_60] : memref<2x18x18x128xf32, #tpu.memory_space<vmem>>, vector<2x16x16x128xf32>
    %24 = arith.truncf %23 : vector<2x16x16x128xf32> to vector<2x16x16x128xbf16>
    %c0_61 = arith.constant 0 : index
    %c0_62 = arith.constant 0 : index
    %c0_63 = arith.constant 0 : index
    %c640 = arith.constant 640 : index
    %25 = vector.load %arg8[%c0_61, %c0_62, %c0_63, %c640] : memref<2x16x16x1152xbf16, #tpu.memory_space<vmem>>, vector<2x16x16x128xbf16>
    tpu.vector_store %arg8[%c0_61, %c0_62, %c0_63, %c640], %24 {strides = array<i32>} : memref<2x16x16x1152xbf16, #tpu.memory_space<vmem>>, vector<2x16x16x128xbf16>,
    %c0_64 = arith.constant 0 : index
    %c2_65 = arith.constant 2 : index
    %c0_66 = arith.constant 0 : index
    %c0_67 = arith.constant 0 : index
    %26 = vector.load %arg7[%c0_64, %c2_65, %c0_66, %c0_67] : memref<2x18x18x128xf32, #tpu.memory_space<vmem>>, vector<2x16x16x128xf32>
    %27 = arith.truncf %26 : vector<2x16x16x128xf32> to vector<2x16x16x128xbf16>
    %c0_68 = arith.constant 0 : index
    %c0_69 = arith.constant 0 : index
    %c0_70 = arith.constant 0 : index
    %c768 = arith.constant 768 : index
    %28 = vector.load %arg8[%c0_68, %c0_69, %c0_70, %c768] : memref<2x16x16x1152xbf16, #tpu.memory_space<vmem>>, vector<2x16x16x128xbf16>
    tpu.vector_store %arg8[%c0_68, %c0_69, %c0_70, %c768], %27 {strides = array<i32>} : memref<2x16x16x1152xbf16, #tpu.memory_space<vmem>>, vector<2x16x16x128xbf16>,
    %c0_71 = arith.constant 0 : index
    %c2_72 = arith.constant 2 : index
    %c1_73 = arith.constant 1 : index
    %c0_74 = arith.constant 0 : index
    %29 = vector.load %arg7[%c0_71, %c2_72, %c1_73, %c0_74] : memref<2x18x18x128xf32, #tpu.memory_space<vmem>>, vector<2x16x16x128xf32>
    %30 = arith.truncf %29 : vector<2x16x16x128xf32> to vector<2x16x16x128xbf16>
    %c0_75 = arith.constant 0 : index
    %c0_76 = arith.constant 0 : index
    %c0_77 = arith.constant 0 : index
    %c896 = arith.constant 896 : index
    %31 = vector.load %arg8[%c0_75, %c0_76, %c0_77, %c896] : memref<2x16x16x1152xbf16, #tpu.memory_space<vmem>>, vector<2x16x16x128xbf16>
    tpu.vector_store %arg8[%c0_75, %c0_76, %c0_77, %c896], %30 {strides = array<i32>} : memref<2x16x16x1152xbf16, #tpu.memory_space<vmem>>, vector<2x16x16x128xbf16>,
    %c0_78 = arith.constant 0 : index
    %c2_79 = arith.constant 2 : index
    %c2_80 = arith.constant 2 : index
    %c0_81 = arith.constant 0 : index
    %32 = vector.load %arg7[%c0_78, %c2_79, %c2_80, %c0_81] : memref<2x18x18x128xf32, #tpu.memory_space<vmem>>, vector<2x16x16x128xf32>
    %33 = arith.truncf %32 : vector<2x16x16x128xf32> to vector<2x16x16x128xbf16>
    %c0_82 = arith.constant 0 : index
    %c0_83 = arith.constant 0 : index
    %c0_84 = arith.constant 0 : index
    %c1024 = arith.constant 1024 : index
    %34 = vector.load %arg8[%c0_82, %c0_83, %c0_84, %c1024] : memref<2x16x16x1152xbf16, #tpu.memory_space<vmem>>, vector<2x16x16x128xbf16>
    tpu.vector_store %arg8[%c0_82, %c0_83, %c0_84, %c1024], %33 {strides = array<i32>} : memref<2x16x16x1152xbf16, #tpu.memory_space<vmem>>, vector<2x16x16x128xbf16>,
    %c0_85 = arith.constant 0 : index
    %c0_86 = arith.constant 0 : index
    %c0_87 = arith.constant 0 : index
    %c0_88 = arith.constant 0 : index
    %35 = vector.load %arg8[%c0_85, %c0_86, %c0_87, %c0_88] : memref<2x16x16x1152xbf16, #tpu.memory_space<vmem>>, vector<2x16x16x1152xbf16>
    %36 = vector.shape_cast %35 : vector<2x16x16x1152xbf16> to vector<512x1152xbf16>
    %c0_89 = arith.constant 0 : index
    %c0_90 = arith.constant 0 : index
    %37 = vector.load %arg2[%c0_89, %c0_90] : memref<1152x128xbf16, #tpu.memory_space<vmem>>, vector<1152x128xbf16>
    %cst_91 = arith.constant dense<0.000000e+00> : vector<512x128xf32>
    %38 = tpu.matmul %36, %37, %cst_91 {dimension_numbers = #tpu.dot_dimension_numbers<[1], [0], [0], [1], [0, 0, 1, 1], [], []>} : vector<512x1152xbf16>, vector<1152x128xbf16>, vector<512x128xf32> -> vector<512x128xf32>
    %c0_92 = arith.constant 0 : index
    %c0_93 = arith.constant 0 : index
    %39 = vector.load %arg3[%c0_92, %c0_93] : memref<1x128xf32, #tpu.memory_space<vmem>>, vector<1x128xf32>
    %40 = vector.broadcast %39 : vector<1x128xf32> to vector<512x128xf32>
    %41 = arith.addf %38, %40 : vector<512x128xf32>
    %42 = vector.shape_cast %41 : vector<512x128xf32> to vector<2x256x128xf32>
    %cst_94 = arith.constant dense<0.000000e+00> : vector<2x128xf32>
    %43 = vector.multi_reduction <add>, %42, %cst_94 [1] : vector<2x256x128xf32> to vector<2x128xf32>
    %44 = vector.shape_cast %43 : vector<2x128xf32> to vector<2x1x128xf32>
    %cst_95 = arith.constant 2.560000e+02 : f32
    %45 = vector.broadcast %cst_95 : f32 to vector<2x1x128xf32>
    %46 = arith.divf %44, %45 : vector<2x1x128xf32>
    %47 = vector.broadcast %46 : vector<2x1x128xf32> to vector<2x256x128xf32>
    %48 = arith.subf %42, %47 : vector<2x256x128xf32>
    %49 = arith.mulf %48, %48 : vector<2x256x128xf32>
    %cst_96 = arith.constant dense<0.000000e+00> : vector<2x128xf32>
    %50 = vector.multi_reduction <add>, %49, %cst_96 [1] : vector<2x256x128xf32> to vector<2x128xf32>
    %51 = vector.shape_cast %50 : vector<2x128xf32> to vector<2x1x128xf32>
    %cst_97 = arith.constant 2.560000e+02 : f32
    %52 = vector.broadcast %cst_97 : f32 to vector<2x1x128xf32>
    %53 = arith.divf %51, %52 : vector<2x1x128xf32>
    %cst_98 = arith.constant 9.99999974E-6 : f32
    %54 = vector.broadcast %cst_98 : f32 to vector<2x1x128xf32>
    %55 = arith.addf %53, %54 : vector<2x1x128xf32>
    %56 = math.rsqrt %55 : vector<2x1x128xf32>
    %57 = vector.broadcast %56 : vector<2x1x128xf32> to vector<2x256x128xf32>
    %58 = arith.mulf %48, %57 : vector<2x256x128xf32>
    %59 = vector.shape_cast %58 : vector<2x256x128xf32> to vector<512x128xf32>
    %cst_99 = arith.constant 0.000000e+00 : f32
    %60 = vector.broadcast %cst_99 : f32 to vector<512x128xf32>
    %61 = arith.maximumf %59, %60 : vector<512x128xf32>
    %62 = vector.shape_cast %61 : vector<512x128xf32> to vector<2x16x16x128xf32>
    %c0_100 = arith.constant 0 : index
    %c1_101 = arith.constant 1 : index
    %c1_102 = arith.constant 1 : index
    %c0_103 = arith.constant 0 : index
    %63 = vector.load %arg7[%c0_100, %c1_101, %c1_102, %c0_103] : memref<2x18x18x128xf32, #tpu.memory_space<vmem>>, vector<2x16x16x128xf32>
    tpu.vector_store %arg7[%c0_100, %c1_101, %c1_102, %c0_103], %62 {strides = array<i32>} : memref<2x18x18x128xf32, #tpu.memory_space<vmem>>, vector<2x16x16x128xf32>,
    %c0_104 = arith.constant 0 : index
    %c0_105 = arith.constant 0 : index
    %c0_106 = arith.constant 0 : index
    %c0_107 = arith.constant 0 : index
    %64 = vector.load %arg7[%c0_104, %c0_105, %c0_106, %c0_107] : memref<2x18x18x128xf32, #tpu.memory_space<vmem>>, vector<2x16x16x128xf32>
    %65 = arith.truncf %64 : vector<2x16x16x128xf32> to vector<2x16x16x128xbf16>
    %c0_108 = arith.constant 0 : index
    %c0_109 = arith.constant 0 : index
    %c0_110 = arith.constant 0 : index
    %c0_111 = arith.constant 0 : index
    %66 = vector.load %arg8[%c0_108, %c0_109, %c0_110, %c0_111] : memref<2x16x16x1152xbf16, #tpu.memory_space<vmem>>, vector<2x16x16x128xbf16>
    tpu.vector_store %arg8[%c0_108, %c0_109, %c0_110, %c0_111], %65 {strides = array<i32>} : memref<2x16x16x1152xbf16, #tpu.memory_space<vmem>>, vector<2x16x16x128xbf16>,
    %c0_112 = arith.constant 0 : index
    %c0_113 = arith.constant 0 : index
    %c1_114 = arith.constant 1 : index
    %c0_115 = arith.constant 0 : index
    %67 = vector.load %arg7[%c0_112, %c0_113, %c1_114, %c0_115] : memref<2x18x18x128xf32, #tpu.memory_space<vmem>>, vector<2x16x16x128xf32>
    %68 = arith.truncf %67 : vector<2x16x16x128xf32> to vector<2x16x16x128xbf16>
    %c0_116 = arith.constant 0 : index
    %c0_117 = arith.constant 0 : index
    %c0_118 = arith.constant 0 : index
    %c128_119 = arith.constant 128 : index
    %69 = vector.load %arg8[%c0_116, %c0_117, %c0_118, %c128_119] : memref<2x16x16x1152xbf16, #tpu.memory_space<vmem>>, vector<2x16x16x128xbf16>
    tpu.vector_store %arg8[%c0_116, %c0_117, %c0_118, %c128_119], %68 {strides = array<i32>} : memref<2x16x16x1152xbf16, #tpu.memory_space<vmem>>, vector<2x16x16x128xbf16>,
    %c0_120 = arith.constant 0 : index
    %c0_121 = arith.constant 0 : index
    %c2_122 = arith.constant 2 : index
    %c0_123 = arith.constant 0 : index
    %70 = vector.load %arg7[%c0_120, %c0_121, %c2_122, %c0_123] : memref<2x18x18x128xf32, #tpu.memory_space<vmem>>, vector<2x16x16x128xf32>
    %71 = arith.truncf %70 : vector<2x16x16x128xf32> to vector<2x16x16x128xbf16>
    %c0_124 = arith.constant 0 : index
    %c0_125 = arith.constant 0 : index
    %c0_126 = arith.constant 0 : index
    %c256_127 = arith.constant 256 : index
    %72 = vector.load %arg8[%c0_124, %c0_125, %c0_126, %c256_127] : memref<2x16x16x1152xbf16, #tpu.memory_space<vmem>>, vector<2x16x16x128xbf16>
    tpu.vector_store %arg8[%c0_124, %c0_125, %c0_126, %c256_127], %71 {strides = array<i32>} : memref<2x16x16x1152xbf16, #tpu.memory_space<vmem>>, vector<2x16x16x128xbf16>,
    %c0_128 = arith.constant 0 : index
    %c1_129 = arith.constant 1 : index
    %c0_130 = arith.constant 0 : index
    %c0_131 = arith.constant 0 : index
    %73 = vector.load %arg7[%c0_128, %c1_129, %c0_130, %c0_131] : memref<2x18x18x128xf32, #tpu.memory_space<vmem>>, vector<2x16x16x128xf32>
    %74 = arith.truncf %73 : vector<2x16x16x128xf32> to vector<2x16x16x128xbf16>
    %c0_132 = arith.constant 0 : index
    %c0_133 = arith.constant 0 : index
    %c0_134 = arith.constant 0 : index
    %c384_135 = arith.constant 384 : index
    %75 = vector.load %arg8[%c0_132, %c0_133, %c0_134, %c384_135] : memref<2x16x16x1152xbf16, #tpu.memory_space<vmem>>, vector<2x16x16x128xbf16>
    tpu.vector_store %arg8[%c0_132, %c0_133, %c0_134, %c384_135], %74 {strides = array<i32>} : memref<2x16x16x1152xbf16, #tpu.memory_space<vmem>>, vector<2x16x16x128xbf16>,
    %c0_136 = arith.constant 0 : index
    %c1_137 = arith.constant 1 : index
    %c1_138 = arith.constant 1 : index
    %c0_139 = arith.constant 0 : index
    %76 = vector.load %arg7[%c0_136, %c1_137, %c1_138, %c0_139] : memref<2x18x18x128xf32, #tpu.memory_space<vmem>>, vector<2x16x16x128xf32>
    %77 = arith.truncf %76 : vector<2x16x16x128xf32> to vector<2x16x16x128xbf16>
    %c0_140 = arith.constant 0 : index
    %c0_141 = arith.constant 0 : index
    %c0_142 = arith.constant 0 : index
    %c512_143 = arith.constant 512 : index
    %78 = vector.load %arg8[%c0_140, %c0_141, %c0_142, %c512_143] : memref<2x16x16x1152xbf16, #tpu.memory_space<vmem>>, vector<2x16x16x128xbf16>
    tpu.vector_store %arg8[%c0_140, %c0_141, %c0_142, %c512_143], %77 {strides = array<i32>} : memref<2x16x16x1152xbf16, #tpu.memory_space<vmem>>, vector<2x16x16x128xbf16>,
    %c0_144 = arith.constant 0 : index
    %c1_145 = arith.constant 1 : index
    %c2_146 = arith.constant 2 : index
    %c0_147 = arith.constant 0 : index
    %79 = vector.load %arg7[%c0_144, %c1_145, %c2_146, %c0_147] : memref<2x18x18x128xf32, #tpu.memory_space<vmem>>, vector<2x16x16x128xf32>
    %80 = arith.truncf %79 : vector<2x16x16x128xf32> to vector<2x16x16x128xbf16>
    %c0_148 = arith.constant 0 : index
    %c0_149 = arith.constant 0 : index
    %c0_150 = arith.constant 0 : index
    %c640_151 = arith.constant 640 : index
    %81 = vector.load %arg8[%c0_148, %c0_149, %c0_150, %c640_151] : memref<2x16x16x1152xbf16, #tpu.memory_space<vmem>>, vector<2x16x16x128xbf16>
    tpu.vector_store %arg8[%c0_148, %c0_149, %c0_150, %c640_151], %80 {strides = array<i32>} : memref<2x16x16x1152xbf16, #tpu.memory_space<vmem>>, vector<2x16x16x128xbf16>,
    %c0_152 = arith.constant 0 : index
    %c2_153 = arith.constant 2 : index
    %c0_154 = arith.constant 0 : index
    %c0_155 = arith.constant 0 : index
    %82 = vector.load %arg7[%c0_152, %c2_153, %c0_154, %c0_155] : memref<2x18x18x128xf32, #tpu.memory_space<vmem>>, vector<2x16x16x128xf32>
    %83 = arith.truncf %82 : vector<2x16x16x128xf32> to vector<2x16x16x128xbf16>
    %c0_156 = arith.constant 0 : index
    %c0_157 = arith.constant 0 : index
    %c0_158 = arith.constant 0 : index
    %c768_159 = arith.constant 768 : index
    %84 = vector.load %arg8[%c0_156, %c0_157, %c0_158, %c768_159] : memref<2x16x16x1152xbf16, #tpu.memory_space<vmem>>, vector<2x16x16x128xbf16>
    tpu.vector_store %arg8[%c0_156, %c0_157, %c0_158, %c768_159], %83 {strides = array<i32>} : memref<2x16x16x1152xbf16, #tpu.memory_space<vmem>>, vector<2x16x16x128xbf16>,
    %c0_160 = arith.constant 0 : index
    %c2_161 = arith.constant 2 : index
    %c1_162 = arith.constant 1 : index
    %c0_163 = arith.constant 0 : index
    %85 = vector.load %arg7[%c0_160, %c2_161, %c1_162, %c0_163] : memref<2x18x18x128xf32, #tpu.memory_space<vmem>>, vector<2x16x16x128xf32>
    %86 = arith.truncf %85 : vector<2x16x16x128xf32> to vector<2x16x16x128xbf16>
    %c0_164 = arith.constant 0 : index
    %c0_165 = arith.constant 0 : index
    %c0_166 = arith.constant 0 : index
    %c896_167 = arith.constant 896 : index
    %87 = vector.load %arg8[%c0_164, %c0_165, %c0_166, %c896_167] : memref<2x16x16x1152xbf16, #tpu.memory_space<vmem>>, vector<2x16x16x128xbf16>
    tpu.vector_store %arg8[%c0_164, %c0_165, %c0_166, %c896_167], %86 {strides = array<i32>} : memref<2x16x16x1152xbf16, #tpu.memory_space<vmem>>, vector<2x16x16x128xbf16>,
    %c0_168 = arith.constant 0 : index
    %c2_169 = arith.constant 2 : index
    %c2_170 = arith.constant 2 : index
    %c0_171 = arith.constant 0 : index
    %88 = vector.load %arg7[%c0_168, %c2_169, %c2_170, %c0_171] : memref<2x18x18x128xf32, #tpu.memory_space<vmem>>, vector<2x16x16x128xf32>
    %89 = arith.truncf %88 : vector<2x16x16x128xf32> to vector<2x16x16x128xbf16>
    %c0_172 = arith.constant 0 : index
    %c0_173 = arith.constant 0 : index
    %c0_174 = arith.constant 0 : index
    %c1024_175 = arith.constant 1024 : index
    %90 = vector.load %arg8[%c0_172, %c0_173, %c0_174, %c1024_175] : memref<2x16x16x1152xbf16, #tpu.memory_space<vmem>>, vector<2x16x16x128xbf16>
    tpu.vector_store %arg8[%c0_172, %c0_173, %c0_174, %c1024_175], %89 {strides = array<i32>} : memref<2x16x16x1152xbf16, #tpu.memory_space<vmem>>, vector<2x16x16x128xbf16>,
    %c0_176 = arith.constant 0 : index
    %c0_177 = arith.constant 0 : index
    %c0_178 = arith.constant 0 : index
    %c0_179 = arith.constant 0 : index
    %91 = vector.load %arg8[%c0_176, %c0_177, %c0_178, %c0_179] : memref<2x16x16x1152xbf16, #tpu.memory_space<vmem>>, vector<2x16x16x1152xbf16>
    %92 = vector.shape_cast %91 : vector<2x16x16x1152xbf16> to vector<512x1152xbf16>
    %c0_180 = arith.constant 0 : index
    %c0_181 = arith.constant 0 : index
    %93 = vector.load %arg4[%c0_180, %c0_181] : memref<1152x128xbf16, #tpu.memory_space<vmem>>, vector<1152x128xbf16>
    %cst_182 = arith.constant dense<0.000000e+00> : vector<512x128xf32>
    %94 = tpu.matmul %92, %93, %cst_182 {dimension_numbers = #tpu.dot_dimension_numbers<[1], [0], [0], [1], [0, 0, 1, 1], [], []>} : vector<512x1152xbf16>, vector<1152x128xbf16>, vector<512x128xf32> -> vector<512x128xf32>
    %c0_183 = arith.constant 0 : index
    %c0_184 = arith.constant 0 : index
    %95 = vector.load %arg5[%c0_183, %c0_184] : memref<1x128xf32, #tpu.memory_space<vmem>>, vector<1x128xf32>
    %96 = vector.broadcast %95 : vector<1x128xf32> to vector<512x128xf32>
    %97 = arith.addf %94, %96 : vector<512x128xf32>
    %98 = vector.shape_cast %97 : vector<512x128xf32> to vector<2x256x128xf32>
    %cst_185 = arith.constant dense<0.000000e+00> : vector<2x128xf32>
    %99 = vector.multi_reduction <add>, %98, %cst_185 [1] : vector<2x256x128xf32> to vector<2x128xf32>
    %100 = vector.shape_cast %99 : vector<2x128xf32> to vector<2x1x128xf32>
    %cst_186 = arith.constant 2.560000e+02 : f32
    %101 = vector.broadcast %cst_186 : f32 to vector<2x1x128xf32>
    %102 = arith.divf %100, %101 : vector<2x1x128xf32>
    %103 = vector.broadcast %102 : vector<2x1x128xf32> to vector<2x256x128xf32>
    %104 = arith.subf %98, %103 : vector<2x256x128xf32>
    %105 = arith.mulf %104, %104 : vector<2x256x128xf32>
    %cst_187 = arith.constant dense<0.000000e+00> : vector<2x128xf32>
    %106 = vector.multi_reduction <add>, %105, %cst_187 [1] : vector<2x256x128xf32> to vector<2x128xf32>
    %107 = vector.shape_cast %106 : vector<2x128xf32> to vector<2x1x128xf32>
    %cst_188 = arith.constant 2.560000e+02 : f32
    %108 = vector.broadcast %cst_188 : f32 to vector<2x1x128xf32>
    %109 = arith.divf %107, %108 : vector<2x1x128xf32>
    %cst_189 = arith.constant 9.99999974E-6 : f32
    %110 = vector.broadcast %cst_189 : f32 to vector<2x1x128xf32>
    %111 = arith.addf %109, %110 : vector<2x1x128xf32>
    %112 = math.rsqrt %111 : vector<2x1x128xf32>
    %113 = vector.broadcast %112 : vector<2x1x128xf32> to vector<2x256x128xf32>
    %114 = arith.mulf %104, %113 : vector<2x256x128xf32>
    %115 = vector.shape_cast %114 : vector<2x256x128xf32> to vector<512x128xf32>
    %116 = vector.shape_cast %115 : vector<512x128xf32> to vector<2x16x16x128xf32>
    %c0_190 = arith.constant 0 : index
    %c0_191 = arith.constant 0 : index
    %c0_192 = arith.constant 0 : index
    %c0_193 = arith.constant 0 : index
    %117 = vector.load %arg1[%c0_190, %c0_191, %c0_192, %c0_193] : memref<2x16x16x128xf32, #tpu.memory_space<vmem>>, vector<2x16x16x128xf32>
    %118 = arith.addf %116, %117 : vector<2x16x16x128xf32>
    %c0_194 = arith.constant 0 : index
    %c0_195 = arith.constant 0 : index
    %c0_196 = arith.constant 0 : index
    %c0_197 = arith.constant 0 : index
    %119 = vector.load %arg6[%c0_194, %c0_195, %c0_196, %c0_197] : memref<2x16x16x128xf32, #tpu.memory_space<vmem>>, vector<2x16x16x128xf32>
    tpu.vector_store %arg6[%c0_194, %c0_195, %c0_196, %c0_197], %118 {strides = array<i32>} : memref<2x16x16x128xf32, #tpu.memory_space<vmem>>, vector<2x16x16x128xf32>,
    return
  }
  func.func @transform_0(%arg0: i32) -> (i32, i32, i32, i32) {
    %c0_i32 = arith.constant 0 : i32
    %c0_i32_0 = arith.constant 0 : i32
    %c0_i32_1 = arith.constant 0 : i32
    %c0_i32_2 = arith.constant 0 : i32
    return %arg0, %c0_i32, %c0_i32_0, %c0_i32_1 : i32, i32, i32, i32
  }
  func.func @transform_1(%arg0: i32) -> (i32, i32) {
    %c0_i32 = arith.constant 0 : i32
    %c0_i32_0 = arith.constant 0 : i32
    %c0_i32_1 = arith.constant 0 : i32
    return %c0_i32, %c0_i32_0 : i32, i32
  }
  func.func @transform_2(%arg0: i32) -> (i32, i32) {
    %c0_i32 = arith.constant 0 : i32
    %c0_i32_0 = arith.constant 0 : i32
    %c0_i32_1 = arith.constant 0 : i32
    return %c0_i32, %c0_i32_0 : i32, i32
  }
  func.func @transform_3(%arg0: i32) -> (i32, i32) {
    %c0_i32 = arith.constant 0 : i32
    %c0_i32_0 = arith.constant 0 : i32
    %c0_i32_1 = arith.constant 0 : i32
    return %c0_i32, %c0_i32_0 : i32, i32
  }
  func.func @transform_4(%arg0: i32) -> (i32, i32) {
    %c0_i32 = arith.constant 0 : i32
    %c0_i32_0 = arith.constant 0 : i32
    %c0_i32_1 = arith.constant 0 : i32
    return %c0_i32, %c0_i32_0 : i32, i32
  }
  func.func @transform_5(%arg0: i32) -> (i32, i32, i32, i32) {
    %c0_i32 = arith.constant 0 : i32
    %c0_i32_0 = arith.constant 0 : i32
    %c0_i32_1 = arith.constant 0 : i32
    %c0_i32_2 = arith.constant 0 : i32
    return %arg0, %c0_i32, %c0_i32_0, %c0_i32_1 : i32, i32, i32, i32
  }
}

</mosaic_0001>

<llo_original>
// kernel: resblock_forward.1
$region0: #{resblock_forward.1}
  #allocation0 [shape = 'u32[]', space=smem, size = 0x4, offset = 0x4, fixed_abs, tag = 'smem constant byte address 0x4 - core index']
  #allocation1 [shape = 'u32[144,128]{1,0:T(1,128)}', space=vmem, size = 0x12000, scoped, tag = 'internal scratch']
  #allocation2 [shape = 'f32[2,18,18,128]{3,2,1,0:T(8,128)}', space=vmem, size = 0x6c000, scoped, tag = 'scratch operand']
  #allocation3 [shape = 'bf16[2,16,16,1152]{3,2,1,0:T(16,128)(2,1)}', space=vmem, size = 0x120000, scoped, tag = 'scratch operand']
  %s0 = inlined_call_operand.vmem [shape: f32[4,16,16,128], index: 0, kind: input, shape index: {}]
  %s1 = inlined_call_operand.vmem [shape: bf16[1152,128], index: 1, kind: input, shape index: {}]
  %s2 = inlined_call_operand.vmem [shape: f32[1,128], index: 2, kind: input, shape index: {}]
  %s3 = inlined_call_operand.vmem [shape: bf16[1152,128], index: 3, kind: input, shape index: {}]
  %s4 = inlined_call_operand.vmem [shape: f32[1,128], index: 4, kind: input, shape index: {}]
  %s5 = inlined_call_operand.vmem [shape: f32[4,16,16,128], index: 5, kind: output, shape index: {}]
  %s6 = sld [smem:[#allocation0]]
  $region53: #{resblock_forward.1} parent=0
    _
  %s8 = ssub.s32 1, %s6
  %s9 = scalar_select 0, %s8, %s6
  loop: start=0, step=1, limit=4
  $region2: #{resblock_forward.1} parent=0 // loop_pre_header
    _
  $region3: #{resblock_forward.1} parent=0 // loop_header
    %s11 = sphi 0, %s15
    %p12 = scmp.ge.s32.totalorder %s11, 4
    %s21 = sphi 0, %s23
    %s24 = sphi 0, %s21
    %s25 = sphi 0, %s24
    %s41 = sphi 0, %s25
    %s45 = sphi 0, %s45
    %s47 = sphi 0, %s45
    %s48 = sphi 0, %s47
    %s62 = sphi 0, %s48
    %s66 = sphi 0, %s66
    %s68 = sphi 0, %s66
    %s69 = sphi 0, %s68
    %s83 = sphi 0, %s69
    %s87 = sphi 0, %s87
    %s89 = sphi 0, %s87
    %s90 = sphi 0, %s89
    %s104 = sphi 0, %s90
    %s108 = sphi 0, %s108
    %s110 = sphi 0, %s108
    %s111 = sphi 0, %s110
    %s125 = sphi 0, %s111
    %s131 = sphi 0, %s133
    %s134 = sphi 0, %s131
    %s135 = sphi 0, %s134
    %s151 = sphi 0, %s135
  $region4: #{resblock_forward.1} parent=0 // loop_header_branch
    %14 = sbr.rel (%p12) target = $region8
  $region5: #{resblock_forward.1} parent=0 // loop_body
    %s16 = ssub.s32 %s11, 1
    %s17 = ssub.s32 %s11, 2
    %s18 = sadd.s32 %s11, 1
    %s19 = ssub.s32 %s11, %s18
    %p20 = scmp.eq.s32.totalorder %s19, 0
    %s22 = sadd.s32 %s21, 1
    %s23 = scalar_select %p20, %s21, %s22
    %p26 = pneg %p20
    %p27 = scmp.eq.s32.totalorder %s11, 1
    %p28 = por %p26, %p27
    %p29 = scmp.ne.s32.totalorder %s21, %s24
    %p30 = scmp.eq.s32.totalorder %s11, 0
    %p31 = por %p29, %p30
    %p32 = scmp.ne.s32.totalorder %s21, %s24
    %p33 = scmp.eq.s32.totalorder %s16, 1
    %p34 = por %p32, %p33
    %p35 = scmp.ne.s32.totalorder %s24, %s25
    %p36 = scmp.eq.s32.totalorder %s16, 0
    %p37 = por %p35, %p36
    %p38 = scmp.ne.s32.totalorder %s24, %s25
    %p39 = scmp.eq.s32.totalorder %s17, 1
    %p40 = por %p38, %p39
    %p42 = scmp.ne.s32.totalorder %s25, %s41
    %p43 = scmp.eq.s32.totalorder %s17, 0
    %p44 = por %p42, %p43
    %s46 = sadd.s32 %s45, 1
    %p49 = scmp.eq.s32.totalorder %s11, 1
    %p50 = scmp.ne.s32.totalorder %s45, %s47
    %p51 = scmp.eq.s32.totalorder %s11, 0
    %p52 = por %p50, %p51
    %p53 = scmp.ne.s32.totalorder %s45, %s47
    %p54 = scmp.eq.s32.totalorder %s16, 1
    %p55 = por %p53, %p54
    %p56 = scmp.ne.s32.totalorder %s47, %s48
    %p57 = scmp.eq.s32.totalorder %s16, 0
    %p58 = por %p56, %p57
    %p59 = scmp.ne.s32.totalorder %s47, %s48
    %p60 = scmp.eq.s32.totalorder %s17, 1
    %p61 = por %p59, %p60
    %p63 = scmp.ne.s32.totalorder %s48, %s62
    %p64 = scmp.eq.s32.totalorder %s17, 0
    %p65 = por %p63, %p64
    %s67 = sadd.s32 %s66, 1
    %p70 = scmp.eq.s32.totalorder %s11, 1
    %p71 = scmp.ne.s32.totalorder %s66, %s68
    %p72 = scmp.eq.s32.totalorder %s11, 0
    %p73 = por %p71, %p72
    %p74 = scmp.ne.s32.totalorder %s66, %s68
    %p75 = scmp.eq.s32.totalorder %s16, 1
    %p76 = por %p74, %p75
    %p77 = scmp.ne.s32.totalorder %s68, %s69
    %p78 = scmp.eq.s32.totalorder %s16, 0
    %p79 = por %p77, %p78
    %p80 = scmp.ne.s32.totalorder %s68, %s69
    %p81 = scmp.eq.s32.totalorder %s17, 1
    %p82 = por %p80, %p81
    %p84 = scmp.ne.s32.totalorder %s69, %s83
    %p85 = scmp.eq.s32.totalorder %s17, 0
    %p86 = por %p84, %p85
    %s88 = sadd.s32 %s87, 1
    %p91 = scmp.eq.s32.totalorder %s11, 1
    %p92 = scmp.ne.s32.totalorder %s87, %s89
    %p93 = scmp.eq.s32.totalorder %s11, 0
    %p94 = por %p92, %p93
    %p95 = scmp.ne.s32.totalorder %s87, %s89
    %p96 = scmp.eq.s32.totalorder %s16, 1
    %p97 = por %p95, %p96
    %p98 = scmp.ne.s32.totalorder %s89, %s90
    %p99 = scmp.eq.s32.totalorder %s16, 0
    %p100 = por %p98, %p99
    %p101 = scmp.ne.s32.totalorder %s89, %s90
    %p102 = scmp.eq.s32.totalorder %s17, 1
    %p103 = por %p101, %p102
    %p105 = scmp.ne.s32.totalorder %s90, %s104
    %p106 = scmp.eq.s32.totalorder %s17, 0
    %p107 = por %p105, %p106
    %s109 = sadd.s32 %s108, 1
    %p112 = scmp.eq.s32.totalorder %s11, 1
    %p113 = scmp.ne.s32.totalorder %s108, %s110
    %p114 = scmp.eq.s32.totalorder %s11, 0
    %p115 = por %p113, %p114
    %p116 = scmp.ne.s32.totalorder %s108, %s110
    %p117 = scmp.eq.s32.totalorder %s16, 1
    %p118 = por %p116, %p117
    %p119 = scmp.ne.s32.totalorder %s110, %s111
    %p120 = scmp.eq.s32.totalorder %s16, 0
    %p121 = por %p119, %p120
    %p122 = scmp.ne.s32.totalorder %s110, %s111
    %p123 = scmp.eq.s32.totalorder %s17, 1
    %p124 = por %p122, %p123
    %p126 = scmp.ne.s32.totalorder %s111, %s125
    %p127 = scmp.eq.s32.totalorder %s17, 0
    %p128 = por %p126, %p127
    %s129 = ssub.s32 %s11, %s18
    %p130 = scmp.eq.s32.totalorder %s129, 0
    %s132 = sadd.s32 %s131, 1
    %s133 = scalar_select %p130, %s131, %s132
    %p136 = pneg %p130
    %p137 = scmp.eq.s32.totalorder %s11, 1
    %p138 = por %p136, %p137
    %p139 = scmp.ne.s32.totalorder %s131, %s134
    %p140 = scmp.eq.s32.totalorder %s11, 0
    %p141 = por %p139, %p140
    %p142 = scmp.ne.s32.totalorder %s131, %s134
    %p143 = scmp.eq.s32.totalorder %s16, 1
    %p144 = por %p142, %p143
    %p145 = scmp.ne.s32.totalorder %s134, %s135
    %p146 = scmp.eq.s32.totalorder %s16, 0
    %p147 = por %p145, %p146
    %p148 = scmp.ne.s32.totalorder %s134, %s135
    %p149 = scmp.eq.s32.totalorder %s17, 1
    %p150 = por %p148, %p149
    %p152 = scmp.ne.s32.totalorder %s135, %s151
    %p153 = scmp.eq.s32.totalorder %s17, 0
    %p154 = por %p152, %p153
    %p155 = scmp.le.s32.totalorder 1, %s11
    %p156 = scmp.lt.s32.totalorder %s11, 3
    %p157 = pnand %p155, %p156
    %p158 = pneg %p157
    // Predicated region
    $region9: #{resblock_forward.1} parent=5 // pred_check
      _
    $region10: #{resblock_forward.1} parent=5 // pred_check_branch
      %160 = sbr.rel (%p157) target = $region12
    $region11: #{resblock_forward.1} parent=5 // pred_region
      %s161 = ssub.s32 %s11, 1
      // Predicated region
      $region13: #{resblock_forward.1} parent=11 // pred_check
        %p162 = pneg %p58
      $region14: #{resblock_forward.1} parent=11 // pred_check_branch
        %164 = sbr.rel (%p162) target = $region16
      $region15: #{resblock_forward.1} parent=11 // pred_region
        _
      $region16: #{resblock_forward.1} parent=11 // pred_fallthru
        _
      // Predicated region
      $region17: #{resblock_forward.1} parent=11 // pred_check
        %p165 = pneg %p79
      $region18: #{resblock_forward.1} parent=11 // pred_check_branch
        %167 = sbr.rel (%p165) target = $region20
      $region19: #{resblock_forward.1} parent=11 // pred_region
        _
      $region20: #{resblock_forward.1} parent=11 // pred_fallthru
        _
      // Predicated region
      $region21: #{resblock_forward.1} parent=11 // pred_check
        %p168 = pneg %p100
      $region22: #{resblock_forward.1} parent=11 // pred_check_branch
        %170 = sbr.rel (%p168) target = $region24
      $region23: #{resblock_forward.1} parent=11 // pred_region
        _
      $region24: #{resblock_forward.1} parent=11 // pred_fallthru
        _
      // Predicated region
      $region25: #{resblock_forward.1} parent=11 // pred_check
        %p171 = pneg %p121
      $region26: #{resblock_forward.1} parent=11 // pred_check_branch
        %173 = sbr.rel (%p171) target = $region28
      $region27: #{resblock_forward.1} parent=11 // pred_region
        _
      $region28: #{resblock_forward.1} parent=11 // pred_fallthru
        _
    $region12: #{resblock_forward.1} parent=5 // pred_fallthru
      _
    %p174 = scmp.lt.s32.totalorder %s11, 2
    // Predicated region
    $region29: #{resblock_forward.1} parent=5 // pred_check
      %p175 = pneg %p174
    $region30: #{resblock_forward.1} parent=5 // pred_check_branch
      %177 = sbr.rel (%p175) target = $region32
    $region31: #{resblock_forward.1} parent=5 // pred_region
      // Predicated region
      $region33: #{resblock_forward.1} parent=31 // pred_check
        %p178 = pneg %p31
      $region34: #{resblock_forward.1} parent=31 // pred_check_branch
        %180 = sbr.rel (%p178) target = $region36
      $region35: #{resblock_forward.1} parent=31 // pred_region
        %s181 = smul.u32 2, %s11
        %p182 = scmp.lt.s32.totalorder %s181, 3
        %s183 = scalar_select %p182, %s181, 3
        %s184 = smul.addr %s183, 32
        %s185 = smul.addr %s184, 8
        %s186 = scalar_lea.vmem %s0, %s185
        %s187 = smul.u32 2, %s11
      $region36: #{resblock_forward.1} parent=31 // pred_fallthru
        _
    $region32: #{resblock_forward.1} parent=5 // pred_fallthru
      _
    %p188 = scmp.le.s32.totalorder 1, %s11
    %p189 = scmp.lt.s32.totalorder %s11, 3
    %p190 = pnand %p188, %p189
    %p191 = pneg %p190
    // Predicated region
    $region37: #{resblock_forward.1} parent=5 // pred_check
      _
    $region38: #{resblock_forward.1} parent=5 // pred_check_branch
      %193 = sbr.rel (%p190) target = $region40
    $region39: #{resblock_forward.1} parent=5 // pred_region
      %s194 = ssub.s32 %s11, 1
      %s195 = smul.u32 2, %s16
      %p196 = scmp.lt.s32.totalorder %s195, 3
      %s197 = scalar_select %p196, %s195, 3
      %s198 = smul.addr %s197, 32
      %s199 = smul.addr %s198, 8
      %s200 = scalar_lea.vmem %s0, %s199
      %p201 = pneg %p37
      %p202 = pneg %p34
      %p203 = pneg %p58
      %p204 = pneg %p55
      %p205 = pneg %p79
      %p206 = pneg %p76
      %p207 = pneg %p100
      %p208 = pneg %p97
      %p209 = pneg %p121
      %p210 = pneg %p118
      %p211 = pneg %p147
      %p212 = pneg %p144
      %s213 = smul.u32 2, %s16
      %p214 = scmp.lt.s32.totalorder %s213, 3
      %s215 = scalar_select %p214, %s213, 3
      %s216 = smul.addr %s215, 32
      %s217 = smul.addr %s216, 8
      %s218 = scalar_lea.vmem %s5, %s217
      %s219 = smul.u32 2, %s16
      %p220 = scmp.lt.s32.totalorder %s219, 3
      %s221 = scalar_select %p220, %s219, 3
      %s222 = smul.addr %s221, 32
      %s223 = smul.addr %s222, 8
      %s224 = scalar_lea.vmem %s0, %s223
      %s225 = smul.u32 2, %s16
      %s226 = smul.u32 2, %s16
      %p227 = scmp.lt.s32.totalorder %s226, 3
      %s228 = scalar_select %p227, %s226, 3
      %s229 = smul.addr %s228, 32
      %s230 = smul.addr %s229, 8
      %s231 = scalar_lea.vmem %s5, %s230
      %s232 = smul.u32 2, %s16
      %234 = vst [vmem:[#allocation2] sm:$0xff] 0.0
      %235 = vst [vmem:[#allocation2 + $0x8] sm:$0xff] 0.0
      %236 = vst [vmem:[#allocation2 + $0x10] sm:$0x3] 0.0
      %237 = vst [vmem:[#allocation2 + $0x1b0] sm:$0xff] 0.0
      %238 = vst [vmem:[#allocation2 + $0x1b8] sm:$0xff] 0.0
      %239 = vst [vmem:[#allocation2 + $0x1c0] sm:$0x3] 0.0
      %s240 = scalar_lea.vmem [#allocation2], 408
      %241 = vst [vmem:[%s240] sm:$0xff] 0.0
      %242 = vst [vmem:[%s240 + $0x8] sm:$0xff] 0.0
      %243 = vst [vmem:[%s240 + $0x10] sm:$0x3] 0.0
      %244 = vst [vmem:[%s240 + $0x1b0] sm:$0xff] 0.0
      %245 = vst [vmem:[%s240 + $0x1b8] sm:$0xff] 0.0
      %246 = vst [vmem:[%s240 + $0x1c0] sm:$0x3] 0.0
      %247 = vst [vmem:[#allocation2] sm:$0x1] 0.0
      %248 = vst [vmem:[#allocation2 + $0x18] sm:$0x1] 0.0
      %249 = vst [vmem:[#allocation2 + $0x30] sm:$0x1] 0.0
      %250 = vst [vmem:[#allocation2 + $0x48] sm:$0x1] 0.0
      %251 = vst [vmem:[#allocation2 + $0x60] sm:$0x1] 0.0
      %252 = vst [vmem:[#allocation2 + $0x78] sm:$0x1] 0.0
      %253 = vst [vmem:[#allocation2 + $0x90] sm:$0x1] 0.0
      %254 = vst [vmem:[#allocation2 + $0xa8] sm:$0x1] 0.0
      %255 = vst [vmem:[#allocation2 + $0xc0] sm:$0x1] 0.0
      %256 = vst [vmem:[#allocation2 + $0xd8] sm:$0x1] 0.0
      %257 = vst [vmem:[#allocation2 + $0xf0] sm:$0x1] 0.0
      %258 = vst [vmem:[#allocation2 + $0x108] sm:$0x1] 0.0
      %259 = vst [vmem:[#allocation2 + $0x120] sm:$0x1] 0.0
      %260 = vst [vmem:[#allocation2 + $0x138] sm:$0x1] 0.0
      %261 = vst [vmem:[#allocation2 + $0x150] sm:$0x1] 0.0
      %262 = vst [vmem:[#allocation2 + $0x168] sm:$0x1] 0.0
      %263 = vst [vmem:[#allocation2 + $0x180] sm:$0x1] 0.0
      %264 = vst [vmem:[#allocation2 + $0x198] sm:$0x1] 0.0
      %265 = vst [vmem:[#allocation2 + $0x1b0] sm:$0x1] 0.0
      %266 = vst [vmem:[#allocation2 + $0x1c8] sm:$0x1] 0.0
      %267 = vst [vmem:[#allocation2 + $0x1e0] sm:$0x1] 0.0
      %268 = vst [vmem:[#allocation2 + $0x1f8] sm:$0x1] 0.0
      %269 = vst [vmem:[#allocation2 + $0x210] sm:$0x1] 0.0
      %270 = vst [vmem:[#allocation2 + $0x228] sm:$0x1] 0.0
      %271 = vst [vmem:[#allocation2 + $0x240] sm:$0x1] 0.0
      %272 = vst [vmem:[#allocation2 + $0x258] sm:$0x1] 0.0
      %273 = vst [vmem:[#allocation2 + $0x270] sm:$0x1] 0.0
      %274 = vst [vmem:[#allocation2 + $0x288] sm:$0x1] 0.0
      %275 = vst [vmem:[#allocation2 + $0x2a0] sm:$0x1] 0.0
      %276 = vst [vmem:[#allocation2 + $0x2b8] sm:$0x1] 0.0
      %277 = vst [vmem:[#allocation2 + $0x2d0] sm:$0x1] 0.0
      %278 = vst [vmem:[#allocation2 + $0x2e8] sm:$0x1] 0.0
      %279 = vst [vmem:[#allocation2 + $0x300] sm:$0x1] 0.0
      %280 = vst [vmem:[#allocation2 + $0x318] sm:$0x1] 0.0
      %281 = vst [vmem:[#allocation2 + $0x330] sm:$0x1] 0.0
      %282 = vst [vmem:[#allocation2 + $0x348] sm:$0x1] 0.0
      %283 = vst [vmem:[#allocation2 + $0x11] sm:$0x1] 0.0
      %284 = vst [vmem:[#allocation2 + $0x29] sm:$0x1] 0.0
      %285 = vst [vmem:[#allocation2 + $0x41] sm:$0x1] 0.0
      %286 = vst [vmem:[#allocation2 + $0x59] sm:$0x1] 0.0
      %287 = vst [vmem:[#allocation2 + $0x71] sm:$0x1] 0.0
      %288 = vst [vmem:[#allocation2 + $0x89] sm:$0x1] 0.0
      %289 = vst [vmem:[#allocation2 + $0xa1] sm:$0x1] 0.0
      %290 = vst [vmem:[#allocation2 + $0xb9] sm:$0x1] 0.0
      %291 = vst [vmem:[#allocation2 + $0xd1] sm:$0x1] 0.0
      %292 = vst [vmem:[#allocation2 + $0xe9] sm:$0x1] 0.0
      %293 = vst [vmem:[#allocation2 + $0x101] sm:$0x1] 0.0
      %294 = vst [vmem:[#allocation2 + $0x119] sm:$0x1] 0.0
      %295 = vst [vmem:[#allocation2 + $0x131] sm:$0x1] 0.0
      %296 = vst [vmem:[#allocation2 + $0x149] sm:$0x1] 0.0
      %297 = vst [vmem:[#allocation2 + $0x161] sm:$0x1] 0.0
      %298 = vst [vmem:[#allocation2 + $0x179] sm:$0x1] 0.0
      %299 = vst [vmem:[#allocation2 + $0x191] sm:$0x1] 0.0
      %300 = vst [vmem:[#allocation2 + $0x1a9] sm:$0x1] 0.0
      %301 = vst [vmem:[#allocation2 + $0x1c1] sm:$0x1] 0.0
      %302 = vst [vmem:[#allocation2 + $0x1d9] sm:$0x1] 0.0
      %303 = vst [vmem:[#allocation2 + $0x1f1] sm:$0x1] 0.0
      %304 = vst [vmem:[#allocation2 + $0x209] sm:$0x1] 0.0
      %305 = vst [vmem:[#allocation2 + $0x221] sm:$0x1] 0.0
      %306 = vst [vmem:[#allocation2 + $0x239] sm:$0x1] 0.0
      %307 = vst [vmem:[#allocation2 + $0x251] sm:$0x1] 0.0
      %308 = vst [vmem:[#allocation2 + $0x269] sm:$0x1] 0.0
      %309 = vst [vmem:[#allocation2 + $0x281] sm:$0x1] 0.0
      %310 = vst [vmem:[#allocation2 + $0x299] sm:$0x1] 0.0
      %311 = vst [vmem:[#allocation2 + $0x2b1] sm:$0x1] 0.0
      %312 = vst [vmem:[#allocation2 + $0x2c9] sm:$0x1] 0.0
      %313 = vst [vmem:[#allocation2 + $0x2e1] sm:$0x1] 0.0
      %314 = vst [vmem:[#allocation2 + $0x2f9] sm:$0x1] 0.0
      %315 = vst [vmem:[#allocation2 + $0x311] sm:$0x1] 0.0
      %316 = vst [vmem:[#allocation2 + $0x329] sm:$0x1] 0.0
      %317 = vst [vmem:[#allocation2 + $0x341] sm:$0x1] 0.0
      %318 = vst [vmem:[#allocation2 + $0x359] sm:$0x1] 0.0
      %v319 = vld [vmem:[%s224] sm:$0xff]
      %v320 = vld [vmem:[%s224 + $0x8] sm:$0xff]
      %v321 = vld [vmem:[%s224 + $0x10] sm:$0xff]
      %v322 = vld [vmem:[%s224 + $0x18] sm:$0xff]
      %v323 = vld [vmem:[%s224 + $0x20] sm:$0xff]
      %v324 = vld [vmem:[%s224 + $0x28] sm:$0xff]
      %v325 = vld [vmem:[%s224 + $0x30] sm:$0xff]
      %v326 = vld [vmem:[%s224 + $0x38] sm:$0xff]
      %v327 = vld [vmem:[%s224 + $0x40] sm:$0xff]
      %v328 = vld [vmem:[%s224 + $0x48] sm:$0xff]
      %v329 = vld [vmem:[%s224 + $0x50] sm:$0xff]
      %v330 = vld [vmem:[%s224 + $0x58] sm:$0xff]
      %v331 = vld [vmem:[%s224 + $0x60] sm:$0xff]
      %v332 = vld [vmem:[%s224 + $0x68] sm:$0xff]
      %v333 = vld [vmem:[%s224 + $0x70] sm:$0xff]
      %v334 = vld [vmem:[%s224 + $0x78] sm:$0xff]
      %v335 = vld [vmem:[%s224 + $0x80] sm:$0xff]
      %v336 = vld [vmem:[%s224 + $0x88] sm:$0xff]
      %v337 = vld [vmem:[%s224 + $0x90] sm:$0xff]
      %v338 = vld [vmem:[%s224 + $0x98] sm:$0xff]
      %v339 = vld [vmem:[%s224 + $0xa0] sm:$0xff]
      %v340 = vld [vmem:[%s224 + $0xa8] sm:$0xff]
      %v341 = vld [vmem:[%s224 + $0xb0] sm:$0xff]
      %v342 = vld [vmem:[%s224 + $0xb8] sm:$0xff]
      %v343 = vld [vmem:[%s224 + $0xc0] sm:$0xff]
      %v344 = vld [vmem:[%s224 + $0xc8] sm:$0xff]
      %v345 = vld [vmem:[%s224 + $0xd0] sm:$0xff]
      %v346 = vld [vmem:[%s224 + $0xd8] sm:$0xff]
      %v347 = vld [vmem:[%s224 + $0xe0] sm:$0xff]
      %v348 = vld [vmem:[%s224 + $0xe8] sm:$0xff]
      %v349 = vld [vmem:[%s224 + $0xf0] sm:$0xff]
      %v350 = vld [vmem:[%s224 + $0xf8] sm:$0xff]
      %v351 = vld [vmem:[%s224 + $0x100] sm:$0xff]
      %v352 = vld [vmem:[%s224 + $0x108] sm:$0xff]
      %v353 = vld [vmem:[%s224 + $0x110] sm:$0xff]
      %v354 = vld [vmem:[%s224 + $0x118] sm:$0xff]
      %v355 = vld [vmem:[%s224 + $0x120] sm:$0xff]
      %v356 = vld [vmem:[%s224 + $0x128] sm:$0xff]
      %v357 = vld [vmem:[%s224 + $0x130] sm:$0xff]
      %v358 = vld [vmem:[%s224 + $0x138] sm:$0xff]
      %v359 = vld [vmem:[%s224 + $0x140] sm:$0xff]
      %v360 = vld [vmem:[%s224 + $0x148] sm:$0xff]
      %v361 = vld [vmem:[%s224 + $0x150] sm:$0xff]
      %v362 = vld [vmem:[%s224 + $0x158] sm:$0xff]
      %v363 = vld [vmem:[%s224 + $0x160] sm:$0xff]
      %v364 = vld [vmem:[%s224 + $0x168] sm:$0xff]
      %v365 = vld [vmem:[%s224 + $0x170] sm:$0xff]
      %v366 = vld [vmem:[%s224 + $0x178] sm:$0xff]
      %v367 = vld [vmem:[%s224 + $0x180] sm:$0xff]
      %v368 = vld [vmem:[%s224 + $0x188] sm:$0xff]
      %v369 = vld [vmem:[%s224 + $0x190] sm:$0xff]
      %v370 = vld [vmem:[%s224 + $0x198] sm:$0xff]
      %v371 = vld [vmem:[%s224 + $0x1a0] sm:$0xff]
      %v372 = vld [vmem:[%s224 + $0x1a8] sm:$0xff]
      %v373 = vld [vmem:[%s224 + $0x1b0] sm:$0xff]
      %v374 = vld [vmem:[%s224 + $0x1b8] sm:$0xff]
      %v375 = vld [vmem:[%s224 + $0x1c0] sm:$0xff]
      %v376 = vld [vmem:[%s224 + $0x1c8] sm:$0xff]
      %v377 = vld [vmem:[%s224 + $0x1d0] sm:$0xff]
      %v378 = vld [vmem:[%s224 + $0x1d8] sm:$0xff]
      %v379 = vld [vmem:[%s224 + $0x1e0] sm:$0xff]
      %v380 = vld [vmem:[%s224 + $0x1e8] sm:$0xff]
      %v381 = vld [vmem:[%s224 + $0x1f0] sm:$0xff]
      %v382 = vld [vmem:[%s224 + $0x1f8] sm:$0xff]
      %s383 = scalar_lea.vmem [#allocation2], 24
      %384 = vst [vmem:[%s383 + $0x1] sm:$0xff] %v319
      %385 = vst [vmem:[%s383 + $0x9] sm:$0xff] %v320
      %386 = vst [vmem:[%s383 + $0x19] sm:$0xff] %v321
      %387 = vst [vmem:[%s383 + $0x21] sm:$0xff] %v322
      %388 = vst [vmem:[%s383 + $0x31] sm:$0xff] %v323
      %389 = vst [vmem:[%s383 + $0x39] sm:$0xff] %v324
      %390 = vst [vmem:[%s383 + $0x49] sm:$0xff] %v325
      %391 = vst [vmem:[%s383 + $0x51] sm:$0xff] %v326
      %392 = vst [vmem:[%s383 + $0x61] sm:$0xff] %v327
      %393 = vst [vmem:[%s383 + $0x69] sm:$0xff] %v328
      %394 = vst [vmem:[%s383 + $0x79] sm:$0xff] %v329
      %395 = vst [vmem:[%s383 + $0x81] sm:$0xff] %v330
      %396 = vst [vmem:[%s383 + $0x91] sm:$0xff] %v331
      %397 = vst [vmem:[%s383 + $0x99] sm:$0xff] %v332
      %398 = vst [vmem:[%s383 + $0xa9] sm:$0xff] %v333
      %399 = vst [vmem:[%s383 + $0xb1] sm:$0xff] %v334
      %400 = vst [vmem:[%s383 + $0xc1] sm:$0xff] %v335
      %401 = vst [vmem:[%s383 + $0xc9] sm:$0xff] %v336
      %402 = vst [vmem:[%s383 + $0xd9] sm:$0xff] %v337
      %403 = vst [vmem:[%s383 + $0xe1] sm:$0xff] %v338
      %404 = vst [vmem:[%s383 + $0xf1] sm:$0xff] %v339
      %405 = vst [vmem:[%s383 + $0xf9] sm:$0xff] %v340
      %406 = vst [vmem:[%s383 + $0x109] sm:$0xff] %v341
      %407 = vst [vmem:[%s383 + $0x111] sm:$0xff] %v342
      %408 = vst [vmem:[%s383 + $0x121] sm:$0xff] %v343
      %409 = vst [vmem:[%s383 + $0x129] sm:$0xff] %v344
      %410 = vst [vmem:[%s383 + $0x139] sm:$0xff] %v345
      %411 = vst [vmem:[%s383 + $0x141] sm:$0xff] %v346
      %412 = vst [vmem:[%s383 + $0x151] sm:$0xff] %v347
      %413 = vst [vmem:[%s383 + $0x159] sm:$0xff] %v348
      %414 = vst [vmem:[%s383 + $0x169] sm:$0xff] %v349
      %415 = vst [vmem:[%s383 + $0x171] sm:$0xff] %v350
      %416 = vst [vmem:[%s383 + $0x1b1] sm:$0xff] %v351
      %417 = vst [vmem:[%s383 + $0x1b9] sm:$0xff] %v352
      %418 = vst [vmem:[%s383 + $0x1c9] sm:$0xff] %v353
      %419 = vst [vmem:[%s383 + $0x1d1] sm:$0xff] %v354
      %420 = vst [vmem:[%s383 + $0x1e1] sm:$0xff] %v355
      %421 = vst [vmem:[%s383 + $0x1e9] sm:$0xff] %v356
      %422 = vst [vmem:[%s383 + $0x1f9] sm:$0xff] %v357
      %423 = vst [vmem:[%s383 + $0x201] sm:$0xff] %v358
      %424 = vst [vmem:[%s383 + $0x211] sm:$0xff] %v359
      %425 = vst [vmem:[%s383 + $0x219] sm:$0xff] %v360
      %426 = vst [vmem:[%s383 + $0x229] sm:$0xff] %v361
      %427 = vst [vmem:[%s383 + $0x231] sm:$0xff] %v362
      %428 = vst [vmem:[%s383 + $0x241] sm:$0xff] %v363
      %429 = vst [vmem:[%s383 + $0x249] sm:$0xff] %v364
      %430 = vst [vmem:[%s383 + $0x259] sm:$0xff] %v365
      %431 = vst [vmem:[%s383 + $0x261] sm:$0xff] %v366
      %432 = vst [vmem:[%s383 + $0x271] sm:$0xff] %v367
      %433 = vst [vmem:[%s383 + $0x279] sm:$0xff] %v368
      %434 = vst [vmem:[%s383 + $0x289] sm:$0xff] %v369
      %435 = vst [vmem:[%s383 + $0x291] sm:$0xff] %v370
      %436 = vst [vmem:[%s383 + $0x2a1] sm:$0xff] %v371
      %437 = vst [vmem:[%s383 + $0x2a9] sm:$0xff] %v372
      %438 = vst [vmem:[%s383 + $0x2b9] sm:$0xff] %v373
      %439 = vst [vmem:[%s383 + $0x2c1] sm:$0xff] %v374
      %440 = vst [vmem:[%s383 + $0x2d1] sm:$0xff] %v375
      %441 = vst [vmem:[%s383 + $0x2d9] sm:$0xff] %v376
      %442 = vst [vmem:[%s383 + $0x2e9] sm:$0xff] %v377
      %443 = vst [vmem:[%s383 + $0x2f1] sm:$0xff] %v378
      %444 = vst [vmem:[%s383 + $0x301] sm:$0xff] %v379
      %445 = vst [vmem:[%s383 + $0x309] sm:$0xff] %v380
      %446 = vst [vmem:[%s383 + $0x319] sm:$0xff] %v381
      %447 = vst [vmem:[%s383 + $0x321] sm:$0xff] %v382
      %v448 = vld [vmem:[#allocation2] sm:$0xff]
      %v449 = vld [vmem:[#allocation2 + $0x8] sm:$0xff]
      %v450 = vld [vmem:[#allocation2 + $0x18] sm:$0xff]
      %v451 = vld [vmem:[#allocation2 + $0x20] sm:$0xff]
      %v452 = vld [vmem:[#allocation2 + $0x30] sm:$0xff]
      %v453 = vld [vmem:[#allocation2 + $0x38] sm:$0xff]
      %v454 = vld [vmem:[#allocation2 + $0x48] sm:$0xff]
      %v455 = vld [vmem:[#allocation2 + $0x50] sm:$0xff]
      %v456 = vld [vmem:[#allocation2 + $0x60] sm:$0xff]
      %v457 = vld [vmem:[#allocation2 + $0x68] sm:$0xff]
      %v458 = vld [vmem:[#allocation2 + $0x78] sm:$0xff]
      %v459 = vld [vmem:[#allocation2 + $0x80] sm:$0xff]
      %v460 = vld [vmem:[#allocation2 + $0x90] sm:$0xff]
      %v461 = vld [vmem:[#allocation2 + $0x98] sm:$0xff]
      %v462 = vld [vmem:[#allocation2 + $0xa8] sm:$0xff]
      %v463 = vld [vmem:[#allocation2 + $0xb0] sm:$0xff]
      %v464 = vld [vmem:[#allocation2 + $0xc0] sm:$0xff]
      %v465 = vld [vmem:[#allocation2 + $0xc8] sm:$0xff]
      %v466 = vld [vmem:[#allocation2 + $0xd8] sm:$0xff]
      %v467 = vld [vmem:[#allocation2 + $0xe0] sm:$0xff]
      %v468 = vld [vmem:[#allocation2 + $0xf0] sm:$0xff]
      %v469 = vld [vmem:[#allocation2 + $0xf8] sm:$0xff]
      %v470 = vld [vmem:[#allocation2 + $0x108] sm:$0xff]
      %v471 = vld [vmem:[#allocation2 + $0x110] sm:$0xff]
      %v472 = vld [vmem:[#allocation2 + $0x120] sm:$0xff]
      %v473 = vld [vmem:[#allocation2 + $0x128] sm:$0xff]
      %v474 = vld [vmem:[#allocation2 + $0x138] sm:$0xff]
      %v475 = vld [vmem:[#allocation2 + $0x140] sm:$0xff]
      %v476 = vld [vmem:[#allocation2 + $0x150] sm:$0xff]
      %v477 = vld [vmem:[#allocation2 + $0x158] sm:$0xff]
      %v478 = vld [vmem:[#allocation2 + $0x168] sm:$0xff]
      %v479 = vld [vmem:[#allocation2 + $0x170] sm:$0xff]
      %v480 = vld [vmem:[#allocation2 + $0x1b0] sm:$0xff]
      %v481 = vld [vmem:[#allocation2 + $0x1b8] sm:$0xff]
      %v482 = vld [vmem:[#allocation2 + $0x1c8] sm:$0xff]
      %v483 = vld [vmem:[#allocation2 + $0x1d0] sm:$0xff]
      %v484 = vld [vmem:[#allocation2 + $0x1e0] sm:$0xff]
      %v485 = vld [vmem:[#allocation2 + $0x1e8] sm:$0xff]
      %v486 = vld [vmem:[#allocation2 + $0x1f8] sm:$0xff]
      %v487 = vld [vmem:[#allocation2 + $0x200] sm:$0xff]
      %v488 = vld [vmem:[#allocation2 + $0x210] sm:$0xff]
      %v489 = vld [vmem:[#allocation2 + $0x218] sm:$0xff]
      %v490 = vld [vmem:[#allocation2 + $0x228] sm:$0xff]
      %v491 = vld [vmem:[#allocation2 + $0x230] sm:$0xff]
      %v492 = vld [vmem:[#allocation2 + $0x240] sm:$0xff]
      %v493 = vld [vmem:[#allocation2 + $0x248] sm:$0xff]
      %v494 = vld [vmem:[#allocation2 + $0x258] sm:$0xff]
      %v495 = vld [vmem:[#allocation2 + $0x260] sm:$0xff]
      %v496 = vld [vmem:[#allocation2 + $0x270] sm:$0xff]
      %v497 = vld [vmem:[#allocation2 + $0x278] sm:$0xff]
      %v498 = vld [vmem:[#allocation2 + $0x288] sm:$0xff]
      %v499 = vld [vmem:[#allocation2 + $0x290] sm:$0xff]
      %v500 = vld [vmem:[#allocation2 + $0x2a0] sm:$0xff]
      %v501 = vld [vmem:[#allocation2 + $0x2a8] sm:$0xff]
      %v502 = vld [vmem:[#allocation2 + $0x2b8] sm:$0xff]
      %v503 = vld [vmem:[#allocation2 + $0x2c0] sm:$0xff]
      %v504 = vld [vmem:[#allocation2 + $0x2d0] sm:$0xff]
      %v505 = vld [vmem:[#allocation2 + $0x2d8] sm:$0xff]
      %v506 = vld [vmem:[#allocation2 + $0x2e8] sm:$0xff]
      %v507 = vld [vmem:[#allocation2 + $0x2f0] sm:$0xff]
      %v508 = vld [vmem:[#allocation2 + $0x300] sm:$0xff]
      %v509 = vld [vmem:[#allocation2 + $0x308] sm:$0xff]
      %v510 = vld [vmem:[#allocation2 + $0x318] sm:$0xff]
      %v511 = vld [vmem:[#allocation2 + $0x320] sm:$0xff]
      %v512 = vpack.c.bf16 %v449, %v448
      %v513 = vpack.c.bf16 %v451, %v450
      %v514 = vpack.c.bf16 %v453, %v452
      %v515 = vpack.c.bf16 %v455, %v454
      %v516 = vpack.c.bf16 %v457, %v456
      %v517 = vpack.c.bf16 %v459, %v458
      %v518 = vpack.c.bf16 %v461, %v460
      %v519 = vpack.c.bf16 %v463, %v462
      %v520 = vpack.c.bf16 %v465, %v464
      %v521 = vpack.c.bf16 %v467, %v466
      %v522 = vpack.c.bf16 %v469, %v468
      %v523 = vpack.c.bf16 %v471, %v470
      %v524 = vpack.c.bf16 %v473, %v472
      %v525 = vpack.c.bf16 %v475, %v474
      %v526 = vpack.c.bf16 %v477, %v476
      %v527 = vpack.c.bf16 %v479, %v478
      %v528 = vpack.c.bf16 %v481, %v480
      %v529 = vpack.c.bf16 %v483, %v482
      %v530 = vpack.c.bf16 %v485, %v484
      %v531 = vpack.c.bf16 %v487, %v486
      %v532 = vpack.c.bf16 %v489, %v488
      %v533 = vpack.c.bf16 %v491, %v490
      %v534 = vpack.c.bf16 %v493, %v492
      %v535 = vpack.c.bf16 %v495, %v494
      %v536 = vpack.c.bf16 %v497, %v496
      %v537 = vpack.c.bf16 %v499, %v498
      %v538 = vpack.c.bf16 %v501, %v500
      %v539 = vpack.c.bf16 %v503, %v502
      %v540 = vpack.c.bf16 %v505, %v504
      %v541 = vpack.c.bf16 %v507, %v506
      %v542 = vpack.c.bf16 %v509, %v508
      %v543 = vpack.c.bf16 %v511, %v510
      %544 = vst [vmem:[#allocation3] sm:$0xff] %v512
      %545 = vst [vmem:[#allocation3 + $0x48] sm:$0xff] %v513
      %546 = vst [vmem:[#allocation3 + $0x90] sm:$0xff] %v514
      %547 = vst [vmem:[#allocation3 + $0xd8] sm:$0xff] %v515
      %548 = vst [vmem:[#allocation3 + $0x120] sm:$0xff] %v516
      %549 = vst [vmem:[#allocation3 + $0x168] sm:$0xff] %v517
      %550 = vst [vmem:[#allocation3 + $0x1b0] sm:$0xff] %v518
      %551 = vst [vmem:[#allocation3 + $0x1f8] sm:$0xff] %v519
      %552 = vst [vmem:[#allocation3 + $0x240] sm:$0xff] %v520
      %553 = vst [vmem:[#allocation3 + $0x288] sm:$0xff] %v521
      %554 = vst [vmem:[#allocation3 + $0x2d0] sm:$0xff] %v522
      %555 = vst [vmem:[#allocation3 + $0x318] sm:$0xff] %v523
      %556 = vst [vmem:[#allocation3 + $0x360] sm:$0xff] %v524
      %557 = vst [vmem:[#allocation3 + $0x3a8] sm:$0xff] %v525
      %558 = vst [vmem:[#allocation3 + $0x3f0] sm:$0xff] %v526
      %559 = vst [vmem:[#allocation3 + $0x438] sm:$0xff] %v527
      %560 = vst [vmem:[#allocation3 + $0x480] sm:$0xff] %v528
      %561 = vst [vmem:[#allocation3 + $0x4c8] sm:$0xff] %v529
      %562 = vst [vmem:[#allocation3 + $0x510] sm:$0xff] %v530
      %563 = vst [vmem:[#allocation3 + $0x558] sm:$0xff] %v531
      %564 = vst [vmem:[#allocation3 + $0x5a0] sm:$0xff] %v532
      %565 = vst [vmem:[#allocation3 + $0x5e8] sm:$0xff] %v533
      %566 = vst [vmem:[#allocation3 + $0x630] sm:$0xff] %v534
      %567 = vst [vmem:[#allocation3 + $0x678] sm:$0xff] %v535
      %568 = vst [vmem:[#allocation3 + $0x6c0] sm:$0xff] %v536
      %569 = vst [vmem:[#allocation3 + $0x708] sm:$0xff] %v537
      %570 = vst [vmem:[#allocation3 + $0x750] sm:$0xff] %v538
      %571 = vst [vmem:[#allocation3 + $0x798] sm:$0xff] %v539
      %572 = vst [vmem:[#allocation3 + $0x7e0] sm:$0xff] %v540
      %573 = vst [vmem:[#allocation3 + $0x828] sm:$0xff] %v541
      %574 = vst [vmem:[#allocation3 + $0x870] sm:$0xff] %v542
      %575 = vst [vmem:[#allocation3 + $0x8b8] sm:$0xff] %v543
      %v576 = vld [vmem:[#allocation2 + $0x1] sm:$0xff]
      %v577 = vld [vmem:[#allocation2 + $0x9] sm:$0xff]
      %v578 = vld [vmem:[#allocation2 + $0x19] sm:$0xff]
      %v579 = vld [vmem:[#allocation2 + $0x21] sm:$0xff]
      %v580 = vld [vmem:[#allocation2 + $0x31] sm:$0xff]
      %v581 = vld [vmem:[#allocation2 + $0x39] sm:$0xff]
      %v582 = vld [vmem:[#allocation2 + $0x49] sm:$0xff]
      %v583 = vld [vmem:[#allocation2 + $0x51] sm:$0xff]
      %v584 = vld [vmem:[#allocation2 + $0x61] sm:$0xff]
      %v585 = vld [vmem:[#allocation2 + $0x69] sm:$0xff]
      %v586 = vld [vmem:[#allocation2 + $0x79] sm:$0xff]
      %v587 = vld [vmem:[#allocation2 + $0x81] sm:$0xff]
      %v588 = vld [vmem:[#allocation2 + $0x91] sm:$0xff]
      %v589 = vld [vmem:[#allocation2 + $0x99] sm:$0xff]
      %v590 = vld [vmem:[#allocation2 + $0xa9] sm:$0xff]
      %v591 = vld [vmem:[#allocation2 + $0xb1] sm:$0xff]
      %v592 = vld [vmem:[#allocation2 + $0xc1] sm:$0xff]
      %v593 = vld [vmem:[#allocation2 + $0xc9] sm:$0xff]
      %v594 = vld [vmem:[#allocation2 + $0xd9] sm:$0xff]
      %v595 = vld [vmem:[#allocation2 + $0xe1] sm:$0xff]
      %v596 = vld [vmem:[#allocation2 + $0xf1] sm:$0xff]
      %v597 = vld [vmem:[#allocation2 + $0xf9] sm:$0xff]
      %v598 = vld [vmem:[#allocation2 + $0x109] sm:$0xff]
      %v599 = vld [vmem:[#allocation2 + $0x111] sm:$0xff]
      %v600 = vld [vmem:[#allocation2 + $0x121] sm:$0xff]
      %v601 = vld [vmem:[#allocation2 + $0x129] sm:$0xff]
      %v602 = vld [vmem:[#allocation2 + $0x139] sm:$0xff]
      %v603 = vld [vmem:[#allocation2 + $0x141] sm:$0xff]
      %v604 = vld [vmem:[#allocation2 + $0x151] sm:$0xff]
      %v605 = vld [vmem:[#allocation2 + $0x159] sm:$0xff]
      %v606 = vld [vmem:[#allocation2 + $0x169] sm:$0xff]
      %v607 = vld [vmem:[#allocation2 + $0x171] sm:$0xff]
      %v608 = vld [vmem:[#allocation2 + $0x1b1] sm:$0xff]
      %v609 = vld [vmem:[#allocation2 + $0x1b9] sm:$0xff]
      %v610 = vld [vmem:[#allocation2 + $0x1c9] sm:$0xff]
      %v611 = vld [vmem:[#allocation2 + $0x1d1] sm:$0xff]
      %v612 = vld [vmem:[#allocation2 + $0x1e1] sm:$0xff]
      %v613 = vld [vmem:[#allocation2 + $0x1e9] sm:$0xff]
      %v614 = vld [vmem:[#allocation2 + $0x1f9] sm:$0xff]
      %v615 = vld [vmem:[#allocation2 + $0x201] sm:$0xff]
      %v616 = vld [vmem:[#allocation2 + $0x211] sm:$0xff]
      %v617 = vld [vmem:[#allocation2 + $0x219] sm:$0xff]
      %v618 = vld [vmem:[#allocation2 + $0x229] sm:$0xff]
      %v619 = vld [vmem:[#allocation2 + $0x231] sm:$0xff]
      %v620 = vld [vmem:[#allocation2 + $0x241] sm:$0xff]
      %v621 = vld [vmem:[#allocation2 + $0x249] sm:$0xff]
      %v622 = vld [vmem:[#allocation2 + $0x259] sm:$0xff]
      %v623 = vld [vmem:[#allocation2 + $0x261] sm:$0xff]
      %v624 = vld [vmem:[#allocation2 + $0x271] sm:$0xff]
      %v625 = vld [vmem:[#allocation2 + $0x279] sm:$0xff]
      %v626 = vld [vmem:[#allocation2 + $0x289] sm:$0xff]
      %v627 = vld [vmem:[#allocation2 + $0x291] sm:$0xff]
      %v628 = vld [vmem:[#allocation2 + $0x2a1] sm:$0xff]
      %v629 = vld [vmem:[#allocation2 + $0x2a9] sm:$0xff]
      %v630 = vld [vmem:[#allocation2 + $0x2b9] sm:$0xff]
      %v631 = vld [vmem:[#allocation2 + $0x2c1] sm:$0xff]
      %v632 = vld [vmem:[#allocation2 + $0x2d1] sm:$0xff]
      %v633 = vld [vmem:[#allocation2 + $0x2d9] sm:$0xff]
      %v634 = vld [vmem:[#allocation2 + $0x2e9] sm:$0xff]
      %v635 = vld [vmem:[#allocation2 + $0x2f1] sm:$0xff]
      %v636 = vld [vmem:[#allocation2 + $0x301] sm:$0xff]
      %v637 = vld [vmem:[#allocation2 + $0x309] sm:$0xff]
      %v638 = vld [vmem:[#allocation2 + $0x319] sm:$0xff]
      %v639 = vld [vmem:[#allocation2 + $0x321] sm:$0xff]
      %v640 = vpack.c.bf16 %v577, %v576
      %v641 = vpack.c.bf16 %v579, %v578
      %v642 = vpack.c.bf16 %v581, %v580
      %v643 = vpack.c.bf16 %v583, %v582
      %v644 = vpack.c.bf16 %v585, %v584
      %v645 = vpack.c.bf16 %v587, %v586
      %v646 = vpack.c.bf16 %v589, %v588
      %v647 = vpack.c.bf16 %v591, %v590
      %v648 = vpack.c.bf16 %v593, %v592
      %v649 = vpack.c.bf16 %v595, %v594
      %v650 = vpack.c.bf16 %v597, %v596
      %v651 = vpack.c.bf16 %v599, %v598
      %v652 = vpack.c.bf16 %v601, %v600
      %v653 = vpack.c.bf16 %v603, %v602
      %v654 = vpack.c.bf16 %v605, %v604
      %v655 = vpack.c.bf16 %v607, %v606
      %v656 = vpack.c.bf16 %v609, %v608
      %v657 = vpack.c.bf16 %v611, %v610
      %v658 = vpack.c.bf16 %v613, %v612
      %v659 = vpack.c.bf16 %v615, %v614
      %v660 = vpack.c.bf16 %v617, %v616
      %v661 = vpack.c.bf16 %v619, %v618
      %v662 = vpack.c.bf16 %v621, %v620
      %v663 = vpack.c.bf16 %v623, %v622
      %v664 = vpack.c.bf16 %v625, %v624
      %v665 = vpack.c.bf16 %v627, %v626
      %v666 = vpack.c.bf16 %v629, %v628
      %v667 = vpack.c.bf16 %v631, %v630
      %v668 = vpack.c.bf16 %v633, %v632
      %v669 = vpack.c.bf16 %v635, %v634
      %v670 = vpack.c.bf16 %v637, %v636
      %v671 = vpack.c.bf16 %v639, %v638
      %672 = vst [vmem:[#allocation3 + $0x8] sm:$0xff] %v640
      %673 = vst [vmem:[#allocation3 + $0x50] sm:$0xff] %v641
      %674 = vst [vmem:[#allocation3 + $0x98] sm:$0xff] %v642
      %675 = vst [vmem:[#allocation3 + $0xe0] sm:$0xff] %v643
      %676 = vst [vmem:[#allocation3 + $0x128] sm:$0xff] %v644
      %677 = vst [vmem:[#allocation3 + $0x170] sm:$0xff] %v645
      %678 = vst [vmem:[#allocation3 + $0x1b8] sm:$0xff] %v646
      %679 = vst [vmem:[#allocation3 + $0x200] sm:$0xff] %v647
      %680 = vst [vmem:[#allocation3 + $0x248] sm:$0xff] %v648
      %681 = vst [vmem:[#allocation3 + $0x290] sm:$0xff] %v649
      %682 = vst [vmem:[#allocation3 + $0x2d8] sm:$0xff] %v650
      %683 = vst [vmem:[#allocation3 + $0x320] sm:$0xff] %v651
      %684 = vst [vmem:[#allocation3 + $0x368] sm:$0xff] %v652
      %685 = vst [vmem:[#allocation3 + $0x3b0] sm:$0xff] %v653
      %686 = vst [vmem:[#allocation3 + $0x3f8] sm:$0xff] %v654
      %687 = vst [vmem:[#allocation3 + $0x440] sm:$0xff] %v655
      %688 = vst [vmem:[#allocation3 + $0x488] sm:$0xff] %v656
      %689 = vst [vmem:[#allocation3 + $0x4d0] sm:$0xff] %v657
      %690 = vst [vmem:[#allocation3 + $0x518] sm:$0xff] %v658
      %691 = vst [vmem:[#allocation3 + $0x560] sm:$0xff] %v659
      %692 = vst [vmem:[#allocation3 + $0x5a8] sm:$0xff] %v660
      %693 = vst [vmem:[#allocation3 + $0x5f0] sm:$0xff] %v661
      %694 = vst [vmem:[#allocation3 + $0x638] sm:$0xff] %v662
      %695 = vst [vmem:[#allocation3 + $0x680] sm:$0xff] %v663
      %696 = vst [vmem:[#allocation3 + $0x6c8] sm:$0xff] %v664
      %697 = vst [vmem:[#allocation3 + $0x710] sm:$0xff] %v665
      %698 = vst [vmem:[#allocation3 + $0x758] sm:$0xff] %v666
      %699 = vst [vmem:[#allocation3 + $0x7a0] sm:$0xff] %v667
      %700 = vst [vmem:[#allocation3 + $0x7e8] sm:$0xff] %v668
      %701 = vst [vmem:[#allocation3 + $0x830] sm:$0xff] %v669
      %702 = vst [vmem:[#allocation3 + $0x878] sm:$0xff] %v670
      %703 = vst [vmem:[#allocation3 + $0x8c0] sm:$0xff] %v671
      %v704 = vld [vmem:[#allocation2 + $0x2] sm:$0xff]
      %v705 = vld [vmem:[#allocation2 + $0xa] sm:$0xff]
      %v706 = vld [vmem:[#allocation2 + $0x1a] sm:$0xff]
      %v707 = vld [vmem:[#allocation2 + $0x22] sm:$0xff]
      %v708 = vld [vmem:[#allocation2 + $0x32] sm:$0xff]
      %v709 = vld [vmem:[#allocation2 + $0x3a] sm:$0xff]
      %v710 = vld [vmem:[#allocation2 + $0x4a] sm:$0xff]
      %v711 = vld [vmem:[#allocation2 + $0x52] sm:$0xff]
      %v712 = vld [vmem:[#allocation2 + $0x62] sm:$0xff]
      %v713 = vld [vmem:[#allocation2 + $0x6a] sm:$0xff]
      %v714 = vld [vmem:[#allocation2 + $0x7a] sm:$0xff]
      %v715 = vld [vmem:[#allocation2 + $0x82] sm:$0xff]
      %v716 = vld [vmem:[#allocation2 + $0x92] sm:$0xff]
      %v717 = vld [vmem:[#allocation2 + $0x9a] sm:$0xff]
      %v718 = vld [vmem:[#allocation2 + $0xaa] sm:$0xff]
      %v719 = vld [vmem:[#allocation2 + $0xb2] sm:$0xff]
      %v720 = vld [vmem:[#allocation2 + $0xc2] sm:$0xff]
      %v721 = vld [vmem:[#allocation2 + $0xca] sm:$0xff]
      %v722 = vld [vmem:[#allocation2 + $0xda] sm:$0xff]
      %v723 = vld [vmem:[#allocation2 + $0xe2] sm:$0xff]
      %v724 = vld [vmem:[#allocation2 + $0xf2] sm:$0xff]
      %v725 = vld [vmem:[#allocation2 + $0xfa] sm:$0xff]
      %v726 = vld [vmem:[#allocation2 + $0x10a] sm:$0xff]
      %v727 = vld [vmem:[#allocation2 + $0x112] sm:$0xff]
      %v728 = vld [vmem:[#allocation2 + $0x122] sm:$0xff]
      %v729 = vld [vmem:[#allocation2 + $0x12a] sm:$0xff]
      %v730 = vld [vmem:[#allocation2 + $0x13a] sm:$0xff]
      %v731 = vld [vmem:[#allocation2 + $0x142] sm:$0xff]
      %v732 = vld [vmem:[#allocation2 + $0x152] sm:$0xff]
      %v733 = vld [vmem:[#allocation2 + $0x15a] sm:$0xff]
      %v734 = vld [vmem:[#allocation2 + $0x16a] sm:$0xff]
      %v735 = vld [vmem:[#allocation2 + $0x172] sm:$0xff]
      %v736 = vld [vmem:[#allocation2 + $0x1b2] sm:$0xff]
      %v737 = vld [vmem:[#allocation2 + $0x1ba] sm:$0xff]
      %v738 = vld [vmem:[#allocation2 + $0x1ca] sm:$0xff]
      %v739 = vld [vmem:[#allocation2 + $0x1d2] sm:$0xff]
      %v740 = vld [vmem:[#allocation2 + $0x1e2] sm:$0xff]
      %v741 = vld [vmem:[#allocation2 + $0x1ea] sm:$0xff]
      %v742 = vld [vmem:[#allocation2 + $0x1fa] sm:$0xff]
      %v743 = vld [vmem:[#allocation2 + $0x202] sm:$0xff]
      %v744 = vld [vmem:[#allocation2 + $0x212] sm:$0xff]
      %v745 = vld [vmem:[#allocation2 + $0x21a] sm:$0xff]
      %v746 = vld [vmem:[#allocation2 + $0x22a] sm:$0xff]
      %v747 = vld [vmem:[#allocation2 + $0x232] sm:$0xff]
      %v748 = vld [vmem:[#allocation2 + $0x242] sm:$0xff]
      %v749 = vld [vmem:[#allocation2 + $0x24a] sm:$0xff]
      %v750 = vld [vmem:[#allocation2 + $0x25a] sm:$0xff]
      %v751 = vld [vmem:[#allocation2 + $0x262] sm:$0xff]
      %v752 = vld [vmem:[#allocation2 + $0x272] sm:$0xff]
      %v753 = vld [vmem:[#allocation2 + $0x27a] sm:$0xff]
      %v754 = vld [vmem:[#allocation2 + $0x28a] sm:$0xff]
      %v755 = vld [vmem:[#allocation2 + $0x292] sm:$0xff]
      %v756 = vld [vmem:[#allocation2 + $0x2a2] sm:$0xff]
      %v757 = vld [vmem:[#allocation2 + $0x2aa] sm:$0xff]
      %v758 = vld [vmem:[#allocation2 + $0x2ba] sm:$0xff]
      %v759 = vld [vmem:[#allocation2 + $0x2c2] sm:$0xff]
      %v760 = vld [vmem:[#allocation2 + $0x2d2] sm:$0xff]
      %v761 = vld [vmem:[#allocation2 + $0x2da] sm:$0xff]
      %v762 = vld [vmem:[#allocation2 + $0x2ea] sm:$0xff]
      %v763 = vld [vmem:[#allocation2 + $0x2f2] sm:$0xff]
      %v764 = vld [vmem:[#allocation2 + $0x302] sm:$0xff]
      %v765 = vld [vmem:[#allocation2 + $0x30a] sm:$0xff]
      %v766 = vld [vmem:[#allocation2 + $0x31a] sm:$0xff]
      %v767 = vld [vmem:[#allocation2 + $0x322] sm:$0xff]
      %v768 = vpack.c.bf16 %v705, %v704
      %v769 = vpack.c.bf16 %v707, %v706
      %v770 = vpack.c.bf16 %v709, %v708
      %v771 = vpack.c.bf16 %v711, %v710
      %v772 = vpack.c.bf16 %v713, %v712
      %v773 = vpack.c.bf16 %v715, %v714
      %v774 = vpack.c.bf16 %v717, %v716
      %v775 = vpack.c.bf16 %v719, %v718
      %v776 = vpack.c.bf16 %v721, %v720
      %v777 = vpack.c.bf16 %v723, %v722
      %v778 = vpack.c.bf16 %v725, %v724
      %v779 = vpack.c.bf16 %v727, %v726
      %v780 = vpack.c.bf16 %v729, %v728
      %v781 = vpack.c.bf16 %v731, %v730
      %v782 = vpack.c.bf16 %v733, %v732
      %v783 = vpack.c.bf16 %v735, %v734
      %v784 = vpack.c.bf16 %v737, %v736
      %v785 = vpack.c.bf16 %v739, %v738
      %v786 = vpack.c.bf16 %v741, %v740
      %v787 = vpack.c.bf16 %v743, %v742
      %v788 = vpack.c.bf16 %v745, %v744
      %v789 = vpack.c.bf16 %v747, %v746
      %v790 = vpack.c.bf16 %v749, %v748
      %v791 = vpack.c.bf16 %v751, %v750
      %v792 = vpack.c.bf16 %v753, %v752
      %v793 = vpack.c.bf16 %v755, %v754
      %v794 = vpack.c.bf16 %v757, %v756
      %v795 = vpack.c.bf16 %v759, %v758
      %v796 = vpack.c.bf16 %v761, %v760
      %v797 = vpack.c.bf16 %v763, %v762
      %v798 = vpack.c.bf16 %v765, %v764
      %v799 = vpack.c.bf16 %v767, %v766
      %800 = vst [vmem:[#allocation3 + $0x10] sm:$0xff] %v768
      %801 = vst [vmem:[#allocation3 + $0x58] sm:$0xff] %v769
      %802 = vst [vmem:[#allocation3 + $0xa0] sm:$0xff] %v770
      %803 = vst [vmem:[#allocation3 + $0xe8] sm:$0xff] %v771
      %804 = vst [vmem:[#allocation3 + $0x130] sm:$0xff] %v772
      %805 = vst [vmem:[#allocation3 + $0x178] sm:$0xff] %v773
      %806 = vst [vmem:[#allocation3 + $0x1c0] sm:$0xff] %v774
      %807 = vst [vmem:[#allocation3 + $0x208] sm:$0xff] %v775
      %808 = vst [vmem:[#allocation3 + $0x250] sm:$0xff] %v776
      %809 = vst [vmem:[#allocation3 + $0x298] sm:$0xff] %v777
      %810 = vst [vmem:[#allocation3 + $0x2e0] sm:$0xff] %v778
      %811 = vst [vmem:[#allocation3 + $0x328] sm:$0xff] %v779
      %812 = vst [vmem:[#allocation3 + $0x370] sm:$0xff] %v780
      %813 = vst [vmem:[#allocation3 + $0x3b8] sm:$0xff] %v781
      %814 = vst [vmem:[#allocation3 + $0x400] sm:$0xff] %v782
      %815 = vst [vmem:[#allocation3 + $0x448] sm:$0xff] %v783
      %816 = vst [vmem:[#allocation3 + $0x490] sm:$0xff] %v784
      %817 = vst [vmem:[#allocation3 + $0x4d8] sm:$0xff] %v785
      %818 = vst [vmem:[#allocation3 + $0x520] sm:$0xff] %v786
      %819 = vst [vmem:[#allocation3 + $0x568] sm:$0xff] %v787
      %820 = vst [vmem:[#allocation3 + $0x5b0] sm:$0xff] %v788
      %821 = vst [vmem:[#allocation3 + $0x5f8] sm:$0xff] %v789
      %822 = vst [vmem:[#allocation3 + $0x640] sm:$0xff] %v790
      %823 = vst [vmem:[#allocation3 + $0x688] sm:$0xff] %v791
      %824 = vst [vmem:[#allocation3 + $0x6d0] sm:$0xff] %v792
      %825 = vst [vmem:[#allocation3 + $0x718] sm:$0xff] %v793
      %826 = vst [vmem:[#allocation3 + $0x760] sm:$0xff] %v794
      %827 = vst [vmem:[#allocation3 + $0x7a8] sm:$0xff] %v795
      %828 = vst [vmem:[#allocation3 + $0x7f0] sm:$0xff] %v796
      %829 = vst [vmem:[#allocation3 + $0x838] sm:$0xff] %v797
      %830 = vst [vmem:[#allocation3 + $0x880] sm:$0xff] %v798
      %831 = vst [vmem:[#allocation3 + $0x8c8] sm:$0xff] %v799
      %v832 = vld [vmem:[%s383] sm:$0xff]
      %v833 = vld [vmem:[%s383 + $0x8] sm:$0xff]
      %v834 = vld [vmem:[%s383 + $0x18] sm:$0xff]
      %v835 = vld [vmem:[%s383 + $0x20] sm:$0xff]
      %v836 = vld [vmem:[%s383 + $0x30] sm:$0xff]
      %v837 = vld [vmem:[%s383 + $0x38] sm:$0xff]
      %v838 = vld [vmem:[%s383 + $0x48] sm:$0xff]
      %v839 = vld [vmem:[%s383 + $0x50] sm:$0xff]
      %v840 = vld [vmem:[%s383 + $0x60] sm:$0xff]
      %v841 = vld [vmem:[%s383 + $0x68] sm:$0xff]
      %v842 = vld [vmem:[%s383 + $0x78] sm:$0xff]
      %v843 = vld [vmem:[%s383 + $0x80] sm:$0xff]
      %v844 = vld [vmem:[%s383 + $0x90] sm:$0xff]
      %v845 = vld [vmem:[%s383 + $0x98] sm:$0xff]
      %v846 = vld [vmem:[%s383 + $0xa8] sm:$0xff]
      %v847 = vld [vmem:[%s383 + $0xb0] sm:$0xff]
      %v848 = vld [vmem:[%s383 + $0xc0] sm:$0xff]
      %v849 = vld [vmem:[%s383 + $0xc8] sm:$0xff]
      %v850 = vld [vmem:[%s383 + $0xd8] sm:$0xff]
      %v851 = vld [vmem:[%s383 + $0xe0] sm:$0xff]
      %v852 = vld [vmem:[%s383 + $0xf0] sm:$0xff]
      %v853 = vld [vmem:[%s383 + $0xf8] sm:$0xff]
      %v854 = vld [vmem:[%s383 + $0x108] sm:$0xff]
      %v855 = vld [vmem:[%s383 + $0x110] sm:$0xff]
      %v856 = vld [vmem:[%s383 + $0x120] sm:$0xff]
      %v857 = vld [vmem:[%s383 + $0x128] sm:$0xff]
      %v858 = vld [vmem:[%s383 + $0x138] sm:$0xff]
      %v859 = vld [vmem:[%s383 + $0x140] sm:$0xff]
      %v860 = vld [vmem:[%s383 + $0x150] sm:$0xff]
      %v861 = vld [vmem:[%s383 + $0x158] sm:$0xff]
      %v862 = vld [vmem:[%s383 + $0x168] sm:$0xff]
      %v863 = vld [vmem:[%s383 + $0x170] sm:$0xff]
      %v864 = vld [vmem:[%s383 + $0x1b0] sm:$0xff]
      %v865 = vld [vmem:[%s383 + $0x1b8] sm:$0xff]
      %v866 = vld [vmem:[%s383 + $0x1c8] sm:$0xff]
      %v867 = vld [vmem:[%s383 + $0x1d0] sm:$0xff]
      %v868 = vld [vmem:[%s383 + $0x1e0] sm:$0xff]
      %v869 = vld [vmem:[%s383 + $0x1e8] sm:$0xff]
      %v870 = vld [vmem:[%s383 + $0x1f8] sm:$0xff]
      %v871 = vld [vmem:[%s383 + $0x200] sm:$0xff]
      %v872 = vld [vmem:[%s383 + $0x210] sm:$0xff]
      %v873 = vld [vmem:[%s383 + $0x218] sm:$0xff]
      %v874 = vld [vmem:[%s383 + $0x228] sm:$0xff]
      %v875 = vld [vmem:[%s383 + $0x230] sm:$0xff]
      %v876 = vld [vmem:[%s383 + $0x240] sm:$0xff]
      %v877 = vld [vmem:[%s383 + $0x248] sm:$0xff]
      %v878 = vld [vmem:[%s383 + $0x258] sm:$0xff]
      %v879 = vld [vmem:[%s383 + $0x260] sm:$0xff]
      %v880 = vld [vmem:[%s383 + $0x270] sm:$0xff]
      %v881 = vld [vmem:[%s383 + $0x278] sm:$0xff]
      %v882 = vld [vmem:[%s383 + $0x288] sm:$0xff]
      %v883 = vld [vmem:[%s383 + $0x290] sm:$0xff]
      %v884 = vld [vmem:[%s383 + $0x2a0] sm:$0xff]
      %v885 = vld [vmem:[%s383 + $0x2a8] sm:$0xff]
      %v886 = vld [vmem:[%s383 + $0x2b8] sm:$0xff]
      %v887 = vld [vmem:[%s383 + $0x2c0] sm:$0xff]
      %v888 = vld [vmem:[%s383 + $0x2d0] sm:$0xff]
      %v889 = vld [vmem:[%s383 + $0x2d8] sm:$0xff]
      %v890 = vld [vmem:[%s383 + $0x2e8] sm:$0xff]
      %v891 = vld [vmem:[%s383 + $0x2f0] sm:$0xff]
      %v892 = vld [vmem:[%s383 + $0x300] sm:$0xff]
      %v893 = vld [vmem:[%s383 + $0x308] sm:$0xff]
      %v894 = vld [vmem:[%s383 + $0x318] sm:$0xff]
      %v895 = vld [vmem:[%s383 + $0x320] sm:$0xff]
      %v896 = vpack.c.bf16 %v833, %v832
      %v897 = vpack.c.bf16 %v835, %v834
      %v898 = vpack.c.bf16 %v837, %v836
      %v899 = vpack.c.bf16 %v839, %v838
      %v900 = vpack.c.bf16 %v841, %v840
      %v901 = vpack.c.bf16 %v843, %v842
      %v902 = vpack.c.bf16 %v845, %v844
      %v903 = vpack.c.bf16 %v847, %v846
      %v904 = vpack.c.bf16 %v849, %v848
      %v905 = vpack.c.bf16 %v851, %v850
      %v906 = vpack.c.bf16 %v853, %v852
      %v907 = vpack.c.bf16 %v855, %v854
      %v908 = vpack.c.bf16 %v857, %v856
      %v909 = vpack.c.bf16 %v859, %v858
      %v910 = vpack.c.bf16 %v861, %v860
      %v911 = vpack.c.bf16 %v863, %v862
      %v912 = vpack.c.bf16 %v865, %v864
      %v913 = vpack.c.bf16 %v867, %v866
      %v914 = vpack.c.bf16 %v869, %v868
      %v915 = vpack.c.bf16 %v871, %v870
      %v916 = vpack.c.bf16 %v873, %v872
      %v917 = vpack.c.bf16 %v875, %v874
      %v918 = vpack.c.bf16 %v877, %v876
      %v919 = vpack.c.bf16 %v879, %v878
      %v920 = vpack.c.bf16 %v881, %v880
      %v921 = vpack.c.bf16 %v883, %v882
      %v922 = vpack.c.bf16 %v885, %v884
      %v923 = vpack.c.bf16 %v887, %v886
      %v924 = vpack.c.bf16 %v889, %v888
      %v925 = vpack.c.bf16 %v891, %v890
      %v926 = vpack.c.bf16 %v893, %v892
      %v927 = vpack.c.bf16 %v895, %v894
      %928 = vst [vmem:[#allocation3 + $0x18] sm:$0xff] %v896
      %929 = vst [vmem:[#allocation3 + $0x60] sm:$0xff] %v897
      %930 = vst [vmem:[#allocation3 + $0xa8] sm:$0xff] %v898
      %931 = vst [vmem:[#allocation3 + $0xf0] sm:$0xff] %v899
      %932 = vst [vmem:[#allocation3 + $0x138] sm:$0xff] %v900
      %933 = vst [vmem:[#allocation3 + $0x180] sm:$0xff] %v901
      %934 = vst [vmem:[#allocation3 + $0x1c8] sm:$0xff] %v902
      %935 = vst [vmem:[#allocation3 + $0x210] sm:$0xff] %v903
      %936 = vst [vmem:[#allocation3 + $0x258] sm:$0xff] %v904
      %937 = vst [vmem:[#allocation3 + $0x2a0] sm:$0xff] %v905
      %938 = vst [vmem:[#allocation3 + $0x2e8] sm:$0xff] %v906
      %939 = vst [vmem:[#allocation3 + $0x330] sm:$0xff] %v907
      %940 = vst [vmem:[#allocation3 + $0x378] sm:$0xff] %v908
      %941 = vst [vmem:[#allocation3 + $0x3c0] sm:$0xff] %v909
      %942 = vst [vmem:[#allocation3 + $0x408] sm:$0xff] %v910
      %943 = vst [vmem:[#allocation3 + $0x450] sm:$0xff] %v911
      %944 = vst [vmem:[#allocation3 + $0x498] sm:$0xff] %v912
      %945 = vst [vmem:[#allocation3 + $0x4e0] sm:$0xff] %v913
      %946 = vst [vmem:[#allocation3 + $0x528] sm:$0xff] %v914
      %947 = vst [vmem:[#allocation3 + $0x570] sm:$0xff] %v915
      %948 = vst [vmem:[#allocation3 + $0x5b8] sm:$0xff] %v916
      %949 = vst [vmem:[#allocation3 + $0x600] sm:$0xff] %v917
      %950 = vst [vmem:[#allocation3 + $0x648] sm:$0xff] %v918
      %951 = vst [vmem:[#allocation3 + $0x690] sm:$0xff] %v919
      %952 = vst [vmem:[#allocation3 + $0x6d8] sm:$0xff] %v920
      %953 = vst [vmem:[#allocation3 + $0x720] sm:$0xff] %v921
      %954 = vst [vmem:[#allocation3 + $0x768] sm:$0xff] %v922
      %955 = vst [vmem:[#allocation3 + $0x7b0] sm:$0xff] %v923
      %956 = vst [vmem:[#allocation3 + $0x7f8] sm:$0xff] %v924
      %957 = vst [vmem:[#allocation3 + $0x840] sm:$0xff] %v925
      %958 = vst [vmem:[#allocation3 + $0x888] sm:$0xff] %v926
      %959 = vst [vmem:[#allocation3 + $0x8d0] sm:$0xff] %v927
      %v960 = vld [vmem:[%s383 + $0x1] sm:$0xff]
      %v961 = vld [vmem:[%s383 + $0x9] sm:$0xff]
      %v962 = vld [vmem:[%s383 + $0x19] sm:$0xff]
      %v963 = vld [vmem:[%s383 + $0x21] sm:$0xff]
      %v964 = vld [vmem:[%s383 + $0x31] sm:$0xff]
      %v965 = vld [vmem:[%s383 + $0x39] sm:$0xff]
      %v966 = vld [vmem:[%s383 + $0x49] sm:$0xff]
      %v967 = vld [vmem:[%s383 + $0x51] sm:$0xff]
      %v968 = vld [vmem:[%s383 + $0x61] sm:$0xff]
      %v969 = vld [vmem:[%s383 + $0x69] sm:$0xff]
      %v970 = vld [vmem:[%s383 + $0x79] sm:$0xff]
      %v971 = vld [vmem:[%s383 + $0x81] sm:$0xff]
      %v972 = vld [vmem:[%s383 + $0x91] sm:$0xff]
      %v973 = vld [vmem:[%s383 + $0x99] sm:$0xff]
      %v974 = vld [vmem:[%s383 + $0xa9] sm:$0xff]
      %v975 = vld [vmem:[%s383 + $0xb1] sm:$0xff]
      %v976 = vld [vmem:[%s383 + $0xc1] sm:$0xff]
      %v977 = vld [vmem:[%s383 + $0xc9] sm:$0xff]
      %v978 = vld [vmem:[%s383 + $0xd9] sm:$0xff]
      %v979 = vld [vmem:[%s383 + $0xe1] sm:$0xff]
      %v980 = vld [vmem:[%s383 + $0xf1] sm:$0xff]
      %v981 = vld [vmem:[%s383 + $0xf9] sm:$0xff]
      %v982 = vld [vmem:[%s383 + $0x109] sm:$0xff]
      %v983 = vld [vmem:[%s383 + $0x111] sm:$0xff]
      %v984 = vld [vmem:[%s383 + $0x121] sm:$0xff]
      %v985 = vld [vmem:[%s383 + $0x129] sm:$0xff]
      %v986 = vld [vmem:[%s383 + $0x139] sm:$0xff]
      %v987 = vld [vmem:[%s383 + $0x141] sm:$0xff]
      %v988 = vld [vmem:[%s383 + $0x151] sm:$0xff]
      %v989 = vld [vmem:[%s383 + $0x159] sm:$0xff]
      %v990 = vld [vmem:[%s383 + $0x169] sm:$0xff]
      %v991 = vld [vmem:[%s383 + $0x171] sm:$0xff]
      %v992 = vld [vmem:[%s383 + $0x1b1] sm:$0xff]
      %v993 = vld [vmem:[%s383 + $0x1b9] sm:$0xff]
      %v994 = vld [vmem:[%s383 + $0x1c9] sm:$0xff]
      %v995 = vld [vmem:[%s383 + $0x1d1] sm:$0xff]
      %v996 = vld [vmem:[%s383 + $0x1e1] sm:$0xff]
      %v997 = vld [vmem:[%s383 + $0x1e9] sm:$0xff]
      %v998 = vld [vmem:[%s383 + $0x1f9] sm:$0xff]
      %v999 = vld [vmem:[%s383 + $0x201] sm:$0xff]
      %v1000 = vld [vmem:[%s383 + $0x211] sm:$0xff]
      %v1001 = vld [vmem:[%s383 + $0x219] sm:$0xff]
      %v1002 = vld [vmem:[%s383 + $0x229] sm:$0xff]
      %v1003 = vld [vmem:[%s383 + $0x231] sm:$0xff]
      %v1004 = vld [vmem:[%s383 + $0x241] sm:$0xff]
      %v1005 = vld [vmem:[%s383 + $0x249] sm:$0xff]
      %v1006 = vld [vmem:[%s383 + $0x259] sm:$0xff]
      %v1007 = vld [vmem:[%s383 + $0x261] sm:$0xff]
      %v1008 = vld [vmem:[%s383 + $0x271] sm:$0xff]
      %v1009 = vld [vmem:[%s383 + $0x279] sm:$0xff]
      %v1010 = vld [vmem:[%s383 + $0x289] sm:$0xff]
      %v1011 = vld [vmem:[%s383 + $0x291] sm:$0xff]
      %v1012 = vld [vmem:[%s383 + $0x2a1] sm:$0xff]
      %v1013 = vld [vmem:[%s383 + $0x2a9] sm:$0xff]
      %v1014 = vld [vmem:[%s383 + $0x2b9] sm:$0xff]
      %v1015 = vld [vmem:[%s383 + $0x2c1] sm:$0xff]
      %v1016 = vld [vmem:[%s383 + $0x2d1] sm:$0xff]
      %v1017 = vld [vmem:[%s383 + $0x2d9] sm:$0xff]
      %v1018 = vld [vmem:[%s383 + $0x2e9] sm:$0xff]
      %v1019 = vld [vmem:[%s383 + $0x2f1] sm:$0xff]
      %v1020 = vld [vmem:[%s383 + $0x301] sm:$0xff]
      %v1021 = vld [vmem:[%s383 + $0x309] sm:$0xff]
      %v1022 = vld [vmem:[%s383 + $0x319] sm:$0xff]
      %v1023 = vld [vmem:[%s383 + $0x321] sm:$0xff]
      %v1024 = vpack.c.bf16 %v961, %v960
      %v1025 = vpack.c.bf16 %v963, %v962
      %v1026 = vpack.c.bf16 %v965, %v964
      %v1027 = vpack.c.bf16 %v967, %v966
      %v1028 = vpack.c.bf16 %v969, %v968
      %v1029 = vpack.c.bf16 %v971, %v970
      %v1030 = vpack.c.bf16 %v973, %v972
      %v1031 = vpack.c.bf16 %v975, %v974
      %v1032 = vpack.c.bf16 %v977, %v976
      %v1033 = vpack.c.bf16 %v979, %v978
      %v1034 = vpack.c.bf16 %v981, %v980
      %v1035 = vpack.c.bf16 %v983, %v982
      %v1036 = vpack.c.bf16 %v985, %v984
      %v1037 = vpack.c.bf16 %v987, %v986
      %v1038 = vpack.c.bf16 %v989, %v988
      %v1039 = vpack.c.bf16 %v991, %v990
      %v1040 = vpack.c.bf16 %v993, %v992
      %v1041 = vpack.c.bf16 %v995, %v994
      %v1042 = vpack.c.bf16 %v997, %v996
      %v1043 = vpack.c.bf16 %v999, %v998
      %v1044 = vpack.c.bf16 %v1001, %v1000
      %v1045 = vpack.c.bf16 %v1003, %v1002
      %v1046 = vpack.c.bf16 %v1005, %v1004
      %v1047 = vpack.c.bf16 %v1007, %v1006
      %v1048 = vpack.c.bf16 %v1009, %v1008
      %v1049 = vpack.c.bf16 %v1011, %v1010
      %v1050 = vpack.c.bf16 %v1013, %v1012
      %v1051 = vpack.c.bf16 %v1015, %v1014
      %v1052 = vpack.c.bf16 %v1017, %v1016
      %v1053 = vpack.c.bf16 %v1019, %v1018
      %v1054 = vpack.c.bf16 %v1021, %v1020
      %v1055 = vpack.c.bf16 %v1023, %v1022
      %1056 = vst [vmem:[#allocation3 + $0x20] sm:$0xff] %v1024
      %1057 = vst [vmem:[#allocation3 + $0x68] sm:$0xff] %v1025
      %1058 = vst [vmem:[#allocation3 + $0xb0] sm:$0xff] %v1026
      %1059 = vst [vmem:[#allocation3 + $0xf8] sm:$0xff] %v1027
      %1060 = vst [vmem:[#allocation3 + $0x140] sm:$0xff] %v1028
      %1061 = vst [vmem:[#allocation3 + $0x188] sm:$0xff] %v1029
      %1062 = vst [vmem:[#allocation3 + $0x1d0] sm:$0xff] %v1030
      %1063 = vst [vmem:[#allocation3 + $0x218] sm:$0xff] %v1031
      %1064 = vst [vmem:[#allocation3 + $0x260] sm:$0xff] %v1032
      %1065 = vst [vmem:[#allocation3 + $0x2a8] sm:$0xff] %v1033
      %1066 = vst [vmem:[#allocation3 + $0x2f0] sm:$0xff] %v1034
      %1067 = vst [vmem:[#allocation3 + $0x338] sm:$0xff] %v1035
      %1068 = vst [vmem:[#allocation3 + $0x380] sm:$0xff] %v1036
      %1069 = vst [vmem:[#allocation3 + $0x3c8] sm:$0xff] %v1037
      %1070 = vst [vmem:[#allocation3 + $0x410] sm:$0xff] %v1038
      %1071 = vst [vmem:[#allocation3 + $0x458] sm:$0xff] %v1039
      %1072 = vst [vmem:[#allocation3 + $0x4a0] sm:$0xff] %v1040
      %1073 = vst [vmem:[#allocation3 + $0x4e8] sm:$0xff] %v1041
      %1074 = vst [vmem:[#allocation3 + $0x530] sm:$0xff] %v1042
      %1075 = vst [vmem:[#allocation3 + $0x578] sm:$0xff] %v1043
      %1076 = vst [vmem:[#allocation3 + $0x5c0] sm:$0xff] %v1044
      %1077 = vst [vmem:[#allocation3 + $0x608] sm:$0xff] %v1045
      %1078 = vst [vmem:[#allocation3 + $0x650] sm:$0xff] %v1046
      %1079 = vst [vmem:[#allocation3 + $0x698] sm:$0xff] %v1047
      %1080 = vst [vmem:[#allocation3 + $0x6e0] sm:$0xff] %v1048
      %1081 = vst [vmem:[#allocation3 + $0x728] sm:$0xff] %v1049
      %1082 = vst [vmem:[#allocation3 + $0x770] sm:$0xff] %v1050
      %1083 = vst [vmem:[#allocation3 + $0x7b8] sm:$0xff] %v1051
      %1084 = vst [vmem:[#allocation3 + $0x800] sm:$0xff] %v1052
      %1085 = vst [vmem:[#allocation3 + $0x848] sm:$0xff] %v1053
      %1086 = vst [vmem:[#allocation3 + $0x890] sm:$0xff] %v1054
      %1087 = vst [vmem:[#allocation3 + $0x8d8] sm:$0xff] %v1055
      %v1088 = vld [vmem:[%s383 + $0x2] sm:$0xff]
      %v1089 = vld [vmem:[%s383 + $0xa] sm:$0xff]
      %v1090 = vld [vmem:[%s383 + $0x1a] sm:$0xff]
      %v1091 = vld [vmem:[%s383 + $0x22] sm:$0xff]
      %v1092 = vld [vmem:[%s383 + $0x32] sm:$0xff]
      %v1093 = vld [vmem:[%s383 + $0x3a] sm:$0xff]
      %v1094 = vld [vmem:[%s383 + $0x4a] sm:$0xff]
      %v1095 = vld [vmem:[%s383 + $0x52] sm:$0xff]
      %v1096 = vld [vmem:[%s383 + $0x62] sm:$0xff]
      %v1097 = vld [vmem:[%s383 + $0x6a] sm:$0xff]
      %v1098 = vld [vmem:[%s383 + $0x7a] sm:$0xff]
      %v1099 = vld [vmem:[%s383 + $0x82] sm:$0xff]
      %v1100 = vld [vmem:[%s383 + $0x92] sm:$0xff]
      %v1101 = vld [vmem:[%s383 + $0x9a] sm:$0xff]
      %v1102 = vld [vmem:[%s383 + $0xaa] sm:$0xff]
      %v1103 = vld [vmem:[%s383 + $0xb2] sm:$0xff]
      %v1104 = vld [vmem:[%s383 + $0xc2] sm:$0xff]
      %v1105 = vld [vmem:[%s383 + $0xca] sm:$0xff]
      %v1106 = vld [vmem:[%s383 + $0xda] sm:$0xff]
      %v1107 = vld [vmem:[%s383 + $0xe2] sm:$0xff]
      %v1108 = vld [vmem:[%s383 + $0xf2] sm:$0xff]
      %v1109 = vld [vmem:[%s383 + $0xfa] sm:$0xff]
      %v1110 = vld [vmem:[%s383 + $0x10a] sm:$0xff]
      %v1111 = vld [vmem:[%s383 + $0x112] sm:$0xff]
      %v1112 = vld [vmem:[%s383 + $0x122] sm:$0xff]
      %v1113 = vld [vmem:[%s383 + $0x12a] sm:$0xff]
      %v1114 = vld [vmem:[%s383 + $0x13a] sm:$0xff]
      %v1115 = vld [vmem:[%s383 + $0x142] sm:$0xff]
      %v1116 = vld [vmem:[%s383 + $0x152] sm:$0xff]
      %v1117 = vld [vmem:[%s383 + $0x15a] sm:$0xff]
      %v1118 = vld [vmem:[%s383 + $0x16a] sm:$0xff]
      %v1119 = vld [vmem:[%s383 + $0x172] sm:$0xff]
      %v1120 = vld [vmem:[%s383 + $0x1b2] sm:$0xff]
      %v1121 = vld [vmem:[%s383 + $0x1ba] sm:$0xff]
      %v1122 = vld [vmem:[%s383 + $0x1ca] sm:$0xff]
      %v1123 = vld [vmem:[%s383 + $0x1d2] sm:$0xff]
      %v1124 = vld [vmem:[%s383 + $0x1e2] sm:$0xff]
      %v1125 = vld [vmem:[%s383 + $0x1ea] sm:$0xff]
      %v1126 = vld [vmem:[%s383 + $0x1fa] sm:$0xff]
      %v1127 = vld [vmem:[%s383 + $0x202] sm:$0xff]
      %v1128 = vld [vmem:[%s383 + $0x212] sm:$0xff]
      %v1129 = vld [vmem:[%s383 + $0x21a] sm:$0xff]
      %v1130 = vld [vmem:[%s383 + $0x22a] sm:$0xff]
      %v1131 = vld [vmem:[%s383 + $0x232] sm:$0xff]
      %v1132 = vld [vmem:[%s383 + $0x242] sm:$0xff]
      %v1133 = vld [vmem:[%s383 + $0x24a] sm:$0xff]
      %v1134 = vld [vmem:[%s383 + $0x25a] sm:$0xff]
      %v1135 = vld [vmem:[%s383 + $0x262] sm:$0xff]
      %v1136 = vld [vmem:[%s383 + $0x272] sm:$0xff]
      %v1137 = vld [vmem:[%s383 + $0x27a] sm:$0xff]
      %v1138 = vld [vmem:[%s383 + $0x28a] sm:$0xff]
      %v1139 = vld [vmem:[%s383 + $0x292] sm:$0xff]
      %v1140 = vld [vmem:[%s383 + $0x2a2] sm:$0xff]
      %v1141 = vld [vmem:[%s383 + $0x2aa] sm:$0xff]
      %v1142 = vld [vmem:[%s383 + $0x2ba] sm:$0xff]
      %v1143 = vld [vmem:[%s383 + $0x2c2] sm:$0xff]
      %v1144 = vld [vmem:[%s383 + $0x2d2] sm:$0xff]
      %v1145 = vld [vmem:[%s383 + $0x2da] sm:$0xff]
      %v1146 = vld [vmem:[%s383 + $0x2ea] sm:$0xff]
      %v1147 = vld [vmem:[%s383 + $0x2f2] sm:$0xff]
      %v1148 = vld [vmem:[%s383 + $0x302] sm:$0xff]
      %v1149 = vld [vmem:[%s383 + $0x30a] sm:$0xff]
      %v1150 = vld [vmem:[%s383 + $0x31a] sm:$0xff]
      %v1151 = vld [vmem:[%s383 + $0x322] sm:$0xff]
      %v1152 = vpack.c.bf16 %v1089, %v1088
      %v1153 = vpack.c.bf16 %v1091, %v1090
      %v1154 = vpack.c.bf16 %v1093, %v1092
      %v1155 = vpack.c.bf16 %v1095, %v1094
      %v1156 = vpack.c.bf16 %v1097, %v1096
      %v1157 = vpack.c.bf16 %v1099, %v1098
      %v1158 = vpack.c.bf16 %v1101, %v1100
      %v1159 = vpack.c.bf16 %v1103, %v1102
      %v1160 = vpack.c.bf16 %v1105, %v1104
      %v1161 = vpack.c.bf16 %v1107, %v1106
      %v1162 = vpack.c.bf16 %v1109, %v1108
      %v1163 = vpack.c.bf16 %v1111, %v1110
      %v1164 = vpack.c.bf16 %v1113, %v1112
      %v1165 = vpack.c.bf16 %v1115, %v1114
      %v1166 = vpack.c.bf16 %v1117, %v1116
      %v1167 = vpack.c.bf16 %v1119, %v1118
      %v1168 = vpack.c.bf16 %v1121, %v1120
      %v1169 = vpack.c.bf16 %v1123, %v1122
      %v1170 = vpack.c.bf16 %v1125, %v1124
      %v1171 = vpack.c.bf16 %v1127, %v1126
      %v1172 = vpack.c.bf16 %v1129, %v1128
      %v1173 = vpack.c.bf16 %v1131, %v1130
      %v1174 = vpack.c.bf16 %v1133, %v1132
      %v1175 = vpack.c.bf16 %v1135, %v1134
      %v1176 = vpack.c.bf16 %v1137, %v1136
      %v1177 = vpack.c.bf16 %v1139, %v1138
      %v1178 = vpack.c.bf16 %v1141, %v1140
      %v1179 = vpack.c.bf16 %v1143, %v1142
      %v1180 = vpack.c.bf16 %v1145, %v1144
      %v1181 = vpack.c.bf16 %v1147, %v1146
      %v1182 = vpack.c.bf16 %v1149, %v1148
      %v1183 = vpack.c.bf16 %v1151, %v1150
      %1184 = vst [vmem:[#allocation3 + $0x28] sm:$0xff] %v1152
      %1185 = vst [vmem:[#allocation3 + $0x70] sm:$0xff] %v1153
      %1186 = vst [vmem:[#allocation3 + $0xb8] sm:$0xff] %v1154
      %1187 = vst [vmem:[#allocation3 + $0x100] sm:$0xff] %v1155
      %1188 = vst [vmem:[#allocation3 + $0x148] sm:$0xff] %v1156
      %1189 = vst [vmem:[#allocation3 + $0x190] sm:$0xff] %v1157
      %1190 = vst [vmem:[#allocation3 + $0x1d8] sm:$0xff] %v1158
      %1191 = vst [vmem:[#allocation3 + $0x220] sm:$0xff] %v1159
      %1192 = vst [vmem:[#allocation3 + $0x268] sm:$0xff] %v1160
      %1193 = vst [vmem:[#allocation3 + $0x2b0] sm:$0xff] %v1161
      %1194 = vst [vmem:[#allocation3 + $0x2f8] sm:$0xff] %v1162
      %1195 = vst [vmem:[#allocation3 + $0x340] sm:$0xff] %v1163
      %1196 = vst [vmem:[#allocation3 + $0x388] sm:$0xff] %v1164
      %1197 = vst [vmem:[#allocation3 + $0x3d0] sm:$0xff] %v1165
      %1198 = vst [vmem:[#allocation3 + $0x418] sm:$0xff] %v1166
      %1199 = vst [vmem:[#allocation3 + $0x460] sm:$0xff] %v1167
      %1200 = vst [vmem:[#allocation3 + $0x4a8] sm:$0xff] %v1168
      %1201 = vst [vmem:[#allocation3 + $0x4f0] sm:$0xff] %v1169
      %1202 = vst [vmem:[#allocation3 + $0x538] sm:$0xff] %v1170
      %1203 = vst [vmem:[#allocation3 + $0x580] sm:$0xff] %v1171
      %1204 = vst [vmem:[#allocation3 + $0x5c8] sm:$0xff] %v1172
      %1205 = vst [vmem:[#allocation3 + $0x610] sm:$0xff] %v1173
      %1206 = vst [vmem:[#allocation3 + $0x658] sm:$0xff] %v1174
      %1207 = vst [vmem:[#allocation3 + $0x6a0] sm:$0xff] %v1175
      %1208 = vst [vmem:[#allocation3 + $0x6e8] sm:$0xff] %v1176
      %1209 = vst [vmem:[#allocation3 + $0x730] sm:$0xff] %v1177
      %1210 = vst [vmem:[#allocation3 + $0x778] sm:$0xff] %v1178
      %1211 = vst [vmem:[#allocation3 + $0x7c0] sm:$0xff] %v1179
      %1212 = vst [vmem:[#allocation3 + $0x808] sm:$0xff] %v1180
      %1213 = vst [vmem:[#allocation3 + $0x850] sm:$0xff] %v1181
      %1214 = vst [vmem:[#allocation3 + $0x898] sm:$0xff] %v1182
      %1215 = vst [vmem:[#allocation3 + $0x8e0] sm:$0xff] %v1183
      %s1216 = scalar_lea.vmem [#allocation2], 48
      %v1217 = vld [vmem:[%s1216] sm:$0xff]
      %v1218 = vld [vmem:[%s1216 + $0x8] sm:$0xff]
      %v1219 = vld [vmem:[%s1216 + $0x18] sm:$0xff]
      %v1220 = vld [vmem:[%s1216 + $0x20] sm:$0xff]
      %v1221 = vld [vmem:[%s1216 + $0x30] sm:$0xff]
      %v1222 = vld [vmem:[%s1216 + $0x38] sm:$0xff]
      %v1223 = vld [vmem:[%s1216 + $0x48] sm:$0xff]
      %v1224 = vld [vmem:[%s1216 + $0x50] sm:$0xff]
      %v1225 = vld [vmem:[%s1216 + $0x60] sm:$0xff]
      %v1226 = vld [vmem:[%s1216 + $0x68] sm:$0xff]
      %v1227 = vld [vmem:[%s1216 + $0x78] sm:$0xff]
      %v1228 = vld [vmem:[%s1216 + $0x80] sm:$0xff]
      %v1229 = vld [vmem:[%s1216 + $0x90] sm:$0xff]
      %v1230 = vld [vmem:[%s1216 + $0x98] sm:$0xff]
      %v1231 = vld [vmem:[%s1216 + $0xa8] sm:$0xff]
      %v1232 = vld [vmem:[%s1216 + $0xb0] sm:$0xff]
      %v1233 = vld [vmem:[%s1216 + $0xc0] sm:$0xff]
      %v1234 = vld [vmem:[%s1216 + $0xc8] sm:$0xff]
      %v1235 = vld [vmem:[%s1216 + $0xd8] sm:$0xff]
      %v1236 = vld [vmem:[%s1216 + $0xe0] sm:$0xff]
      %v1237 = vld [vmem:[%s1216 + $0xf0] sm:$0xff]
      %v1238 = vld [vmem:[%s1216 + $0xf8] sm:$0xff]
      %v1239 = vld [vmem:[%s1216 + $0x108] sm:$0xff]
      %v1240 = vld [vmem:[%s1216 + $0x110] sm:$0xff]
      %v1241 = vld [vmem:[%s1216 + $0x120] sm:$0xff]
      %v1242 = vld [vmem:[%s1216 + $0x128] sm:$0xff]
      %v1243 = vld [vmem:[%s1216 + $0x138] sm:$0xff]
      %v1244 = vld [vmem:[%s1216 + $0x140] sm:$0xff]
      %v1245 = vld [vmem:[%s1216 + $0x150] sm:$0xff]
      %v1246 = vld [vmem:[%s1216 + $0x158] sm:$0xff]
      %v1247 = vld [vmem:[%s1216 + $0x168] sm:$0xff]
      %v1248 = vld [vmem:[%s1216 + $0x170] sm:$0xff]
      %v1249 = vld [vmem:[%s1216 + $0x1b0] sm:$0xff]
      %v1250 = vld [vmem:[%s1216 + $0x1b8] sm:$0xff]
      %v1251 = vld [vmem:[%s1216 + $0x1c8] sm:$0xff]
      %v1252 = vld [vmem:[%s1216 + $0x1d0] sm:$0xff]
      %v1253 = vld [vmem:[%s1216 + $0x1e0] sm:$0xff]
      %v1254 = vld [vmem:[%s1216 + $0x1e8] sm:$0xff]
      %v1255 = vld [vmem:[%s1216 + $0x1f8] sm:$0xff]
      %v1256 = vld [vmem:[%s1216 + $0x200] sm:$0xff]
      %v1257 = vld [vmem:[%s1216 + $0x210] sm:$0xff]
      %v1258 = vld [vmem:[%s1216 + $0x218] sm:$0xff]
      %v1259 = vld [vmem:[%s1216 + $0x228] sm:$0xff]
      %v1260 = vld [vmem:[%s1216 + $0x230] sm:$0xff]
      %v1261 = vld [vmem:[%s1216 + $0x240] sm:$0xff]
      %v1262 = vld [vmem:[%s1216 + $0x248] sm:$0xff]
      %v1263 = vld [vmem:[%s1216 + $0x258] sm:$0xff]
      %v1264 = vld [vmem:[%s1216 + $0x260] sm:$0xff]
      %v1265 = vld [vmem:[%s1216 + $0x270] sm:$0xff]
      %v1266 = vld [vmem:[%s1216 + $0x278] sm:$0xff]
      %v1267 = vld [vmem:[%s1216 + $0x288] sm:$0xff]
      %v1268 = vld [vmem:[%s1216 + $0x290] sm:$0xff]
      %v1269 = vld [vmem:[%s1216 + $0x2a0] sm:$0xff]
      %v1270 = vld [vmem:[%s1216 + $0x2a8] sm:$0xff]
      %v1271 = vld [vmem:[%s1216 + $0x2b8] sm:$0xff]
      %v1272 = vld [vmem:[%s1216 + $0x2c0] sm:$0xff]
      %v1273 = vld [vmem:[%s1216 + $0x2d0] sm:$0xff]
      %v1274 = vld [vmem:[%s1216 + $0x2d8] sm:$0xff]
      %v1275 = vld [vmem:[%s1216 + $0x2e8] sm:$0xff]
      %v1276 = vld [vmem:[%s1216 + $0x2f0] sm:$0xff]
      %v1277 = vld [vmem:[%s1216 + $0x300] sm:$0xff]
      %v1278 = vld [vmem:[%s1216 + $0x308] sm:$0xff]
      %v1279 = vld [vmem:[%s1216 + $0x318] sm:$0xff]
      %v1280 = vld [vmem:[%s1216 + $0x320] sm:$0xff]
      %v1281 = vpack.c.bf16 %v1218, %v1217
      %v1282 = vpack.c.bf16 %v1220, %v1219
      %v1283 = vpack.c.bf16 %v1222, %v1221
      %v1284 = vpack.c.bf16 %v1224, %v1223
      %v1285 = vpack.c.bf16 %v1226, %v1225
      %v1286 = vpack.c.bf16 %v1228, %v1227
      %v1287 = vpack.c.bf16 %v1230, %v1229
      %v1288 = vpack.c.bf16 %v1232, %v1231
      %v1289 = vpack.c.bf16 %v1234, %v1233
      %v1290 = vpack.c.bf16 %v1236, %v1235
      %v1291 = vpack.c.bf16 %v1238, %v1237
      %v1292 = vpack.c.bf16 %v1240, %v1239
      %v1293 = vpack.c.bf16 %v1242, %v1241
      %v1294 = vpack.c.bf16 %v1244, %v1243
      %v1295 = vpack.c.bf16 %v1246, %v1245
      %v1296 = vpack.c.bf16 %v1248, %v1247
      %v1297 = vpack.c.bf16 %v1250, %v1249
      %v1298 = vpack.c.bf16 %v1252, %v1251
      %v1299 = vpack.c.bf16 %v1254, %v1253
      %v1300 = vpack.c.bf16 %v1256, %v1255
      %v1301 = vpack.c.bf16 %v1258, %v1257
      %v1302 = vpack.c.bf16 %v1260, %v1259
      %v1303 = vpack.c.bf16 %v1262, %v1261
      %v1304 = vpack.c.bf16 %v1264, %v1263
      %v1305 = vpack.c.bf16 %v1266, %v1265
      %v1306 = vpack.c.bf16 %v1268, %v1267
      %v1307 = vpack.c.bf16 %v1270, %v1269
      %v1308 = vpack.c.bf16 %v1272, %v1271
      %v1309 = vpack.c.bf16 %v1274, %v1273
      %v1310 = vpack.c.bf16 %v1276, %v1275
      %v1311 = vpack.c.bf16 %v1278, %v1277
      %v1312 = vpack.c.bf16 %v1280, %v1279
      %1313 = vst [vmem:[#allocation3 + $0x30] sm:$0xff] %v1281
      %1314 = vst [vmem:[#allocation3 + $0x78] sm:$0xff] %v1282
      %1315 = vst [vmem:[#allocation3 + $0xc0] sm:$0xff] %v1283
      %1316 = vst [vmem:[#allocation3 + $0x108] sm:$0xff] %v1284
      %1317 = vst [vmem:[#allocation3 + $0x150] sm:$0xff] %v1285
      %1318 = vst [vmem:[#allocation3 + $0x198] sm:$0xff] %v1286
      %1319 = vst [vmem:[#allocation3 + $0x1e0] sm:$0xff] %v1287
      %1320 = vst [vmem:[#allocation3 + $0x228] sm:$0xff] %v1288
      %1321 = vst [vmem:[#allocation3 + $0x270] sm:$0xff] %v1289
      %1322 = vst [vmem:[#allocation3 + $0x2b8] sm:$0xff] %v1290
      %1323 = vst [vmem:[#allocation3 + $0x300] sm:$0xff] %v1291
      %1324 = vst [vmem:[#allocation3 + $0x348] sm:$0xff] %v1292
      %1325 = vst [vmem:[#allocation3 + $0x390] sm:$0xff] %v1293
      %1326 = vst [vmem:[#allocation3 + $0x3d8] sm:$0xff] %v1294
      %1327 = vst [vmem:[#allocation3 + $0x420] sm:$0xff] %v1295
      %1328 = vst [vmem:[#allocation3 + $0x468] sm:$0xff] %v1296
      %1329 = vst [vmem:[#allocation3 + $0x4b0] sm:$0xff] %v1297
      %1330 = vst [vmem:[#allocation3 + $0x4f8] sm:$0xff] %v1298
      %1331 = vst [vmem:[#allocation3 + $0x540] sm:$0xff] %v1299
      %1332 = vst [vmem:[#allocation3 + $0x588] sm:$0xff] %v1300
      %1333 = vst [vmem:[#allocation3 + $0x5d0] sm:$0xff] %v1301
      %1334 = vst [vmem:[#allocation3 + $0x618] sm:$0xff] %v1302
      %1335 = vst [vmem:[#allocation3 + $0x660] sm:$0xff] %v1303
      %1336 = vst [vmem:[#allocation3 + $0x6a8] sm:$0xff] %v1304
      %1337 = vst [vmem:[#allocation3 + $0x6f0] sm:$0xff] %v1305
      %1338 = vst [vmem:[#allocation3 + $0x738] sm:$0xff] %v1306
      %1339 = vst [vmem:[#allocation3 + $0x780] sm:$0xff] %v1307
      %1340 = vst [vmem:[#allocation3 + $0x7c8] sm:$0xff] %v1308
      %1341 = vst [vmem:[#allocation3 + $0x810] sm:$0xff] %v1309
      %1342 = vst [vmem:[#allocation3 + $0x858] sm:$0xff] %v1310
      %1343 = vst [vmem:[#allocation3 + $0x8a0] sm:$0xff] %v1311
      %1344 = vst [vmem:[#allocation3 + $0x8e8] sm:$0xff] %v1312
      %v1345 = vld [vmem:[%s1216 + $0x1] sm:$0xff]
      %v1346 = vld [vmem:[%s1216 + $0x9] sm:$0xff]
      %v1347 = vld [vmem:[%s1216 + $0x19] sm:$0xff]
      %v1348 = vld [vmem:[%s1216 + $0x21] sm:$0xff]
      %v1349 = vld [vmem:[%s1216 + $0x31] sm:$0xff]
      %v1350 = vld [vmem:[%s1216 + $0x39] sm:$0xff]
      %v1351 = vld [vmem:[%s1216 + $0x49] sm:$0xff]
      %v1352 = vld [vmem:[%s1216 + $0x51] sm:$0xff]
      %v1353 = vld [vmem:[%s1216 + $0x61] sm:$0xff]
      %v1354 = vld [vmem:[%s1216 + $0x69] sm:$0xff]
      %v1355 = vld [vmem:[%s1216 + $0x79] sm:$0xff]
      %v1356 = vld [vmem:[%s1216 + $0x81] sm:$0xff]
      %v1357 = vld [vmem:[%s1216 + $0x91] sm:$0xff]
      %v1358 = vld [vmem:[%s1216 + $0x99] sm:$0xff]
      %v1359 = vld [vmem:[%s1216 + $0xa9] sm:$0xff]
      %v1360 = vld [vmem:[%s1216 + $0xb1] sm:$0xff]
      %v1361 = vld [vmem:[%s1216 + $0xc1] sm:$0xff]
      %v1362 = vld [vmem:[%s1216 + $0xc9] sm:$0xff]
      %v1363 = vld [vmem:[%s1216 + $0xd9] sm:$0xff]
      %v1364 = vld [vmem:[%s1216 + $0xe1] sm:$0xff]
      %v1365 = vld [vmem:[%s1216 + $0xf1] sm:$0xff]
      %v1366 = vld [vmem:[%s1216 + $0xf9] sm:$0xff]
      %v1367 = vld [vmem:[%s1216 + $0x109] sm:$0xff]
      %v1368 = vld [vmem:[%s1216 + $0x111] sm:$0xff]
      %v1369 = vld [vmem:[%s1216 + $0x121] sm:$0xff]
      %v1370 = vld [vmem:[%s1216 + $0x129] sm:$0xff]
      %v1371 = vld [vmem:[%s1216 + $0x139] sm:$0xff]
      %v1372 = vld [vmem:[%s1216 + $0x141] sm:$0xff]
      %v1373 = vld [vmem:[%s1216 + $0x151] sm:$0xff]
      %v1374 = vld [vmem:[%s1216 + $0x159] sm:$0xff]
      %v1375 = vld [vmem:[%s1216 + $0x169] sm:$0xff]
      %v1376 = vld [vmem:[%s1216 + $0x171] sm:$0xff]
      %v1377 = vld [vmem:[%s1216 + $0x1b1] sm:$0xff]
      %v1378 = vld [vmem:[%s1216 + $0x1b9] sm:$0xff]
      %v1379 = vld [vmem:[%s1216 + $0x1c9] sm:$0xff]
      %v1380 = vld [vmem:[%s1216 + $0x1d1] sm:$0xff]
      %v1381 = vld [vmem:[%s1216 + $0x1e1] sm:$0xff]
      %v1382 = vld [vmem:[%s1216 + $0x1e9] sm:$0xff]
      %v1383 = vld [vmem:[%s1216 + $0x1f9] sm:$0xff]
      %v1384 = vld [vmem:[%s1216 + $0x201] sm:$0xff]
      %v1385 = vld [vmem:[%s1216 + $0x211] sm:$0xff]
      %v1386 = vld [vmem:[%s1216 + $0x219] sm:$0xff]
      %v1387 = vld [vmem:[%s1216 + $0x229] sm:$0xff]
      %v1388 = vld [vmem:[%s1216 + $0x231] sm:$0xff]
      %v1389 = vld [vmem:[%s1216 + $0x241] sm:$0xff]
      %v1390 = vld [vmem:[%s1216 + $0x249] sm:$0xff]
      %v1391 = vld [vmem:[%s1216 + $0x259] sm:$0xff]
      %v1392 = vld [vmem:[%s1216 + $0x261] sm:$0xff]
      %v1393 = vld [vmem:[%s1216 + $0x271] sm:$0xff]
      %v1394 = vld [vmem:[%s1216 + $0x279] sm:$0xff]
      %v1395 = vld [vmem:[%s1216 + $0x289] sm:$0xff]
      %v1396 = vld [vmem:[%s1216 + $0x291] sm:$0xff]
      %v1397 = vld [vmem:[%s1216 + $0x2a1] sm:$0xff]
      %v1398 = vld [vmem:[%s1216 + $0x2a9] sm:$0xff]
      %v1399 = vld [vmem:[%s1216 + $0x2b9] sm:$0xff]
      %v1400 = vld [vmem:[%s1216 + $0x2c1] sm:$0xff]
      %v1401 = vld [vmem:[%s1216 + $0x2d1] sm:$0xff]
      %v1402 = vld [vmem:[%s1216 + $0x2d9] sm:$0xff]
      %v1403 = vld [vmem:[%s1216 + $0x2e9] sm:$0xff]
      %v1404 = vld [vmem:[%s1216 + $0x2f1] sm:$0xff]
      %v1405 = vld [vmem:[%s1216 + $0x301] sm:$0xff]
      %v1406 = vld [vmem:[%s1216 + $0x309] sm:$0xff]
      %v1407 = vld [vmem:[%s1216 + $0x319] sm:$0xff]
      %v1408 = vld [vmem:[%s1216 + $0x321] sm:$0xff]
      %v1409 = vpack.c.bf16 %v1346, %v1345
      %v1410 = vpack.c.bf16 %v1348, %v1347
      %v1411 = vpack.c.bf16 %v1350, %v1349
      %v1412 = vpack.c.bf16 %v1352, %v1351
      %v1413 = vpack.c.bf16 %v1354, %v1353
      %v1414 = vpack.c.bf16 %v1356, %v1355
      %v1415 = vpack.c.bf16 %v1358, %v1357
      %v1416 = vpack.c.bf16 %v1360, %v1359
      %v1417 = vpack.c.bf16 %v1362, %v1361
      %v1418 = vpack.c.bf16 %v1364, %v1363
      %v1419 = vpack.c.bf16 %v1366, %v1365
      %v1420 = vpack.c.bf16 %v1368, %v1367
      %v1421 = vpack.c.bf16 %v1370, %v1369
      %v1422 = vpack.c.bf16 %v1372, %v1371
      %v1423 = vpack.c.bf16 %v1374, %v1373
      %v1424 = vpack.c.bf16 %v1376, %v1375
      %v1425 = vpack.c.bf16 %v1378, %v1377
      %v1426 = vpack.c.bf16 %v1380, %v1379
      %v1427 = vpack.c.bf16 %v1382, %v1381
      %v1428 = vpack.c.bf16 %v1384, %v1383
      %v1429 = vpack.c.bf16 %v1386, %v1385
      %v1430 = vpack.c.bf16 %v1388, %v1387
      %v1431 = vpack.c.bf16 %v1390, %v1389
      %v1432 = vpack.c.bf16 %v1392, %v1391
      %v1433 = vpack.c.bf16 %v1394, %v1393
      %v1434 = vpack.c.bf16 %v1396, %v1395
      %v1435 = vpack.c.bf16 %v1398, %v1397
      %v1436 = vpack.c.bf16 %v1400, %v1399
      %v1437 = vpack.c.bf16 %v1402, %v1401
      %v1438 = vpack.c.bf16 %v1404, %v1403
      %v1439 = vpack.c.bf16 %v1406, %v1405
      %v1440 = vpack.c.bf16 %v1408, %v1407
      %1441 = vst [vmem:[#allocation3 + $0x38] sm:$0xff] %v1409
      %1442 = vst [vmem:[#allocation3 + $0x80] sm:$0xff] %v1410
      %1443 = vst [vmem:[#allocation3 + $0xc8] sm:$0xff] %v1411
      %1444 = vst [vmem:[#allocation3 + $0x110] sm:$0xff] %v1412
      %1445 = vst [vmem:[#allocation3 + $0x158] sm:$0xff] %v1413
      %1446 = vst [vmem:[#allocation3 + $0x1a0] sm:$0xff] %v1414
      %1447 = vst [vmem:[#allocation3 + $0x1e8] sm:$0xff] %v1415
      %1448 = vst [vmem:[#allocation3 + $0x230] sm:$0xff] %v1416
      %1449 = vst [vmem:[#allocation3 + $0x278] sm:$0xff] %v1417
      %1450 = vst [vmem:[#allocation3 + $0x2c0] sm:$0xff] %v1418
      %1451 = vst [vmem:[#allocation3 + $0x308] sm:$0xff] %v1419
      %1452 = vst [vmem:[#allocation3 + $0x350] sm:$0xff] %v1420
      %1453 = vst [vmem:[#allocation3 + $0x398] sm:$0xff] %v1421
      %1454 = vst [vmem:[#allocation3 + $0x3e0] sm:$0xff] %v1422
      %1455 = vst [vmem:[#allocation3 + $0x428] sm:$0xff] %v1423
      %1456 = vst [vmem:[#allocation3 + $0x470] sm:$0xff] %v1424
      %1457 = vst [vmem:[#allocation3 + $0x4b8] sm:$0xff] %v1425
      %1458 = vst [vmem:[#allocation3 + $0x500] sm:$0xff] %v1426
      %1459 = vst [vmem:[#allocation3 + $0x548] sm:$0xff] %v1427
      %1460 = vst [vmem:[#allocation3 + $0x590] sm:$0xff] %v1428
      %1461 = vst [vmem:[#allocation3 + $0x5d8] sm:$0xff] %v1429
      %1462 = vst [vmem:[#allocation3 + $0x620] sm:$0xff] %v1430
      %1463 = vst [vmem:[#allocation3 + $0x668] sm:$0xff] %v1431
      %1464 = vst [vmem:[#allocation3 + $0x6b0] sm:$0xff] %v1432
      %1465 = vst [vmem:[#allocation3 + $0x6f8] sm:$0xff] %v1433
      %1466 = vst [vmem:[#allocation3 + $0x740] sm:$0xff] %v1434
      %1467 = vst [vmem:[#allocation3 + $0x788] sm:$0xff] %v1435
      %1468 = vst [vmem:[#allocation3 + $0x7d0] sm:$0xff] %v1436
      %1469 = vst [vmem:[#allocation3 + $0x818] sm:$0xff] %v1437
      %1470 = vst [vmem:[#allocation3 + $0x860] sm:$0xff] %v1438
      %1471 = vst [vmem:[#allocation3 + $0x8a8] sm:$0xff] %v1439
      %1472 = vst [vmem:[#allocation3 + $0x8f0] sm:$0xff] %v1440
      %v1473 = vld [vmem:[%s1216 + $0x2] sm:$0xff]
      %v1474 = vld [vmem:[%s1216 + $0xa] sm:$0xff]
      %v1475 = vld [vmem:[%s1216 + $0x1a] sm:$0xff]
      %v1476 = vld [vmem:[%s1216 + $0x22] sm:$0xff]
      %v1477 = vld [vmem:[%s1216 + $0x32] sm:$0xff]
      %v1478 = vld [vmem:[%s1216 + $0x3a] sm:$0xff]
      %v1479 = vld [vmem:[%s1216 + $0x4a] sm:$0xff]
      %v1480 = vld [vmem:[%s1216 + $0x52] sm:$0xff]
      %v1481 = vld [vmem:[%s1216 + $0x62] sm:$0xff]
      %v1482 = vld [vmem:[%s1216 + $0x6a] sm:$0xff]
      %v1483 = vld [vmem:[%s1216 + $0x7a] sm:$0xff]
      %v1484 = vld [vmem:[%s1216 + $0x82] sm:$0xff]
      %v1485 = vld [vmem:[%s1216 + $0x92] sm:$0xff]
      %v1486 = vld [vmem:[%s1216 + $0x9a] sm:$0xff]
      %v1487 = vld [vmem:[%s1216 + $0xaa] sm:$0xff]
      %v1488 = vld [vmem:[%s1216 + $0xb2] sm:$0xff]
      %v1489 = vld [vmem:[%s1216 + $0xc2] sm:$0xff]
      %v1490 = vld [vmem:[%s1216 + $0xca] sm:$0xff]
      %v1491 = vld [vmem:[%s1216 + $0xda] sm:$0xff]
      %v1492 = vld [vmem:[%s1216 + $0xe2] sm:$0xff]
      %v1493 = vld [vmem:[%s1216 + $0xf2] sm:$0xff]
      %v1494 = vld [vmem:[%s1216 + $0xfa] sm:$0xff]
      %v1495 = vld [vmem:[%s1216 + $0x10a] sm:$0xff]
      %v1496 = vld [vmem:[%s1216 + $0x112] sm:$0xff]
      %v1497 = vld [vmem:[%s1216 + $0x122] sm:$0xff]
      %v1498 = vld [vmem:[%s1216 + $0x12a] sm:$0xff]
      %v1499 = vld [vmem:[%s1216 + $0x13a] sm:$0xff]
      %v1500 = vld [vmem:[%s1216 + $0x142] sm:$0xff]
      %v1501 = vld [vmem:[%s1216 + $0x152] sm:$0xff]
      %v1502 = vld [vmem:[%s1216 + $0x15a] sm:$0xff]
      %v1503 = vld [vmem:[%s1216 + $0x16a] sm:$0xff]
      %v1504 = vld [vmem:[%s1216 + $0x172] sm:$0xff]
      %v1505 = vld [vmem:[%s1216 + $0x1b2] sm:$0xff]
      %v1506 = vld [vmem:[%s1216 + $0x1ba] sm:$0xff]
      %v1507 = vld [vmem:[%s1216 + $0x1ca] sm:$0xff]
      %v1508 = vld [vmem:[%s1216 + $0x1d2] sm:$0xff]
      %v1509 = vld [vmem:[%s1216 + $0x1e2] sm:$0xff]
      %v1510 = vld [vmem:[%s1216 + $0x1ea] sm:$0xff]
      %v1511 = vld [vmem:[%s1216 + $0x1fa] sm:$0xff]
      %v1512 = vld [vmem:[%s1216 + $0x202] sm:$0xff]
      %v1513 = vld [vmem:[%s1216 + $0x212] sm:$0xff]
      %v1514 = vld [vmem:[%s1216 + $0x21a] sm:$0xff]
      %v1515 = vld [vmem:[%s1216 + $0x22a] sm:$0xff]
      %v1516 = vld [vmem:[%s1216 + $0x232] sm:$0xff]
      %v1517 = vld [vmem:[%s1216 + $0x242] sm:$0xff]
      %v1518 = vld [vmem:[%s1216 + $0x24a] sm:$0xff]
      %v1519 = vld [vmem:[%s1216 + $0x25a] sm:$0xff]
      %v1520 = vld [vmem:[%s1216 + $0x262] sm:$0xff]
      %v1521 = vld [vmem:[%s1216 + $0x272] sm:$0xff]
      %v1522 = vld [vmem:[%s1216 + $0x27a] sm:$0xff]
      %v1523 = vld [vmem:[%s1216 + $0x28a] sm:$0xff]
      %v1524 = vld [vmem:[%s1216 + $0x292] sm:$0xff]
      %v1525 = vld [vmem:[%s1216 + $0x2a2] sm:$0xff]
      %v1526 = vld [vmem:[%s1216 + $0x2aa] sm:$0xff]
      %v1527 = vld [vmem:[%s1216 + $0x2ba] sm:$0xff]
      %v1528 = vld [vmem:[%s1216 + $0x2c2] sm:$0xff]
      %v1529 = vld [vmem:[%s1216 + $0x2d2] sm:$0xff]
      %v1530 = vld [vmem:[%s1216 + $0x2da] sm:$0xff]
      %v1531 = vld [vmem:[%s1216 + $0x2ea] sm:$0xff]
      %v1532 = vld [vmem:[%s1216 + $0x2f2] sm:$0xff]
      %v1533 = vld [vmem:[%s1216 + $0x302] sm:$0xff]
      %v1534 = vld [vmem:[%s1216 + $0x30a] sm:$0xff]
      %v1535 = vld [vmem:[%s1216 + $0x31a] sm:$0xff]
      %v1536 = vld [vmem:[%s1216 + $0x322] sm:$0xff]
      %v1537 = vpack.c.bf16 %v1474, %v1473
      %v1538 = vpack.c.bf16 %v1476, %v1475
      %v1539 = vpack.c.bf16 %v1478, %v1477
      %v1540 = vpack.c.bf16 %v1480, %v1479
      %v1541 = vpack.c.bf16 %v1482, %v1481
      %v1542 = vpack.c.bf16 %v1484, %v1483
      %v1543 = vpack.c.bf16 %v1486, %v1485
      %v1544 = vpack.c.bf16 %v1488, %v1487
      %v1545 = vpack.c.bf16 %v1490, %v1489
      %v1546 = vpack.c.bf16 %v1492, %v1491
      %v1547 = vpack.c.bf16 %v1494, %v1493
      %v1548 = vpack.c.bf16 %v1496, %v1495
      %v1549 = vpack.c.bf16 %v1498, %v1497
      %v1550 = vpack.c.bf16 %v1500, %v1499
      %v1551 = vpack.c.bf16 %v1502, %v1501
      %v1552 = vpack.c.bf16 %v1504, %v1503
      %v1553 = vpack.c.bf16 %v1506, %v1505
      %v1554 = vpack.c.bf16 %v1508, %v1507
      %v1555 = vpack.c.bf16 %v1510, %v1509
      %v1556 = vpack.c.bf16 %v1512, %v1511
      %v1557 = vpack.c.bf16 %v1514, %v1513
      %v1558 = vpack.c.bf16 %v1516, %v1515
      %v1559 = vpack.c.bf16 %v1518, %v1517
      %v1560 = vpack.c.bf16 %v1520, %v1519
      %v1561 = vpack.c.bf16 %v1522, %v1521
      %v1562 = vpack.c.bf16 %v1524, %v1523
      %v1563 = vpack.c.bf16 %v1526, %v1525
      %v1564 = vpack.c.bf16 %v1528, %v1527
      %v1565 = vpack.c.bf16 %v1530, %v1529
      %v1566 = vpack.c.bf16 %v1532, %v1531
      %v1567 = vpack.c.bf16 %v1534, %v1533
      %v1568 = vpack.c.bf16 %v1536, %v1535
      %1569 = vst [vmem:[#allocation3 + $0x40] sm:$0xff] %v1537
      %1570 = vst [vmem:[#allocation3 + $0x88] sm:$0xff] %v1538
      %1571 = vst [vmem:[#allocation3 + $0xd0] sm:$0xff] %v1539
      %1572 = vst [vmem:[#allocation3 + $0x118] sm:$0xff] %v1540
      %1573 = vst [vmem:[#allocation3 + $0x160] sm:$0xff] %v1541
      %1574 = vst [vmem:[#allocation3 + $0x1a8] sm:$0xff] %v1542
      %1575 = vst [vmem:[#allocation3 + $0x1f0] sm:$0xff] %v1543
      %1576 = vst [vmem:[#allocation3 + $0x238] sm:$0xff] %v1544
      %1577 = vst [vmem:[#allocation3 + $0x280] sm:$0xff] %v1545
      %1578 = vst [vmem:[#allocation3 + $0x2c8] sm:$0xff] %v1546
      %1579 = vst [vmem:[#allocation3 + $0x310] sm:$0xff] %v1547
      %1580 = vst [vmem:[#allocation3 + $0x358] sm:$0xff] %v1548
      %1581 = vst [vmem:[#allocation3 + $0x3a0] sm:$0xff] %v1549
      %1582 = vst [vmem:[#allocation3 + $0x3e8] sm:$0xff] %v1550
      %1583 = vst [vmem:[#allocation3 + $0x430] sm:$0xff] %v1551
      %1584 = vst [vmem:[#allocation3 + $0x478] sm:$0xff] %v1552
      %1585 = vst [vmem:[#allocation3 + $0x4c0] sm:$0xff] %v1553
      %1586 = vst [vmem:[#allocation3 + $0x508] sm:$0xff] %v1554
      %1587 = vst [vmem:[#allocation3 + $0x550] sm:$0xff] %v1555
      %1588 = vst [vmem:[#allocation3 + $0x598] sm:$0xff] %v1556
      %1589 = vst [vmem:[#allocation3 + $0x5e0] sm:$0xff] %v1557
      %1590 = vst [vmem:[#allocation3 + $0x628] sm:$0xff] %v1558
      %1591 = vst [vmem:[#allocation3 + $0x670] sm:$0xff] %v1559
      %1592 = vst [vmem:[#allocation3 + $0x6b8] sm:$0xff] %v1560
      %1593 = vst [vmem:[#allocation3 + $0x700] sm:$0xff] %v1561
      %1594 = vst [vmem:[#allocation3 + $0x748] sm:$0xff] %v1562
      %1595 = vst [vmem:[#allocation3 + $0x790] sm:$0xff] %v1563
      %1596 = vst [vmem:[#allocation3 + $0x7d8] sm:$0xff] %v1564
      %1597 = vst [vmem:[#allocation3 + $0x820] sm:$0xff] %v1565
      %1598 = vst [vmem:[#allocation3 + $0x868] sm:$0xff] %v1566
      %1599 = vst [vmem:[#allocation3 + $0x8b0] sm:$0xff] %v1567
      %1600 = vst [vmem:[#allocation3 + $0x8f8] sm:$0xff] %v1568
      %v1601 = vld [vmem:[#allocation3] sm:$0xff]
      %v1602 = vld [vmem:[#allocation3 + $0x8] sm:$0xff]
      %v1603 = vld [vmem:[#allocation3 + $0x10] sm:$0xff]
      %v1604 = vld [vmem:[#allocation3 + $0x18] sm:$0xff]
      %v1605 = vld [vmem:[#allocation3 + $0x20] sm:$0xff]
      %v1606 = vld [vmem:[#allocation3 + $0x28] sm:$0xff]
      %v1607 = vld [vmem:[#allocation3 + $0x30] sm:$0xff]
      %v1608 = vld [vmem:[#allocation3 + $0x38] sm:$0xff]
      %v1609 = vld [vmem:[#allocation3 + $0x40] sm:$0xff]
      %v1610 = vld [vmem:[#allocation3 + $0x48] sm:$0xff]
      %v1611 = vld [vmem:[#allocation3 + $0x50] sm:$0xff]
      %v1612 = vld [vmem:[#allocation3 + $0x58] sm:$0xff]
      %v1613 = vld [vmem:[#allocation3 + $0x60] sm:$0xff]
      %v1614 = vld [vmem:[#allocation3 + $0x68] sm:$0xff]
      %v1615 = vld [vmem:[#allocation3 + $0x70] sm:$0xff]
      %v1616 = vld [vmem:[#allocation3 + $0x78] sm:$0xff]
      %v1617 = vld [vmem:[#allocation3 + $0x80] sm:$0xff]
      %v1618 = vld [vmem:[#allocation3 + $0x88] sm:$0xff]
      %v1619 = vld [vmem:[#allocation3 + $0x90] sm:$0xff]
      %v1620 = vld [vmem:[#allocation3 + $0x98] sm:$0xff]
      %v1621 = vld [vmem:[#allocation3 + $0xa0] sm:$0xff]
      %v1622 = vld [vmem:[#allocation3 + $0xa8] sm:$0xff]
      %v1623 = vld [vmem:[#allocation3 + $0xb0] sm:$0xff]
      %v1624 = vld [vmem:[#allocation3 + $0xb8] sm:$0xff]
      %v1625 = vld [vmem:[#allocation3 + $0xc0] sm:$0xff]
      %v1626 = vld [vmem:[#allocation3 + $0xc8] sm:$0xff]
      %v1627 = vld [vmem:[#allocation3 + $0xd0] sm:$0xff]
      %v1628 = vld [vmem:[#allocation3 + $0xd8] sm:$0xff]
      %v1629 = vld [vmem:[#allocation3 + $0xe0] sm:$0xff]
      %v1630 = vld [vmem:[#allocation3 + $0xe8] sm:$0xff]
      %v1631 = vld [vmem:[#allocation3 + $0xf0] sm:$0xff]
      %v1632 = vld [vmem:[#allocation3 + $0xf8] sm:$0xff]
      %v1633 = vld [vmem:[#allocation3 + $0x100] sm:$0xff]
      %v1634 = vld [vmem:[#allocation3 + $0x108] sm:$0xff]
      %v1635 = vld [vmem:[#allocation3 + $0x110] sm:$0xff]
      %v1636 = vld [vmem:[#allocation3 + $0x118] sm:$0xff]
      %v1637 = vld [vmem:[#allocation3 + $0x120] sm:$0xff]
      %v1638 = vld [vmem:[#allocation3 + $0x128] sm:$0xff]
      %v1639 = vld [vmem:[#allocation3 + $0x130] sm:$0xff]
      %v1640 = vld [vmem:[#allocation3 + $0x138] sm:$0xff]
      %v1641 = vld [vmem:[#allocation3 + $0x140] sm:$0xff]
      %v1642 = vld [vmem:[#allocation3 + $0x148] sm:$0xff]
      %v1643 = vld [vmem:[#allocation3 + $0x150] sm:$0xff]
      %v1644 = vld [vmem:[#allocation3 + $0x158] sm:$0xff]
      %v1645 = vld [vmem:[#allocation3 + $0x160] sm:$0xff]
      %v1646 = vld [vmem:[#allocation3 + $0x168] sm:$0xff]
      %v1647 = vld [vmem:[#allocation3 + $0x170] sm:$0xff]
      %v1648 = vld [vmem:[#allocation3 + $0x178] sm:$0xff]
      %v1649 = vld [vmem:[#allocation3 + $0x180] sm:$0xff]
      %v1650 = vld [vmem:[#allocation3 + $0x188] sm:$0xff]
      %v1651 = vld [vmem:[#allocation3 + $0x190] sm:$0xff]
      %v1652 = vld [vmem:[#allocation3 + $0x198] sm:$0xff]
      %v1653 = vld [vmem:[#allocation3 + $0x1a0] sm:$0xff]
      %v1654 = vld [vmem:[#allocation3 + $0x1a8] sm:$0xff]
      %v1655 = vld [vmem:[#allocation3 + $0x1b0] sm:$0xff]
      %v1656 = vld [vmem:[#allocation3 + $0x1b8] sm:$0xff]
      %v1657 = vld [vmem:[#allocation3 + $0x1c0] sm:$0xff]
      %v1658 = vld [vmem:[#allocation3 + $0x1c8] sm:$0xff]
      %v1659 = vld [vmem:[#allocation3 + $0x1d0] sm:$0xff]
      %v1660 = vld [vmem:[#allocation3 + $0x1d8] sm:$0xff]
      %v1661 = vld [vmem:[#allocation3 + $0x1e0] sm:$0xff]
      %v1662 = vld [vmem:[#allocation3 + $0x1e8] sm:$0xff]
      %v1663 = vld [vmem:[#allocation3 + $0x1f0] sm:$0xff]
      %v1664 = vld [vmem:[#allocation3 + $0x1f8] sm:$0xff]
      %v1665 = vld [vmem:[#allocation3 + $0x200] sm:$0xff]
      %v1666 = vld [vmem:[#allocation3 + $0x208] sm:$0xff]
      %v1667 = vld [vmem:[#allocation3 + $0x210] sm:$0xff]
      %v1668 = vld [vmem:[#allocation3 + $0x218] sm:$0xff]
      %v1669 = vld [vmem:[#allocation3 + $0x220] sm:$0xff]
      %v1670 = vld [vmem:[#allocation3 + $0x228] sm:$0xff]
      %v1671 = vld [vmem:[#allocation3 + $0x230] sm:$0xff]
      %v1672 = vld [vmem:[#allocation3 + $0x238] sm:$0xff]
      %v1673 = vld [vmem:[#allocation3 + $0x240] sm:$0xff]
      %v1674 = vld [vmem:[#allocation3 + $0x248] sm:$0xff]
      %v1675 = vld [vmem:[#allocation3 + $0x250] sm:$0xff]
      %v1676 = vld [vmem:[#allocation3 + $0x258] sm:$0xff]
      %v1677 = vld [vmem:[#allocation3 + $0x260] sm:$0xff]
      %v1678 = vld [vmem:[#allocation3 + $0x268] sm:$0xff]
      %v1679 = vld [vmem:[#allocation3 + $0x270] sm:$0xff]
      %v1680 = vld [vmem:[#allocation3 + $0x278] sm:$0xff]
      %v1681 = vld [vmem:[#allocation3 + $0x280] sm:$0xff]
      %v1682 = vld [vmem:[#allocation3 + $0x288] sm:$0xff]
      %v1683 = vld [vmem:[#allocation3 + $0x290] sm:$0xff]
      %v1684 = vld [vmem:[#allocation3 + $0x298] sm:$0xff]
      %v1685 = vld [vmem:[#allocation3 + $0x2a0] sm:$0xff]
      %v1686 = vld [vmem:[#allocation3 + $0x2a8] sm:$0xff]
      %v1687 = vld [vmem:[#allocation3 + $0x2b0] sm:$0xff]
      %v1688 = vld [vmem:[#allocation3 + $0x2b8] sm:$0xff]
      %v1689 = vld [vmem:[#allocation3 + $0x2c0] sm:$0xff]
      %v1690 = vld [vmem:[#allocation3 + $0x2c8] sm:$0xff]
      %v1691 = vld [vmem:[#allocation3 + $0x2d0] sm:$0xff]
      %v1692 = vld [vmem:[#allocation3 + $0x2d8] sm:$0xff]
      %v1693 = vld [vmem:[#allocation3 + $0x2e0] sm:$0xff]
      %v1694 = vld [vmem:[#allocation3 + $0x2e8] sm:$0xff]
      %v1695 = vld [vmem:[#allocation3 + $0x2f0] sm:$0xff]
      %v1696 = vld [vmem:[#allocation3 + $0x2f8] sm:$0xff]
      %v1697 = vld [vmem:[#allocation3 + $0x300] sm:$0xff]
      %v1698 = vld [vmem:[#allocation3 + $0x308] sm:$0xff]
      %v1699 = vld [vmem:[#allocation3 + $0x310] sm:$0xff]
      %v1700 = vld [vmem:[#allocation3 + $0x318] sm:$0xff]
      %v1701 = vld [vmem:[#allocation3 + $0x320] sm:$0xff]
      %v1702 = vld [vmem:[#allocation3 + $0x328] sm:$0xff]
      %v1703 = vld [vmem:[#allocation3 + $0x330] sm:$0xff]
      %v1704 = vld [vmem:[#allocation3 + $0x338] sm:$0xff]
      %v1705 = vld [vmem:[#allocation3 + $0x340] sm:$0xff]
      %v1706 = vld [vmem:[#allocation3 + $0x348] sm:$0xff]
      %v1707 = vld [vmem:[#allocation3 + $0x350] sm:$0xff]
      %v1708 = vld [vmem:[#allocation3 + $0x358] sm:$0xff]
      %v1709 = vld [vmem:[#allocation3 + $0x360] sm:$0xff]
      %v1710 = vld [vmem:[#allocation3 + $0x368] sm:$0xff]
      %v1711 = vld [vmem:[#allocation3 + $0x370] sm:$0xff]
      %v1712 = vld [vmem:[#allocation3 + $0x378] sm:$0xff]
      %v1713 = vld [vmem:[#allocation3 + $0x380] sm:$0xff]
      %v1714 = vld [vmem:[#allocation3 + $0x388] sm:$0xff]
      %v1715 = vld [vmem:[#allocation3 + $0x390] sm:$0xff]
      %v1716 = vld [vmem:[#allocation3 + $0x398] sm:$0xff]
      %v1717 = vld [vmem:[#allocation3 + $0x3a0] sm:$0xff]
      %v1718 = vld [vmem:[#allocation3 + $0x3a8] sm:$0xff]
      %v1719 = vld [vmem:[#allocation3 + $0x3b0] sm:$0xff]
      %v1720 = vld [vmem:[#allocation3 + $0x3b8] sm:$0xff]
      %v1721 = vld [vmem:[#allocation3 + $0x3c0] sm:$0xff]
      %v1722 = vld [vmem:[#allocation3 + $0x3c8] sm:$0xff]
      %v1723 = vld [vmem:[#allocation3 + $0x3d0] sm:$0xff]
      %v1724 = vld [vmem:[#allocation3 + $0x3d8] sm:$0xff]
      %v1725 = vld [vmem:[#allocation3 + $0x3e0] sm:$0xff]
      %v1726 = vld [vmem:[#allocation3 + $0x3e8] sm:$0xff]
      %v1727 = vld [vmem:[#allocation3 + $0x3f0] sm:$0xff]
      %v1728 = vld [vmem:[#allocation3 + $0x3f8] sm:$0xff]
      %v1729 = vld [vmem:[#allocation3 + $0x400] sm:$0xff]
      %v1730 = vld [vmem:[#allocation3 + $0x408] sm:$0xff]
      %v1731 = vld [vmem:[#allocation3 + $0x410] sm:$0xff]
      %v1732 = vld [vmem:[#allocation3 + $0x418] sm:$0xff]
      %v1733 = vld [vmem:[#allocation3 + $0x420] sm:$0xff]
      %v1734 = vld [vmem:[#allocation3 + $0x428] sm:$0xff]
      %v1735 = vld [vmem:[#allocation3 + $0x430] sm:$0xff]
      %v1736 = vld [vmem:[#allocation3 + $0x438] sm:$0xff]
      %v1737 = vld [vmem:[#allocation3 + $0x440] sm:$0xff]
      %v1738 = vld [vmem:[#allocation3 + $0x448] sm:$0xff]
      %v1739 = vld [vmem:[#allocation3 + $0x450] sm:$0xff]
      %v1740 = vld [vmem:[#allocation3 + $0x458] sm:$0xff]
      %v1741 = vld [vmem:[#allocation3 + $0x460] sm:$0xff]
      %v1742 = vld [vmem:[#allocation3 + $0x468] sm:$0xff]
      %v1743 = vld [vmem:[#allocation3 + $0x470] sm:$0xff]
      %v1744 = vld [vmem:[#allocation3 + $0x478] sm:$0xff]
      %v1745 = vld [vmem:[#allocation3 + $0x480] sm:$0xff]
      %v1746 = vld [vmem:[#allocation3 + $0x488] sm:$0xff]
      %v1747 = vld [vmem:[#allocation3 + $0x490] sm:$0xff]
      %v1748 = vld [vmem:[#allocation3 + $0x498] sm:$0xff]
      %v1749 = vld [vmem:[#allocation3 + $0x4a0] sm:$0xff]
      %v1750 = vld [vmem:[#allocation3 + $0x4a8] sm:$0xff]
      %v1751 = vld [vmem:[#allocation3 + $0x4b0] sm:$0xff]
      %v1752 = vld [vmem:[#allocation3 + $0x4b8] sm:$0xff]
      %v1753 = vld [vmem:[#allocation3 + $0x4c0] sm:$0xff]
      %v1754 = vld [vmem:[#allocation3 + $0x4c8] sm:$0xff]
      %v1755 = vld [vmem:[#allocation3 + $0x4d0] sm:$0xff]
      %v1756 = vld [vmem:[#allocation3 + $0x4d8] sm:$0xff]
      %v1757 = vld [vmem:[#allocation3 + $0x4e0] sm:$0xff]
      %v1758 = vld [vmem:[#allocation3 + $0x4e8] sm:$0xff]
      %v1759 = vld [vmem:[#allocation3 + $0x4f0] sm:$0xff]
      %v1760 = vld [vmem:[#allocation3 + $0x4f8] sm:$0xff]
      %v1761 = vld [vmem:[#allocation3 + $0x500] sm:$0xff]
      %v1762 = vld [vmem:[#allocation3 + $0x508] sm:$0xff]
      %v1763 = vld [vmem:[#allocation3 + $0x510] sm:$0xff]
      %v1764 = vld [vmem:[#allocation3 + $0x518] sm:$0xff]
      %v1765 = vld [vmem:[#allocation3 + $0x520] sm:$0xff]
      %v1766 = vld [vmem:[#allocation3 + $0x528] sm:$0xff]
      %v1767 = vld [vmem:[#allocation3 + $0x530] sm:$0xff]
      %v1768 = vld [vmem:[#allocation3 + $0x538] sm:$0xff]
      %v1769 = vld [vmem:[#allocation3 + $0x540] sm:$0xff]
      %v1770 = vld [vmem:[#allocation3 + $0x548] sm:$0xff]
      %v1771 = vld [vmem:[#allocation3 + $0x550] sm:$0xff]
      %v1772 = vld [vmem:[#allocation3 + $0x558] sm:$0xff]
      %v1773 = vld [vmem:[#allocation3 + $0x560] sm:$0xff]
      %v1774 = vld [vmem:[#allocation3 + $0x568] sm:$0xff]
      %v1775 = vld [vmem:[#allocation3 + $0x570] sm:$0xff]
      %v1776 = vld [vmem:[#allocation3 + $0x578] sm:$0xff]
      %v1777 = vld [vmem:[#allocation3 + $0x580] sm:$0xff]
      %v1778 = vld [vmem:[#allocation3 + $0x588] sm:$0xff]
      %v1779 = vld [vmem:[#allocation3 + $0x590] sm:$0xff]
      %v1780 = vld [vmem:[#allocation3 + $0x598] sm:$0xff]
      %v1781 = vld [vmem:[#allocation3 + $0x5a0] sm:$0xff]
      %v1782 = vld [vmem:[#allocation3 + $0x5a8] sm:$0xff]
      %v1783 = vld [vmem:[#allocation3 + $0x5b0] sm:$0xff]
      %v1784 = vld [vmem:[#allocation3 + $0x5b8] sm:$0xff]
      %v1785 = vld [vmem:[#allocation3 + $0x5c0] sm:$0xff]
      %v1786 = vld [vmem:[#allocation3 + $0x5c8] sm:$0xff]
      %v1787 = vld [vmem:[#allocation3 + $0x5d0] sm:$0xff]
      %v1788 = vld [vmem:[#allocation3 + $0x5d8] sm:$0xff]
      %v1789 = vld [vmem:[#allocation3 + $0x5e0] sm:$0xff]
      %v1790 = vld [vmem:[#allocation3 + $0x5e8] sm:$0xff]
      %v1791 = vld [vmem:[#allocation3 + $0x5f0] sm:$0xff]
      %v1792 = vld [vmem:[#allocation3 + $0x5f8] sm:$0xff]
      %v1793 = vld [vmem:[#allocation3 + $0x600] sm:$0xff]
      %v1794 = vld [vmem:[#allocation3 + $0x608] sm:$0xff]
      %v1795 = vld [vmem:[#allocation3 + $0x610] sm:$0xff]
      %v1796 = vld [vmem:[#allocation3 + $0x618] sm:$0xff]
      %v1797 = vld [vmem:[#allocation3 + $0x620] sm:$0xff]
      %v1798 = vld [vmem:[#allocation3 + $0x628] sm:$0xff]
      %v1799 = vld [vmem:[#allocation3 + $0x630] sm:$0xff]
      %v1800 = vld [vmem:[#allocation3 + $0x638] sm:$0xff]
      %v1801 = vld [vmem:[#allocation3 + $0x640] sm:$0xff]
      %v1802 = vld [vmem:[#allocation3 + $0x648] sm:$0xff]
      %v1803 = vld [vmem:[#allocation3 + $0x650] sm:$0xff]
      %v1804 = vld [vmem:[#allocation3 + $0x658] sm:$0xff]
      %v1805 = vld [vmem:[#allocation3 + $0x660] sm:$0xff]
      %v1806 = vld [vmem:[#allocation3 + $0x668] sm:$0xff]
      %v1807 = vld [vmem:[#allocation3 + $0x670] sm:$0xff]
      %v1808 = vld [vmem:[#allocation3 + $0x678] sm:$0xff]
      %v1809 = vld [vmem:[#allocation3 + $0x680] sm:$0xff]
      %v1810 = vld [vmem:[#allocation3 + $0x688] sm:$0xff]
      %v1811 = vld [vmem:[#allocation3 + $0x690] sm:$0xff]
      %v1812 = vld [vmem:[#allocation3 + $0x698] sm:$0xff]
      %v1813 = vld [vmem:[#allocation3 + $0x6a0] sm:$0xff]
      %v1814 = vld [vmem:[#allocation3 + $0x6a8] sm:$0xff]
      %v1815 = vld [vmem:[#allocation3 + $0x6b0] sm:$0xff]
      %v1816 = vld [vmem:[#allocation3 + $0x6b8] sm:$0xff]
      %v1817 = vld [vmem:[#allocation3 + $0x6c0] sm:$0xff]
      %v1818 = vld [vmem:[#allocation3 + $0x6c8] sm:$0xff]
      %v1819 = vld [vmem:[#allocation3 + $0x6d0] sm:$0xff]
      %v1820 = vld [vmem:[#allocation3 + $0x6d8] sm:$0xff]
      %v1821 = vld [vmem:[#allocation3 + $0x6e0] sm:$0xff]
      %v1822 = vld [vmem:[#allocation3 + $0x6e8] sm:$0xff]
      %v1823 = vld [vmem:[#allocation3 + $0x6f0] sm:$0xff]
      %v1824 = vld [vmem:[#allocation3 + $0x6f8] sm:$0xff]
      %v1825 = vld [vmem:[#allocation3 + $0x700] sm:$0xff]
      %v1826 = vld [vmem:[#allocation3 + $0x708] sm:$0xff]
      %v1827 = vld [vmem:[#allocation3 + $0x710] sm:$0xff]
      %v1828 = vld [vmem:[#allocation3 + $0x718] sm:$0xff]
      %v1829 = vld [vmem:[#allocation3 + $0x720] sm:$0xff]
      %v1830 = vld [vmem:[#allocation3 + $0x728] sm:$0xff]
      %v1831 = vld [vmem:[#allocation3 + $0x730] sm:$0xff]
      %v1832 = vld [vmem:[#allocation3 + $0x738] sm:$0xff]
      %v1833 = vld [vmem:[#allocation3 + $0x740] sm:$0xff]
      %v1834 = vld [vmem:[#allocation3 + $0x748] sm:$0xff]
      %v1835 = vld [vmem:[#allocation3 + $0x750] sm:$0xff]
      %v1836 = vld [vmem:[#allocation3 + $0x758] sm:$0xff]
      %v1837 = vld [vmem:[#allocation3 + $0x760] sm:$0xff]
      %v1838 = vld [vmem:[#allocation3 + $0x768] sm:$0xff]
      %v1839 = vld [vmem:[#allocation3 + $0x770] sm:$0xff]
      %v1840 = vld [vmem:[#allocation3 + $0x778] sm:$0xff]
      %v1841 = vld [vmem:[#allocation3 + $0x780] sm:$0xff]
      %v1842 = vld [vmem:[#allocation3 + $0x788] sm:$0xff]
      %v1843 = vld [vmem:[#allocation3 + $0x790] sm:$0xff]
      %v1844 = vld [vmem:[#allocation3 + $0x798] sm:$0xff]
      %v1845 = vld [vmem:[#allocation3 + $0x7a0] sm:$0xff]
      %v1846 = vld [vmem:[#allocation3 + $0x7a8] sm:$0xff]
      %v1847 = vld [vmem:[#allocation3 + $0x7b0] sm:$0xff]
      %v1848 = vld [vmem:[#allocation3 + $0x7b8] sm:$0xff]
      %v1849 = vld [vmem:[#allocation3 + $0x7c0] sm:$0xff]
      %v1850 = vld [vmem:[#allocation3 + $0x7c8] sm:$0xff]
      %v1851 = vld [vmem:[#allocation3 + $0x7d0] sm:$0xff]
      %v1852 = vld [vmem:[#allocation3 + $0x7d8] sm:$0xff]
      %v1853 = vld [vmem:[#allocation3 + $0x7e0] sm:$0xff]
      %v1854 = vld [vmem:[#allocation3 + $0x7e8] sm:$0xff]
      %v1855 = vld [vmem:[#allocation3 + $0x7f0] sm:$0xff]
      %v1856 = vld [vmem:[#allocation3 + $0x7f8] sm:$0xff]
      %v1857 = vld [vmem:[#allocation3 + $0x800] sm:$0xff]
      %v1858 = vld [vmem:[#allocation3 + $0x808] sm:$0xff]
      %v1859 = vld [vmem:[#allocation3 + $0x810] sm:$0xff]
      %v1860 = vld [vmem:[#allocation3 + $0x818] sm:$0xff]
      %v1861 = vld [vmem:[#allocation3 + $0x820] sm:$0xff]
      %v1862 = vld [vmem:[#allocation3 + $0x828] sm:$0xff]
      %v1863 = vld [vmem:[#allocation3 + $0x830] sm:$0xff]
      %v1864 = vld [vmem:[#allocation3 + $0x838] sm:$0xff]
      %v1865 = vld [vmem:[#allocation3 + $0x840] sm:$0xff]
      %v1866 = vld [vmem:[#allocation3 + $0x848] sm:$0xff]
      %v1867 = vld [vmem:[#allocation3 + $0x850] sm:$0xff]
      %v1868 = vld [vmem:[#allocation3 + $0x858] sm:$0xff]
      %v1869 = vld [vmem:[#allocation3 + $0x860] sm:$0xff]
      %v1870 = vld [vmem:[#allocation3 + $0x868] sm:$0xff]
      %v1871 = vld [vmem:[#allocation3 + $0x870] sm:$0xff]
      %v1872 = vld [vmem:[#allocation3 + $0x878] sm:$0xff]
      %v1873 = vld [vmem:[#allocation3 + $0x880] sm:$0xff]
      %v1874 = vld [vmem:[#allocation3 + $0x888] sm:$0xff]
      %v1875 = vld [vmem:[#allocation3 + $0x890] sm:$0xff]
      %v1876 = vld [vmem:[#allocation3 + $0x898] sm:$0xff]
      %v1877 = vld [vmem:[#allocation3 + $0x8a0] sm:$0xff]
      %v1878 = vld [vmem:[#allocation3 + $0x8a8] sm:$0xff]
      %v1879 = vld [vmem:[#allocation3 + $0x8b0] sm:$0xff]
      %v1880 = vld [vmem:[#allocation3 + $0x8b8] sm:$0xff]
      %v1881 = vld [vmem:[#allocation3 + $0x8c0] sm:$0xff]
      %v1882 = vld [vmem:[#allocation3 + $0x8c8] sm:$0xff]
      %v1883 = vld [vmem:[#allocation3 + $0x8d0] sm:$0xff]
      %v1884 = vld [vmem:[#allocation3 + $0x8d8] sm:$0xff]
      %v1885 = vld [vmem:[#allocation3 + $0x8e0] sm:$0xff]
      %v1886 = vld [vmem:[#allocation3 + $0x8e8] sm:$0xff]
      %v1887 = vld [vmem:[#allocation3 + $0x8f0] sm:$0xff]
      %v1888 = vld [vmem:[#allocation3 + $0x8f8] sm:$0xff]
      %v1889 = vld [vmem:[%s1] sm:$0xf]
      %v1890 = vld [vmem:[%s1 + $0x4] sm:$0xf]
      %v1891 = vld [vmem:[%s1 + $0x8] sm:$0xf]
      %v1892 = vld [vmem:[%s1 + $0xc] sm:$0xf]
      %v1893 = vld [vmem:[%s1 + $0x10] sm:$0xf]
      %v1894 = vld [vmem:[%s1 + $0x14] sm:$0xf]
      %v1895 = vld [vmem:[%s1 + $0x18] sm:$0xf]
      %v1896 = vld [vmem:[%s1 + $0x1c] sm:$0xf]
      %v1897 = vld [vmem:[%s1 + $0x20] sm:$0xf]
      %v1898 = vld [vmem:[%s1 + $0x24] sm:$0xf]
      %v1899 = vld [vmem:[%s1 + $0x28] sm:$0xf]
      %v1900 = vld [vmem:[%s1 + $0x2c] sm:$0xf]
      %v1901 = vld [vmem:[%s1 + $0x30] sm:$0xf]
      %v1902 = vld [vmem:[%s1 + $0x34] sm:$0xf]
      %v1903 = vld [vmem:[%s1 + $0x38] sm:$0xf]
      %v1904 = vld [vmem:[%s1 + $0x3c] sm:$0xf]
      %v1905 = vld [vmem:[%s1 + $0x40] sm:$0xf]
      %v1906 = vld [vmem:[%s1 + $0x44] sm:$0xf]
      %v1907 = vld [vmem:[%s1 + $0x48] sm:$0xf]
      %v1908 = vld [vmem:[%s1 + $0x4c] sm:$0xf]
      %v1909 = vld [vmem:[%s1 + $0x50] sm:$0xf]
      %v1910 = vld [vmem:[%s1 + $0x54] sm:$0xf]
      %v1911 = vld [vmem:[%s1 + $0x58] sm:$0xf]
      %v1912 = vld [vmem:[%s1 + $0x5c] sm:$0xf]
      %v1913 = vld [vmem:[%s1 + $0x60] sm:$0xf]
      %v1914 = vld [vmem:[%s1 + $0x64] sm:$0xf]
      %v1915 = vld [vmem:[%s1 + $0x68] sm:$0xf]
      %v1916 = vld [vmem:[%s1 + $0x6c] sm:$0xf]
      %v1917 = vld [vmem:[%s1 + $0x70] sm:$0xf]
      %v1918 = vld [vmem:[%s1 + $0x74] sm:$0xf]
      %v1919 = vld [vmem:[%s1 + $0x78] sm:$0xf]
      %v1920 = vld [vmem:[%s1 + $0x7c] sm:$0xf]
      %v1921 = vld [vmem:[%s1 + $0x80] sm:$0xf]
      %v1922 = vld [vmem:[%s1 + $0x84] sm:$0xf]
      %v1923 = vld [vmem:[%s1 + $0x88] sm:$0xf]
      %v1924 = vld [vmem:[%s1 + $0x8c] sm:$0xf]
      %v1925 = vld [vmem:[%s1 + $0x90] sm:$0xf]
      %v1926 = vld [vmem:[%s1 + $0x94] sm:$0xf]
      %v1927 = vld [vmem:[%s1 + $0x98] sm:$0xf]
      %v1928 = vld [vmem:[%s1 + $0x9c] sm:$0xf]
      %v1929 = vld [vmem:[%s1 + $0xa0] sm:$0xf]
      %v1930 = vld [vmem:[%s1 + $0xa4] sm:$0xf]
      %v1931 = vld [vmem:[%s1 + $0xa8] sm:$0xf]
      %v1932 = vld [vmem:[%s1 + $0xac] sm:$0xf]
      %v1933 = vld [vmem:[%s1 + $0xb0] sm:$0xf]
      %v1934 = vld [vmem:[%s1 + $0xb4] sm:$0xf]
      %v1935 = vld [vmem:[%s1 + $0xb8] sm:$0xf]
      %v1936 = vld [vmem:[%s1 + $0xbc] sm:$0xf]
      %v1937 = vld [vmem:[%s1 + $0xc0] sm:$0xf]
      %v1938 = vld [vmem:[%s1 + $0xc4] sm:$0xf]
      %v1939 = vld [vmem:[%s1 + $0xc8] sm:$0xf]
      %v1940 = vld [vmem:[%s1 + $0xcc] sm:$0xf]
      %v1941 = vld [vmem:[%s1 + $0xd0] sm:$0xf]
      %v1942 = vld [vmem:[%s1 + $0xd4] sm:$0xf]
      %v1943 = vld [vmem:[%s1 + $0xd8] sm:$0xf]
      %v1944 = vld [vmem:[%s1 + $0xdc] sm:$0xf]
      %v1945 = vld [vmem:[%s1 + $0xe0] sm:$0xf]
      %v1946 = vld [vmem:[%s1 + $0xe4] sm:$0xf]
      %v1947 = vld [vmem:[%s1 + $0xe8] sm:$0xf]
      %v1948 = vld [vmem:[%s1 + $0xec] sm:$0xf]
      %v1949 = vld [vmem:[%s1 + $0xf0] sm:$0xf]
      %v1950 = vld [vmem:[%s1 + $0xf4] sm:$0xf]
      %v1951 = vld [vmem:[%s1 + $0xf8] sm:$0xf]
      %v1952 = vld [vmem:[%s1 + $0xfc] sm:$0xf]
      %v1953 = vld [vmem:[%s1 + $0x100] sm:$0xf]
      %v1954 = vld [vmem:[%s1 + $0x104] sm:$0xf]
      %v1955 = vld [vmem:[%s1 + $0x108] sm:$0xf]
      %v1956 = vld [vmem:[%s1 + $0x10c] sm:$0xf]
      %v1957 = vld [vmem:[%s1 + $0x110] sm:$0xf]
      %v1958 = vld [vmem:[%s1 + $0x114] sm:$0xf]
      %v1959 = vld [vmem:[%s1 + $0x118] sm:$0xf]
      %v1960 = vld [vmem:[%s1 + $0x11c] sm:$0xf]
      %v1961 = vld [vmem:[%s1 + $0x120] sm:$0xf]
      %v1962 = vld [vmem:[%s1 + $0x124] sm:$0xf]
      %v1963 = vld [vmem:[%s1 + $0x128] sm:$0xf]
      %v1964 = vld [vmem:[%s1 + $0x12c] sm:$0xf]
      %v1965 = vld [vmem:[%s1 + $0x130] sm:$0xf]
      %v1966 = vld [vmem:[%s1 + $0x134] sm:$0xf]
      %v1967 = vld [vmem:[%s1 + $0x138] sm:$0xf]
      %v1968 = vld [vmem:[%s1 + $0x13c] sm:$0xf]
      %v1969 = vld [vmem:[%s1 + $0x140] sm:$0xf]
      %v1970 = vld [vmem:[%s1 + $0x144] sm:$0xf]
      %v1971 = vld [vmem:[%s1 + $0x148] sm:$0xf]
      %v1972 = vld [vmem:[%s1 + $0x14c] sm:$0xf]
      %v1973 = vld [vmem:[%s1 + $0x150] sm:$0xf]
      %v1974 = vld [vmem:[%s1 + $0x154] sm:$0xf]
      %v1975 = vld [vmem:[%s1 + $0x158] sm:$0xf]
      %v1976 = vld [vmem:[%s1 + $0x15c] sm:$0xf]
      %v1977 = vld [vmem:[%s1 + $0x160] sm:$0xf]
      %v1978 = vld [vmem:[%s1 + $0x164] sm:$0xf]
      %v1979 = vld [vmem:[%s1 + $0x168] sm:$0xf]
      %v1980 = vld [vmem:[%s1 + $0x16c] sm:$0xf]
      %v1981 = vld [vmem:[%s1 + $0x170] sm:$0xf]
      %v1982 = vld [vmem:[%s1 + $0x174] sm:$0xf]
      %v1983 = vld [vmem:[%s1 + $0x178] sm:$0xf]
      %v1984 = vld [vmem:[%s1 + $0x17c] sm:$0xf]
      %v1985 = vld [vmem:[%s1 + $0x180] sm:$0xf]
      %v1986 = vld [vmem:[%s1 + $0x184] sm:$0xf]
      %v1987 = vld [vmem:[%s1 + $0x188] sm:$0xf]
      %v1988 = vld [vmem:[%s1 + $0x18c] sm:$0xf]
      %v1989 = vld [vmem:[%s1 + $0x190] sm:$0xf]
      %v1990 = vld [vmem:[%s1 + $0x194] sm:$0xf]
      %v1991 = vld [vmem:[%s1 + $0x198] sm:$0xf]
      %v1992 = vld [vmem:[%s1 + $0x19c] sm:$0xf]
      %v1993 = vld [vmem:[%s1 + $0x1a0] sm:$0xf]
      %v1994 = vld [vmem:[%s1 + $0x1a4] sm:$0xf]
      %v1995 = vld [vmem:[%s1 + $0x1a8] sm:$0xf]
      %v1996 = vld [vmem:[%s1 + $0x1ac] sm:$0xf]
      %v1997 = vld [vmem:[%s1 + $0x1b0] sm:$0xf]
      %v1998 = vld [vmem:[%s1 + $0x1b4] sm:$0xf]
      %v1999 = vld [vmem:[%s1 + $0x1b8] sm:$0xf]
      %v2000 = vld [vmem:[%s1 + $0x1bc] sm:$0xf]
      %v2001 = vld [vmem:[%s1 + $0x1c0] sm:$0xf]
      %v2002 = vld [vmem:[%s1 + $0x1c4] sm:$0xf]
      %v2003 = vld [vmem:[%s1 + $0x1c8] sm:$0xf]
      %v2004 = vld [vmem:[%s1 + $0x1cc] sm:$0xf]
      %v2005 = vld [vmem:[%s1 + $0x1d0] sm:$0xf]
      %v2006 = vld [vmem:[%s1 + $0x1d4] sm:$0xf]
      %v2007 = vld [vmem:[%s1 + $0x1d8] sm:$0xf]
      %v2008 = vld [vmem:[%s1 + $0x1dc] sm:$0xf]
      %v2009 = vld [vmem:[%s1 + $0x1e0] sm:$0xf]
      %v2010 = vld [vmem:[%s1 + $0x1e4] sm:$0xf]
      %v2011 = vld [vmem:[%s1 + $0x1e8] sm:$0xf]
      %v2012 = vld [vmem:[%s1 + $0x1ec] sm:$0xf]
      %v2013 = vld [vmem:[%s1 + $0x1f0] sm:$0xf]
      %v2014 = vld [vmem:[%s1 + $0x1f4] sm:$0xf]
      %v2015 = vld [vmem:[%s1 + $0x1f8] sm:$0xf]
      %v2016 = vld [vmem:[%s1 + $0x1fc] sm:$0xf]
      %v2017 = vld [vmem:[%s1 + $0x200] sm:$0xf]
      %v2018 = vld [vmem:[%s1 + $0x204] sm:$0xf]
      %v2019 = vld [vmem:[%s1 + $0x208] sm:$0xf]
      %v2020 = vld [vmem:[%s1 + $0x20c] sm:$0xf]
      %v2021 = vld [vmem:[%s1 + $0x210] sm:$0xf]
      %v2022 = vld [vmem:[%s1 + $0x214] sm:$0xf]
      %v2023 = vld [vmem:[%s1 + $0x218] sm:$0xf]
      %v2024 = vld [vmem:[%s1 + $0x21c] sm:$0xf]
      %v2025 = vld [vmem:[%s1 + $0x220] sm:$0xf]
      %v2026 = vld [vmem:[%s1 + $0x224] sm:$0xf]
      %v2027 = vld [vmem:[%s1 + $0x228] sm:$0xf]
      %v2028 = vld [vmem:[%s1 + $0x22c] sm:$0xf]
      %v2029 = vld [vmem:[%s1 + $0x230] sm:$0xf]
      %v2030 = vld [vmem:[%s1 + $0x234] sm:$0xf]
      %v2031 = vld [vmem:[%s1 + $0x238] sm:$0xf]
      %v2032 = vld [vmem:[%s1 + $0x23c] sm:$0xf]
      %v2033 = vld [vmem:[%s2] sm:$0x1]
      %v2035 = vlaneseq
      %v2036 = vshrl.u32 %v2035, 7
      %v2037 = vsub.s32 0, %v2036
      %v2038 = vrot.slane %v2033, %v2037
      %v2184 = vunpack.c.l.b16 %v1889
      %v2185 = vunpack.c.l.b16 %v1890
      %v2186 = vunpack.c.l.b16 %v1891
      %v2187 = vunpack.c.l.b16 %v1892
      %v2188 = vunpack.c.l.b16 %v1893
      %v2189 = vunpack.c.l.b16 %v1894
      %v2190 = vunpack.c.l.b16 %v1895
      %v2191 = vunpack.c.l.b16 %v1896
      %v2192 = vunpack.c.l.b16 %v1897
      %v2193 = vunpack.c.l.b16 %v1898
      %v2194 = vunpack.c.l.b16 %v1899
      %v2195 = vunpack.c.l.b16 %v1900
      %v2196 = vunpack.c.l.b16 %v1901
      %v2197 = vunpack.c.l.b16 %v1902
      %v2198 = vunpack.c.l.b16 %v1903
      %v2199 = vunpack.c.l.b16 %v1904
      %v2200 = vunpack.c.l.b16 %v1905
      %v2201 = vunpack.c.l.b16 %v1906
      %v2202 = vunpack.c.l.b16 %v1907
      %v2203 = vunpack.c.l.b16 %v1908
      %v2204 = vunpack.c.l.b16 %v1909
      %v2205 = vunpack.c.l.b16 %v1910
      %v2206 = vunpack.c.l.b16 %v1911
      %v2207 = vunpack.c.l.b16 %v1912
      %v2208 = vunpack.c.l.b16 %v1913
      %v2209 = vunpack.c.l.b16 %v1914
      %v2210 = vunpack.c.l.b16 %v1915
      %v2211 = vunpack.c.l.b16 %v1916
      %v2212 = vunpack.c.l.b16 %v1917
      %v2213 = vunpack.c.l.b16 %v1918
      %v2214 = vunpack.c.l.b16 %v1919
      %v2215 = vunpack.c.l.b16 %v1920
      %v2216 = vunpack.c.l.b16 %v1921
      %v2217 = vunpack.c.l.b16 %v1922
      %v2218 = vunpack.c.l.b16 %v1923
      %v2219 = vunpack.c.l.b16 %v1924
      %v2220 = vunpack.c.l.b16 %v1925
      %v2221 = vunpack.c.l.b16 %v1926
      %v2222 = vunpack.c.l.b16 %v1927
      %v2223 = vunpack.c.l.b16 %v1928
      %v2224 = vunpack.c.l.b16 %v1929
      %v2225 = vunpack.c.l.b16 %v1930
      %v2226 = vunpack.c.l.b16 %v1931
      %v2227 = vunpack.c.l.b16 %v1932
      %v2228 = vunpack.c.l.b16 %v1933
      %v2229 = vunpack.c.l.b16 %v1934
      %v2230 = vunpack.c.l.b16 %v1935
      %v2231 = vunpack.c.l.b16 %v1936
      %v2232 = vunpack.c.l.b16 %v1937
      %v2233 = vunpack.c.l.b16 %v1938
      %v2234 = vunpack.c.l.b16 %v1939
      %v2235 = vunpack.c.l.b16 %v1940
      %v2236 = vunpack.c.l.b16 %v1941
      %v2237 = vunpack.c.l.b16 %v1942
      %v2238 = vunpack.c.l.b16 %v1943
      %v2239 = vunpack.c.l.b16 %v1944
      %v2240 = vunpack.c.l.b16 %v1945
      %v2241 = vunpack.c.l.b16 %v1946
      %v2242 = vunpack.c.l.b16 %v1947
      %v2243 = vunpack.c.l.b16 %v1948
      %v2244 = vunpack.c.l.b16 %v1949
      %v2245 = vunpack.c.l.b16 %v1950
      %v2246 = vunpack.c.l.b16 %v1951
      %v2247 = vunpack.c.l.b16 %v1952
      %v2248 = vunpack.c.l.b16 %v1953
      %v2249 = vunpack.c.l.b16 %v1954
      %v2250 = vunpack.c.l.b16 %v1955
      %v2251 = vunpack.c.l.b16 %v1956
      %v2252 = vunpack.c.l.b16 %v1957
      %v2253 = vunpack.c.l.b16 %v1958
      %v2254 = vunpack.c.l.b16 %v1959
      %v2255 = vunpack.c.l.b16 %v1960
      %v2256 = vunpack.c.l.b16 %v1961
      %v2257 = vunpack.c.l.b16 %v1962
      %v2258 = vunpack.c.l.b16 %v1963
      %v2259 = vunpack.c.l.b16 %v1964
      %v2260 = vunpack.c.l.b16 %v1965
      %v2261 = vunpack.c.l.b16 %v1966
      %v2262 = vunpack.c.l.b16 %v1967
      %v2263 = vunpack.c.l.b16 %v1968
      %v2264 = vunpack.c.l.b16 %v1969
      %v2265 = vunpack.c.l.b16 %v1970
      %v2266 = vunpack.c.l.b16 %v1971
      %v2267 = vunpack.c.l.b16 %v1972
      %v2268 = vunpack.c.l.b16 %v1973
      %v2269 = vunpack.c.l.b16 %v1974
      %v2270 = vunpack.c.l.b16 %v1975
      %v2271 = vunpack.c.l.b16 %v1976
      %v2272 = vunpack.c.l.b16 %v1977
      %v2273 = vunpack.c.l.b16 %v1978
      %v2274 = vunpack.c.l.b16 %v1979
      %v2275 = vunpack.c.l.b16 %v1980
      %v2276 = vunpack.c.l.b16 %v1981
      %v2277 = vunpack.c.l.b16 %v1982
      %v2278 = vunpack.c.l.b16 %v1983
      %v2279 = vunpack.c.l.b16 %v1984
      %v2280 = vunpack.c.l.b16 %v1985
      %v2281 = vunpack.c.l.b16 %v1986
      %v2282 = vunpack.c.l.b16 %v1987
      %v2283 = vunpack.c.l.b16 %v1988
      %v2284 = vunpack.c.l.b16 %v1989
      %v2285 = vunpack.c.l.b16 %v1990
      %v2286 = vunpack.c.l.b16 %v1991
      %v2287 = vunpack.c.l.b16 %v1992
      %v2288 = vunpack.c.l.b16 %v1993
      %v2289 = vunpack.c.l.b16 %v1994
      %v2290 = vunpack.c.l.b16 %v1995
      %v2291 = vunpack.c.l.b16 %v1996
      %v2292 = vunpack.c.l.b16 %v1997
      %v2293 = vunpack.c.l.b16 %v1998
      %v2294 = vunpack.c.l.b16 %v1999
      %v2295 = vunpack.c.l.b16 %v2000
      %v2296 = vunpack.c.l.b16 %v2001
      %v2297 = vunpack.c.l.b16 %v2002
      %v2298 = vunpack.c.l.b16 %v2003
      %v2299 = vunpack.c.l.b16 %v2004
      %v2300 = vunpack.c.l.b16 %v2005
      %v2301 = vunpack.c.l.b16 %v2006
      %v2302 = vunpack.c.l.b16 %v2007
      %v2303 = vunpack.c.l.b16 %v2008
      %v2304 = vunpack.c.l.b16 %v2009
      %v2305 = vunpack.c.l.b16 %v2010
      %v2306 = vunpack.c.l.b16 %v2011
      %v2307 = vunpack.c.l.b16 %v2012
      %v2308 = vunpack.c.l.b16 %v2013
      %v2309 = vunpack.c.l.b16 %v2014
      %v2310 = vunpack.c.l.b16 %v2015
      %v2311 = vunpack.c.l.b16 %v2016
      %v2312 = vunpack.c.l.b16 %v2017
      %v2313 = vunpack.c.l.b16 %v2018
      %v2314 = vunpack.c.l.b16 %v2019
      %v2315 = vunpack.c.l.b16 %v2020
      %v2316 = vunpack.c.l.b16 %v2021
      %v2317 = vunpack.c.l.b16 %v2022
      %v2318 = vunpack.c.l.b16 %v2023
      %v2319 = vunpack.c.l.b16 %v2024
      %v2320 = vunpack.c.l.b16 %v2025
      %v2321 = vunpack.c.l.b16 %v2026
      %v2322 = vunpack.c.l.b16 %v2027
      %v2323 = vunpack.c.l.b16 %v2028
      %v2324 = vunpack.c.l.b16 %v2029
      %v2325 = vunpack.c.l.b16 %v2030
      %v2326 = vunpack.c.l.b16 %v2031
      %v2327 = vunpack.c.l.b16 %v2032
      %v2328 = vpack.c.b16 %v2185, %v2184
      %v2329 = vpack.c.b16 %v2187, %v2186
      %v2330 = vpack.c.b16 %v2189, %v2188
      %v2331 = vpack.c.b16 %v2191, %v2190
      %v2332 = vpack.c.b16 %v2193, %v2192
      %v2333 = vpack.c.b16 %v2195, %v2194
      %v2334 = vpack.c.b16 %v2197, %v2196
      %v2335 = vpack.c.b16 %v2199, %v2198
      %v2336 = vpack.c.b16 %v2201, %v2200
      %v2337 = vpack.c.b16 %v2203, %v2202
      %v2338 = vpack.c.b16 %v2205, %v2204
      %v2339 = vpack.c.b16 %v2207, %v2206
      %v2340 = vpack.c.b16 %v2209, %v2208
      %v2341 = vpack.c.b16 %v2211, %v2210
      %v2342 = vpack.c.b16 %v2213, %v2212
      %v2343 = vpack.c.b16 %v2215, %v2214
      %v2344 = vpack.c.b16 %v2217, %v2216
      %v2345 = vpack.c.b16 %v2219, %v2218
      %v2346 = vpack.c.b16 %v2221, %v2220
      %v2347 = vpack.c.b16 %v2223, %v2222
      %v2348 = vpack.c.b16 %v2225, %v2224
      %v2349 = vpack.c.b16 %v2227, %v2226
      %v2350 = vpack.c.b16 %v2229, %v2228
      %v2351 = vpack.c.b16 %v2231, %v2230
      %v2352 = vpack.c.b16 %v2233, %v2232
      %v2353 = vpack.c.b16 %v2235, %v2234
      %v2354 = vpack.c.b16 %v2237, %v2236
      %v2355 = vpack.c.b16 %v2239, %v2238
      %v2356 = vpack.c.b16 %v2241, %v2240
      %v2357 = vpack.c.b16 %v2243, %v2242
      %v2358 = vpack.c.b16 %v2245, %v2244
      %v2359 = vpack.c.b16 %v2247, %v2246
      %v2360 = vpack.c.b16 %v2249, %v2248
      %v2361 = vpack.c.b16 %v2251, %v2250
      %v2362 = vpack.c.b16 %v2253, %v2252
      %v2363 = vpack.c.b16 %v2255, %v2254
      %v2364 = vpack.c.b16 %v2257, %v2256
      %v2365 = vpack.c.b16 %v2259, %v2258
      %v2366 = vpack.c.b16 %v2261, %v2260
      %v2367 = vpack.c.b16 %v2263, %v2262
      %v2368 = vpack.c.b16 %v2265, %v2264
      %v2369 = vpack.c.b16 %v2267, %v2266
      %v2370 = vpack.c.b16 %v2269, %v2268
      %v2371 = vpack.c.b16 %v2271, %v2270
      %v2372 = vpack.c.b16 %v2273, %v2272
      %v2373 = vpack.c.b16 %v2275, %v2274
      %v2374 = vpack.c.b16 %v2277, %v2276
      %v2375 = vpack.c.b16 %v2279, %v2278
      %v2376 = vpack.c.b16 %v2281, %v2280
      %v2377 = vpack.c.b16 %v2283, %v2282
      %v2378 = vpack.c.b16 %v2285, %v2284
      %v2379 = vpack.c.b16 %v2287, %v2286
      %v2380 = vpack.c.b16 %v2289, %v2288
      %v2381 = vpack.c.b16 %v2291, %v2290
      %v2382 = vpack.c.b16 %v2293, %v2292
      %v2383 = vpack.c.b16 %v2295, %v2294
      %v2384 = vpack.c.b16 %v2297, %v2296
      %v2385 = vpack.c.b16 %v2299, %v2298
      %v2386 = vpack.c.b16 %v2301, %v2300
      %v2387 = vpack.c.b16 %v2303, %v2302
      %v2388 = vpack.c.b16 %v2305, %v2304
      %v2389 = vpack.c.b16 %v2307, %v2306
      %v2390 = vpack.c.b16 %v2309, %v2308
      %v2391 = vpack.c.b16 %v2311, %v2310
      %v2392 = vpack.c.b16 %v2313, %v2312
      %v2393 = vpack.c.b16 %v2315, %v2314
      %v2394 = vpack.c.b16 %v2317, %v2316
      %v2395 = vpack.c.b16 %v2319, %v2318
      %v2396 = vpack.c.b16 %v2321, %v2320
      %v2397 = vpack.c.b16 %v2323, %v2322
      %v2398 = vpack.c.b16 %v2325, %v2324
      %v2399 = vpack.c.b16 %v2327, %v2326
      %2472 = vmatprep.subr.bf16.mxu0 0
      %2473 = vmatpush1.bf16.msra.mxu0 %v2328
      %2474 = vmatprep.subr.bf16.mxu0 0
      %2475 = vmatpush1.bf16.msra.mxu0 %v2329
      %2476 = vmatprep.subr.bf16.mxu0 0
      %2477 = vmatpush1.bf16.msra.mxu0 %v2330
      %2478 = vmatprep.subr.bf16.mxu0 0
      %2479 = vmatpush1.bf16.msra.mxu0 %v2331
      %2480 = vmatprep.subr.bf16.mxu0 0
      %2481 = vmatpush1.bf16.msra.mxu0 %v2332
      %2482 = vmatprep.subr.bf16.mxu0 0
      %2483 = vmatpush1.bf16.msra.mxu0 %v2333
      %2484 = vmatprep.subr.bf16.mxu0 0
      %2485 = vmatpush1.bf16.msra.mxu0 %v2334
      %2486 = vmatprep.subr.bf16.mxu0 0
      %2487 = vmatpush1.bf16.msra.mxu0 %v2335
      %2488 = vmatprep.subr.bf16.mxu0 0
      %2489 = vmatpush1.bf16.msra.mxu0 %v2336
      %2490 = vmatprep.subr.bf16.mxu0 0
      %2491 = vmatpush1.bf16.msra.mxu0 %v2337
      %2492 = vmatprep.subr.bf16.mxu0 0
      %2493 = vmatpush1.bf16.msra.mxu0 %v2338
      %2494 = vmatprep.subr.bf16.mxu0 0
      %2495 = vmatpush1.bf16.msra.mxu0 %v2339
      %2496 = vmatprep.subr.bf16.mxu0 0
      %2497 = vmatpush1.bf16.msra.mxu0 %v2340
      %2498 = vmatprep.subr.bf16.mxu0 0
      %2499 = vmatpush1.bf16.msra.mxu0 %v2341
      %2500 = vmatprep.subr.bf16.mxu0 0
      %2501 = vmatpush1.bf16.msra.mxu0 %v2342
      %2502 = vmatprep.subr.bf16.mxu0 0
      %2503 = vmatpush1.bf16.msra.mxu0 %v2343
      %2504 = vmatprep.mubr.bf16.mxu0 %v1602
      %2505 = vmatmul.mubr.bf16.gmra.mrb[0].mxu0 %v1601
      %v2506 = vpop.f32.mrb[0].mxu0
      %v2507 = vadd.f32 %v2038, %v2506
      %v2508 = vpop.f32.mrb[0].mxu0
      %v2509 = vpop.f32.mrb[0].mxu0
      %v2510 = vadd.f32 %v2038, %v2509
      %v2511 = vpop.f32.mrb[0].mxu0
      %2512 = vmatprep.mubr.bf16.mxu0 %v1611
      %2513 = vmatmul.mubr.bf16.gmra.mrb[0].mxu0 %v1610
      %v2514 = vpop.f32.mrb[0].mxu0
      %v2515 = vadd.f32 %v2038, %v2514
      %v2516 = vpop.f32.mrb[0].mxu0
      %v2517 = vpop.f32.mrb[0].mxu0
      %v2518 = vadd.f32 %v2038, %v2517
      %v2519 = vpop.f32.mrb[0].mxu0
      %2520 = vmatprep.mubr.bf16.mxu0 %v1620
      %2521 = vmatmul.mubr.bf16.gmra.mrb[0].mxu0 %v1619
      %v2522 = vpop.f32.mrb[0].mxu0
      %v2523 = vadd.f32 %v2038, %v2522
      %v2524 = vpop.f32.mrb[0].mxu0
      %v2525 = vpop.f32.mrb[0].mxu0
      %v2526 = vadd.f32 %v2038, %v2525
      %v2527 = vpop.f32.mrb[0].mxu0
      %2528 = vmatprep.mubr.bf16.mxu0 %v1629
      %2529 = vmatmul.mubr.bf16.gmra.mrb[0].mxu0 %v1628
      %v2530 = vpop.f32.mrb[0].mxu0
      %v2531 = vadd.f32 %v2038, %v2530
      %v2532 = vpop.f32.mrb[0].mxu0
      %v2533 = vpop.f32.mrb[0].mxu0
      %v2534 = vadd.f32 %v2038, %v2533
      %v2535 = vpop.f32.mrb[0].mxu0
      %2536 = vmatprep.mubr.bf16.mxu0 %v1638
      %2537 = vmatmul.mubr.bf16.gmra.mrb[0].mxu0 %v1637
      %v2538 = vpop.f32.mrb[0].mxu0
      %v2539 = vadd.f32 %v2038, %v2538
      %v2540 = vpop.f32.mrb[0].mxu0
      %v2541 = vpop.f32.mrb[0].mxu0
      %v2542 = vadd.f32 %v2038, %v2541
      %v2543 = vpop.f32.mrb[0].mxu0
      %2544 = vmatprep.mubr.bf16.mxu0 %v1647
      %2545 = vmatmul.mubr.bf16.gmra.mrb[0].mxu0 %v1646
      %v2546 = vpop.f32.mrb[0].mxu0
      %v2547 = vadd.f32 %v2038, %v2546
      %v2548 = vpop.f32.mrb[0].mxu0
      %v2549 = vpop.f32.mrb[0].mxu0
      %v2550 = vadd.f32 %v2038, %v2549
      %v2551 = vpop.f32.mrb[0].mxu0
      %2552 = vmatprep.mubr.bf16.mxu0 %v1656
      %2553 = vmatmul.mubr.bf16.gmra.mrb[0].mxu0 %v1655
      %v2554 = vpop.f32.mrb[0].mxu0
      %v2555 = vadd.f32 %v2038, %v2554
      %v2556 = vpop.f32.mrb[0].mxu0
      %v2557 = vpop.f32.mrb[0].mxu0
      %v2558 = vadd.f32 %v2038, %v2557
      %v2559 = vpop.f32.mrb[0].mxu0
      %2560 = vmatprep.mubr.bf16.mxu0 %v1665
      %2561 = vmatmul.mubr.bf16.gmra.mrb[0].mxu0 %v1664
      %v2562 = vpop.f32.mrb[0].mxu0
      %v2563 = vadd.f32 %v2038, %v2562
      %v2564 = vpop.f32.mrb[0].mxu0
      %v2565 = vpop.f32.mrb[0].mxu0
      %v2566 = vadd.f32 %v2038, %v2565
      %v2567 = vpop.f32.mrb[0].mxu0
      %2568 = vmatprep.mubr.bf16.mxu0 %v1674
      %2569 = vmatmul.mubr.bf16.gmra.mrb[0].mxu0 %v1673
      %v2570 = vpop.f32.mrb[0].mxu0
      %v2571 = vadd.f32 %v2038, %v2570
      %v2572 = vpop.f32.mrb[0].mxu0
      %v2573 = vpop.f32.mrb[0].mxu0
      %v2574 = vadd.f32 %v2038, %v2573
      %v2575 = vpop.f32.mrb[0].mxu0
      %2576 = vmatprep.mubr.bf16.mxu0 %v1683
      %2577 = vmatmul.mubr.bf16.gmra.mrb[0].mxu0 %v1682
      %v2578 = vpop.f32.mrb[0].mxu0
      %v2579 = vadd.f32 %v2038, %v2578
      %v2580 = vpop.f32.mrb[0].mxu0
      %v2581 = vpop.f32.mrb[0].mxu0
      %v2582 = vadd.f32 %v2038, %v2581
      %v2583 = vpop.f32.mrb[0].mxu0
      %2584 = vmatprep.mubr.bf16.mxu0 %v1692
      %2585 = vmatmul.mubr.bf16.gmra.mrb[0].mxu0 %v1691
      %v2586 = vpop.f32.mrb[0].mxu0
      %v2587 = vadd.f32 %v2038, %v2586
      %v2588 = vpop.f32.mrb[0].mxu0
      %v2589 = vpop.f32.mrb[0].mxu0
      %v2590 = vadd.f32 %v2038, %v2589
      %v2591 = vpop.f32.mrb[0].mxu0
      %2592 = vmatprep.mubr.bf16.mxu0 %v1701
      %2593 = vmatmul.mubr.bf16.gmra.mrb[0].mxu0 %v1700
      %v2594 = vpop.f32.mrb[0].mxu0
      %v2595 = vadd.f32 %v2038, %v2594
      %v2596 = vpop.f32.mrb[0].mxu0
      %v2597 = vpop.f32.mrb[0].mxu0
      %v2598 = vadd.f32 %v2038, %v2597
      %v2599 = vpop.f32.mrb[0].mxu0
      %2600 = vmatprep.mubr.bf16.mxu0 %v1710
      %2601 = vmatmul.mubr.bf16.gmra.mrb[0].mxu0 %v1709
      %v2602 = vpop.f32.mrb[0].mxu0
      %v2603 = vadd.f32 %v2038, %v2602
      %v2604 = vpop.f32.mrb[0].mxu0
      %v2605 = vpop.f32.mrb[0].mxu0
      %v2606 = vadd.f32 %v2038, %v2605
      %v2607 = vpop.f32.mrb[0].mxu0
      %2608 = vmatprep.mubr.bf16.mxu0 %v1719
      %2609 = vmatmul.mubr.bf16.gmra.mrb[0].mxu0 %v1718
      %v2610 = vpop.f32.mrb[0].mxu0
      %v2611 = vadd.f32 %v2038, %v2610
      %v2612 = vpop.f32.mrb[0].mxu0
      %v2613 = vpop.f32.mrb[0].mxu0
      %v2614 = vadd.f32 %v2038, %v2613
      %v2615 = vpop.f32.mrb[0].mxu0
      %2616 = vmatprep.mubr.bf16.mxu0 %v1728
      %2617 = vmatmul.mubr.bf16.gmra.mrb[0].mxu0 %v1727
      %v2618 = vpop.f32.mrb[0].mxu0
      %v2619 = vadd.f32 %v2038, %v2618
      %v2620 = vpop.f32.mrb[0].mxu0
      %v2621 = vpop.f32.mrb[0].mxu0
      %v2622 = vadd.f32 %v2038, %v2621
      %v2623 = vpop.f32.mrb[0].mxu0
      %2624 = vmatprep.mubr.bf16.mxu0 %v1737
      %2625 = vmatmul.mubr.bf16.gmra.mrb[0].mxu0 %v1736
      %v2626 = vpop.f32.mrb[0].mxu0
      %v2627 = vadd.f32 %v2038, %v2626
      %v2628 = vpop.f32.mrb[0].mxu0
      %v2629 = vpop.f32.mrb[0].mxu0
      %v2630 = vadd.f32 %v2038, %v2629
      %v2631 = vpop.f32.mrb[0].mxu0
      %2632 = vmatprep.mubr.bf16.mxu0 %v1746
      %2633 = vmatmul.mubr.bf16.gmra.mrb[0].mxu0 %v1745
      %v2634 = vpop.f32.mrb[0].mxu0
      %v2635 = vadd.f32 %v2038, %v2634
      %v2636 = vpop.f32.mrb[0].mxu0
      %v2637 = vpop.f32.mrb[0].mxu0
      %v2638 = vadd.f32 %v2038, %v2637
      %v2639 = vpop.f32.mrb[0].mxu0
      %2640 = vmatprep.mubr.bf16.mxu0 %v1755
      %2641 = vmatmul.mubr.bf16.gmra.mrb[0].mxu0 %v1754
      %v2642 = vpop.f32.mrb[0].mxu0
      %v2643 = vadd.f32 %v2038, %v2642
      %v2644 = vpop.f32.mrb[0].mxu0
      %v2645 = vpop.f32.mrb[0].mxu0
      %v2646 = vadd.f32 %v2038, %v2645
      %v2647 = vpop.f32.mrb[0].mxu0
      %2648 = vmatprep.mubr.bf16.mxu0 %v1764
      %2649 = vmatmul.mubr.bf16.gmra.mrb[0].mxu0 %v1763
      %v2650 = vpop.f32.mrb[0].mxu0
      %v2651 = vadd.f32 %v2038, %v2650
      %v2652 = vpop.f32.mrb[0].mxu0
      %v2653 = vpop.f32.mrb[0].mxu0
      %v2654 = vadd.f32 %v2038, %v2653
      %v2655 = vpop.f32.mrb[0].mxu0
      %2656 = vmatprep.mubr.bf16.mxu0 %v1773
      %2657 = vmatmul.mubr.bf16.gmra.mrb[0].mxu0 %v1772
      %v2658 = vpop.f32.mrb[0].mxu0
      %v2659 = vadd.f32 %v2038, %v2658
      %v2660 = vpop.f32.mrb[0].mxu0
      %v2661 = vpop.f32.mrb[0].mxu0
      %v2662 = vadd.f32 %v2038, %v2661
      %v2663 = vpop.f32.mrb[0].mxu0
      %2664 = vmatprep.mubr.bf16.mxu0 %v1782
      %2665 = vmatmul.mubr.bf16.gmra.mrb[0].mxu0 %v1781
      %v2666 = vpop.f32.mrb[0].mxu0
      %v2667 = vadd.f32 %v2038, %v2666
      %v2668 = vpop.f32.mrb[0].mxu0
      %v2669 = vpop.f32.mrb[0].mxu0
      %v2670 = vadd.f32 %v2038, %v2669
      %v2671 = vpop.f32.mrb[0].mxu0
      %2672 = vmatprep.mubr.bf16.mxu0 %v1791
      %2673 = vmatmul.mubr.bf16.gmra.mrb[0].mxu0 %v1790
      %v2674 = vpop.f32.mrb[0].mxu0
      %v2675 = vadd.f32 %v2038, %v2674
      %v2676 = vpop.f32.mrb[0].mxu0
      %v2677 = vpop.f32.mrb[0].mxu0
      %v2678 = vadd.f32 %v2038, %v2677
      %v2679 = vpop.f32.mrb[0].mxu0
      %2680 = vmatprep.mubr.bf16.mxu0 %v1800
      %2681 = vmatmul.mubr.bf16.gmra.mrb[0].mxu0 %v1799
      %v2682 = vpop.f32.mrb[0].mxu0
      %v2683 = vadd.f32 %v2038, %v2682
      %v2684 = vpop.f32.mrb[0].mxu0
      %v2685 = vpop.f32.mrb[0].mxu0
      %v2686 = vadd.f32 %v2038, %v2685
      %v2687 = vpop.f32.mrb[0].mxu0
      %2688 = vmatprep.mubr.bf16.mxu0 %v1809
      %2689 = vmatmul.mubr.bf16.gmra.mrb[0].mxu0 %v1808
      %v2690 = vpop.f32.mrb[0].mxu0
      %v2691 = vadd.f32 %v2038, %v2690
      %v2692 = vpop.f32.mrb[0].mxu0
      %v2693 = vpop.f32.mrb[0].mxu0
      %v2694 = vadd.f32 %v2038, %v2693
      %v2695 = vpop.f32.mrb[0].mxu0
      %2696 = vmatprep.mubr.bf16.mxu0 %v1818
      %2697 = vmatmul.mubr.bf16.gmra.mrb[0].mxu0 %v1817
      %v2698 = vpop.f32.mrb[0].mxu0
      %v2699 = vadd.f32 %v2038, %v2698
      %v2700 = vpop.f32.mrb[0].mxu0
      %v2701 = vpop.f32.mrb[0].mxu0
      %v2702 = vadd.f32 %v2038, %v2701
      %v2703 = vpop.f32.mrb[0].mxu0
      %2704 = vmatprep.mubr.bf16.mxu0 %v1827
      %2705 = vmatmul.mubr.bf16.gmra.mrb[0].mxu0 %v1826
      %v2706 = vpop.f32.mrb[0].mxu0
      %v2707 = vadd.f32 %v2038, %v2706
      %v2708 = vpop.f32.mrb[0].mxu0
      %v2709 = vpop.f32.mrb[0].mxu0
      %v2710 = vadd.f32 %v2038, %v2709
      %v2711 = vpop.f32.mrb[0].mxu0
      %2712 = vmatprep.mubr.bf16.mxu0 %v1836
      %2713 = vmatmul.mubr.bf16.gmra.mrb[0].mxu0 %v1835
      %v2714 = vpop.f32.mrb[0].mxu0
      %v2715 = vadd.f32 %v2038, %v2714
      %v2716 = vpop.f32.mrb[0].mxu0
      %v2717 = vpop.f32.mrb[0].mxu0
      %v2718 = vadd.f32 %v2038, %v2717
      %v2719 = vpop.f32.mrb[0].mxu0
      %2720 = vmatprep.mubr.bf16.mxu0 %v1845
      %2721 = vmatmul.mubr.bf16.gmra.mrb[0].mxu0 %v1844
      %v2722 = vpop.f32.mrb[0].mxu0
      %v2723 = vadd.f32 %v2038, %v2722
      %v2724 = vpop.f32.mrb[0].mxu0
      %v2725 = vpop.f32.mrb[0].mxu0
      %v2726 = vadd.f32 %v2038, %v2725
      %v2727 = vpop.f32.mrb[0].mxu0
      %2728 = vmatprep.mubr.bf16.mxu0 %v1854
      %2729 = vmatmul.mubr.bf16.gmra.mrb[0].mxu0 %v1853
      %v2730 = vpop.f32.mrb[0].mxu0
      %v2731 = vadd.f32 %v2038, %v2730
      %v2732 = vpop.f32.mrb[0].mxu0
      %v2733 = vpop.f32.mrb[0].mxu0
      %v2734 = vadd.f32 %v2038, %v2733
      %v2735 = vpop.f32.mrb[0].mxu0
      %2736 = vmatprep.mubr.bf16.mxu0 %v1863
      %2737 = vmatmul.mubr.bf16.gmra.mrb[0].mxu0 %v1862
      %v2738 = vpop.f32.mrb[0].mxu0
      %v2739 = vadd.f32 %v2038, %v2738
      %v2740 = vpop.f32.mrb[0].mxu0
      %v2741 = vpop.f32.mrb[0].mxu0
      %v2742 = vadd.f32 %v2038, %v2741
      %v2743 = vpop.f32.mrb[0].mxu0
      %2744 = vmatprep.mubr.bf16.mxu0 %v1872
      %2745 = vmatmul.mubr.bf16.gmra.mrb[0].mxu0 %v1871
      %v2746 = vpop.f32.mrb[0].mxu0
      %v2747 = vadd.f32 %v2038, %v2746
      %v2748 = vpop.f32.mrb[0].mxu0
      %v2749 = vpop.f32.mrb[0].mxu0
      %v2750 = vadd.f32 %v2038, %v2749
      %v2751 = vpop.f32.mrb[0].mxu0
      %2752 = vmatprep.mubr.bf16.mxu0 %v1881
      %2753 = vmatmul.mubr.bf16.gmra.mrb[0].mxu0 %v1880
      %v2754 = vpop.f32.mrb[0].mxu0
      %v2755 = vadd.f32 %v2038, %v2754
      %v2756 = vpop.f32.mrb[0].mxu0
      %v2757 = vpop.f32.mrb[0].mxu0
      %v2758 = vadd.f32 %v2038, %v2757
      %v2759 = vpop.f32.mrb[0].mxu0
      %2760 = vdwg.mxu0
      %2761 = vmatprep.subr.bf16.mxu0 0
      %2762 = vmatpush1.bf16.msra.mxu0 %v2344
      %2763 = vmatprep.subr.bf16.mxu0 0
      %2764 = vmatpush1.bf16.msra.mxu0 %v2345
      %2765 = vmatprep.subr.bf16.mxu0 0
      %2766 = vmatpush1.bf16.msra.mxu0 %v2346
      %2767 = vmatprep.subr.bf16.mxu0 0
      %2768 = vmatpush1.bf16.msra.mxu0 %v2347
      %2769 = vmatprep.subr.bf16.mxu0 0
      %2770 = vmatpush1.bf16.msra.mxu0 %v2348
      %2771 = vmatprep.subr.bf16.mxu0 0
      %2772 = vmatpush1.bf16.msra.mxu0 %v2349
      %2773 = vmatprep.subr.bf16.mxu0 0
      %2774 = vmatpush1.bf16.msra.mxu0 %v2350
      %2775 = vmatprep.subr.bf16.mxu0 0
      %2776 = vmatpush1.bf16.msra.mxu0 %v2351
      %2777 = vmatprep.subr.bf16.mxu0 0
      %2778 = vmatpush1.bf16.msra.mxu0 %v2352
      %2779 = vmatprep.subr.bf16.mxu0 0
      %2780 = vmatpush1.bf16.msra.mxu0 %v2353
      %2781 = vmatprep.subr.bf16.mxu0 0
      %2782 = vmatpush1.bf16.msra.mxu0 %v2354
      %2783 = vmatprep.subr.bf16.mxu0 0
      %2784 = vmatpush1.bf16.msra.mxu0 %v2355
      %2785 = vmatprep.subr.bf16.mxu0 0
      %2786 = vmatpush1.bf16.msra.mxu0 %v2356
      %2787 = vmatprep.subr.bf16.mxu0 0
      %2788 = vmatpush1.bf16.msra.mxu0 %v2357
      %2789 = vmatprep.subr.bf16.mxu0 0
      %2790 = vmatpush1.bf16.msra.mxu0 %v2358
      %2791 = vmatprep.subr.bf16.mxu0 0
      %2792 = vmatpush1.bf16.msra.mxu0 %v2359
      %2793 = vmatprep.mubr.bf16.mxu0 %v1604
      %2794 = vmatmul.mubr.bf16.gmra.mrb[0].mxu0 %v1603
      %v2795 = vpop.f32.mrb[0].mxu0
      %v2796 = vadd.f32 %v2507, %v2795
      %v2797 = vpop.f32.mrb[0].mxu0
      %v2798 = vpop.f32.mrb[0].mxu0
      %v2799 = vadd.f32 %v2510, %v2798
      %v2800 = vpop.f32.mrb[0].mxu0
      %2801 = vmatprep.mubr.bf16.mxu0 %v1613
      %2802 = vmatmul.mubr.bf16.gmra.mrb[0].mxu0 %v1612
      %v2803 = vpop.f32.mrb[0].mxu0
      %v2804 = vadd.f32 %v2515, %v2803
      %v2805 = vpop.f32.mrb[0].mxu0
      %v2806 = vpop.f32.mrb[0].mxu0
      %v2807 = vadd.f32 %v2518, %v2806
      %v2808 = vpop.f32.mrb[0].mxu0
      %2809 = vmatprep.mubr.bf16.mxu0 %v1622
      %2810 = vmatmul.mubr.bf16.gmra.mrb[0].mxu0 %v1621
      %v2811 = vpop.f32.mrb[0].mxu0
      %v2812 = vadd.f32 %v2523, %v2811
      %v2813 = vpop.f32.mrb[0].mxu0
      %v2814 = vpop.f32.mrb[0].mxu0
      %v2815 = vadd.f32 %v2526, %v2814
      %v2816 = vpop.f32.mrb[0].mxu0
      %2817 = vmatprep.mubr.bf16.mxu0 %v1631
      %2818 = vmatmul.mubr.bf16.gmra.mrb[0].mxu0 %v1630
      %v2819 = vpop.f32.mrb[0].mxu0
      %v2820 = vadd.f32 %v2531, %v2819
      %v2821 = vpop.f32.mrb[0].mxu0
      %v2822 = vpop.f32.mrb[0].mxu0
      %v2823 = vadd.f32 %v2534, %v2822
      %v2824 = vpop.f32.mrb[0].mxu0
      %2825 = vmatprep.mubr.bf16.mxu0 %v1640
      %2826 = vmatmul.mubr.bf16.gmra.mrb[0].mxu0 %v1639
      %v2827 = vpop.f32.mrb[0].mxu0
      %v2828 = vadd.f32 %v2539, %v2827
      %v2829 = vpop.f32.mrb[0].mxu0
      %v2830 = vpop.f32.mrb[0].mxu0
      %v2831 = vadd.f32 %v2542, %v2830
      %v2832 = vpop.f32.mrb[0].mxu0
      %2833 = vmatprep.mubr.bf16.mxu0 %v1649
      %2834 = vmatmul.mubr.bf16.gmra.mrb[0].mxu0 %v1648
      %v2835 = vpop.f32.mrb[0].mxu0
      %v2836 = vadd.f32 %v2547, %v2835
      %v2837 = vpop.f32.mrb[0].mxu0
      %v2838 = vpop.f32.mrb[0].mxu0
      %v2839 = vadd.f32 %v2550, %v2838
      %v2840 = vpop.f32.mrb[0].mxu0
      %2841 = vmatprep.mubr.bf16.mxu0 %v1658
      %2842 = vmatmul.mubr.bf16.gmra.mrb[0].mxu0 %v1657
      %v2843 = vpop.f32.mrb[0].mxu0
      %v2844 = vadd.f32 %v2555, %v2843
      %v2845 = vpop.f32.mrb[0].mxu0
      %v2846 = vpop.f32.mrb[0].mxu0
      %v2847 = vadd.f32 %v2558, %v2846
      %v2848 = vpop.f32.mrb[0].mxu0
      %2849 = vmatprep.mubr.bf16.mxu0 %v1667
      %2850 = vmatmul.mubr.bf16.gmra.mrb[0].mxu0 %v1666
      %v2851 = vpop.f32.mrb[0].mxu0
      %v2852 = vadd.f32 %v2563, %v2851
      %v2853 = vpop.f32.mrb[0].mxu0
      %v2854 = vpop.f32.mrb[0].mxu0
      %v2855 = vadd.f32 %v2566, %v2854
      %v2856 = vpop.f32.mrb[0].mxu0
      %2857 = vmatprep.mubr.bf16.mxu0 %v1676
      %2858 = vmatmul.mubr.bf16.gmra.mrb[0].mxu0 %v1675
      %v2859 = vpop.f32.mrb[0].mxu0
      %v2860 = vadd.f32 %v2571, %v2859
      %v2861 = vpop.f32.mrb[0].mxu0
      %v2862 = vpop.f32.mrb[0].mxu0
      %v2863 = vadd.f32 %v2574, %v2862
      %v2864 = vpop.f32.mrb[0].mxu0
      %2865 = vmatprep.mubr.bf16.mxu0 %v1685
      %2866 = vmatmul.mubr.bf16.gmra.mrb[0].mxu0 %v1684
      %v2867 = vpop.f32.mrb[0].mxu0
      %v2868 = vadd.f32 %v2579, %v2867
      %v2869 = vpop.f32.mrb[0].mxu0
      %v2870 = vpop.f32.mrb[0].mxu0
      %v2871 = vadd.f32 %v2582, %v2870
      %v2872 = vpop.f32.mrb[0].mxu0
      %2873 = vmatprep.mubr.bf16.mxu0 %v1694
      %2874 = vmatmul.mubr.bf16.gmra.mrb[0].mxu0 %v1693
      %v2875 = vpop.f32.mrb[0].mxu0
      %v2876 = vadd.f32 %v2587, %v2875
      %v2877 = vpop.f32.mrb[0].mxu0
      %v2878 = vpop.f32.mrb[0].mxu0
      %v2879 = vadd.f32 %v2590, %v2878
      %v2880 = vpop.f32.mrb[0].mxu0
      %2881 = vmatprep.mubr.bf16.mxu0 %v1703
      %2882 = vmatmul.mubr.bf16.gmra.mrb[0].mxu0 %v1702
      %v2883 = vpop.f32.mrb[0].mxu0
      %v2884 = vadd.f32 %v2595, %v2883
      %v2885 = vpop.f32.mrb[0].mxu0
      %v2886 = vpop.f32.mrb[0].mxu0
      %v2887 = vadd.f32 %v2598, %v2886
      %v2888 = vpop.f32.mrb[0].mxu0
      %2889 = vmatprep.mubr.bf16.mxu0 %v1712
      %2890 = vmatmul.mubr.bf16.gmra.mrb[0].mxu0 %v1711
      %v2891 = vpop.f32.mrb[0].mxu0
      %v2892 = vadd.f32 %v2603, %v2891
      %v2893 = vpop.f32.mrb[0].mxu0
      %v2894 = vpop.f32.mrb[0].mxu0
      %v2895 = vadd.f32 %v2606, %v2894
      %v2896 = vpop.f32.mrb[0].mxu0
      %2897 = vmatprep.mubr.bf16.mxu0 %v1721
      %2898 = vmatmul.mubr.bf16.gmra.mrb[0].mxu0 %v1720
      %v2899 = vpop.f32.mrb[0].mxu0
      %v2900 = vadd.f32 %v2611, %v2899
      %v2901 = vpop.f32.mrb[0].mxu0
      %v2902 = vpop.f32.mrb[0].mxu0
      %v2903 = vadd.f32 %v2614, %v2902
      %v2904 = vpop.f32.mrb[0].mxu0
      %2905 = vmatprep.mubr.bf16.mxu0 %v1730
      %2906 = vmatmul.mubr.bf16.gmra.mrb[0].mxu0 %v1729
      %v2907 = vpop.f32.mrb[0].mxu0
      %v2908 = vadd.f32 %v2619, %v2907
      %v2909 = vpop.f32.mrb[0].mxu0
      %v2910 = vpop.f32.mrb[0].mxu0
      %v2911 = vadd.f32 %v2622, %v2910
      %v2912 = vpop.f32.mrb[0].mxu0
      %2913 = vmatprep.mubr.bf16.mxu0 %v1739
      %2914 = vmatmul.mubr.bf16.gmra.mrb[0].mxu0 %v1738
      %v2915 = vpop.f32.mrb[0].mxu0
      %v2916 = vadd.f32 %v2627, %v2915
      %v2917 = vpop.f32.mrb[0].mxu0
      %v2918 = vpop.f32.mrb[0].mxu0
      %v2919 = vadd.f32 %v2630, %v2918
      %v2920 = vpop.f32.mrb[0].mxu0
      %2921 = vmatprep.mubr.bf16.mxu0 %v1748
      %2922 = vmatmul.mubr.bf16.gmra.mrb[0].mxu0 %v1747
      %v2923 = vpop.f32.mrb[0].mxu0
      %v2924 = vadd.f32 %v2635, %v2923
      %v2925 = vpop.f32.mrb[0].mxu0
      %v2926 = vpop.f32.mrb[0].mxu0
      %v2927 = vadd.f32 %v2638, %v2926
      %v2928 = vpop.f32.mrb[0].mxu0
      %2929 = vmatprep.mubr.bf16.mxu0 %v1757
      %2930 = vmatmul.mubr.bf16.gmra.mrb[0].mxu0 %v1756
      %v2931 = vpop.f32.mrb[0].mxu0
      %v2932 = vadd.f32 %v2643, %v2931
      %v2933 = vpop.f32.mrb[0].mxu0
      %v2934 = vpop.f32.mrb[0].mxu0
      %v2935 = vadd.f32 %v2646, %v2934
      %v2936 = vpop.f32.mrb[0].mxu0
      %2937 = vmatprep.mubr.bf16.mxu0 %v1766
      %2938 = vmatmul.mubr.bf16.gmra.mrb[0].mxu0 %v1765
      %v2939 = vpop.f32.mrb[0].mxu0
      %v2940 = vadd.f32 %v2651, %v2939
      %v2941 = vpop.f32.mrb[0].mxu0
      %v2942 = vpop.f32.mrb[0].mxu0
      %v2943 = vadd.f32 %v2654, %v2942
      %v2944 = vpop.f32.mrb[0].mxu0
      %2945 = vmatprep.mubr.bf16.mxu0 %v1775
      %2946 = vmatmul.mubr.bf16.gmra.mrb[0].mxu0 %v1774
      %v2947 = vpop.f32.mrb[0].mxu0
      %v2948 = vadd.f32 %v2659, %v2947
      %v2949 = vpop.f32.mrb[0].mxu0
      %v2950 = vpop.f32.mrb[0].mxu0
      %v2951 = vadd.f32 %v2662, %v2950
      %v2952 = vpop.f32.mrb[0].mxu0
      %2953 = vmatprep.mubr.bf16.mxu0 %v1784
      %2954 = vmatmul.mubr.bf16.gmra.mrb[0].mxu0 %v1783
      %v2955 = vpop.f32.mrb[0].mxu0
      %v2956 = vadd.f32 %v2667, %v2955
      %v2957 = vpop.f32.mrb[0].mxu0
      %v2958 = vpop.f32.mrb[0].mxu0
      %v2959 = vadd.f32 %v2670, %v2958
      %v2960 = vpop.f32.mrb[0].mxu0
      %2961 = vmatprep.mubr.bf16.mxu0 %v1793
      %2962 = vmatmul.mubr.bf16.gmra.mrb[0].mxu0 %v1792
      %v2963 = vpop.f32.mrb[0].mxu0
      %v2964 = vadd.f32 %v2675, %v2963
      %v2965 = vpop.f32.mrb[0].mxu0
      %v2966 = vpop.f32.mrb[0].mxu0
      %v2967 = vadd.f32 %v2678, %v2966
      %v2968 = vpop.f32.mrb[0].mxu0
      %2969 = vmatprep.mubr.bf16.mxu0 %v1802
      %2970 = vmatmul.mubr.bf16.gmra.mrb[0].mxu0 %v1801
      %v2971 = vpop.f32.mrb[0].mxu0
      %v2972 = vadd.f32 %v2683, %v2971
      %v2973 = vpop.f32.mrb[0].mxu0
      %v2974 = vpop.f32.mrb[0].mxu0
      %v2975 = vadd.f32 %v2686, %v2974
      %v2976 = vpop.f32.mrb[0].mxu0
      %2977 = vmatprep.mubr.bf16.mxu0 %v1811
      %2978 = vmatmul.mubr.bf16.gmra.mrb[0].mxu0 %v1810
      %v2979 = vpop.f32.mrb[0].mxu0
      %v2980 = vadd.f32 %v2691, %v2979
      %v2981 = vpop.f32.mrb[0].mxu0
      %v2982 = vpop.f32.mrb[0].mxu0
      %v2983 = vadd.f32 %v2694, %v2982
      %v2984 = vpop.f32.mrb[0].mxu0
      %2985 = vmatprep.mubr.bf16.mxu0 %v1820
      %2986 = vmatmul.mubr.bf16.gmra.mrb[0].mxu0 %v1819
      %v2987 = vpop.f32.mrb[0].mxu0
      %v2988 = vadd.f32 %v2699, %v2987
      %v2989 = vpop.f32.mrb[0].mxu0
      %v2990 = vpop.f32.mrb[0].mxu0
      %v2991 = vadd.f32 %v2702, %v2990
      %v2992 = vpop.f32.mrb[0].mxu0
      %2993 = vmatprep.mubr.bf16.mxu0 %v1829
      %2994 = vmatmul.mubr.bf16.gmra.mrb[0].mxu0 %v1828
      %v2995 = vpop.f32.mrb[0].mxu0
      %v2996 = vadd.f32 %v2707, %v2995
      %v2997 = vpop.f32.mrb[0].mxu0
      %v2998 = vpop.f32.mrb[0].mxu0
      %v2999 = vadd.f32 %v2710, %v2998
      %v3000 = vpop.f32.mrb[0].mxu0
      %3001 = vmatprep.mubr.bf16.mxu0 %v1838
      %3002 = vmatmul.mubr.bf16.gmra.mrb[0].mxu0 %v1837
      %v3003 = vpop.f32.mrb[0].mxu0
      %v3004 = vadd.f32 %v2715, %v3003
      %v3005 = vpop.f32.mrb[0].mxu0
      %v3006 = vpop.f32.mrb[0].mxu0
      %v3007 = vadd.f32 %v2718, %v3006
      %v3008 = vpop.f32.mrb[0].mxu0
      %3009 = vmatprep.mubr.bf16.mxu0 %v1847
      %3010 = vmatmul.mubr.bf16.gmra.mrb[0].mxu0 %v1846
      %v3011 = vpop.f32.mrb[0].mxu0
      %v3012 = vadd.f32 %v2723, %v3011
      %v3013 = vpop.f32.mrb[0].mxu0
      %v3014 = vpop.f32.mrb[0].mxu0
      %v3015 = vadd.f32 %v2726, %v3014
      %v3016 = vpop.f32.mrb[0].mxu0
      %3017 = vmatprep.mubr.bf16.mxu0 %v1856
      %3018 = vmatmul.mubr.bf16.gmra.mrb[0].mxu0 %v1855
      %v3019 = vpop.f32.mrb[0].mxu0
      %v3020 = vadd.f32 %v2731, %v3019
      %v3021 = vpop.f32.mrb[0].mxu0
      %v3022 = vpop.f32.mrb[0].mxu0
      %v3023 = vadd.f32 %v2734, %v3022
      %v3024 = vpop.f32.mrb[0].mxu0
      %3025 = vmatprep.mubr.bf16.mxu0 %v1865
      %3026 = vmatmul.mubr.bf16.gmra.mrb[0].mxu0 %v1864
      %v3027 = vpop.f32.mrb[0].mxu0
      %v3028 = vadd.f32 %v2739, %v3027
      %v3029 = vpop.f32.mrb[0].mxu0
      %v3030 = vpop.f32.mrb[0].mxu0
      %v3031 = vadd.f32 %v2742, %v3030
      %v3032 = vpop.f32.mrb[0].mxu0
      %3033 = vmatprep.mubr.bf16.mxu0 %v1874
      %3034 = vmatmul.mubr.bf16.gmra.mrb[0].mxu0 %v1873
      %v3035 = vpop.f32.mrb[0].mxu0
      %v3036 = vadd.f32 %v2747, %v3035
      %v3037 = vpop.f32.mrb[0].mxu0
      %v3038 = vpop.f32.mrb[0].mxu0
      %v3039 = vadd.f32 %v2750, %v3038
      %v3040 = vpop.f32.mrb[0].mxu0
      %3041 = vmatprep.mubr.bf16.mxu0 %v1883
      %3042 = vmatmul.mubr.bf16.gmra.mrb[0].mxu0 %v1882
      %v3043 = vpop.f32.mrb[0].mxu0
      %v3044 = vadd.f32 %v2755, %v3043
      %v3045 = vpop.f32.mrb[0].mxu0
      %v3046 = vpop.f32.mrb[0].mxu0
      %v3047 = vadd.f32 %v2758, %v3046
      %v3048 = vpop.f32.mrb[0].mxu0
      %3049 = vdwg.mxu0
      %3050 = vmatprep.subr.bf16.mxu0 0
      %3051 = vmatpush1.bf16.msra.mxu0 %v2360
      %3052 = vmatprep.subr.bf16.mxu0 0
      %3053 = vmatpush1.bf16.msra.mxu0 %v2361
      %3054 = vmatprep.subr.bf16.mxu0 0
      %3055 = vmatpush1.bf16.msra.mxu0 %v2362
      %3056 = vmatprep.subr.bf16.mxu0 0
      %3057 = vmatpush1.bf16.msra.mxu0 %v2363
      %3058 = vmatprep.subr.bf16.mxu0 0
      %3059 = vmatpush1.bf16.msra.mxu0 %v2364
      %3060 = vmatprep.subr.bf16.mxu0 0
      %3061 = vmatpush1.bf16.msra.mxu0 %v2365
      %3062 = vmatprep.subr.bf16.mxu0 0
      %3063 = vmatpush1.bf16.msra.mxu0 %v2366
      %3064 = vmatprep.subr.bf16.mxu0 0
      %3065 = vmatpush1.bf16.msra.mxu0 %v2367
      %3066 = vmatprep.subr.bf16.mxu0 0
      %3067 = vmatpush1.bf16.msra.mxu0 %v2368
      %3068 = vmatprep.subr.bf16.mxu0 0
      %3069 = vmatpush1.bf16.msra.mxu0 %v2369
      %3070 = vmatprep.subr.bf16.mxu0 0
      %3071 = vmatpush1.bf16.msra.mxu0 %v2370
      %3072 = vmatprep.subr.bf16.mxu0 0
      %3073 = vmatpush1.bf16.msra.mxu0 %v2371
      %3074 = vmatprep.subr.bf16.mxu0 0
      %3075 = vmatpush1.bf16.msra.mxu0 %v2372
      %3076 = vmatprep.subr.bf16.mxu0 0
      %3077 = vmatpush1.bf16.msra.mxu0 %v2373
      %3078 = vmatprep.subr.bf16.mxu0 0
      %3079 = vmatpush1.bf16.msra.mxu0 %v2374
      %3080 = vmatprep.subr.bf16.mxu0 0
      %3081 = vmatpush1.bf16.msra.mxu0 %v2375
      %3082 = vmatprep.mubr.bf16.mxu0 %v1606
      %3083 = vmatmul.mubr.bf16.gmra.mrb[0].mxu0 %v1605
      %v3084 = vpop.f32.mrb[0].mxu0
      %v3085 = vadd.f32 %v2796, %v3084
      %v3086 = vpop.f32.mrb[0].mxu0
      %v3087 = vpop.f32.mrb[0].mxu0
      %v3088 = vadd.f32 %v2799, %v3087
      %v3089 = vpop.f32.mrb[0].mxu0
      %3090 = vmatprep.mubr.bf16.mxu0 %v1615
      %3091 = vmatmul.mubr.bf16.gmra.mrb[0].mxu0 %v1614
      %v3092 = vpop.f32.mrb[0].mxu0
      %v3093 = vadd.f32 %v2804, %v3092
      %v3094 = vpop.f32.mrb[0].mxu0
      %v3095 = vpop.f32.mrb[0].mxu0
      %v3096 = vadd.f32 %v2807, %v3095
      %v3097 = vpop.f32.mrb[0].mxu0
      %3098 = vmatprep.mubr.bf16.mxu0 %v1624
      %3099 = vmatmul.mubr.bf16.gmra.mrb[0].mxu0 %v1623
      %v3100 = vpop.f32.mrb[0].mxu0
      %v3101 = vadd.f32 %v2812, %v3100
      %v3102 = vpop.f32.mrb[0].mxu0
      %v3103 = vpop.f32.mrb[0].mxu0
      %v3104 = vadd.f32 %v2815, %v3103
      %v3105 = vpop.f32.mrb[0].mxu0
      %3106 = vmatprep.mubr.bf16.mxu0 %v1633
      %3107 = vmatmul.mubr.bf16.gmra.mrb[0].mxu0 %v1632
      %v3108 = vpop.f32.mrb[0].mxu0
      %v3109 = vadd.f32 %v2820, %v3108
      %v3110 = vpop.f32.mrb[0].mxu0
      %v3111 = vpop.f32.mrb[0].mxu0
      %v3112 = vadd.f32 %v2823, %v3111
      %v3113 = vpop.f32.mrb[0].mxu0
      %3114 = vmatprep.mubr.bf16.mxu0 %v1642
      %3115 = vmatmul.mubr.bf16.gmra.mrb[0].mxu0 %v1641
      %v3116 = vpop.f32.mrb[0].mxu0
      %v3117 = vadd.f32 %v2828, %v3116
      %v3118 = vpop.f32.mrb[0].mxu0
      %v3119 = vpop.f32.mrb[0].mxu0
      %v3120 = vadd.f32 %v2831, %v3119
      %v3121 = vpop.f32.mrb[0].mxu0
      %3122 = vmatprep.mubr.bf16.mxu0 %v1651
      %3123 = vmatmul.mubr.bf16.gmra.mrb[0].mxu0 %v1650
      %v3124 = vpop.f32.mrb[0].mxu0
      %v3125 = vadd.f32 %v2836, %v3124
      %v3126 = vpop.f32.mrb[0].mxu0
      %v3127 = vpop.f32.mrb[0].mxu0
      %v3128 = vadd.f32 %v2839, %v3127
      %v3129 = vpop.f32.mrb[0].mxu0
      %3130 = vmatprep.mubr.bf16.mxu0 %v1660
      %3131 = vmatmul.mubr.bf16.gmra.mrb[0].mxu0 %v1659
      %v3132 = vpop.f32.mrb[0].mxu0
      %v3133 = vadd.f32 %v2844, %v3132
      %v3134 = vpop.f32.mrb[0].mxu0
      %v3135 = vpop.f32.mrb[0].mxu0
      %v3136 = vadd.f32 %v2847, %v3135
      %v3137 = vpop.f32.mrb[0].mxu0
      %3138 = vmatprep.mubr.bf16.mxu0 %v1669
      %3139 = vmatmul.mubr.bf16.gmra.mrb[0].mxu0 %v1668
      %v3140 = vpop.f32.mrb[0].mxu0
      %v3141 = vadd.f32 %v2852, %v3140
      %v3142 = vpop.f32.mrb[0].mxu0
      %v3143 = vpop.f32.mrb[0].mxu0
      %v3144 = vadd.f32 %v2855, %v3143
      %v3145 = vpop.f32.mrb[0].mxu0
      %3146 = vmatprep.mubr.bf16.mxu0 %v1678
      %3147 = vmatmul.mubr.bf16.gmra.mrb[0].mxu0 %v1677
      %v3148 = vpop.f32.mrb[0].mxu0
      %v3149 = vadd.f32 %v2860, %v3148
      %v3150 = vpop.f32.mrb[0].mxu0
      %v3151 = vpop.f32.mrb[0].mxu0
      %v3152 = vadd.f32 %v2863, %v3151
      %v3153 = vpop.f32.mrb[0].mxu0
      %3154 = vmatprep.mubr.bf16.mxu0 %v1687
      %3155 = vmatmul.mubr.bf16.gmra.mrb[0].mxu0 %v1686
      %v3156 = vpop.f32.mrb[0].mxu0
      %v3157 = vadd.f32 %v2868, %v3156
      %v3158 = vpop.f32.mrb[0].mxu0
      %v3159 = vpop.f32.mrb[0].mxu0
      %v3160 = vadd.f32 %v2871, %v3159
      %v3161 = vpop.f32.mrb[0].mxu0
      %3162 = vmatprep.mubr.bf16.mxu0 %v1696
      %3163 = vmatmul.mubr.bf16.gmra.mrb[0].mxu0 %v1695
      %v3164 = vpop.f32.mrb[0].mxu0
      %v3165 = vadd.f32 %v2876, %v3164
      %v3166 = vpop.f32.mrb[0].mxu0
      %v3167 = vpop.f32.mrb[0].mxu0
      %v3168 = vadd.f32 %v2879, %v3167
      %v3169 = vpop.f32.mrb[0].mxu0
      %3170 = vmatprep.mubr.bf16.mxu0 %v1705
      %3171 = vmatmul.mubr.bf16.gmra.mrb[0].mxu0 %v1704
      %v3172 = vpop.f32.mrb[0].mxu0
      %v3173 = vadd.f32 %v2884, %v3172
      %v3174 = vpop.f32.mrb[0].mxu0
      %v3175 = vpop.f32.mrb[0].mxu0
      %v3176 = vadd.f32 %v2887, %v3175
      %v3177 = vpop.f32.mrb[0].mxu0
      %3178 = vmatprep.mubr.bf16.mxu0 %v1714
      %3179 = vmatmul.mubr.bf16.gmra.mrb[0].mxu0 %v1713
      %v3180 = vpop.f32.mrb[0].mxu0
      %v3181 = vadd.f32 %v2892, %v3180
      %v3182 = vpop.f32.mrb[0].mxu0
      %v3183 = vpop.f32.mrb[0].mxu0
      %v3184 = vadd.f32 %v2895, %v3183
      %v3185 = vpop.f32.mrb[0].mxu0
      %3186 = vmatprep.mubr.bf16.mxu0 %v1723
      %3187 = vmatmul.mubr.bf16.gmra.mrb[0].mxu0 %v1722
      %v3188 = vpop.f32.mrb[0].mxu0
      %v3189 = vadd.f32 %v2900, %v3188
      %v3190 = vpop.f32.mrb[0].mxu0
      %v3191 = vpop.f32.mrb[0].mxu0
      %v3192 = vadd.f32 %v2903, %v3191
      %v3193 = vpop.f32.mrb[0].mxu0
      %3194 = vmatprep.mubr.bf16.mxu0 %v1732
      %3195 = vmatmul.mubr.bf16.gmra.mrb[0].mxu0 %v1731
      %v3196 = vpop.f32.mrb[0].mxu0
      %v3197 = vadd.f32 %v2908, %v3196
      %v3198 = vpop.f32.mrb[0].mxu0
      %v3199 = vpop.f32.mrb[0].mxu0
      %v3200 = vadd.f32 %v2911, %v3199
      %v3201 = vpop.f32.mrb[0].mxu0
      %3202 = vmatprep.mubr.bf16.mxu0 %v1741
      %3203 = vmatmul.mubr.bf16.gmra.mrb[0].mxu0 %v1740
      %v3204 = vpop.f32.mrb[0].mxu0
      %v3205 = vadd.f32 %v2916, %v3204
      %v3206 = vpop.f32.mrb[0].mxu0
      %v3207 = vpop.f32.mrb[0].mxu0
      %v3208 = vadd.f32 %v2919, %v3207
      %v3209 = vpop.f32.mrb[0].mxu0
      %3210 = vmatprep.mubr.bf16.mxu0 %v1750
      %3211 = vmatmul.mubr.bf16.gmra.mrb[0].mxu0 %v1749
      %v3212 = vpop.f32.mrb[0].mxu0
      %v3213 = vadd.f32 %v2924, %v3212
      %v3214 = vpop.f32.mrb[0].mxu0
      %v3215 = vpop.f32.mrb[0].mxu0
      %v3216 = vadd.f32 %v2927, %v3215
      %v3217 = vpop.f32.mrb[0].mxu0
      %3218 = vmatprep.mubr.bf16.mxu0 %v1759
      %3219 = vmatmul.mubr.bf16.gmra.mrb[0].mxu0 %v1758
      %v3220 = vpop.f32.mrb[0].mxu0
      %v3221 = vadd.f32 %v2932, %v3220
      %v3222 = vpop.f32.mrb[0].mxu0
      %v3223 = vpop.f32.mrb[0].mxu0
      %v3224 = vadd.f32 %v2935, %v3223
      %v3225 = vpop.f32.mrb[0].mxu0
      %3226 = vmatprep.mubr.bf16.mxu0 %v1768
      %3227 = vmatmul.mubr.bf16.gmra.mrb[0].mxu0 %v1767
      %v3228 = vpop.f32.mrb[0].mxu0
      %v3229 = vadd.f32 %v2940, %v3228
      %v3230 = vpop.f32.mrb[0].mxu0
      %v3231 = vpop.f32.mrb[0].mxu0
      %v3232 = vadd.f32 %v2943, %v3231
      %v3233 = vpop.f32.mrb[0].mxu0
      %3234 = vmatprep.mubr.bf16.mxu0 %v1777
      %3235 = vmatmul.mubr.bf16.gmra.mrb[0].mxu0 %v1776
      %v3236 = vpop.f32.mrb[0].mxu0
      %v3237 = vadd.f32 %v2948, %v3236
      %v3238 = vpop.f32.mrb[0].mxu0
      %v3239 = vpop.f32.mrb[0].mxu0
      %v3240 = vadd.f32 %v2951, %v3239
      %v3241 = vpop.f32.mrb[0].mxu0
      %3242 = vmatprep.mubr.bf16.mxu0 %v1786
      %3243 = vmatmul.mubr.bf16.gmra.mrb[0].mxu0 %v1785
      %v3244 = vpop.f32.mrb[0].mxu0
      %v3245 = vadd.f32 %v2956, %v3244
      %v3246 = vpop.f32.mrb[0].mxu0
      %v3247 = vpop.f32.mrb[0].mxu0
      %v3248 = vadd.f32 %v2959, %v3247
      %v3249 = vpop.f32.mrb[0].mxu0
      %3250 = vmatprep.mubr.bf16.mxu0 %v1795
      %3251 = vmatmul.mubr.bf16.gmra.mrb[0].mxu0 %v1794
      %v3252 = vpop.f32.mrb[0].mxu0
      %v3253 = vadd.f32 %v2964, %v3252
      %v3254 = vpop.f32.mrb[0].mxu0
      %v3255 = vpop.f32.mrb[0].mxu0
      %v3256 = vadd.f32 %v2967, %v3255
      %v3257 = vpop.f32.mrb[0].mxu0
      %3258 = vmatprep.mubr.bf16.mxu0 %v1804
      %3259 = vmatmul.mubr.bf16.gmra.mrb[0].mxu0 %v1803
      %v3260 = vpop.f32.mrb[0].mxu0
      %v3261 = vadd.f32 %v2972, %v3260
      %v3262 = vpop.f32.mrb[0].mxu0
      %v3263 = vpop.f32.mrb[0].mxu0
      %v3264 = vadd.f32 %v2975, %v3263
      %v3265 = vpop.f32.mrb[0].mxu0
      %3266 = vmatprep.mubr.bf16.mxu0 %v1813
      %3267 = vmatmul.mubr.bf16.gmra.mrb[0].mxu0 %v1812
      %v3268 = vpop.f32.mrb[0].mxu0
      %v3269 = vadd.f32 %v2980, %v3268
      %v3270 = vpop.f32.mrb[0].mxu0
      %v3271 = vpop.f32.mrb[0].mxu0
      %v3272 = vadd.f32 %v2983, %v3271
      %v3273 = vpop.f32.mrb[0].mxu0
      %3274 = vmatprep.mubr.bf16.mxu0 %v1822
      %3275 = vmatmul.mubr.bf16.gmra.mrb[0].mxu0 %v1821
      %v3276 = vpop.f32.mrb[0].mxu0
      %v3277 = vadd.f32 %v2988, %v3276
      %v3278 = vpop.f32.mrb[0].mxu0
      %v3279 = vpop.f32.mrb[0].mxu0
      %v3280 = vadd.f32 %v2991, %v3279
      %v3281 = vpop.f32.mrb[0].mxu0
      %3282 = vmatprep.mubr.bf16.mxu0 %v1831
      %3283 = vmatmul.mubr.bf16.gmra.mrb[0].mxu0 %v1830
      %v3284 = vpop.f32.mrb[0].mxu0
      %v3285 = vadd.f32 %v2996, %v3284
      %v3286 = vpop.f32.mrb[0].mxu0
      %v3287 = vpop.f32.mrb[0].mxu0
      %v3288 = vadd.f32 %v2999, %v3287
      %v3289 = vpop.f32.mrb[0].mxu0
      %3290 = vmatprep.mubr.bf16.mxu0 %v1840
      %3291 = vmatmul.mubr.bf16.gmra.mrb[0].mxu0 %v1839
      %v3292 = vpop.f32.mrb[0].mxu0
      %v3293 = vadd.f32 %v3004, %v3292
      %v3294 = vpop.f32.mrb[0].mxu0
      %v3295 = vpop.f32.mrb[0].mxu0
      %v3296 = vadd.f32 %v3007, %v3295
      %v3297 = vpop.f32.mrb[0].mxu0
      %3298 = vmatprep.mubr.bf16.mxu0 %v1849
      %3299 = vmatmul.mubr.bf16.gmra.mrb[0].mxu0 %v1848
      %v3300 = vpop.f32.mrb[0].mxu0
      %v3301 = vadd.f32 %v3012, %v3300
      %v3302 = vpop.f32.mrb[0].mxu0
      %v3303 = vpop.f32.mrb[0].mxu0
      %v3304 = vadd.f32 %v3015, %v3303
      %v3305 = vpop.f32.mrb[0].mxu0
      %3306 = vmatprep.mubr.bf16.mxu0 %v1858
      %3307 = vmatmul.mubr.bf16.gmra.mrb[0].mxu0 %v1857
      %v3308 = vpop.f32.mrb[0].mxu0
      %v3309 = vadd.f32 %v3020, %v3308
      %v3310 = vpop.f32.mrb[0].mxu0
      %v3311 = vpop.f32.mrb[0].mxu0
      %v3312 = vadd.f32 %v3023, %v3311
      %v3313 = vpop.f32.mrb[0].mxu0
      %3314 = vmatprep.mubr.bf16.mxu0 %v1867
      %3315 = vmatmul.mubr.bf16.gmra.mrb[0].mxu0 %v1866
      %v3316 = vpop.f32.mrb[0].mxu0
      %v3317 = vadd.f32 %v3028, %v3316
      %v3318 = vpop.f32.mrb[0].mxu0
      %v3319 = vpop.f32.mrb[0].mxu0
      %v3320 = vadd.f32 %v3031, %v3319
      %v3321 = vpop.f32.mrb[0].mxu0
      %3322 = vmatprep.mubr.bf16.mxu0 %v1876
      %3323 = vmatmul.mubr.bf16.gmra.mrb[0].mxu0 %v1875
      %v3324 = vpop.f32.mrb[0].mxu0
      %v3325 = vadd.f32 %v3036, %v3324
      %v3326 = vpop.f32.mrb[0].mxu0
      %v3327 = vpop.f32.mrb[0].mxu0
      %v3328 = vadd.f32 %v3039, %v3327
      %v3329 = vpop.f32.mrb[0].mxu0
      %3330 = vmatprep.mubr.bf16.mxu0 %v1885
      %3331 = vmatmul.mubr.bf16.gmra.mrb[0].mxu0 %v1884
      %v3332 = vpop.f32.mrb[0].mxu0
      %v3333 = vadd.f32 %v3044, %v3332
      %v3334 = vpop.f32.mrb[0].mxu0
      %v3335 = vpop.f32.mrb[0].mxu0
      %v3336 = vadd.f32 %v3047, %v3335
      %v3337 = vpop.f32.mrb[0].mxu0
      %3338 = vdwg.mxu0
      %3339 = vmatprep.subr.bf16.mxu0 0
      %3340 = vmatpush1.bf16.msra.mxu0 %v2376
      %3341 = vmatprep.subr.bf16.mxu0 0
      %3342 = vmatpush1.bf16.msra.mxu0 %v2377
      %3343 = vmatprep.subr.bf16.mxu0 0
      %3344 = vmatpush1.bf16.msra.mxu0 %v2378
      %3345 = vmatprep.subr.bf16.mxu0 0
      %3346 = vmatpush1.bf16.msra.mxu0 %v2379
      %3347 = vmatprep.subr.bf16.mxu0 0
      %3348 = vmatpush1.bf16.msra.mxu0 %v2380
      %3349 = vmatprep.subr.bf16.mxu0 0
      %3350 = vmatpush1.bf16.msra.mxu0 %v2381
      %3351 = vmatprep.subr.bf16.mxu0 0
      %3352 = vmatpush1.bf16.msra.mxu0 %v2382
      %3353 = vmatprep.subr.bf16.mxu0 0
      %3354 = vmatpush1.bf16.msra.mxu0 %v2383
      %3355 = vmatprep.subr.bf16.mxu0 0
      %3356 = vmatpush1.bf16.msra.mxu0 %v2384
      %3357 = vmatprep.subr.bf16.mxu0 0
      %3358 = vmatpush1.bf16.msra.mxu0 %v2385
      %3359 = vmatprep.subr.bf16.mxu0 0
      %3360 = vmatpush1.bf16.msra.mxu0 %v2386
      %3361 = vmatprep.subr.bf16.mxu0 0
      %3362 = vmatpush1.bf16.msra.mxu0 %v2387
      %3363 = vmatprep.subr.bf16.mxu0 0
      %3364 = vmatpush1.bf16.msra.mxu0 %v2388
      %3365 = vmatprep.subr.bf16.mxu0 0
      %3366 = vmatpush1.bf16.msra.mxu0 %v2389
      %3367 = vmatprep.subr.bf16.mxu0 0
      %3368 = vmatpush1.bf16.msra.mxu0 %v2390
      %3369 = vmatprep.subr.bf16.mxu0 0
      %3370 = vmatpush1.bf16.msra.mxu0 %v2391
      %3371 = vmatprep.mubr.bf16.mxu0 %v1608
      %3372 = vmatmul.mubr.bf16.gmra.mrb[0].mxu0 %v1607
      %v3373 = vpop.f32.mrb[0].mxu0
      %v3374 = vadd.f32 %v3085, %v3373
      %v3375 = vpop.f32.mrb[0].mxu0
      %v3376 = vpop.f32.mrb[0].mxu0
      %v3377 = vadd.f32 %v3088, %v3376
      %v3378 = vpop.f32.mrb[0].mxu0
      %3379 = vmatprep.mubr.bf16.mxu0 %v1617
      %3380 = vmatmul.mubr.bf16.gmra.mrb[0].mxu0 %v1616
      %v3381 = vpop.f32.mrb[0].mxu0
      %v3382 = vadd.f32 %v3093, %v3381
      %v3383 = vpop.f32.mrb[0].mxu0
      %v3384 = vpop.f32.mrb[0].mxu0
      %v3385 = vadd.f32 %v3096, %v3384
      %v3386 = vpop.f32.mrb[0].mxu0
      %3387 = vmatprep.mubr.bf16.mxu0 %v1626
      %3388 = vmatmul.mubr.bf16.gmra.mrb[0].mxu0 %v1625
      %v3389 = vpop.f32.mrb[0].mxu0
      %v3390 = vadd.f32 %v3101, %v3389
      %v3391 = vpop.f32.mrb[0].mxu0
      %v3392 = vpop.f32.mrb[0].mxu0
      %v3393 = vadd.f32 %v3104, %v3392
      %v3394 = vpop.f32.mrb[0].mxu0
      %3395 = vmatprep.mubr.bf16.mxu0 %v1635
      %3396 = vmatmul.mubr.bf16.gmra.mrb[0].mxu0 %v1634
      %v3397 = vpop.f32.mrb[0].mxu0
      %v3398 = vadd.f32 %v3109, %v3397
      %v3399 = vpop.f32.mrb[0].mxu0
      %v3400 = vpop.f32.mrb[0].mxu0
      %v3401 = vadd.f32 %v3112, %v3400
      %v3402 = vpop.f32.mrb[0].mxu0
      %3403 = vmatprep.mubr.bf16.mxu0 %v1644
      %3404 = vmatmul.mubr.bf16.gmra.mrb[0].mxu0 %v1643
      %v3405 = vpop.f32.mrb[0].mxu0
      %v3406 = vadd.f32 %v3117, %v3405
      %v3407 = vpop.f32.mrb[0].mxu0
      %v3408 = vpop.f32.mrb[0].mxu0
      %v3409 = vadd.f32 %v3120, %v3408
      %v3410 = vpop.f32.mrb[0].mxu0
      %3411 = vmatprep.mubr.bf16.mxu0 %v1653
      %3412 = vmatmul.mubr.bf16.gmra.mrb[0].mxu0 %v1652
      %v3413 = vpop.f32.mrb[0].mxu0
      %v3414 = vadd.f32 %v3125, %v3413
      %v3415 = vpop.f32.mrb[0].mxu0
      %v3416 = vpop.f32.mrb[0].mxu0
      %v3417 = vadd.f32 %v3128, %v3416
      %v3418 = vpop.f32.mrb[0].mxu0
      %3419 = vmatprep.mubr.bf16.mxu0 %v1662
      %3420 = vmatmul.mubr.bf16.gmra.mrb[0].mxu0 %v1661
      %v3421 = vpop.f32.mrb[0].mxu0
      %v3422 = vadd.f32 %v3133, %v3421
      %v3423 = vpop.f32.mrb[0].mxu0
      %v3424 = vpop.f32.mrb[0].mxu0
      %v3425 = vadd.f32 %v3136, %v3424
      %v3426 = vpop.f32.mrb[0].mxu0
      %3427 = vmatprep.mubr.bf16.mxu0 %v1671
      %3428 = vmatmul.mubr.bf16.gmra.mrb[0].mxu0 %v1670
      %v3429 = vpop.f32.mrb[0].mxu0
      %v3430 = vadd.f32 %v3141, %v3429
      %v3431 = vpop.f32.mrb[0].mxu0
      %v3432 = vpop.f32.mrb[0].mxu0
      %v3433 = vadd.f32 %v3144, %v3432
      %v3434 = vpop.f32.mrb[0].mxu0
      %3435 = vmatprep.mubr.bf16.mxu0 %v1680
      %3436 = vmatmul.mubr.bf16.gmra.mrb[0].mxu0 %v1679
      %v3437 = vpop.f32.mrb[0].mxu0
      %v3438 = vadd.f32 %v3149, %v3437
      %v3439 = vpop.f32.mrb[0].mxu0
      %v3440 = vpop.f32.mrb[0].mxu0
      %v3441 = vadd.f32 %v3152, %v3440
      %v3442 = vpop.f32.mrb[0].mxu0
      %3443 = vmatprep.mubr.bf16.mxu0 %v1689
      %3444 = vmatmul.mubr.bf16.gmra.mrb[0].mxu0 %v1688
      %v3445 = vpop.f32.mrb[0].mxu0
      %v3446 = vadd.f32 %v3157, %v3445
      %v3447 = vpop.f32.mrb[0].mxu0
      %v3448 = vpop.f32.mrb[0].mxu0
      %v3449 = vadd.f32 %v3160, %v3448
      %v3450 = vpop.f32.mrb[0].mxu0
      %3451 = vmatprep.mubr.bf16.mxu0 %v1698
      %3452 = vmatmul.mubr.bf16.gmra.mrb[0].mxu0 %v1697
      %v3453 = vpop.f32.mrb[0].mxu0
      %v3454 = vadd.f32 %v3165, %v3453
      %v3455 = vpop.f32.mrb[0].mxu0
      %v3456 = vpop.f32.mrb[0].mxu0
      %v3457 = vadd.f32 %v3168, %v3456
      %v3458 = vpop.f32.mrb[0].mxu0
      %3459 = vmatprep.mubr.bf16.mxu0 %v1707
      %3460 = vmatmul.mubr.bf16.gmra.mrb[0].mxu0 %v1706
      %v3461 = vpop.f32.mrb[0].mxu0
      %v3462 = vadd.f32 %v3173, %v3461
      %v3463 = vpop.f32.mrb[0].mxu0
      %v3464 = vpop.f32.mrb[0].mxu0
      %v3465 = vadd.f32 %v3176, %v3464
      %v3466 = vpop.f32.mrb[0].mxu0
      %3467 = vmatprep.mubr.bf16.mxu0 %v1716
      %3468 = vmatmul.mubr.bf16.gmra.mrb[0].mxu0 %v1715
      %v3469 = vpop.f32.mrb[0].mxu0
      %v3470 = vadd.f32 %v3181, %v3469
      %v3471 = vpop.f32.mrb[0].mxu0
      %v3472 = vpop.f32.mrb[0].mxu0
      %v3473 = vadd.f32 %v3184, %v3472
      %v3474 = vpop.f32.mrb[0].mxu0
      %3475 = vmatprep.mubr.bf16.mxu0 %v1725
      %3476 = vmatmul.mubr.bf16.gmra.mrb[0].mxu0 %v1724
      %v3477 = vpop.f32.mrb[0].mxu0
      %v3478 = vadd.f32 %v3189, %v3477
      %v3479 = vpop.f32.mrb[0].mxu0
      %v3480 = vpop.f32.mrb[0].mxu0
      %v3481 = vadd.f32 %v3192, %v3480
      %v3482 = vpop.f32.mrb[0].mxu0
      %3483 = vmatprep.mubr.bf16.mxu0 %v1734
      %3484 = vmatmul.mubr.bf16.gmra.mrb[0].mxu0 %v1733
      %v3485 = vpop.f32.mrb[0].mxu0
      %v3486 = vadd.f32 %v3197, %v3485
      %v3487 = vpop.f32.mrb[0].mxu0
      %v3488 = vpop.f32.mrb[0].mxu0
      %v3489 = vadd.f32 %v3200, %v3488
      %v3490 = vpop.f32.mrb[0].mxu0
      %3491 = vmatprep.mubr.bf16.mxu0 %v1743
      %3492 = vmatmul.mubr.bf16.gmra.mrb[0].mxu0 %v1742
      %v3493 = vpop.f32.mrb[0].mxu0
      %v3494 = vadd.f32 %v3205, %v3493
      %v3495 = vpop.f32.mrb[0].mxu0
      %v3496 = vpop.f32.mrb[0].mxu0
      %v3497 = vadd.f32 %v3208, %v3496
      %v3498 = vpop.f32.mrb[0].mxu0
      %3499 = vmatprep.mubr.bf16.mxu0 %v1752
      %3500 = vmatmul.mubr.bf16.gmra.mrb[0].mxu0 %v1751
      %v3501 = vpop.f32.mrb[0].mxu0
      %v3502 = vadd.f32 %v3213, %v3501
      %v3503 = vpop.f32.mrb[0].mxu0
      %v3504 = vpop.f32.mrb[0].mxu0
      %v3505 = vadd.f32 %v3216, %v3504
      %v3506 = vpop.f32.mrb[0].mxu0
      %3507 = vmatprep.mubr.bf16.mxu0 %v1761
      %3508 = vmatmul.mubr.bf16.gmra.mrb[0].mxu0 %v1760
      %v3509 = vpop.f32.mrb[0].mxu0
      %v3510 = vadd.f32 %v3221, %v3509
      %v3511 = vpop.f32.mrb[0].mxu0
      %v3512 = vpop.f32.mrb[0].mxu0
      %v3513 = vadd.f32 %v3224, %v3512
      %v3514 = vpop.f32.mrb[0].mxu0
      %3515 = vmatprep.mubr.bf16.mxu0 %v1770
      %3516 = vmatmul.mubr.bf16.gmra.mrb[0].mxu0 %v1769
      %v3517 = vpop.f32.mrb[0].mxu0
      %v3518 = vadd.f32 %v3229, %v3517
      %v3519 = vpop.f32.mrb[0].mxu0
      %v3520 = vpop.f32.mrb[0].mxu0
      %v3521 = vadd.f32 %v3232, %v3520
      %v3522 = vpop.f32.mrb[0].mxu0
      %3523 = vmatprep.mubr.bf16.mxu0 %v1779
      %3524 = vmatmul.mubr.bf16.gmra.mrb[0].mxu0 %v1778
      %v3525 = vpop.f32.mrb[0].mxu0
      %v3526 = vadd.f32 %v3237, %v3525
      %v3527 = vpop.f32.mrb[0].mxu0
      %v3528 = vpop.f32.mrb[0].mxu0
      %v3529 = vadd.f32 %v3240, %v3528
      %v3530 = vpop.f32.mrb[0].mxu0
      %3531 = vmatprep.mubr.bf16.mxu0 %v1788
      %3532 = vmatmul.mubr.bf16.gmra.mrb[0].mxu0 %v1787
      %v3533 = vpop.f32.mrb[0].mxu0
      %v3534 = vadd.f32 %v3245, %v3533
      %v3535 = vpop.f32.mrb[0].mxu0
      %v3536 = vpop.f32.mrb[0].mxu0
      %v3537 = vadd.f32 %v3248, %v3536
      %v3538 = vpop.f32.mrb[0].mxu0
      %3539 = vmatprep.mubr.bf16.mxu0 %v1797
      %3540 = vmatmul.mubr.bf16.gmra.mrb[0].mxu0 %v1796
      %v3541 = vpop.f32.mrb[0].mxu0
      %v3542 = vadd.f32 %v3253, %v3541
      %v3543 = vpop.f32.mrb[0].mxu0
      %v3544 = vpop.f32.mrb[0].mxu0
      %v3545 = vadd.f32 %v3256, %v3544
      %v3546 = vpop.f32.mrb[0].mxu0
      %3547 = vmatprep.mubr.bf16.mxu0 %v1806
      %3548 = vmatmul.mubr.bf16.gmra.mrb[0].mxu0 %v1805
      %v3549 = vpop.f32.mrb[0].mxu0
      %v3550 = vadd.f32 %v3261, %v3549
      %v3551 = vpop.f32.mrb[0].mxu0
      %v3552 = vpop.f32.mrb[0].mxu0
      %v3553 = vadd.f32 %v3264, %v3552
      %v3554 = vpop.f32.mrb[0].mxu0
      %3555 = vmatprep.mubr.bf16.mxu0 %v1815
      %3556 = vmatmul.mubr.bf16.gmra.mrb[0].mxu0 %v1814
      %v3557 = vpop.f32.mrb[0].mxu0
      %v3558 = vadd.f32 %v3269, %v3557
      %v3559 = vpop.f32.mrb[0].mxu0
      %v3560 = vpop.f32.mrb[0].mxu0
      %v3561 = vadd.f32 %v3272, %v3560
      %v3562 = vpop.f32.mrb[0].mxu0
      %3563 = vmatprep.mubr.bf16.mxu0 %v1824
      %3564 = vmatmul.mubr.bf16.gmra.mrb[0].mxu0 %v1823
      %v3565 = vpop.f32.mrb[0].mxu0
      %v3566 = vadd.f32 %v3277, %v3565
      %v3567 = vpop.f32.mrb[0].mxu0
      %v3568 = vpop.f32.mrb[0].mxu0
      %v3569 = vadd.f32 %v3280, %v3568
      %v3570 = vpop.f32.mrb[0].mxu0
      %3571 = vmatprep.mubr.bf16.mxu0 %v1833
      %3572 = vmatmul.mubr.bf16.gmra.mrb[0].mxu0 %v1832
      %v3573 = vpop.f32.mrb[0].mxu0
      %v3574 = vadd.f32 %v3285, %v3573
      %v3575 = vpop.f32.mrb[0].mxu0
      %v3576 = vpop.f32.mrb[0].mxu0
      %v3577 = vadd.f32 %v3288, %v3576
      %v3578 = vpop.f32.mrb[0].mxu0
      %3579 = vmatprep.mubr.bf16.mxu0 %v1842
      %3580 = vmatmul.mubr.bf16.gmra.mrb[0].mxu0 %v1841
      %v3581 = vpop.f32.mrb[0].mxu0
      %v3582 = vadd.f32 %v3293, %v3581
      %v3583 = vpop.f32.mrb[0].mxu0
      %v3584 = vpop.f32.mrb[0].mxu0
      %v3585 = vadd.f32 %v3296, %v3584
      %v3586 = vpop.f32.mrb[0].mxu0
      %3587 = vmatprep.mubr.bf16.mxu0 %v1851
      %3588 = vmatmul.mubr.bf16.gmra.mrb[0].mxu0 %v1850
      %v3589 = vpop.f32.mrb[0].mxu0
      %v3590 = vadd.f32 %v3301, %v3589
      %v3591 = vpop.f32.mrb[0].mxu0
      %v3592 = vpop.f32.mrb[0].mxu0
      %v3593 = vadd.f32 %v3304, %v3592
      %v3594 = vpop.f32.mrb[0].mxu0
      %3595 = vmatprep.mubr.bf16.mxu0 %v1860
      %3596 = vmatmul.mubr.bf16.gmra.mrb[0].mxu0 %v1859
      %v3597 = vpop.f32.mrb[0].mxu0
      %v3598 = vadd.f32 %v3309, %v3597
      %v3599 = vpop.f32.mrb[0].mxu0
      %v3600 = vpop.f32.mrb[0].mxu0
      %v3601 = vadd.f32 %v3312, %v3600
      %v3602 = vpop.f32.mrb[0].mxu0
      %3603 = vmatprep.mubr.bf16.mxu0 %v1869
      %3604 = vmatmul.mubr.bf16.gmra.mrb[0].mxu0 %v1868
      %v3605 = vpop.f32.mrb[0].mxu0
      %v3606 = vadd.f32 %v3317, %v3605
      %v3607 = vpop.f32.mrb[0].mxu0
      %v3608 = vpop.f32.mrb[0].mxu0
      %v3609 = vadd.f32 %v3320, %v3608
      %v3610 = vpop.f32.mrb[0].mxu0
      %3611 = vmatprep.mubr.bf16.mxu0 %v1878
      %3612 = vmatmul.mubr.bf16.gmra.mrb[0].mxu0 %v1877
      %v3613 = vpop.f32.mrb[0].mxu0
      %v3614 = vadd.f32 %v3325, %v3613
      %v3615 = vpop.f32.mrb[0].mxu0
      %v3616 = vpop.f32.mrb[0].mxu0
      %v3617 = vadd.f32 %v3328, %v3616
      %v3618 = vpop.f32.mrb[0].mxu0
      %3619 = vmatprep.mubr.bf16.mxu0 %v1887
      %3620 = vmatmul.mubr.bf16.gmra.mrb[0].mxu0 %v1886
      %v3621 = vpop.f32.mrb[0].mxu0
      %v3622 = vadd.f32 %v3333, %v3621
      %v3623 = vpop.f32.mrb[0].mxu0
      %v3624 = vpop.f32.mrb[0].mxu0
      %v3625 = vadd.f32 %v3336, %v3624
      %v3626 = vpop.f32.mrb[0].mxu0
      %3627 = vdwg.mxu0
      %3628 = vmatprep.subr.bf16.mxu0 0
      %3629 = vmatpush1.bf16.msra.mxu0 %v2392
      %3630 = vmatprep.subr.bf16.mxu0 0
      %3631 = vmatpush1.bf16.msra.mxu0 %v2393
      %3632 = vmatprep.subr.bf16.mxu0 0
      %3633 = vmatpush1.bf16.msra.mxu0 %v2394
      %3634 = vmatprep.subr.bf16.mxu0 0
      %3635 = vmatpush1.bf16.msra.mxu0 %v2395
      %3636 = vmatprep.subr.bf16.mxu0 0
      %3637 = vmatpush1.bf16.msra.mxu0 %v2396
      %3638 = vmatprep.subr.bf16.mxu0 0
      %3639 = vmatpush1.bf16.msra.mxu0 %v2397
      %3640 = vmatprep.subr.bf16.mxu0 0
      %3641 = vmatpush1.bf16.msra.mxu0 %v2398
      %3642 = vmatprep.subr.bf16.mxu0 0
      %3643 = vmatpush1.bf16.msra.mxu0 %v2399
      %3644 = vmatprep.subr.bf16.mxu0 0
      %3645 = vmatpush1.bf16.msra.mxu0 0
      %3646 = vmatprep.subr.bf16.mxu0 0
      %3647 = vmatpush1.bf16.msra.mxu0 0
      %3648 = vmatprep.subr.bf16.mxu0 0
      %3649 = vmatpush1.bf16.msra.mxu0 0
      %3650 = vmatprep.subr.bf16.mxu0 0
      %3651 = vmatpush1.bf16.msra.mxu0 0
      %3652 = vmatprep.subr.bf16.mxu0 0
      %3653 = vmatpush1.bf16.msra.mxu0 0
      %3654 = vmatprep.subr.bf16.mxu0 0
      %3655 = vmatpush1.bf16.msra.mxu0 0
      %3656 = vmatprep.subr.bf16.mxu0 0
      %3657 = vmatpush1.bf16.msra.mxu0 0
      %3658 = vmatprep.subr.bf16.mxu0 0
      %3659 = vmatpush1.bf16.msra.mxu0 0
      %3660 = vmatprep.mubr.bf16.mxu0 0
      %3661 = vmatmul.mubr.bf16.gmra.mrb[0].mxu0 %v1609
      %v3662 = vpop.f32.mrb[0].mxu0
      %v3663 = vadd.f32 %v3374, %v3662
      %v3664 = vpop.f32.mrb[0].mxu0
      %v3665 = vpop.f32.mrb[0].mxu0
      %v3666 = vadd.f32 %v3377, %v3665
      %v3667 = vpop.f32.mrb[0].mxu0
      %3668 = vmatprep.mubr.bf16.mxu0 0
      %3669 = vmatmul.mubr.bf16.gmra.mrb[0].mxu0 %v1618
      %v3670 = vpop.f32.mrb[0].mxu0
      %v3671 = vadd.f32 %v3382, %v3670
      %v3672 = vpop.f32.mrb[0].mxu0
      %v3673 = vpop.f32.mrb[0].mxu0
      %v3674 = vadd.f32 %v3385, %v3673
      %v3675 = vpop.f32.mrb[0].mxu0
      %3676 = vmatprep.mubr.bf16.mxu0 0
      %3677 = vmatmul.mubr.bf16.gmra.mrb[0].mxu0 %v1627
      %v3678 = vpop.f32.mrb[0].mxu0
      %v3679 = vadd.f32 %v3390, %v3678
      %v3680 = vpop.f32.mrb[0].mxu0
      %v3681 = vpop.f32.mrb[0].mxu0
      %v3682 = vadd.f32 %v3393, %v3681
      %v3683 = vpop.f32.mrb[0].mxu0
      %3684 = vmatprep.mubr.bf16.mxu0 0
      %3685 = vmatmul.mubr.bf16.gmra.mrb[0].mxu0 %v1636
      %v3686 = vpop.f32.mrb[0].mxu0
      %v3687 = vadd.f32 %v3398, %v3686
      %v3688 = vpop.f32.mrb[0].mxu0
      %v3689 = vpop.f32.mrb[0].mxu0
      %v3690 = vadd.f32 %v3401, %v3689
      %v3691 = vpop.f32.mrb[0].mxu0
      %3692 = vmatprep.mubr.bf16.mxu0 0
      %3693 = vmatmul.mubr.bf16.gmra.mrb[0].mxu0 %v1645
      %v3694 = vpop.f32.mrb[0].mxu0
      %v3695 = vadd.f32 %v3406, %v3694
      %v3696 = vpop.f32.mrb[0].mxu0
      %v3697 = vpop.f32.mrb[0].mxu0
      %v3698 = vadd.f32 %v3409, %v3697
      %v3699 = vpop.f32.mrb[0].mxu0
      %3700 = vmatprep.mubr.bf16.mxu0 0
      %3701 = vmatmul.mubr.bf16.gmra.mrb[0].mxu0 %v1654
      %v3702 = vpop.f32.mrb[0].mxu0
      %v3703 = vadd.f32 %v3414, %v3702
      %v3704 = vpop.f32.mrb[0].mxu0
      %v3705 = vpop.f32.mrb[0].mxu0
      %v3706 = vadd.f32 %v3417, %v3705
      %v3707 = vpop.f32.mrb[0].mxu0
      %3708 = vmatprep.mubr.bf16.mxu0 0
      %3709 = vmatmul.mubr.bf16.gmra.mrb[0].mxu0 %v1663
      %v3710 = vpop.f32.mrb[0].mxu0
      %v3711 = vadd.f32 %v3422, %v3710
      %v3712 = vpop.f32.mrb[0].mxu0
      %v3713 = vpop.f32.mrb[0].mxu0
      %v3714 = vadd.f32 %v3425, %v3713
      %v3715 = vpop.f32.mrb[0].mxu0
      %3716 = vmatprep.mubr.bf16.mxu0 0
      %3717 = vmatmul.mubr.bf16.gmra.mrb[0].mxu0 %v1672
      %v3718 = vpop.f32.mrb[0].mxu0
      %v3719 = vadd.f32 %v3430, %v3718
      %v3720 = vpop.f32.mrb[0].mxu0
      %v3721 = vpop.f32.mrb[0].mxu0
      %v3722 = vadd.f32 %v3433, %v3721
      %v3723 = vpop.f32.mrb[0].mxu0
      %3724 = vmatprep.mubr.bf16.mxu0 0
      %3725 = vmatmul.mubr.bf16.gmra.mrb[0].mxu0 %v1681
      %v3726 = vpop.f32.mrb[0].mxu0
      %v3727 = vadd.f32 %v3438, %v3726
      %v3728 = vpop.f32.mrb[0].mxu0
      %v3729 = vpop.f32.mrb[0].mxu0
      %v3730 = vadd.f32 %v3441, %v3729
      %v3731 = vpop.f32.mrb[0].mxu0
      %3732 = vmatprep.mubr.bf16.mxu0 0
      %3733 = vmatmul.mubr.bf16.gmra.mrb[0].mxu0 %v1690
      %v3734 = vpop.f32.mrb[0].mxu0
      %v3735 = vadd.f32 %v3446, %v3734
      %v3736 = vpop.f32.mrb[0].mxu0
      %v3737 = vpop.f32.mrb[0].mxu0
      %v3738 = vadd.f32 %v3449, %v3737
      %v3739 = vpop.f32.mrb[0].mxu0
      %3740 = vmatprep.mubr.bf16.mxu0 0
      %3741 = vmatmul.mubr.bf16.gmra.mrb[0].mxu0 %v1699
      %v3742 = vpop.f32.mrb[0].mxu0
      %v3743 = vadd.f32 %v3454, %v3742
      %v3744 = vpop.f32.mrb[0].mxu0
      %v3745 = vpop.f32.mrb[0].mxu0
      %v3746 = vadd.f32 %v3457, %v3745
      %v3747 = vpop.f32.mrb[0].mxu0
      %3748 = vmatprep.mubr.bf16.mxu0 0
      %3749 = vmatmul.mubr.bf16.gmra.mrb[0].mxu0 %v1708
      %v3750 = vpop.f32.mrb[0].mxu0
      %v3751 = vadd.f32 %v3462, %v3750
      %v3752 = vpop.f32.mrb[0].mxu0
      %v3753 = vpop.f32.mrb[0].mxu0
      %v3754 = vadd.f32 %v3465, %v3753
      %v3755 = vpop.f32.mrb[0].mxu0
      %3756 = vmatprep.mubr.bf16.mxu0 0
      %3757 = vmatmul.mubr.bf16.gmra.mrb[0].mxu0 %v1717
      %v3758 = vpop.f32.mrb[0].mxu0
      %v3759 = vadd.f32 %v3470, %v3758
      %v3760 = vpop.f32.mrb[0].mxu0
      %v3761 = vpop.f32.mrb[0].mxu0
      %v3762 = vadd.f32 %v3473, %v3761
      %v3763 = vpop.f32.mrb[0].mxu0
      %3764 = vmatprep.mubr.bf16.mxu0 0
      %3765 = vmatmul.mubr.bf16.gmra.mrb[0].mxu0 %v1726
      %v3766 = vpop.f32.mrb[0].mxu0
      %v3767 = vadd.f32 %v3478, %v3766
      %v3768 = vpop.f32.mrb[0].mxu0
      %v3769 = vpop.f32.mrb[0].mxu0
      %v3770 = vadd.f32 %v3481, %v3769
      %v3771 = vpop.f32.mrb[0].mxu0
      %3772 = vmatprep.mubr.bf16.mxu0 0
      %3773 = vmatmul.mubr.bf16.gmra.mrb[0].mxu0 %v1735
      %v3774 = vpop.f32.mrb[0].mxu0
      %v3775 = vadd.f32 %v3486, %v3774
      %v3776 = vpop.f32.mrb[0].mxu0
      %v3777 = vpop.f32.mrb[0].mxu0
      %v3778 = vadd.f32 %v3489, %v3777
      %v3779 = vpop.f32.mrb[0].mxu0
      %3780 = vmatprep.mubr.bf16.mxu0 0
      %3781 = vmatmul.mubr.bf16.gmra.mrb[0].mxu0 %v1744
      %v3782 = vpop.f32.mrb[0].mxu0
      %v3783 = vadd.f32 %v3494, %v3782
      %v3784 = vpop.f32.mrb[0].mxu0
      %v3785 = vpop.f32.mrb[0].mxu0
      %v3786 = vadd.f32 %v3497, %v3785
      %v3787 = vpop.f32.mrb[0].mxu0
      %3788 = vmatprep.mubr.bf16.mxu0 0
      %3789 = vmatmul.mubr.bf16.gmra.mrb[0].mxu0 %v1753
      %v3790 = vpop.f32.mrb[0].mxu0
      %v3791 = vadd.f32 %v3502, %v3790
      %v3792 = vpop.f32.mrb[0].mxu0
      %v3793 = vpop.f32.mrb[0].mxu0
      %v3794 = vadd.f32 %v3505, %v3793
      %v3795 = vpop.f32.mrb[0].mxu0
      %3796 = vmatprep.mubr.bf16.mxu0 0
      %3797 = vmatmul.mubr.bf16.gmra.mrb[0].mxu0 %v1762
      %v3798 = vpop.f32.mrb[0].mxu0
      %v3799 = vadd.f32 %v3510, %v3798
      %v3800 = vpop.f32.mrb[0].mxu0
      %v3801 = vpop.f32.mrb[0].mxu0
      %v3802 = vadd.f32 %v3513, %v3801
      %v3803 = vpop.f32.mrb[0].mxu0
      %3804 = vmatprep.mubr.bf16.mxu0 0
      %3805 = vmatmul.mubr.bf16.gmra.mrb[0].mxu0 %v1771
      %v3806 = vpop.f32.mrb[0].mxu0
      %v3807 = vadd.f32 %v3518, %v3806
      %v3808 = vpop.f32.mrb[0].mxu0
      %v3809 = vpop.f32.mrb[0].mxu0
      %v3810 = vadd.f32 %v3521, %v3809
      %v3811 = vpop.f32.mrb[0].mxu0
      %3812 = vmatprep.mubr.bf16.mxu0 0
      %3813 = vmatmul.mubr.bf16.gmra.mrb[0].mxu0 %v1780
      %v3814 = vpop.f32.mrb[0].mxu0
      %v3815 = vadd.f32 %v3526, %v3814
      %v3816 = vpop.f32.mrb[0].mxu0
      %v3817 = vpop.f32.mrb[0].mxu0
      %v3818 = vadd.f32 %v3529, %v3817
      %v3819 = vpop.f32.mrb[0].mxu0
      %3820 = vmatprep.mubr.bf16.mxu0 0
      %3821 = vmatmul.mubr.bf16.gmra.mrb[0].mxu0 %v1789
      %v3822 = vpop.f32.mrb[0].mxu0
      %v3823 = vadd.f32 %v3534, %v3822
      %v3824 = vpop.f32.mrb[0].mxu0
      %v3825 = vpop.f32.mrb[0].mxu0
      %v3826 = vadd.f32 %v3537, %v3825
      %v3827 = vpop.f32.mrb[0].mxu0
      %3828 = vmatprep.mubr.bf16.mxu0 0
      %3829 = vmatmul.mubr.bf16.gmra.mrb[0].mxu0 %v1798
      %v3830 = vpop.f32.mrb[0].mxu0
      %v3831 = vadd.f32 %v3542, %v3830
      %v3832 = vpop.f32.mrb[0].mxu0
      %v3833 = vpop.f32.mrb[0].mxu0
      %v3834 = vadd.f32 %v3545, %v3833
      %v3835 = vpop.f32.mrb[0].mxu0
      %3836 = vmatprep.mubr.bf16.mxu0 0
      %3837 = vmatmul.mubr.bf16.gmra.mrb[0].mxu0 %v1807
      %v3838 = vpop.f32.mrb[0].mxu0
      %v3839 = vadd.f32 %v3550, %v3838
      %v3840 = vpop.f32.mrb[0].mxu0
      %v3841 = vpop.f32.mrb[0].mxu0
      %v3842 = vadd.f32 %v3553, %v3841
      %v3843 = vpop.f32.mrb[0].mxu0
      %3844 = vmatprep.mubr.bf16.mxu0 0
      %3845 = vmatmul.mubr.bf16.gmra.mrb[0].mxu0 %v1816
      %v3846 = vpop.f32.mrb[0].mxu0
      %v3847 = vadd.f32 %v3558, %v3846
      %v3848 = vpop.f32.mrb[0].mxu0
      %v3849 = vpop.f32.mrb[0].mxu0
      %v3850 = vadd.f32 %v3561, %v3849
      %v3851 = vpop.f32.mrb[0].mxu0
      %3852 = vmatprep.mubr.bf16.mxu0 0
      %3853 = vmatmul.mubr.bf16.gmra.mrb[0].mxu0 %v1825
      %v3854 = vpop.f32.mrb[0].mxu0
      %v3855 = vadd.f32 %v3566, %v3854
      %v3856 = vpop.f32.mrb[0].mxu0
      %v3857 = vpop.f32.mrb[0].mxu0
      %v3858 = vadd.f32 %v3569, %v3857
      %v3859 = vpop.f32.mrb[0].mxu0
      %3860 = vmatprep.mubr.bf16.mxu0 0
      %3861 = vmatmul.mubr.bf16.gmra.mrb[0].mxu0 %v1834
      %v3862 = vpop.f32.mrb[0].mxu0
      %v3863 = vadd.f32 %v3574, %v3862
      %v3864 = vpop.f32.mrb[0].mxu0
      %v3865 = vpop.f32.mrb[0].mxu0
      %v3866 = vadd.f32 %v3577, %v3865
      %v3867 = vpop.f32.mrb[0].mxu0
      %3868 = vmatprep.mubr.bf16.mxu0 0
      %3869 = vmatmul.mubr.bf16.gmra.mrb[0].mxu0 %v1843
      %v3870 = vpop.f32.mrb[0].mxu0
      %v3871 = vadd.f32 %v3582, %v3870
      %v3872 = vpop.f32.mrb[0].mxu0
      %v3873 = vpop.f32.mrb[0].mxu0
      %v3874 = vadd.f32 %v3585, %v3873
      %v3875 = vpop.f32.mrb[0].mxu0
      %3876 = vmatprep.mubr.bf16.mxu0 0
      %3877 = vmatmul.mubr.bf16.gmra.mrb[0].mxu0 %v1852
      %v3878 = vpop.f32.mrb[0].mxu0
      %v3879 = vadd.f32 %v3590, %v3878
      %v3880 = vpop.f32.mrb[0].mxu0
      %v3881 = vpop.f32.mrb[0].mxu0
      %v3882 = vadd.f32 %v3593, %v3881
      %v3883 = vpop.f32.mrb[0].mxu0
      %3884 = vmatprep.mubr.bf16.mxu0 0
      %3885 = vmatmul.mubr.bf16.gmra.mrb[0].mxu0 %v1861
      %v3886 = vpop.f32.mrb[0].mxu0
      %v3887 = vadd.f32 %v3598, %v3886
      %v3888 = vpop.f32.mrb[0].mxu0
      %v3889 = vpop.f32.mrb[0].mxu0
      %v3890 = vadd.f32 %v3601, %v3889
      %v3891 = vpop.f32.mrb[0].mxu0
      %3892 = vmatprep.mubr.bf16.mxu0 0
      %3893 = vmatmul.mubr.bf16.gmra.mrb[0].mxu0 %v1870
      %v3894 = vpop.f32.mrb[0].mxu0
      %v3895 = vadd.f32 %v3606, %v3894
      %v3896 = vpop.f32.mrb[0].mxu0
      %v3897 = vpop.f32.mrb[0].mxu0
      %v3898 = vadd.f32 %v3609, %v3897
      %v3899 = vpop.f32.mrb[0].mxu0
      %3900 = vmatprep.mubr.bf16.mxu0 0
      %3901 = vmatmul.mubr.bf16.gmra.mrb[0].mxu0 %v1879
      %v3902 = vpop.f32.mrb[0].mxu0
      %v3903 = vadd.f32 %v3614, %v3902
      %v3904 = vpop.f32.mrb[0].mxu0
      %v3905 = vpop.f32.mrb[0].mxu0
      %v3906 = vadd.f32 %v3617, %v3905
      %v3907 = vpop.f32.mrb[0].mxu0
      %3908 = vmatprep.mubr.bf16.mxu0 0
      %3909 = vmatmul.mubr.bf16.gmra.mrb[0].mxu0 %v1888
      %v3910 = vpop.f32.mrb[0].mxu0
      %v3911 = vadd.f32 %v3622, %v3910
      %v3912 = vpop.f32.mrb[0].mxu0
      %v3913 = vpop.f32.mrb[0].mxu0
      %v3914 = vadd.f32 %v3625, %v3913
      %v3915 = vpop.f32.mrb[0].mxu0
      %3916 = vdwg.mxu0
      %v3917 = vadd.f32 %v3663, %v3666
      %v3918 = vadd.f32 %v3917, %v3671
      %v3919 = vadd.f32 %v3918, %v3674
      %v3920 = vadd.f32 %v3919, %v3679
      %v3921 = vadd.f32 %v3920, %v3682
      %v3922 = vadd.f32 %v3921, %v3687
      %v3923 = vadd.f32 %v3922, %v3690
      %v3924 = vadd.f32 %v3923, %v3695
      %v3925 = vadd.f32 %v3924, %v3698
      %v3926 = vadd.f32 %v3925, %v3703
      %v3927 = vadd.f32 %v3926, %v3706
      %v3928 = vadd.f32 %v3927, %v3711
      %v3929 = vadd.f32 %v3928, %v3714
      %v3930 = vadd.f32 %v3929, %v3719
      %v3931 = vadd.f32 %v3930, %v3722
      %v3932 = vadd.f32 %v3931, %v3727
      %v3933 = vadd.f32 %v3932, %v3730
      %v3934 = vadd.f32 %v3933, %v3735
      %v3935 = vadd.f32 %v3934, %v3738
      %v3936 = vadd.f32 %v3935, %v3743
      %v3937 = vadd.f32 %v3936, %v3746
      %v3938 = vadd.f32 %v3937, %v3751
      %v3939 = vadd.f32 %v3938, %v3754
      %v3940 = vadd.f32 %v3939, %v3759
      %v3941 = vadd.f32 %v3940, %v3762
      %v3942 = vadd.f32 %v3941, %v3767
      %v3943 = vadd.f32 %v3942, %v3770
      %v3944 = vadd.f32 %v3943, %v3775
      %v3945 = vadd.f32 %v3944, %v3778
      %v3946 = vadd.f32 %v3945, %v3783
      %v3947 = vadd.f32 %v3946, %v3786
      %v3948 = vrot.slane %v3947, 4
      %v3949 = vadd.f32 %v3947, %v3948
      %v3950 = vrot.slane %v3949, 2
      %v3951 = vadd.f32 %v3949, %v3950
      %v3952 = vrot.slane %v3951, 1
      %v3953 = vadd.f32 %v3951, %v3952
      %v3954 = vadd.f32 %v3791, %v3794
      %v3955 = vadd.f32 %v3954, %v3799
      %v3956 = vadd.f32 %v3955, %v3802
      %v3957 = vadd.f32 %v3956, %v3807
      %v3958 = vadd.f32 %v3957, %v3810
      %v3959 = vadd.f32 %v3958, %v3815
      %v3960 = vadd.f32 %v3959, %v3818
      %v3961 = vadd.f32 %v3960, %v3823
      %v3962 = vadd.f32 %v3961, %v3826
      %v3963 = vadd.f32 %v3962, %v3831
      %v3964 = vadd.f32 %v3963, %v3834
      %v3965 = vadd.f32 %v3964, %v3839
      %v3966 = vadd.f32 %v3965, %v3842
      %v3967 = vadd.f32 %v3966, %v3847
      %v3968 = vadd.f32 %v3967, %v3850
      %v3969 = vadd.f32 %v3968, %v3855
      %v3970 = vadd.f32 %v3969, %v3858
      %v3971 = vadd.f32 %v3970, %v3863
      %v3972 = vadd.f32 %v3971, %v3866
      %v3973 = vadd.f32 %v3972, %v3871
      %v3974 = vadd.f32 %v3973, %v3874
      %v3975 = vadd.f32 %v3974, %v3879
      %v3976 = vadd.f32 %v3975, %v3882
      %v3977 = vadd.f32 %v3976, %v3887
      %v3978 = vadd.f32 %v3977, %v3890
      %v3979 = vadd.f32 %v3978, %v3895
      %v3980 = vadd.f32 %v3979, %v3898
      %v3981 = vadd.f32 %v3980, %v3903
      %v3982 = vadd.f32 %v3981, %v3906
      %v3983 = vadd.f32 %v3982, %v3911
      %v3984 = vadd.f32 %v3983, %v3914
      %v3985 = vrot.slane %v3984, 4
      %v3986 = vadd.f32 %v3984, %v3985
      %v3987 = vrot.slane %v3986, 2
      %v3988 = vadd.f32 %v3986, %v3987
      %v3989 = vrot.slane %v3988, 1
      %v3990 = vadd.f32 %v3988, %v3989
      %v3991 = vrcp.pop 256.0
      %v3992 = vmul.f32 %v3953, %v3991
      %v3993 = vmul.f32 %v3990, %v3991
      %v3994 = vsub.f32 %v3663, %v3992
      %v3995 = vsub.f32 %v3666, %v3992
      %v3996 = vsub.f32 %v3671, %v3992
      %v3997 = vsub.f32 %v3674, %v3992
      %v3998 = vsub.f32 %v3679, %v3992
      %v3999 = vsub.f32 %v3682, %v3992
      %v4000 = vsub.f32 %v3687, %v3992
      %v4001 = vsub.f32 %v3690, %v3992
      %v4002 = vsub.f32 %v3695, %v3992
      %v4003 = vsub.f32 %v3698, %v3992
      %v4004 = vsub.f32 %v3703, %v3992
      %v4005 = vsub.f32 %v3706, %v3992
      %v4006 = vsub.f32 %v3711, %v3992
      %v4007 = vsub.f32 %v3714, %v3992
      %v4008 = vsub.f32 %v3719, %v3992
      %v4009 = vsub.f32 %v3722, %v3992
      %v4010 = vsub.f32 %v3727, %v3992
      %v4011 = vsub.f32 %v3730, %v3992
      %v4012 = vsub.f32 %v3735, %v3992
      %v4013 = vsub.f32 %v3738, %v3992
      %v4014 = vsub.f32 %v3743, %v3992
      %v4015 = vsub.f32 %v3746, %v3992
      %v4016 = vsub.f32 %v3751, %v3992
      %v4017 = vsub.f32 %v3754, %v3992
      %v4018 = vsub.f32 %v3759, %v3992
      %v4019 = vsub.f32 %v3762, %v3992
      %v4020 = vsub.f32 %v3767, %v3992
      %v4021 = vsub.f32 %v3770, %v3992
      %v4022 = vsub.f32 %v3775, %v3992
      %v4023 = vsub.f32 %v3778, %v3992
      %v4024 = vsub.f32 %v3783, %v3992
      %v4025 = vsub.f32 %v3786, %v3992
      %v4026 = vsub.f32 %v3791, %v3993
      %v4027 = vsub.f32 %v3794, %v3993
      %v4028 = vsub.f32 %v3799, %v3993
      %v4029 = vsub.f32 %v3802, %v3993
      %v4030 = vsub.f32 %v3807, %v3993
      %v4031 = vsub.f32 %v3810, %v3993
      %v4032 = vsub.f32 %v3815, %v3993
      %v4033 = vsub.f32 %v3818, %v3993
      %v4034 = vsub.f32 %v3823, %v3993
      %v4035 = vsub.f32 %v3826, %v3993
      %v4036 = vsub.f32 %v3831, %v3993
      %v4037 = vsub.f32 %v3834, %v3993
      %v4038 = vsub.f32 %v3839, %v3993
      %v4039 = vsub.f32 %v3842, %v3993
      %v4040 = vsub.f32 %v3847, %v3993
      %v4041 = vsub.f32 %v3850, %v3993
      %v4042 = vsub.f32 %v3855, %v3993
      %v4043 = vsub.f32 %v3858, %v3993
      %v4044 = vsub.f32 %v3863, %v3993
      %v4045 = vsub.f32 %v3866, %v3993
      %v4046 = vsub.f32 %v3871, %v3993
      %v4047 = vsub.f32 %v3874, %v3993
      %v4048 = vsub.f32 %v3879, %v3993
      %v4049 = vsub.f32 %v3882, %v3993
      %v4050 = vsub.f32 %v3887, %v3993
      %v4051 = vsub.f32 %v3890, %v3993
      %v4052 = vsub.f32 %v3895, %v3993
      %v4053 = vsub.f32 %v3898, %v3993
      %v4054 = vsub.f32 %v3903, %v3993
      %v4055 = vsub.f32 %v3906, %v3993
      %v4056 = vsub.f32 %v3911, %v3993
      %v4057 = vsub.f32 %v3914, %v3993
      %v4058 = vmul.f32 %v3994, %v3994
      %v4059 = vmul.f32 %v3995, %v3995
      %v4060 = vmul.f32 %v3996, %v3996
      %v4061 = vmul.f32 %v3997, %v3997
      %v4062 = vmul.f32 %v3998, %v3998
      %v4063 = vmul.f32 %v3999, %v3999
      %v4064 = vmul.f32 %v4000, %v4000
      %v4065 = vmul.f32 %v4001, %v4001
      %v4066 = vmul.f32 %v4002, %v4002
      %v4067 = vmul.f32 %v4003, %v4003
      %v4068 = vmul.f32 %v4004, %v4004
      %v4069 = vmul.f32 %v4005, %v4005
      %v4070 = vmul.f32 %v4006, %v4006
      %v4071 = vmul.f32 %v4007, %v4007
      %v4072 = vmul.f32 %v4008, %v4008
      %v4073 = vmul.f32 %v4009, %v4009
      %v4074 = vmul.f32 %v4010, %v4010
      %v4075 = vmul.f32 %v4011, %v4011
      %v4076 = vmul.f32 %v4012, %v4012
      %v4077 = vmul.f32 %v4013, %v4013
      %v4078 = vmul.f32 %v4014, %v4014
      %v4079 = vmul.f32 %v4015, %v4015
      %v4080 = vmul.f32 %v4016, %v4016
      %v4081 = vmul.f32 %v4017, %v4017
      %v4082 = vmul.f32 %v4018, %v4018
      %v4083 = vmul.f32 %v4019, %v4019
      %v4084 = vmul.f32 %v4020, %v4020
      %v4085 = vmul.f32 %v4021, %v4021
      %v4086 = vmul.f32 %v4022, %v4022
      %v4087 = vmul.f32 %v4023, %v4023
      %v4088 = vmul.f32 %v4024, %v4024
      %v4089 = vmul.f32 %v4025, %v4025
      %v4090 = vmul.f32 %v4026, %v4026
      %v4091 = vmul.f32 %v4027, %v4027
      %v4092 = vmul.f32 %v4028, %v4028
      %v4093 = vmul.f32 %v4029, %v4029
      %v4094 = vmul.f32 %v4030, %v4030
      %v4095 = vmul.f32 %v4031, %v4031
      %v4096 = vmul.f32 %v4032, %v4032
      %v4097 = vmul.f32 %v4033, %v4033
      %v4098 = vmul.f32 %v4034, %v4034
      %v4099 = vmul.f32 %v4035, %v4035
      %v4100 = vmul.f32 %v4036, %v4036
      %v4101 = vmul.f32 %v4037, %v4037
      %v4102 = vmul.f32 %v4038, %v4038
      %v4103 = vmul.f32 %v4039, %v4039
      %v4104 = vmul.f32 %v4040, %v4040
      %v4105 = vmul.f32 %v4041, %v4041
      %v4106 = vmul.f32 %v4042, %v4042
      %v4107 = vmul.f32 %v4043, %v4043
      %v4108 = vmul.f32 %v4044, %v4044
      %v4109 = vmul.f32 %v4045, %v4045
      %v4110 = vmul.f32 %v4046, %v4046
      %v4111 = vmul.f32 %v4047, %v4047
      %v4112 = vmul.f32 %v4048, %v4048
      %v4113 = vmul.f32 %v4049, %v4049
      %v4114 = vmul.f32 %v4050, %v4050
      %v4115 = vmul.f32 %v4051, %v4051
      %v4116 = vmul.f32 %v4052, %v4052
      %v4117 = vmul.f32 %v4053, %v4053
      %v4118 = vmul.f32 %v4054, %v4054
      %v4119 = vmul.f32 %v4055, %v4055
      %v4120 = vmul.f32 %v4056, %v4056
      %v4121 = vmul.f32 %v4057, %v4057
      %v4122 = vadd.f32 %v4058, %v4059
      %v4123 = vadd.f32 %v4122, %v4060
      %v4124 = vadd.f32 %v4123, %v4061
      %v4125 = vadd.f32 %v4124, %v4062
      %v4126 = vadd.f32 %v4125, %v4063
      %v4127 = vadd.f32 %v4126, %v4064
      %v4128 = vadd.f32 %v4127, %v4065
      %v4129 = vadd.f32 %v4128, %v4066
      %v4130 = vadd.f32 %v4129, %v4067
      %v4131 = vadd.f32 %v4130, %v4068
      %v4132 = vadd.f32 %v4131, %v4069
      %v4133 = vadd.f32 %v4132, %v4070
      %v4134 = vadd.f32 %v4133, %v4071
      %v4135 = vadd.f32 %v4134, %v4072
      %v4136 = vadd.f32 %v4135, %v4073
      %v4137 = vadd.f32 %v4136, %v4074
      %v4138 = vadd.f32 %v4137, %v4075
      %v4139 = vadd.f32 %v4138, %v4076
      %v4140 = vadd.f32 %v4139, %v4077
      %v4141 = vadd.f32 %v4140, %v4078
      %v4142 = vadd.f32 %v4141, %v4079
      %v4143 = vadd.f32 %v4142, %v4080
      %v4144 = vadd.f32 %v4143, %v4081
      %v4145 = vadd.f32 %v4144, %v4082
      %v4146 = vadd.f32 %v4145, %v4083
      %v4147 = vadd.f32 %v4146, %v4084
      %v4148 = vadd.f32 %v4147, %v4085
      %v4149 = vadd.f32 %v4148, %v4086
      %v4150 = vadd.f32 %v4149, %v4087
      %v4151 = vadd.f32 %v4150, %v4088
      %v4152 = vadd.f32 %v4151, %v4089
      %v4153 = vrot.slane %v4152, 4
      %v4154 = vadd.f32 %v4152, %v4153
      %v4155 = vrot.slane %v4154, 2
      %v4156 = vadd.f32 %v4154, %v4155
      %v4157 = vrot.slane %v4156, 1
      %v4158 = vadd.f32 %v4156, %v4157
      %v4159 = vadd.f32 %v4090, %v4091
      %v4160 = vadd.f32 %v4159, %v4092
      %v4161 = vadd.f32 %v4160, %v4093
      %v4162 = vadd.f32 %v4161, %v4094
      %v4163 = vadd.f32 %v4162, %v4095
      %v4164 = vadd.f32 %v4163, %v4096
      %v4165 = vadd.f32 %v4164, %v4097
      %v4166 = vadd.f32 %v4165, %v4098
      %v4167 = vadd.f32 %v4166, %v4099
      %v4168 = vadd.f32 %v4167, %v4100
      %v4169 = vadd.f32 %v4168, %v4101
      %v4170 = vadd.f32 %v4169, %v4102
      %v4171 = vadd.f32 %v4170, %v4103
      %v4172 = vadd.f32 %v4171, %v4104
      %v4173 = vadd.f32 %v4172, %v4105
      %v4174 = vadd.f32 %v4173, %v4106
      %v4175 = vadd.f32 %v4174, %v4107
      %v4176 = vadd.f32 %v4175, %v4108
      %v4177 = vadd.f32 %v4176, %v4109
      %v4178 = vadd.f32 %v4177, %v4110
      %v4179 = vadd.f32 %v4178, %v4111
      %v4180 = vadd.f32 %v4179, %v4112
      %v4181 = vadd.f32 %v4180, %v4113
      %v4182 = vadd.f32 %v4181, %v4114
      %v4183 = vadd.f32 %v4182, %v4115
      %v4184 = vadd.f32 %v4183, %v4116
      %v4185 = vadd.f32 %v4184, %v4117
      %v4186 = vadd.f32 %v4185, %v4118
      %v4187 = vadd.f32 %v4186, %v4119
      %v4188 = vadd.f32 %v4187, %v4120
      %v4189 = vadd.f32 %v4188, %v4121
      %v4190 = vrot.slane %v4189, 4
      %v4191 = vadd.f32 %v4189, %v4190
      %v4192 = vrot.slane %v4191, 2
      %v4193 = vadd.f32 %v4191, %v4192
      %v4194 = vrot.slane %v4193, 1
      %v4195 = vadd.f32 %v4193, %v4194
      %v4196 = vmul.f32 %v4158, %v3991
      %v4197 = vmul.f32 %v4195, %v3991
      %v4198 = vadd.f32 %v4196, 1e-05
      %v4199 = vadd.f32 %v4197, 1e-05
      %v4200 = vrsqrt.pop %v4198
      %v4201 = vrsqrt.pop %v4199
      %v4202 = vmul.f32 %v3994, %v4200
      %v4203 = vmul.f32 %v3995, %v4200
      %v4204 = vmul.f32 %v3996, %v4200
      %v4205 = vmul.f32 %v3997, %v4200
      %v4206 = vmul.f32 %v3998, %v4200
      %v4207 = vmul.f32 %v3999, %v4200
      %v4208 = vmul.f32 %v4000, %v4200
      %v4209 = vmul.f32 %v4001, %v4200
      %v4210 = vmul.f32 %v4002, %v4200
      %v4211 = vmul.f32 %v4003, %v4200
      %v4212 = vmul.f32 %v4004, %v4200
      %v4213 = vmul.f32 %v4005, %v4200
      %v4214 = vmul.f32 %v4006, %v4200
      %v4215 = vmul.f32 %v4007, %v4200
      %v4216 = vmul.f32 %v4008, %v4200
      %v4217 = vmul.f32 %v4009, %v4200
      %v4218 = vmul.f32 %v4010, %v4200
      %v4219 = vmul.f32 %v4011, %v4200
      %v4220 = vmul.f32 %v4012, %v4200
      %v4221 = vmul.f32 %v4013, %v4200
      %v4222 = vmul.f32 %v4014, %v4200
      %v4223 = vmul.f32 %v4015, %v4200
      %v4224 = vmul.f32 %v4016, %v4200
      %v4225 = vmul.f32 %v4017, %v4200
      %v4226 = vmul.f32 %v4018, %v4200
      %v4227 = vmul.f32 %v4019, %v4200
      %v4228 = vmul.f32 %v4020, %v4200
      %v4229 = vmul.f32 %v4021, %v4200
      %v4230 = vmul.f32 %v4022, %v4200
      %v4231 = vmul.f32 %v4023, %v4200
      %v4232 = vmul.f32 %v4024, %v4200
      %v4233 = vmul.f32 %v4025, %v4200
      %v4234 = vmul.f32 %v4026, %v4201
      %v4235 = vmul.f32 %v4027, %v4201
      %v4236 = vmul.f32 %v4028, %v4201
      %v4237 = vmul.f32 %v4029, %v4201
      %v4238 = vmul.f32 %v4030, %v4201
      %v4239 = vmul.f32 %v4031, %v4201
      %v4240 = vmul.f32 %v4032, %v4201
      %v4241 = vmul.f32 %v4033, %v4201
      %v4242 = vmul.f32 %v4034, %v4201
      %v4243 = vmul.f32 %v4035, %v4201
      %v4244 = vmul.f32 %v4036, %v4201
      %v4245 = vmul.f32 %v4037, %v4201
      %v4246 = vmul.f32 %v4038, %v4201
      %v4247 = vmul.f32 %v4039, %v4201
      %v4248 = vmul.f32 %v4040, %v4201
      %v4249 = vmul.f32 %v4041, %v4201
      %v4250 = vmul.f32 %v4042, %v4201
      %v4251 = vmul.f32 %v4043, %v4201
      %v4252 = vmul.f32 %v4044, %v4201
      %v4253 = vmul.f32 %v4045, %v4201
      %v4254 = vmul.f32 %v4046, %v4201
      %v4255 = vmul.f32 %v4047, %v4201
      %v4256 = vmul.f32 %v4048, %v4201
      %v4257 = vmul.f32 %v4049, %v4201
      %v4258 = vmul.f32 %v4050, %v4201
      %v4259 = vmul.f32 %v4051, %v4201
      %v4260 = vmul.f32 %v4052, %v4201
      %v4261 = vmul.f32 %v4053, %v4201
      %v4262 = vmul.f32 %v4054, %v4201
      %v4263 = vmul.f32 %v4055, %v4201
      %v4264 = vmul.f32 %v4056, %v4201
      %v4265 = vmul.f32 %v4057, %v4201
      %v4266 = vmax.f32 %v4202, 0.0
      %v4267 = vmax.f32 %v4203, 0.0
      %v4268 = vmax.f32 %v4204, 0.0
      %v4269 = vmax.f32 %v4205, 0.0
      %v4270 = vmax.f32 %v4206, 0.0
      %v4271 = vmax.f32 %v4207, 0.0
      %v4272 = vmax.f32 %v4208, 0.0
      %v4273 = vmax.f32 %v4209, 0.0
      %v4274 = vmax.f32 %v4210, 0.0
      %v4275 = vmax.f32 %v4211, 0.0
      %v4276 = vmax.f32 %v4212, 0.0
      %v4277 = vmax.f32 %v4213, 0.0
      %v4278 = vmax.f32 %v4214, 0.0
      %v4279 = vmax.f32 %v4215, 0.0
      %v4280 = vmax.f32 %v4216, 0.0
      %v4281 = vmax.f32 %v4217, 0.0
      %v4282 = vmax.f32 %v4218, 0.0
      %v4283 = vmax.f32 %v4219, 0.0
      %v4284 = vmax.f32 %v4220, 0.0
      %v4285 = vmax.f32 %v4221, 0.0
      %v4286 = vmax.f32 %v4222, 0.0
      %v4287 = vmax.f32 %v4223, 0.0
      %v4288 = vmax.f32 %v4224, 0.0
      %v4289 = vmax.f32 %v4225, 0.0
      %v4290 = vmax.f32 %v4226, 0.0
      %v4291 = vmax.f32 %v4227, 0.0
      %v4292 = vmax.f32 %v4228, 0.0
      %v4293 = vmax.f32 %v4229, 0.0
      %v4294 = vmax.f32 %v4230, 0.0
      %v4295 = vmax.f32 %v4231, 0.0
      %v4296 = vmax.f32 %v4232, 0.0
      %v4297 = vmax.f32 %v4233, 0.0
      %v4298 = vmax.f32 %v4234, 0.0
      %v4299 = vmax.f32 %v4235, 0.0
      %v4300 = vmax.f32 %v4236, 0.0
      %v4301 = vmax.f32 %v4237, 0.0
      %v4302 = vmax.f32 %v4238, 0.0
      %v4303 = vmax.f32 %v4239, 0.0
      %v4304 = vmax.f32 %v4240, 0.0
      %v4305 = vmax.f32 %v4241, 0.0
      %v4306 = vmax.f32 %v4242, 0.0
      %v4307 = vmax.f32 %v4243, 0.0
      %v4308 = vmax.f32 %v4244, 0.0
      %v4309 = vmax.f32 %v4245, 0.0
      %v4310 = vmax.f32 %v4246, 0.0
      %v4311 = vmax.f32 %v4247, 0.0
      %v4312 = vmax.f32 %v4248, 0.0
      %v4313 = vmax.f32 %v4249, 0.0
      %v4314 = vmax.f32 %v4250, 0.0
      %v4315 = vmax.f32 %v4251, 0.0
      %v4316 = vmax.f32 %v4252, 0.0
      %v4317 = vmax.f32 %v4253, 0.0
      %v4318 = vmax.f32 %v4254, 0.0
      %v4319 = vmax.f32 %v4255, 0.0
      %v4320 = vmax.f32 %v4256, 0.0
      %v4321 = vmax.f32 %v4257, 0.0
      %v4322 = vmax.f32 %v4258, 0.0
      %v4323 = vmax.f32 %v4259, 0.0
      %v4324 = vmax.f32 %v4260, 0.0
      %v4325 = vmax.f32 %v4261, 0.0
      %v4326 = vmax.f32 %v4262, 0.0
      %v4327 = vmax.f32 %v4263, 0.0
      %v4328 = vmax.f32 %v4264, 0.0
      %v4329 = vmax.f32 %v4265, 0.0
      %4330 = vst [vmem:[%s383 + $0x1] sm:$0xff] %v4266
      %4331 = vst [vmem:[%s383 + $0x9] sm:$0xff] %v4267
      %4332 = vst [vmem:[%s383 + $0x19] sm:$0xff] %v4268
      %4333 = vst [vmem:[%s383 + $0x21] sm:$0xff] %v4269
      %4334 = vst [vmem:[%s383 + $0x31] sm:$0xff] %v4270
      %4335 = vst [vmem:[%s383 + $0x39] sm:$0xff] %v4271
      %4336 = vst [vmem:[%s383 + $0x49] sm:$0xff] %v4272
      %4337 = vst [vmem:[%s383 + $0x51] sm:$0xff] %v4273
      %4338 = vst [vmem:[%s383 + $0x61] sm:$0xff] %v4274
      %4339 = vst [vmem:[%s383 + $0x69] sm:$0xff] %v4275
      %4340 = vst [vmem:[%s383 + $0x79] sm:$0xff] %v4276
      %4341 = vst [vmem:[%s383 + $0x81] sm:$0xff] %v4277
      %4342 = vst [vmem:[%s383 + $0x91] sm:$0xff] %v4278
      %4343 = vst [vmem:[%s383 + $0x99] sm:$0xff] %v4279
      %4344 = vst [vmem:[%s383 + $0xa9] sm:$0xff] %v4280
      %4345 = vst [vmem:[%s383 + $0xb1] sm:$0xff] %v4281
      %4346 = vst [vmem:[%s383 + $0xc1] sm:$0xff] %v4282
      %4347 = vst [vmem:[%s383 + $0xc9] sm:$0xff] %v4283
      %4348 = vst [vmem:[%s383 + $0xd9] sm:$0xff] %v4284
      %4349 = vst [vmem:[%s383 + $0xe1] sm:$0xff] %v4285
      %4350 = vst [vmem:[%s383 + $0xf1] sm:$0xff] %v4286
      %4351 = vst [vmem:[%s383 + $0xf9] sm:$0xff] %v4287
      %4352 = vst [vmem:[%s383 + $0x109] sm:$0xff] %v4288
      %4353 = vst [vmem:[%s383 + $0x111] sm:$0xff] %v4289
      %4354 = vst [vmem:[%s383 + $0x121] sm:$0xff] %v4290
      %4355 = vst [vmem:[%s383 + $0x129] sm:$0xff] %v4291
      %4356 = vst [vmem:[%s383 + $0x139] sm:$0xff] %v4292
      %4357 = vst [vmem:[%s383 + $0x141] sm:$0xff] %v4293
      %4358 = vst [vmem:[%s383 + $0x151] sm:$0xff] %v4294
      %4359 = vst [vmem:[%s383 + $0x159] sm:$0xff] %v4295
      %4360 = vst [vmem:[%s383 + $0x169] sm:$0xff] %v4296
      %4361 = vst [vmem:[%s383 + $0x171] sm:$0xff] %v4297
      %4362 = vst [vmem:[%s383 + $0x1b1] sm:$0xff] %v4298
      %4363 = vst [vmem:[%s383 + $0x1b9] sm:$0xff] %v4299
      %4364 = vst [vmem:[%s383 + $0x1c9] sm:$0xff] %v4300
      %4365 = vst [vmem:[%s383 + $0x1d1] sm:$0xff] %v4301
      %4366 = vst [vmem:[%s383 + $0x1e1] sm:$0xff] %v4302
      %4367 = vst [vmem:[%s383 + $0x1e9] sm:$0xff] %v4303
      %4368 = vst [vmem:[%s383 + $0x1f9] sm:$0xff] %v4304
      %4369 = vst [vmem:[%s383 + $0x201] sm:$0xff] %v4305
      %4370 = vst [vmem:[%s383 + $0x211] sm:$0xff] %v4306
      %4371 = vst [vmem:[%s383 + $0x219] sm:$0xff] %v4307
      %4372 = vst [vmem:[%s383 + $0x229] sm:$0xff] %v4308
      %4373 = vst [vmem:[%s383 + $0x231] sm:$0xff] %v4309
      %4374 = vst [vmem:[%s383 + $0x241] sm:$0xff] %v4310
      %4375 = vst [vmem:[%s383 + $0x249] sm:$0xff] %v4311
      %4376 = vst [vmem:[%s383 + $0x259] sm:$0xff] %v4312
      %4377 = vst [vmem:[%s383 + $0x261] sm:$0xff] %v4313
      %4378 = vst [vmem:[%s383 + $0x271] sm:$0xff] %v4314
      %4379 = vst [vmem:[%s383 + $0x279] sm:$0xff] %v4315
      %4380 = vst [vmem:[%s383 + $0x289] sm:$0xff] %v4316
      %4381 = vst [vmem:[%s383 + $0x291] sm:$0xff] %v4317
      %4382 = vst [vmem:[%s383 + $0x2a1] sm:$0xff] %v4318
      %4383 = vst [vmem:[%s383 + $0x2a9] sm:$0xff] %v4319
      %4384 = vst [vmem:[%s383 + $0x2b9] sm:$0xff] %v4320
      %4385 = vst [vmem:[%s383 + $0x2c1] sm:$0xff] %v4321
      %4386 = vst [vmem:[%s383 + $0x2d1] sm:$0xff] %v4322
      %4387 = vst [vmem:[%s383 + $0x2d9] sm:$0xff] %v4323
      %4388 = vst [vmem:[%s383 + $0x2e9] sm:$0xff] %v4324
      %4389 = vst [vmem:[%s383 + $0x2f1] sm:$0xff] %v4325
      %4390 = vst [vmem:[%s383 + $0x301] sm:$0xff] %v4326
      %4391 = vst [vmem:[%s383 + $0x309] sm:$0xff] %v4327
      %4392 = vst [vmem:[%s383 + $0x319] sm:$0xff] %v4328
      %4393 = vst [vmem:[%s383 + $0x321] sm:$0xff] %v4329
      %v4394 = vld [vmem:[#allocation2] sm:$0xff]
      %v4395 = vld [vmem:[#allocation2 + $0x8] sm:$0xff]
      %v4396 = vld [vmem:[#allocation2 + $0x18] sm:$0xff]
      %v4397 = vld [vmem:[#allocation2 + $0x20] sm:$0xff]
      %v4398 = vld [vmem:[#allocation2 + $0x30] sm:$0xff]
      %v4399 = vld [vmem:[#allocation2 + $0x38] sm:$0xff]
      %v4400 = vld [vmem:[#allocation2 + $0x48] sm:$0xff]
      %v4401 = vld [vmem:[#allocation2 + $0x50] sm:$0xff]
      %v4402 = vld [vmem:[#allocation2 + $0x60] sm:$0xff]
      %v4403 = vld [vmem:[#allocation2 + $0x68] sm:$0xff]
      %v4404 = vld [vmem:[#allocation2 + $0x78] sm:$0xff]
      %v4405 = vld [vmem:[#allocation2 + $0x80] sm:$0xff]
      %v4406 = vld [vmem:[#allocation2 + $0x90] sm:$0xff]
      %v4407 = vld [vmem:[#allocation2 + $0x98] sm:$0xff]
      %v4408 = vld [vmem:[#allocation2 + $0xa8] sm:$0xff]
      %v4409 = vld [vmem:[#allocation2 + $0xb0] sm:$0xff]
      %v4410 = vld [vmem:[#allocation2 + $0xc0] sm:$0xff]
      %v4411 = vld [vmem:[#allocation2 + $0xc8] sm:$0xff]
      %v4412 = vld [vmem:[#allocation2 + $0xd8] sm:$0xff]
      %v4413 = vld [vmem:[#allocation2 + $0xe0] sm:$0xff]
      %v4414 = vld [vmem:[#allocation2 + $0xf0] sm:$0xff]
      %v4415 = vld [vmem:[#allocation2 + $0xf8] sm:$0xff]
      %v4416 = vld [vmem:[#allocation2 + $0x108] sm:$0xff]
      %v4417 = vld [vmem:[#allocation2 + $0x110] sm:$0xff]
      %v4418 = vld [vmem:[#allocation2 + $0x120] sm:$0xff]
      %v4419 = vld [vmem:[#allocation2 + $0x128] sm:$0xff]
      %v4420 = vld [vmem:[#allocation2 + $0x138] sm:$0xff]
      %v4421 = vld [vmem:[#allocation2 + $0x140] sm:$0xff]
      %v4422 = vld [vmem:[#allocation2 + $0x150] sm:$0xff]
      %v4423 = vld [vmem:[#allocation2 + $0x158] sm:$0xff]
      %v4424 = vld [vmem:[#allocation2 + $0x168] sm:$0xff]
      %v4425 = vld [vmem:[#allocation2 + $0x170] sm:$0xff]
      %v4426 = vld [vmem:[#allocation2 + $0x1b0] sm:$0xff]
      %v4427 = vld [vmem:[#allocation2 + $0x1b8] sm:$0xff]
      %v4428 = vld [vmem:[#allocation2 + $0x1c8] sm:$0xff]
      %v4429 = vld [vmem:[#allocation2 + $0x1d0] sm:$0xff]
      %v4430 = vld [vmem:[#allocation2 + $0x1e0] sm:$0xff]
      %v4431 = vld [vmem:[#allocation2 + $0x1e8] sm:$0xff]
      %v4432 = vld [vmem:[#allocation2 + $0x1f8] sm:$0xff]
      %v4433 = vld [vmem:[#allocation2 + $0x200] sm:$0xff]
      %v4434 = vld [vmem:[#allocation2 + $0x210] sm:$0xff]
      %v4435 = vld [vmem:[#allocation2 + $0x218] sm:$0xff]
      %v4436 = vld [vmem:[#allocation2 + $0x228] sm:$0xff]
      %v4437 = vld [vmem:[#allocation2 + $0x230] sm:$0xff]
      %v4438 = vld [vmem:[#allocation2 + $0x240] sm:$0xff]
      %v4439 = vld [vmem:[#allocation2 + $0x248] sm:$0xff]
      %v4440 = vld [vmem:[#allocation2 + $0x258] sm:$0xff]
      %v4441 = vld [vmem:[#allocation2 + $0x260] sm:$0xff]
      %v4442 = vld [vmem:[#allocation2 + $0x270] sm:$0xff]
      %v4443 = vld [vmem:[#allocation2 + $0x278] sm:$0xff]
      %v4444 = vld [vmem:[#allocation2 + $0x288] sm:$0xff]
      %v4445 = vld [vmem:[#allocation2 + $0x290] sm:$0xff]
      %v4446 = vld [vmem:[#allocation2 + $0x2a0] sm:$0xff]
      %v4447 = vld [vmem:[#allocation2 + $0x2a8] sm:$0xff]
      %v4448 = vld [vmem:[#allocation2 + $0x2b8] sm:$0xff]
      %v4449 = vld [vmem:[#allocation2 + $0x2c0] sm:$0xff]
      %v4450 = vld [vmem:[#allocation2 + $0x2d0] sm:$0xff]
      %v4451 = vld [vmem:[#allocation2 + $0x2d8] sm:$0xff]
      %v4452 = vld [vmem:[#allocation2 + $0x2e8] sm:$0xff]
      %v4453 = vld [vmem:[#allocation2 + $0x2f0] sm:$0xff]
      %v4454 = vld [vmem:[#allocation2 + $0x300] sm:$0xff]
      %v4455 = vld [vmem:[#allocation2 + $0x308] sm:$0xff]
      %v4456 = vld [vmem:[#allocation2 + $0x318] sm:$0xff]
      %v4457 = vld [vmem:[#allocation2 + $0x320] sm:$0xff]
      %v4458 = vpack.c.bf16 %v4395, %v4394
      %v4459 = vpack.c.bf16 %v4397, %v4396
      %v4460 = vpack.c.bf16 %v4399, %v4398
      %v4461 = vpack.c.bf16 %v4401, %v4400
      %v4462 = vpack.c.bf16 %v4403, %v4402
      %v4463 = vpack.c.bf16 %v4405, %v4404
      %v4464 = vpack.c.bf16 %v4407, %v4406
      %v4465 = vpack.c.bf16 %v4409, %v4408
      %v4466 = vpack.c.bf16 %v4411, %v4410
      %v4467 = vpack.c.bf16 %v4413, %v4412
      %v4468 = vpack.c.bf16 %v4415, %v4414
      %v4469 = vpack.c.bf16 %v4417, %v4416
      %v4470 = vpack.c.bf16 %v4419, %v4418
      %v4471 = vpack.c.bf16 %v4421, %v4420
      %v4472 = vpack.c.bf16 %v4423, %v4422
      %v4473 = vpack.c.bf16 %v4425, %v4424
      %v4474 = vpack.c.bf16 %v4427, %v4426
      %v4475 = vpack.c.bf16 %v4429, %v4428
      %v4476 = vpack.c.bf16 %v4431, %v4430
      %v4477 = vpack.c.bf16 %v4433, %v4432
      %v4478 = vpack.c.bf16 %v4435, %v4434
      %v4479 = vpack.c.bf16 %v4437, %v4436
      %v4480 = vpack.c.bf16 %v4439, %v4438
      %v4481 = vpack.c.bf16 %v4441, %v4440
      %v4482 = vpack.c.bf16 %v4443, %v4442
      %v4483 = vpack.c.bf16 %v4445, %v4444
      %v4484 = vpack.c.bf16 %v4447, %v4446
      %v4485 = vpack.c.bf16 %v4449, %v4448
      %v4486 = vpack.c.bf16 %v4451, %v4450
      %v4487 = vpack.c.bf16 %v4453, %v4452
      %v4488 = vpack.c.bf16 %v4455, %v4454
      %v4489 = vpack.c.bf16 %v4457, %v4456
      %4490 = vst [vmem:[#allocation3] sm:$0xff] %v4458
      %4491 = vst [vmem:[#allocation3 + $0x48] sm:$0xff] %v4459
      %4492 = vst [vmem:[#allocation3 + $0x90] sm:$0xff] %v4460
      %4493 = vst [vmem:[#allocation3 + $0xd8] sm:$0xff] %v4461
      %4494 = vst [vmem:[#allocation3 + $0x120] sm:$0xff] %v4462
      %4495 = vst [vmem:[#allocation3 + $0x168] sm:$0xff] %v4463
      %4496 = vst [vmem:[#allocation3 + $0x1b0] sm:$0xff] %v4464
      %4497 = vst [vmem:[#allocation3 + $0x1f8] sm:$0xff] %v4465
      %4498 = vst [vmem:[#allocation3 + $0x240] sm:$0xff] %v4466
      %4499 = vst [vmem:[#allocation3 + $0x288] sm:$0xff] %v4467
      %4500 = vst [vmem:[#allocation3 + $0x2d0] sm:$0xff] %v4468
      %4501 = vst [vmem:[#allocation3 + $0x318] sm:$0xff] %v4469
      %4502 = vst [vmem:[#allocation3 + $0x360] sm:$0xff] %v4470
      %4503 = vst [vmem:[#allocation3 + $0x3a8] sm:$0xff] %v4471
      %4504 = vst [vmem:[#allocation3 + $0x3f0] sm:$0xff] %v4472
      %4505 = vst [vmem:[#allocation3 + $0x438] sm:$0xff] %v4473
      %4506 = vst [vmem:[#allocation3 + $0x480] sm:$0xff] %v4474
      %4507 = vst [vmem:[#allocation3 + $0x4c8] sm:$0xff] %v4475
      %4508 = vst [vmem:[#allocation3 + $0x510] sm:$0xff] %v4476
      %4509 = vst [vmem:[#allocation3 + $0x558] sm:$0xff] %v4477
      %4510 = vst [vmem:[#allocation3 + $0x5a0] sm:$0xff] %v4478
      %4511 = vst [vmem:[#allocation3 + $0x5e8] sm:$0xff] %v4479
      %4512 = vst [vmem:[#allocation3 + $0x630] sm:$0xff] %v4480
      %4513 = vst [vmem:[#allocation3 + $0x678] sm:$0xff] %v4481
      %4514 = vst [vmem:[#allocation3 + $0x6c0] sm:$0xff] %v4482
      %4515 = vst [vmem:[#allocation3 + $0x708] sm:$0xff] %v4483
      %4516 = vst [vmem:[#allocation3 + $0x750] sm:$0xff] %v4484
      %4517 = vst [vmem:[#allocation3 + $0x798] sm:$0xff] %v4485
      %4518 = vst [vmem:[#allocation3 + $0x7e0] sm:$0xff] %v4486
      %4519 = vst [vmem:[#allocation3 + $0x828] sm:$0xff] %v4487
      %4520 = vst [vmem:[#allocation3 + $0x870] sm:$0xff] %v4488
      %4521 = vst [vmem:[#allocation3 + $0x8b8] sm:$0xff] %v4489
      %v4522 = vld [vmem:[#allocation2 + $0x1] sm:$0xff]
      %v4523 = vld [vmem:[#allocation2 + $0x9] sm:$0xff]
      %v4524 = vld [vmem:[#allocation2 + $0x19] sm:$0xff]
      %v4525 = vld [vmem:[#allocation2 + $0x21] sm:$0xff]
      %v4526 = vld [vmem:[#allocation2 + $0x31] sm:$0xff]
      %v4527 = vld [vmem:[#allocation2 + $0x39] sm:$0xff]
      %v4528 = vld [vmem:[#allocation2 + $0x49] sm:$0xff]
      %v4529 = vld [vmem:[#allocation2 + $0x51] sm:$0xff]
      %v4530 = vld [vmem:[#allocation2 + $0x61] sm:$0xff]
      %v4531 = vld [vmem:[#allocation2 + $0x69] sm:$0xff]
      %v4532 = vld [vmem:[#allocation2 + $0x79] sm:$0xff]
      %v4533 = vld [vmem:[#allocation2 + $0x81] sm:$0xff]
      %v4534 = vld [vmem:[#allocation2 + $0x91] sm:$0xff]
      %v4535 = vld [vmem:[#allocation2 + $0x99] sm:$0xff]
      %v4536 = vld [vmem:[#allocation2 + $0xa9] sm:$0xff]
      %v4537 = vld [vmem:[#allocation2 + $0xb1] sm:$0xff]
      %v4538 = vld [vmem:[#allocation2 + $0xc1] sm:$0xff]
      %v4539 = vld [vmem:[#allocation2 + $0xc9] sm:$0xff]
      %v4540 = vld [vmem:[#allocation2 + $0xd9] sm:$0xff]
      %v4541 = vld [vmem:[#allocation2 + $0xe1] sm:$0xff]
      %v4542 = vld [vmem:[#allocation2 + $0xf1] sm:$0xff]
      %v4543 = vld [vmem:[#allocation2 + $0xf9] sm:$0xff]
      %v4544 = vld [vmem:[#allocation2 + $0x109] sm:$0xff]
      %v4545 = vld [vmem:[#allocation2 + $0x111] sm:$0xff]
      %v4546 = vld [vmem:[#allocation2 + $0x121] sm:$0xff]
      %v4547 = vld [vmem:[#allocation2 + $0x129] sm:$0xff]
      %v4548 = vld [vmem:[#allocation2 + $0x139] sm:$0xff]
      %v4549 = vld [vmem:[#allocation2 + $0x141] sm:$0xff]
      %v4550 = vld [vmem:[#allocation2 + $0x151] sm:$0xff]
      %v4551 = vld [vmem:[#allocation2 + $0x159] sm:$0xff]
      %v4552 = vld [vmem:[#allocation2 + $0x169] sm:$0xff]
      %v4553 = vld [vmem:[#allocation2 + $0x171] sm:$0xff]
      %v4554 = vld [vmem:[#allocation2 + $0x1b1] sm:$0xff]
      %v4555 = vld [vmem:[#allocation2 + $0x1b9] sm:$0xff]
      %v4556 = vld [vmem:[#allocation2 + $0x1c9] sm:$0xff]
      %v4557 = vld [vmem:[#allocation2 + $0x1d1] sm:$0xff]
      %v4558 = vld [vmem:[#allocation2 + $0x1e1] sm:$0xff]
      %v4559 = vld [vmem:[#allocation2 + $0x1e9] sm:$0xff]
      %v4560 = vld [vmem:[#allocation2 + $0x1f9] sm:$0xff]
      %v4561 = vld [vmem:[#allocation2 + $0x201] sm:$0xff]
      %v4562 = vld [vmem:[#allocation2 + $0x211] sm:$0xff]
      %v4563 = vld [vmem:[#allocation2 + $0x219] sm:$0xff]
      %v4564 = vld [vmem:[#allocation2 + $0x229] sm:$0xff]
      %v4565 = vld [vmem:[#allocation2 + $0x231] sm:$0xff]
      %v4566 = vld [vmem:[#allocation2 + $0x241] sm:$0xff]
      %v4567 = vld [vmem:[#allocation2 + $0x249] sm:$0xff]
      %v4568 = vld [vmem:[#allocation2 + $0x259] sm:$0xff]
      %v4569 = vld [vmem:[#allocation2 + $0x261] sm:$0xff]
      %v4570 = vld [vmem:[#allocation2 + $0x271] sm:$0xff]
      %v4571 = vld [vmem:[#allocation2 + $0x279] sm:$0xff]
      %v4572 = vld [vmem:[#allocation2 + $0x289] sm:$0xff]
      %v4573 = vld [vmem:[#allocation2 + $0x291] sm:$0xff]
      %v4574 = vld [vmem:[#allocation2 + $0x2a1] sm:$0xff]
      %v4575 = vld [vmem:[#allocation2 + $0x2a9] sm:$0xff]
      %v4576 = vld [vmem:[#allocation2 + $0x2b9] sm:$0xff]
      %v4577 = vld [vmem:[#allocation2 + $0x2c1] sm:$0xff]
      %v4578 = vld [vmem:[#allocation2 + $0x2d1] sm:$0xff]
      %v4579 = vld [vmem:[#allocation2 + $0x2d9] sm:$0xff]
      %v4580 = vld [vmem:[#allocation2 + $0x2e9] sm:$0xff]
      %v4581 = vld [vmem:[#allocation2 + $0x2f1] sm:$0xff]
      %v4582 = vld [vmem:[#allocation2 + $0x301] sm:$0xff]
      %v4583 = vld [vmem:[#allocation2 + $0x309] sm:$0xff]
      %v4584 = vld [vmem:[#allocation2 + $0x319] sm:$0xff]
      %v4585 = vld [vmem:[#allocation2 + $0x321] sm:$0xff]
      %v4586 = vpack.c.bf16 %v4523, %v4522
      %v4587 = vpack.c.bf16 %v4525, %v4524
      %v4588 = vpack.c.bf16 %v4527, %v4526
      %v4589 = vpack.c.bf16 %v4529, %v4528
      %v4590 = vpack.c.bf16 %v4531, %v4530
      %v4591 = vpack.c.bf16 %v4533, %v4532
      %v4592 = vpack.c.bf16 %v4535, %v4534
      %v4593 = vpack.c.bf16 %v4537, %v4536
      %v4594 = vpack.c.bf16 %v4539, %v4538
      %v4595 = vpack.c.bf16 %v4541, %v4540
      %v4596 = vpack.c.bf16 %v4543, %v4542
      %v4597 = vpack.c.bf16 %v4545, %v4544
      %v4598 = vpack.c.bf16 %v4547, %v4546
      %v4599 = vpack.c.bf16 %v4549, %v4548
      %v4600 = vpack.c.bf16 %v4551, %v4550
      %v4601 = vpack.c.bf16 %v4553, %v4552
      %v4602 = vpack.c.bf16 %v4555, %v4554
      %v4603 = vpack.c.bf16 %v4557, %v4556
      %v4604 = vpack.c.bf16 %v4559, %v4558
      %v4605 = vpack.c.bf16 %v4561, %v4560
      %v4606 = vpack.c.bf16 %v4563, %v4562
      %v4607 = vpack.c.bf16 %v4565, %v4564
      %v4608 = vpack.c.bf16 %v4567, %v4566
      %v4609 = vpack.c.bf16 %v4569, %v4568
      %v4610 = vpack.c.bf16 %v4571, %v4570
      %v4611 = vpack.c.bf16 %v4573, %v4572
      %v4612 = vpack.c.bf16 %v4575, %v4574
      %v4613 = vpack.c.bf16 %v4577, %v4576
      %v4614 = vpack.c.bf16 %v4579, %v4578
      %v4615 = vpack.c.bf16 %v4581, %v4580
      %v4616 = vpack.c.bf16 %v4583, %v4582
      %v4617 = vpack.c.bf16 %v4585, %v4584
      %4618 = vst [vmem:[#allocation3 + $0x8] sm:$0xff] %v4586
      %4619 = vst [vmem:[#allocation3 + $0x50] sm:$0xff] %v4587
      %4620 = vst [vmem:[#allocation3 + $0x98] sm:$0xff] %v4588
      %4621 = vst [vmem:[#allocation3 + $0xe0] sm:$0xff] %v4589
      %4622 = vst [vmem:[#allocation3 + $0x128] sm:$0xff] %v4590
      %4623 = vst [vmem:[#allocation3 + $0x170] sm:$0xff] %v4591
      %4624 = vst [vmem:[#allocation3 + $0x1b8] sm:$0xff] %v4592
      %4625 = vst [vmem:[#allocation3 + $0x200] sm:$0xff] %v4593
      %4626 = vst [vmem:[#allocation3 + $0x248] sm:$0xff] %v4594
      %4627 = vst [vmem:[#allocation3 + $0x290] sm:$0xff] %v4595
      %4628 = vst [vmem:[#allocation3 + $0x2d8] sm:$0xff] %v4596
      %4629 = vst [vmem:[#allocation3 + $0x320] sm:$0xff] %v4597
      %4630 = vst [vmem:[#allocation3 + $0x368] sm:$0xff] %v4598
      %4631 = vst [vmem:[#allocation3 + $0x3b0] sm:$0xff] %v4599
      %4632 = vst [vmem:[#allocation3 + $0x3f8] sm:$0xff] %v4600
      %4633 = vst [vmem:[#allocation3 + $0x440] sm:$0xff] %v4601
      %4634 = vst [vmem:[#allocation3 + $0x488] sm:$0xff] %v4602
      %4635 = vst [vmem:[#allocation3 + $0x4d0] sm:$0xff] %v4603
      %4636 = vst [vmem:[#allocation3 + $0x518] sm:$0xff] %v4604
      %4637 = vst [vmem:[#allocation3 + $0x560] sm:$0xff] %v4605
      %4638 = vst [vmem:[#allocation3 + $0x5a8] sm:$0xff] %v4606
      %4639 = vst [vmem:[#allocation3 + $0x5f0] sm:$0xff] %v4607
      %4640 = vst [vmem:[#allocation3 + $0x638] sm:$0xff] %v4608
      %4641 = vst [vmem:[#allocation3 + $0x680] sm:$0xff] %v4609
      %4642 = vst [vmem:[#allocation3 + $0x6c8] sm:$0xff] %v4610
      %4643 = vst [vmem:[#allocation3 + $0x710] sm:$0xff] %v4611
      %4644 = vst [vmem:[#allocation3 + $0x758] sm:$0xff] %v4612
      %4645 = vst [vmem:[#allocation3 + $0x7a0] sm:$0xff] %v4613
      %4646 = vst [vmem:[#allocation3 + $0x7e8] sm:$0xff] %v4614
      %4647 = vst [vmem:[#allocation3 + $0x830] sm:$0xff] %v4615
      %4648 = vst [vmem:[#allocation3 + $0x878] sm:$0xff] %v4616
      %4649 = vst [vmem:[#allocation3 + $0x8c0] sm:$0xff] %v4617
      %v4650 = vld [vmem:[#allocation2 + $0x2] sm:$0xff]
      %v4651 = vld [vmem:[#allocation2 + $0xa] sm:$0xff]
      %v4652 = vld [vmem:[#allocation2 + $0x1a] sm:$0xff]
      %v4653 = vld [vmem:[#allocation2 + $0x22] sm:$0xff]
      %v4654 = vld [vmem:[#allocation2 + $0x32] sm:$0xff]
      %v4655 = vld [vmem:[#allocation2 + $0x3a] sm:$0xff]
      %v4656 = vld [vmem:[#allocation2 + $0x4a] sm:$0xff]
      %v4657 = vld [vmem:[#allocation2 + $0x52] sm:$0xff]
      %v4658 = vld [vmem:[#allocation2 + $0x62] sm:$0xff]
      %v4659 = vld [vmem:[#allocation2 + $0x6a] sm:$0xff]
      %v4660 = vld [vmem:[#allocation2 + $0x7a] sm:$0xff]
      %v4661 = vld [vmem:[#allocation2 + $0x82] sm:$0xff]
      %v4662 = vld [vmem:[#allocation2 + $0x92] sm:$0xff]
      %v4663 = vld [vmem:[#allocation2 + $0x9a] sm:$0xff]
      %v4664 = vld [vmem:[#allocation2 + $0xaa] sm:$0xff]
      %v4665 = vld [vmem:[#allocation2 + $0xb2] sm:$0xff]
      %v4666 = vld [vmem:[#allocation2 + $0xc2] sm:$0xff]
      %v4667 = vld [vmem:[#allocation2 + $0xca] sm:$0xff]
      %v4668 = vld [vmem:[#allocation2 + $0xda] sm:$0xff]
      %v4669 = vld [vmem:[#allocation2 + $0xe2] sm:$0xff]
      %v4670 = vld [vmem:[#allocation2 + $0xf2] sm:$0xff]
      %v4671 = vld [vmem:[#allocation2 + $0xfa] sm:$0xff]
      %v4672 = vld [vmem:[#allocation2 + $0x10a] sm:$0xff]
      %v4673 = vld [vmem:[#allocation2 + $0x112] sm:$0xff]
      %v4674 = vld [vmem:[#allocation2 + $0x122] sm:$0xff]
      %v4675 = vld [vmem:[#allocation2 + $0x12a] sm:$0xff]
      %v4676 = vld [vmem:[#allocation2 + $0x13a] sm:$0xff]
      %v4677 = vld [vmem:[#allocation2 + $0x142] sm:$0xff]
      %v4678 = vld [vmem:[#allocation2 + $0x152] sm:$0xff]
      %v4679 = vld [vmem:[#allocation2 + $0x15a] sm:$0xff]
      %v4680 = vld [vmem:[#allocation2 + $0x16a] sm:$0xff]
      %v4681 = vld [vmem:[#allocation2 + $0x172] sm:$0xff]
      %v4682 = vld [vmem:[#allocation2 + $0x1b2] sm:$0xff]
      %v4683 = vld [vmem:[#allocation2 + $0x1ba] sm:$0xff]
      %v4684 = vld [vmem:[#allocation2 + $0x1ca] sm:$0xff]
      %v4685 = vld [vmem:[#allocation2 + $0x1d2] sm:$0xff]
      %v4686 = vld [vmem:[#allocation2 + $0x1e2] sm:$0xff]
      %v4687 = vld [vmem:[#allocation2 + $0x1ea] sm:$0xff]
      %v4688 = vld [vmem:[#allocation2 + $0x1fa] sm:$0xff]
      %v4689 = vld [vmem:[#allocation2 + $0x202] sm:$0xff]
      %v4690 = vld [vmem:[#allocation2 + $0x212] sm:$0xff]
      %v4691 = vld [vmem:[#allocation2 + $0x21a] sm:$0xff]
      %v4692 = vld [vmem:[#allocation2 + $0x22a] sm:$0xff]
      %v4693 = vld [vmem:[#allocation2 + $0x232] sm:$0xff]
      %v4694 = vld [vmem:[#allocation2 + $0x242] sm:$0xff]
      %v4695 = vld [vmem:[#allocation2 + $0x24a] sm:$0xff]
      %v4696 = vld [vmem:[#allocation2 + $0x25a] sm:$0xff]
      %v4697 = vld [vmem:[#allocation2 + $0x262] sm:$0xff]
      %v4698 = vld [vmem:[#allocation2 + $0x272] sm:$0xff]
      %v4699 = vld [vmem:[#allocation2 + $0x27a] sm:$0xff]
      %v4700 = vld [vmem:[#allocation2 + $0x28a] sm:$0xff]
      %v4701 = vld [vmem:[#allocation2 + $0x292] sm:$0xff]
      %v4702 = vld [vmem:[#allocation2 + $0x2a2] sm:$0xff]
      %v4703 = vld [vmem:[#allocation2 + $0x2aa] sm:$0xff]
      %v4704 = vld [vmem:[#allocation2 + $0x2ba] sm:$0xff]
      %v4705 = vld [vmem:[#allocation2 + $0x2c2] sm:$0xff]
      %v4706 = vld [vmem:[#allocation2 + $0x2d2] sm:$0xff]
      %v4707 = vld [vmem:[#allocation2 + $0x2da] sm:$0xff]
      %v4708 = vld [vmem:[#allocation2 + $0x2ea] sm:$0xff]
      %v4709 = vld [vmem:[#allocation2 + $0x2f2] sm:$0xff]
      %v4710 = vld [vmem:[#allocation2 + $0x302] sm:$0xff]
      %v4711 = vld [vmem:[#allocation2 + $0x30a] sm:$0xff]
      %v4712 = vld [vmem:[#allocation2 + $0x31a] sm:$0xff]
      %v4713 = vld [vmem:[#allocation2 + $0x322] sm:$0xff]
      %v4714 = vpack.c.bf16 %v4651, %v4650
      %v4715 = vpack.c.bf16 %v4653, %v4652
      %v4716 = vpack.c.bf16 %v4655, %v4654
      %v4717 = vpack.c.bf16 %v4657, %v4656
      %v4718 = vpack.c.bf16 %v4659, %v4658
      %v4719 = vpack.c.bf16 %v4661, %v4660
      %v4720 = vpack.c.bf16 %v4663, %v4662
      %v4721 = vpack.c.bf16 %v4665, %v4664
      %v4722 = vpack.c.bf16 %v4667, %v4666
      %v4723 = vpack.c.bf16 %v4669, %v4668
      %v4724 = vpack.c.bf16 %v4671, %v4670
      %v4725 = vpack.c.bf16 %v4673, %v4672
      %v4726 = vpack.c.bf16 %v4675, %v4674
      %v4727 = vpack.c.bf16 %v4677, %v4676
      %v4728 = vpack.c.bf16 %v4679, %v4678
      %v4729 = vpack.c.bf16 %v4681, %v4680
      %v4730 = vpack.c.bf16 %v4683, %v4682
      %v4731 = vpack.c.bf16 %v4685, %v4684
      %v4732 = vpack.c.bf16 %v4687, %v4686
      %v4733 = vpack.c.bf16 %v4689, %v4688
      %v4734 = vpack.c.bf16 %v4691, %v4690
      %v4735 = vpack.c.bf16 %v4693, %v4692
      %v4736 = vpack.c.bf16 %v4695, %v4694
      %v4737 = vpack.c.bf16 %v4697, %v4696
      %v4738 = vpack.c.bf16 %v4699, %v4698
      %v4739 = vpack.c.bf16 %v4701, %v4700
      %v4740 = vpack.c.bf16 %v4703, %v4702
      %v4741 = vpack.c.bf16 %v4705, %v4704
      %v4742 = vpack.c.bf16 %v4707, %v4706
      %v4743 = vpack.c.bf16 %v4709, %v4708
      %v4744 = vpack.c.bf16 %v4711, %v4710
      %v4745 = vpack.c.bf16 %v4713, %v4712
      %4746 = vst [vmem:[#allocation3 + $0x10] sm:$0xff] %v4714
      %4747 = vst [vmem:[#allocation3 + $0x58] sm:$0xff] %v4715
      %4748 = vst [vmem:[#allocation3 + $0xa0] sm:$0xff] %v4716
      %4749 = vst [vmem:[#allocation3 + $0xe8] sm:$0xff] %v4717
      %4750 = vst [vmem:[#allocation3 + $0x130] sm:$0xff] %v4718
      %4751 = vst [vmem:[#allocation3 + $0x178] sm:$0xff] %v4719
      %4752 = vst [vmem:[#allocation3 + $0x1c0] sm:$0xff] %v4720
      %4753 = vst [vmem:[#allocation3 + $0x208] sm:$0xff] %v4721
      %4754 = vst [vmem:[#allocation3 + $0x250] sm:$0xff] %v4722
      %4755 = vst [vmem:[#allocation3 + $0x298] sm:$0xff] %v4723
      %4756 = vst [vmem:[#allocation3 + $0x2e0] sm:$0xff] %v4724
      %4757 = vst [vmem:[#allocation3 + $0x328] sm:$0xff] %v4725
      %4758 = vst [vmem:[#allocation3 + $0x370] sm:$0xff] %v4726
      %4759 = vst [vmem:[#allocation3 + $0x3b8] sm:$0xff] %v4727
      %4760 = vst [vmem:[#allocation3 + $0x400] sm:$0xff] %v4728
      %4761 = vst [vmem:[#allocation3 + $0x448] sm:$0xff] %v4729
      %4762 = vst [vmem:[#allocation3 + $0x490] sm:$0xff] %v4730
      %4763 = vst [vmem:[#allocation3 + $0x4d8] sm:$0xff] %v4731
      %4764 = vst [vmem:[#allocation3 + $0x520] sm:$0xff] %v4732
      %4765 = vst [vmem:[#allocation3 + $0x568] sm:$0xff] %v4733
      %4766 = vst [vmem:[#allocation3 + $0x5b0] sm:$0xff] %v4734
      %4767 = vst [vmem:[#allocation3 + $0x5f8] sm:$0xff] %v4735
      %4768 = vst [vmem:[#allocation3 + $0x640] sm:$0xff] %v4736
      %4769 = vst [vmem:[#allocation3 + $0x688] sm:$0xff] %v4737
      %4770 = vst [vmem:[#allocation3 + $0x6d0] sm:$0xff] %v4738
      %4771 = vst [vmem:[#allocation3 + $0x718] sm:$0xff] %v4739
      %4772 = vst [vmem:[#allocation3 + $0x760] sm:$0xff] %v4740
      %4773 = vst [vmem:[#allocation3 + $0x7a8] sm:$0xff] %v4741
      %4774 = vst [vmem:[#allocation3 + $0x7f0] sm:$0xff] %v4742
      %4775 = vst [vmem:[#allocation3 + $0x838] sm:$0xff] %v4743
      %4776 = vst [vmem:[#allocation3 + $0x880] sm:$0xff] %v4744
      %4777 = vst [vmem:[#allocation3 + $0x8c8] sm:$0xff] %v4745
      %v4778 = vld [vmem:[%s383] sm:$0xff]
      %v4779 = vld [vmem:[%s383 + $0x8] sm:$0xff]
      %v4780 = vld [vmem:[%s383 + $0x18] sm:$0xff]
      %v4781 = vld [vmem:[%s383 + $0x20] sm:$0xff]
      %v4782 = vld [vmem:[%s383 + $0x30] sm:$0xff]
      %v4783 = vld [vmem:[%s383 + $0x38] sm:$0xff]
      %v4784 = vld [vmem:[%s383 + $0x48] sm:$0xff]
      %v4785 = vld [vmem:[%s383 + $0x50] sm:$0xff]
      %v4786 = vld [vmem:[%s383 + $0x60] sm:$0xff]
      %v4787 = vld [vmem:[%s383 + $0x68] sm:$0xff]
      %v4788 = vld [vmem:[%s383 + $0x78] sm:$0xff]
      %v4789 = vld [vmem:[%s383 + $0x80] sm:$0xff]
      %v4790 = vld [vmem:[%s383 + $0x90] sm:$0xff]
      %v4791 = vld [vmem:[%s383 + $0x98] sm:$0xff]
      %v4792 = vld [vmem:[%s383 + $0xa8] sm:$0xff]
      %v4793 = vld [vmem:[%s383 + $0xb0] sm:$0xff]
      %v4794 = vld [vmem:[%s383 + $0xc0] sm:$0xff]
      %v4795 = vld [vmem:[%s383 + $0xc8] sm:$0xff]
      %v4796 = vld [vmem:[%s383 + $0xd8] sm:$0xff]
      %v4797 = vld [vmem:[%s383 + $0xe0] sm:$0xff]
      %v4798 = vld [vmem:[%s383 + $0xf0] sm:$0xff]
      %v4799 = vld [vmem:[%s383 + $0xf8] sm:$0xff]
      %v4800 = vld [vmem:[%s383 + $0x108] sm:$0xff]
      %v4801 = vld [vmem:[%s383 + $0x110] sm:$0xff]
      %v4802 = vld [vmem:[%s383 + $0x120] sm:$0xff]
      %v4803 = vld [vmem:[%s383 + $0x128] sm:$0xff]
      %v4804 = vld [vmem:[%s383 + $0x138] sm:$0xff]
      %v4805 = vld [vmem:[%s383 + $0x140] sm:$0xff]
      %v4806 = vld [vmem:[%s383 + $0x150] sm:$0xff]
      %v4807 = vld [vmem:[%s383 + $0x158] sm:$0xff]
      %v4808 = vld [vmem:[%s383 + $0x168] sm:$0xff]
      %v4809 = vld [vmem:[%s383 + $0x170] sm:$0xff]
      %v4810 = vld [vmem:[%s383 + $0x1b0] sm:$0xff]
      %v4811 = vld [vmem:[%s383 + $0x1b8] sm:$0xff]
      %v4812 = vld [vmem:[%s383 + $0x1c8] sm:$0xff]
      %v4813 = vld [vmem:[%s383 + $0x1d0] sm:$0xff]
      %v4814 = vld [vmem:[%s383 + $0x1e0] sm:$0xff]
      %v4815 = vld [vmem:[%s383 + $0x1e8] sm:$0xff]
      %v4816 = vld [vmem:[%s383 + $0x1f8] sm:$0xff]
      %v4817 = vld [vmem:[%s383 + $0x200] sm:$0xff]
      %v4818 = vld [vmem:[%s383 + $0x210] sm:$0xff]
      %v4819 = vld [vmem:[%s383 + $0x218] sm:$0xff]
      %v4820 = vld [vmem:[%s383 + $0x228] sm:$0xff]
      %v4821 = vld [vmem:[%s383 + $0x230] sm:$0xff]
      %v4822 = vld [vmem:[%s383 + $0x240] sm:$0xff]
      %v4823 = vld [vmem:[%s383 + $0x248] sm:$0xff]
      %v4824 = vld [vmem:[%s383 + $0x258] sm:$0xff]
      %v4825 = vld [vmem:[%s383 + $0x260] sm:$0xff]
      %v4826 = vld [vmem:[%s383 + $0x270] sm:$0xff]
      %v4827 = vld [vmem:[%s383 + $0x278] sm:$0xff]
      %v4828 = vld [vmem:[%s383 + $0x288] sm:$0xff]
      %v4829 = vld [vmem:[%s383 + $0x290] sm:$0xff]
      %v4830 = vld [vmem:[%s383 + $0x2a0] sm:$0xff]
      %v4831 = vld [vmem:[%s383 + $0x2a8] sm:$0xff]
      %v4832 = vld [vmem:[%s383 + $0x2b8] sm:$0xff]
      %v4833 = vld [vmem:[%s383 + $0x2c0] sm:$0xff]
      %v4834 = vld [vmem:[%s383 + $0x2d0] sm:$0xff]
      %v4835 = vld [vmem:[%s383 + $0x2d8] sm:$0xff]
      %v4836 = vld [vmem:[%s383 + $0x2e8] sm:$0xff]
      %v4837 = vld [vmem:[%s383 + $0x2f0] sm:$0xff]
      %v4838 = vld [vmem:[%s383 + $0x300] sm:$0xff]
      %v4839 = vld [vmem:[%s383 + $0x308] sm:$0xff]
      %v4840 = vld [vmem:[%s383 + $0x318] sm:$0xff]
      %v4841 = vld [vmem:[%s383 + $0x320] sm:$0xff]
      %v4842 = vpack.c.bf16 %v4779, %v4778
      %v4843 = vpack.c.bf16 %v4781, %v4780
      %v4844 = vpack.c.bf16 %v4783, %v4782
      %v4845 = vpack.c.bf16 %v4785, %v4784
      %v4846 = vpack.c.bf16 %v4787, %v4786
      %v4847 = vpack.c.bf16 %v4789, %v4788
      %v4848 = vpack.c.bf16 %v4791, %v4790
      %v4849 = vpack.c.bf16 %v4793, %v4792
      %v4850 = vpack.c.bf16 %v4795, %v4794
      %v4851 = vpack.c.bf16 %v4797, %v4796
      %v4852 = vpack.c.bf16 %v4799, %v4798
      %v4853 = vpack.c.bf16 %v4801, %v4800
      %v4854 = vpack.c.bf16 %v4803, %v4802
      %v4855 = vpack.c.bf16 %v4805, %v4804
      %v4856 = vpack.c.bf16 %v4807, %v4806
      %v4857 = vpack.c.bf16 %v4809, %v4808
      %v4858 = vpack.c.bf16 %v4811, %v4810
      %v4859 = vpack.c.bf16 %v4813, %v4812
      %v4860 = vpack.c.bf16 %v4815, %v4814
      %v4861 = vpack.c.bf16 %v4817, %v4816
      %v4862 = vpack.c.bf16 %v4819, %v4818
      %v4863 = vpack.c.bf16 %v4821, %v4820
      %v4864 = vpack.c.bf16 %v4823, %v4822
      %v4865 = vpack.c.bf16 %v4825, %v4824
      %v4866 = vpack.c.bf16 %v4827, %v4826
      %v4867 = vpack.c.bf16 %v4829, %v4828
      %v4868 = vpack.c.bf16 %v4831, %v4830
      %v4869 = vpack.c.bf16 %v4833, %v4832
      %v4870 = vpack.c.bf16 %v4835, %v4834
      %v4871 = vpack.c.bf16 %v4837, %v4836
      %v4872 = vpack.c.bf16 %v4839, %v4838
      %v4873 = vpack.c.bf16 %v4841, %v4840
      %4874 = vst [vmem:[#allocation3 + $0x18] sm:$0xff] %v4842
      %4875 = vst [vmem:[#allocation3 + $0x60] sm:$0xff] %v4843
      %4876 = vst [vmem:[#allocation3 + $0xa8] sm:$0xff] %v4844
      %4877 = vst [vmem:[#allocation3 + $0xf0] sm:$0xff] %v4845
      %4878 = vst [vmem:[#allocation3 + $0x138] sm:$0xff] %v4846
      %4879 = vst [vmem:[#allocation3 + $0x180] sm:$0xff] %v4847
      %4880 = vst [vmem:[#allocation3 + $0x1c8] sm:$0xff] %v4848
      %4881 = vst [vmem:[#allocation3 + $0x210] sm:$0xff] %v4849
      %4882 = vst [vmem:[#allocation3 + $0x258] sm:$0xff] %v4850
      %4883 = vst [vmem:[#allocation3 + $0x2a0] sm:$0xff] %v4851
      %4884 = vst [vmem:[#allocation3 + $0x2e8] sm:$0xff] %v4852
      %4885 = vst [vmem:[#allocation3 + $0x330] sm:$0xff] %v4853
      %4886 = vst [vmem:[#allocation3 + $0x378] sm:$0xff] %v4854
      %4887 = vst [vmem:[#allocation3 + $0x3c0] sm:$0xff] %v4855
      %4888 = vst [vmem:[#allocation3 + $0x408] sm:$0xff] %v4856
      %4889 = vst [vmem:[#allocation3 + $0x450] sm:$0xff] %v4857
      %4890 = vst [vmem:[#allocation3 + $0x498] sm:$0xff] %v4858
      %4891 = vst [vmem:[#allocation3 + $0x4e0] sm:$0xff] %v4859
      %4892 = vst [vmem:[#allocation3 + $0x528] sm:$0xff] %v4860
      %4893 = vst [vmem:[#allocation3 + $0x570] sm:$0xff] %v4861
      %4894 = vst [vmem:[#allocation3 + $0x5b8] sm:$0xff] %v4862
      %4895 = vst [vmem:[#allocation3 + $0x600] sm:$0xff] %v4863
      %4896 = vst [vmem:[#allocation3 + $0x648] sm:$0xff] %v4864
      %4897 = vst [vmem:[#allocation3 + $0x690] sm:$0xff] %v4865
      %4898 = vst [vmem:[#allocation3 + $0x6d8] sm:$0xff] %v4866
      %4899 = vst [vmem:[#allocation3 + $0x720] sm:$0xff] %v4867
      %4900 = vst [vmem:[#allocation3 + $0x768] sm:$0xff] %v4868
      %4901 = vst [vmem:[#allocation3 + $0x7b0] sm:$0xff] %v4869
      %4902 = vst [vmem:[#allocation3 + $0x7f8] sm:$0xff] %v4870
      %4903 = vst [vmem:[#allocation3 + $0x840] sm:$0xff] %v4871
      %4904 = vst [vmem:[#allocation3 + $0x888] sm:$0xff] %v4872
      %4905 = vst [vmem:[#allocation3 + $0x8d0] sm:$0xff] %v4873
      %v4906 = vld [vmem:[%s383 + $0x1] sm:$0xff]
      %v4907 = vld [vmem:[%s383 + $0x9] sm:$0xff]
      %v4908 = vld [vmem:[%s383 + $0x19] sm:$0xff]
      %v4909 = vld [vmem:[%s383 + $0x21] sm:$0xff]
      %v4910 = vld [vmem:[%s383 + $0x31] sm:$0xff]
      %v4911 = vld [vmem:[%s383 + $0x39] sm:$0xff]
      %v4912 = vld [vmem:[%s383 + $0x49] sm:$0xff]
      %v4913 = vld [vmem:[%s383 + $0x51] sm:$0xff]
      %v4914 = vld [vmem:[%s383 + $0x61] sm:$0xff]
      %v4915 = vld [vmem:[%s383 + $0x69] sm:$0xff]
      %v4916 = vld [vmem:[%s383 + $0x79] sm:$0xff]
      %v4917 = vld [vmem:[%s383 + $0x81] sm:$0xff]
      %v4918 = vld [vmem:[%s383 + $0x91] sm:$0xff]
      %v4919 = vld [vmem:[%s383 + $0x99] sm:$0xff]
      %v4920 = vld [vmem:[%s383 + $0xa9] sm:$0xff]
      %v4921 = vld [vmem:[%s383 + $0xb1] sm:$0xff]
      %v4922 = vld [vmem:[%s383 + $0xc1] sm:$0xff]
      %v4923 = vld [vmem:[%s383 + $0xc9] sm:$0xff]
      %v4924 = vld [vmem:[%s383 + $0xd9] sm:$0xff]
      %v4925 = vld [vmem:[%s383 + $0xe1] sm:$0xff]
      %v4926 = vld [vmem:[%s383 + $0xf1] sm:$0xff]
      %v4927 = vld [vmem:[%s383 + $0xf9] sm:$0xff]
      %v4928 = vld [vmem:[%s383 + $0x109] sm:$0xff]
      %v4929 = vld [vmem:[%s383 + $0x111] sm:$0xff]
      %v4930 = vld [vmem:[%s383 + $0x121] sm:$0xff]
      %v4931 = vld [vmem:[%s383 + $0x129] sm:$0xff]
      %v4932 = vld [vmem:[%s383 + $0x139] sm:$0xff]
      %v4933 = vld [vmem:[%s383 + $0x141] sm:$0xff]
      %v4934 = vld [vmem:[%s383 + $0x151] sm:$0xff]
      %v4935 = vld [vmem:[%s383 + $0x159] sm:$0xff]
      %v4936 = vld [vmem:[%s383 + $0x169] sm:$0xff]
      %v4937 = vld [vmem:[%s383 + $0x171] sm:$0xff]
      %v4938 = vld [vmem:[%s383 + $0x1b1] sm:$0xff]
      %v4939 = vld [vmem:[%s383 + $0x1b9] sm:$0xff]
      %v4940 = vld [vmem:[%s383 + $0x1c9] sm:$0xff]
      %v4941 = vld [vmem:[%s383 + $0x1d1] sm:$0xff]
      %v4942 = vld [vmem:[%s383 + $0x1e1] sm:$0xff]
      %v4943 = vld [vmem:[%s383 + $0x1e9] sm:$0xff]
      %v4944 = vld [vmem:[%s383 + $0x1f9] sm:$0xff]
      %v4945 = vld [vmem:[%s383 + $0x201] sm:$0xff]
      %v4946 = vld [vmem:[%s383 + $0x211] sm:$0xff]
      %v4947 = vld [vmem:[%s383 + $0x219] sm:$0xff]
      %v4948 = vld [vmem:[%s383 + $0x229] sm:$0xff]
      %v4949 = vld [vmem:[%s383 + $0x231] sm:$0xff]
      %v4950 = vld [vmem:[%s383 + $0x241] sm:$0xff]
      %v4951 = vld [vmem:[%s383 + $0x249] sm:$0xff]
      %v4952 = vld [vmem:[%s383 + $0x259] sm:$0xff]
      %v4953 = vld [vmem:[%s383 + $0x261] sm:$0xff]
      %v4954 = vld [vmem:[%s383 + $0x271] sm:$0xff]
      %v4955 = vld [vmem:[%s383 + $0x279] sm:$0xff]
      %v4956 = vld [vmem:[%s383 + $0x289] sm:$0xff]
      %v4957 = vld [vmem:[%s383 + $0x291] sm:$0xff]
      %v4958 = vld [vmem:[%s383 + $0x2a1] sm:$0xff]
      %v4959 = vld [vmem:[%s383 + $0x2a9] sm:$0xff]
      %v4960 = vld [vmem:[%s383 + $0x2b9] sm:$0xff]
      %v4961 = vld [vmem:[%s383 + $0x2c1] sm:$0xff]
      %v4962 = vld [vmem:[%s383 + $0x2d1] sm:$0xff]
      %v4963 = vld [vmem:[%s383 + $0x2d9] sm:$0xff]
      %v4964 = vld [vmem:[%s383 + $0x2e9] sm:$0xff]
      %v4965 = vld [vmem:[%s383 + $0x2f1] sm:$0xff]
      %v4966 = vld [vmem:[%s383 + $0x301] sm:$0xff]
      %v4967 = vld [vmem:[%s383 + $0x309] sm:$0xff]
      %v4968 = vld [vmem:[%s383 + $0x319] sm:$0xff]
      %v4969 = vld [vmem:[%s383 + $0x321] sm:$0xff]
      %v4970 = vpack.c.bf16 %v4907, %v4906
      %v4971 = vpack.c.bf16 %v4909, %v4908
      %v4972 = vpack.c.bf16 %v4911, %v4910
      %v4973 = vpack.c.bf16 %v4913, %v4912
      %v4974 = vpack.c.bf16 %v4915, %v4914
      %v4975 = vpack.c.bf16 %v4917, %v4916
      %v4976 = vpack.c.bf16 %v4919, %v4918
      %v4977 = vpack.c.bf16 %v4921, %v4920
      %v4978 = vpack.c.bf16 %v4923, %v4922
      %v4979 = vpack.c.bf16 %v4925, %v4924
      %v4980 = vpack.c.bf16 %v4927, %v4926
      %v4981 = vpack.c.bf16 %v4929, %v4928
      %v4982 = vpack.c.bf16 %v4931, %v4930
      %v4983 = vpack.c.bf16 %v4933, %v4932
      %v4984 = vpack.c.bf16 %v4935, %v4934
      %v4985 = vpack.c.bf16 %v4937, %v4936
      %v4986 = vpack.c.bf16 %v4939, %v4938
      %v4987 = vpack.c.bf16 %v4941, %v4940
      %v4988 = vpack.c.bf16 %v4943, %v4942
      %v4989 = vpack.c.bf16 %v4945, %v4944
      %v4990 = vpack.c.bf16 %v4947, %v4946
      %v4991 = vpack.c.bf16 %v4949, %v4948
      %v4992 = vpack.c.bf16 %v4951, %v4950
      %v4993 = vpack.c.bf16 %v4953, %v4952
      %v4994 = vpack.c.bf16 %v4955, %v4954
      %v4995 = vpack.c.bf16 %v4957, %v4956
      %v4996 = vpack.c.bf16 %v4959, %v4958
      %v4997 = vpack.c.bf16 %v4961, %v4960
      %v4998 = vpack.c.bf16 %v4963, %v4962
      %v4999 = vpack.c.bf16 %v4965, %v4964
      %v5000 = vpack.c.bf16 %v4967, %v4966
      %v5001 = vpack.c.bf16 %v4969, %v4968
      %5002 = vst [vmem:[#allocation3 + $0x20] sm:$0xff] %v4970
      %5003 = vst [vmem:[#allocation3 + $0x68] sm:$0xff] %v4971
      %5004 = vst [vmem:[#allocation3 + $0xb0] sm:$0xff] %v4972
      %5005 = vst [vmem:[#allocation3 + $0xf8] sm:$0xff] %v4973
      %5006 = vst [vmem:[#allocation3 + $0x140] sm:$0xff] %v4974
      %5007 = vst [vmem:[#allocation3 + $0x188] sm:$0xff] %v4975
      %5008 = vst [vmem:[#allocation3 + $0x1d0] sm:$0xff] %v4976
      %5009 = vst [vmem:[#allocation3 + $0x218] sm:$0xff] %v4977
      %5010 = vst [vmem:[#allocation3 + $0x260] sm:$0xff] %v4978
      %5011 = vst [vmem:[#allocation3 + $0x2a8] sm:$0xff] %v4979
      %5012 = vst [vmem:[#allocation3 + $0x2f0] sm:$0xff] %v4980
      %5013 = vst [vmem:[#allocation3 + $0x338] sm:$0xff] %v4981
      %5014 = vst [vmem:[#allocation3 + $0x380] sm:$0xff] %v4982
      %5015 = vst [vmem:[#allocation3 + $0x3c8] sm:$0xff] %v4983
      %5016 = vst [vmem:[#allocation3 + $0x410] sm:$0xff] %v4984
      %5017 = vst [vmem:[#allocation3 + $0x458] sm:$0xff] %v4985
      %5018 = vst [vmem:[#allocation3 + $0x4a0] sm:$0xff] %v4986
      %5019 = vst [vmem:[#allocation3 + $0x4e8] sm:$0xff] %v4987
      %5020 = vst [vmem:[#allocation3 + $0x530] sm:$0xff] %v4988
      %5021 = vst [vmem:[#allocation3 + $0x578] sm:$0xff] %v4989
      %5022 = vst [vmem:[#allocation3 + $0x5c0] sm:$0xff] %v4990
      %5023 = vst [vmem:[#allocation3 + $0x608] sm:$0xff] %v4991
      %5024 = vst [vmem:[#allocation3 + $0x650] sm:$0xff] %v4992
      %5025 = vst [vmem:[#allocation3 + $0x698] sm:$0xff] %v4993
      %5026 = vst [vmem:[#allocation3 + $0x6e0] sm:$0xff] %v4994
      %5027 = vst [vmem:[#allocation3 + $0x728] sm:$0xff] %v4995
      %5028 = vst [vmem:[#allocation3 + $0x770] sm:$0xff] %v4996
      %5029 = vst [vmem:[#allocation3 + $0x7b8] sm:$0xff] %v4997
      %5030 = vst [vmem:[#allocation3 + $0x800] sm:$0xff] %v4998
      %5031 = vst [vmem:[#allocation3 + $0x848] sm:$0xff] %v4999
      %5032 = vst [vmem:[#allocation3 + $0x890] sm:$0xff] %v5000
      %5033 = vst [vmem:[#allocation3 + $0x8d8] sm:$0xff] %v5001
      %v5034 = vld [vmem:[%s383 + $0x2] sm:$0xff]
      %v5035 = vld [vmem:[%s383 + $0xa] sm:$0xff]
      %v5036 = vld [vmem:[%s383 + $0x1a] sm:$0xff]
      %v5037 = vld [vmem:[%s383 + $0x22] sm:$0xff]
      %v5038 = vld [vmem:[%s383 + $0x32] sm:$0xff]
      %v5039 = vld [vmem:[%s383 + $0x3a] sm:$0xff]
      %v5040 = vld [vmem:[%s383 + $0x4a] sm:$0xff]
      %v5041 = vld [vmem:[%s383 + $0x52] sm:$0xff]
      %v5042 = vld [vmem:[%s383 + $0x62] sm:$0xff]
      %v5043 = vld [vmem:[%s383 + $0x6a] sm:$0xff]
      %v5044 = vld [vmem:[%s383 + $0x7a] sm:$0xff]
      %v5045 = vld [vmem:[%s383 + $0x82] sm:$0xff]
      %v5046 = vld [vmem:[%s383 + $0x92] sm:$0xff]
      %v5047 = vld [vmem:[%s383 + $0x9a] sm:$0xff]
      %v5048 = vld [vmem:[%s383 + $0xaa] sm:$0xff]
      %v5049 = vld [vmem:[%s383 + $0xb2] sm:$0xff]
      %v5050 = vld [vmem:[%s383 + $0xc2] sm:$0xff]
      %v5051 = vld [vmem:[%s383 + $0xca] sm:$0xff]
      %v5052 = vld [vmem:[%s383 + $0xda] sm:$0xff]
      %v5053 = vld [vmem:[%s383 + $0xe2] sm:$0xff]
      %v5054 = vld [vmem:[%s383 + $0xf2] sm:$0xff]
      %v5055 = vld [vmem:[%s383 + $0xfa] sm:$0xff]
      %v5056 = vld [vmem:[%s383 + $0x10a] sm:$0xff]
      %v5057 = vld [vmem:[%s383 + $0x112] sm:$0xff]
      %v5058 = vld [vmem:[%s383 + $0x122] sm:$0xff]
      %v5059 = vld [vmem:[%s383 + $0x12a] sm:$0xff]
      %v5060 = vld [vmem:[%s383 + $0x13a] sm:$0xff]
      %v5061 = vld [vmem:[%s383 + $0x142] sm:$0xff]
      %v5062 = vld [vmem:[%s383 + $0x152] sm:$0xff]
      %v5063 = vld [vmem:[%s383 + $0x15a] sm:$0xff]
      %v5064 = vld [vmem:[%s383 + $0x16a] sm:$0xff]
      %v5065 = vld [vmem:[%s383 + $0x172] sm:$0xff]
      %v5066 = vld [vmem:[%s383 + $0x1b2] sm:$0xff]
      %v5067 = vld [vmem:[%s383 + $0x1ba] sm:$0xff]
      %v5068 = vld [vmem:[%s383 + $0x1ca] sm:$0xff]
      %v5069 = vld [vmem:[%s383 + $0x1d2] sm:$0xff]
      %v5070 = vld [vmem:[%s383 + $0x1e2] sm:$0xff]
      %v5071 = vld [vmem:[%s383 + $0x1ea] sm:$0xff]
      %v5072 = vld [vmem:[%s383 + $0x1fa] sm:$0xff]
      %v5073 = vld [vmem:[%s383 + $0x202] sm:$0xff]
      %v5074 = vld [vmem:[%s383 + $0x212] sm:$0xff]
      %v5075 = vld [vmem:[%s383 + $0x21a] sm:$0xff]
      %v5076 = vld [vmem:[%s383 + $0x22a] sm:$0xff]
      %v5077 = vld [vmem:[%s383 + $0x232] sm:$0xff]
      %v5078 = vld [vmem:[%s383 + $0x242] sm:$0xff]
      %v5079 = vld [vmem:[%s383 + $0x24a] sm:$0xff]
      %v5080 = vld [vmem:[%s383 + $0x25a] sm:$0xff]
      %v5081 = vld [vmem:[%s383 + $0x262] sm:$0xff]
      %v5082 = vld [vmem:[%s383 + $0x272] sm:$0xff]
      %v5083 = vld [vmem:[%s383 + $0x27a] sm:$0xff]
      %v5084 = vld [vmem:[%s383 + $0x28a] sm:$0xff]
      %v5085 = vld [vmem:[%s383 + $0x292] sm:$0xff]
      %v5086 = vld [vmem:[%s383 + $0x2a2] sm:$0xff]
      %v5087 = vld [vmem:[%s383 + $0x2aa] sm:$0xff]
      %v5088 = vld [vmem:[%s383 + $0x2ba] sm:$0xff]
      %v5089 = vld [vmem:[%s383 + $0x2c2] sm:$0xff]
      %v5090 = vld [vmem:[%s383 + $0x2d2] sm:$0xff]
      %v5091 = vld [vmem:[%s383 + $0x2da] sm:$0xff]
      %v5092 = vld [vmem:[%s383 + $0x2ea] sm:$0xff]
      %v5093 = vld [vmem:[%s383 + $0x2f2] sm:$0xff]
      %v5094 = vld [vmem:[%s383 + $0x302] sm:$0xff]
      %v5095 = vld [vmem:[%s383 + $0x30a] sm:$0xff]
      %v5096 = vld [vmem:[%s383 + $0x31a] sm:$0xff]
      %v5097 = vld [vmem:[%s383 + $0x322] sm:$0xff]
      %v5098 = vpack.c.bf16 %v5035, %v5034
      %v5099 = vpack.c.bf16 %v5037, %v5036
      %v5100 = vpack.c.bf16 %v5039, %v5038
      %v5101 = vpack.c.bf16 %v5041, %v5040
      %v5102 = vpack.c.bf16 %v5043, %v5042
      %v5103 = vpack.c.bf16 %v5045, %v5044
      %v5104 = vpack.c.bf16 %v5047, %v5046
      %v5105 = vpack.c.bf16 %v5049, %v5048
      %v5106 = vpack.c.bf16 %v5051, %v5050
      %v5107 = vpack.c.bf16 %v5053, %v5052
      %v5108 = vpack.c.bf16 %v5055, %v5054
      %v5109 = vpack.c.bf16 %v5057, %v5056
      %v5110 = vpack.c.bf16 %v5059, %v5058
      %v5111 = vpack.c.bf16 %v5061, %v5060
      %v5112 = vpack.c.bf16 %v5063, %v5062
      %v5113 = vpack.c.bf16 %v5065, %v5064
      %v5114 = vpack.c.bf16 %v5067, %v5066
      %v5115 = vpack.c.bf16 %v5069, %v5068
      %v5116 = vpack.c.bf16 %v5071, %v5070
      %v5117 = vpack.c.bf16 %v5073, %v5072
      %v5118 = vpack.c.bf16 %v5075, %v5074
      %v5119 = vpack.c.bf16 %v5077, %v5076
      %v5120 = vpack.c.bf16 %v5079, %v5078
      %v5121 = vpack.c.bf16 %v5081, %v5080
      %v5122 = vpack.c.bf16 %v5083, %v5082
      %v5123 = vpack.c.bf16 %v5085, %v5084
      %v5124 = vpack.c.bf16 %v5087, %v5086
      %v5125 = vpack.c.bf16 %v5089, %v5088
      %v5126 = vpack.c.bf16 %v5091, %v5090
      %v5127 = vpack.c.bf16 %v5093, %v5092
      %v5128 = vpack.c.bf16 %v5095, %v5094
      %v5129 = vpack.c.bf16 %v5097, %v5096
      %5130 = vst [vmem:[#allocation3 + $0x28] sm:$0xff] %v5098
      %5131 = vst [vmem:[#allocation3 + $0x70] sm:$0xff] %v5099
      %5132 = vst [vmem:[#allocation3 + $0xb8] sm:$0xff] %v5100
      %5133 = vst [vmem:[#allocation3 + $0x100] sm:$0xff] %v5101
      %5134 = vst [vmem:[#allocation3 + $0x148] sm:$0xff] %v5102
      %5135 = vst [vmem:[#allocation3 + $0x190] sm:$0xff] %v5103
      %5136 = vst [vmem:[#allocation3 + $0x1d8] sm:$0xff] %v5104
      %5137 = vst [vmem:[#allocation3 + $0x220] sm:$0xff] %v5105
      %5138 = vst [vmem:[#allocation3 + $0x268] sm:$0xff] %v5106
      %5139 = vst [vmem:[#allocation3 + $0x2b0] sm:$0xff] %v5107
      %5140 = vst [vmem:[#allocation3 + $0x2f8] sm:$0xff] %v5108
      %5141 = vst [vmem:[#allocation3 + $0x340] sm:$0xff] %v5109
      %5142 = vst [vmem:[#allocation3 + $0x388] sm:$0xff] %v5110
      %5143 = vst [vmem:[#allocation3 + $0x3d0] sm:$0xff] %v5111
      %5144 = vst [vmem:[#allocation3 + $0x418] sm:$0xff] %v5112
      %5145 = vst [vmem:[#allocation3 + $0x460] sm:$0xff] %v5113
      %5146 = vst [vmem:[#allocation3 + $0x4a8] sm:$0xff] %v5114
      %5147 = vst [vmem:[#allocation3 + $0x4f0] sm:$0xff] %v5115
      %5148 = vst [vmem:[#allocation3 + $0x538] sm:$0xff] %v5116
      %5149 = vst [vmem:[#allocation3 + $0x580] sm:$0xff] %v5117
      %5150 = vst [vmem:[#allocation3 + $0x5c8] sm:$0xff] %v5118
      %5151 = vst [vmem:[#allocation3 + $0x610] sm:$0xff] %v5119
      %5152 = vst [vmem:[#allocation3 + $0x658] sm:$0xff] %v5120
      %5153 = vst [vmem:[#allocation3 + $0x6a0] sm:$0xff] %v5121
      %5154 = vst [vmem:[#allocation3 + $0x6e8] sm:$0xff] %v5122
      %5155 = vst [vmem:[#allocation3 + $0x730] sm:$0xff] %v5123
      %5156 = vst [vmem:[#allocation3 + $0x778] sm:$0xff] %v5124
      %5157 = vst [vmem:[#allocation3 + $0x7c0] sm:$0xff] %v5125
      %5158 = vst [vmem:[#allocation3 + $0x808] sm:$0xff] %v5126
      %5159 = vst [vmem:[#allocation3 + $0x850] sm:$0xff] %v5127
      %5160 = vst [vmem:[#allocation3 + $0x898] sm:$0xff] %v5128
      %5161 = vst [vmem:[#allocation3 + $0x8e0] sm:$0xff] %v5129
      %v5162 = vld [vmem:[%s1216] sm:$0xff]
      %v5163 = vld [vmem:[%s1216 + $0x8] sm:$0xff]
      %v5164 = vld [vmem:[%s1216 + $0x18] sm:$0xff]
      %v5165 = vld [vmem:[%s1216 + $0x20] sm:$0xff]
      %v5166 = vld [vmem:[%s1216 + $0x30] sm:$0xff]
      %v5167 = vld [vmem:[%s1216 + $0x38] sm:$0xff]
      %v5168 = vld [vmem:[%s1216 + $0x48] sm:$0xff]
      %v5169 = vld [vmem:[%s1216 + $0x50] sm:$0xff]
      %v5170 = vld [vmem:[%s1216 + $0x60] sm:$0xff]
      %v5171 = vld [vmem:[%s1216 + $0x68] sm:$0xff]
      %v5172 = vld [vmem:[%s1216 + $0x78] sm:$0xff]
      %v5173 = vld [vmem:[%s1216 + $0x80] sm:$0xff]
      %v5174 = vld [vmem:[%s1216 + $0x90] sm:$0xff]
      %v5175 = vld [vmem:[%s1216 + $0x98] sm:$0xff]
      %v5176 = vld [vmem:[%s1216 + $0xa8] sm:$0xff]
      %v5177 = vld [vmem:[%s1216 + $0xb0] sm:$0xff]
      %v5178 = vld [vmem:[%s1216 + $0xc0] sm:$0xff]
      %v5179 = vld [vmem:[%s1216 + $0xc8] sm:$0xff]
      %v5180 = vld [vmem:[%s1216 + $0xd8] sm:$0xff]
      %v5181 = vld [vmem:[%s1216 + $0xe0] sm:$0xff]
      %v5182 = vld [vmem:[%s1216 + $0xf0] sm:$0xff]
      %v5183 = vld [vmem:[%s1216 + $0xf8] sm:$0xff]
      %v5184 = vld [vmem:[%s1216 + $0x108] sm:$0xff]
      %v5185 = vld [vmem:[%s1216 + $0x110] sm:$0xff]
      %v5186 = vld [vmem:[%s1216 + $0x120] sm:$0xff]
      %v5187 = vld [vmem:[%s1216 + $0x128] sm:$0xff]
      %v5188 = vld [vmem:[%s1216 + $0x138] sm:$0xff]
      %v5189 = vld [vmem:[%s1216 + $0x140] sm:$0xff]
      %v5190 = vld [vmem:[%s1216 + $0x150] sm:$0xff]
      %v5191 = vld [vmem:[%s1216 + $0x158] sm:$0xff]
      %v5192 = vld [vmem:[%s1216 + $0x168] sm:$0xff]
      %v5193 = vld [vmem:[%s1216 + $0x170] sm:$0xff]
      %v5194 = vld [vmem:[%s1216 + $0x1b0] sm:$0xff]
      %v5195 = vld [vmem:[%s1216 + $0x1b8] sm:$0xff]
      %v5196 = vld [vmem:[%s1216 + $0x1c8] sm:$0xff]
      %v5197 = vld [vmem:[%s1216 + $0x1d0] sm:$0xff]
      %v5198 = vld [vmem:[%s1216 + $0x1e0] sm:$0xff]
      %v5199 = vld [vmem:[%s1216 + $0x1e8] sm:$0xff]
      %v5200 = vld [vmem:[%s1216 + $0x1f8] sm:$0xff]
      %v5201 = vld [vmem:[%s1216 + $0x200] sm:$0xff]
      %v5202 = vld [vmem:[%s1216 + $0x210] sm:$0xff]
      %v5203 = vld [vmem:[%s1216 + $0x218] sm:$0xff]
      %v5204 = vld [vmem:[%s1216 + $0x228] sm:$0xff]
      %v5205 = vld [vmem:[%s1216 + $0x230] sm:$0xff]
      %v5206 = vld [vmem:[%s1216 + $0x240] sm:$0xff]
      %v5207 = vld [vmem:[%s1216 + $0x248] sm:$0xff]
      %v5208 = vld [vmem:[%s1216 + $0x258] sm:$0xff]
      %v5209 = vld [vmem:[%s1216 + $0x260] sm:$0xff]
      %v5210 = vld [vmem:[%s1216 + $0x270] sm:$0xff]
      %v5211 = vld [vmem:[%s1216 + $0x278] sm:$0xff]
      %v5212 = vld [vmem:[%s1216 + $0x288] sm:$0xff]
      %v5213 = vld [vmem:[%s1216 + $0x290] sm:$0xff]
      %v5214 = vld [vmem:[%s1216 + $0x2a0] sm:$0xff]
      %v5215 = vld [vmem:[%s1216 + $0x2a8] sm:$0xff]
      %v5216 = vld [vmem:[%s1216 + $0x2b8] sm:$0xff]
      %v5217 = vld [vmem:[%s1216 + $0x2c0] sm:$0xff]
      %v5218 = vld [vmem:[%s1216 + $0x2d0] sm:$0xff]
      %v5219 = vld [vmem:[%s1216 + $0x2d8] sm:$0xff]
      %v5220 = vld [vmem:[%s1216 + $0x2e8] sm:$0xff]
      %v5221 = vld [vmem:[%s1216 + $0x2f0] sm:$0xff]
      %v5222 = vld [vmem:[%s1216 + $0x300] sm:$0xff]
      %v5223 = vld [vmem:[%s1216 + $0x308] sm:$0xff]
      %v5224 = vld [vmem:[%s1216 + $0x318] sm:$0xff]
      %v5225 = vld [vmem:[%s1216 + $0x320] sm:$0xff]
      %v5226 = vpack.c.bf16 %v5163, %v5162
      %v5227 = vpack.c.bf16 %v5165, %v5164
      %v5228 = vpack.c.bf16 %v5167, %v5166
      %v5229 = vpack.c.bf16 %v5169, %v5168
      %v5230 = vpack.c.bf16 %v5171, %v5170
      %v5231 = vpack.c.bf16 %v5173, %v5172
      %v5232 = vpack.c.bf16 %v5175, %v5174
      %v5233 = vpack.c.bf16 %v5177, %v5176
      %v5234 = vpack.c.bf16 %v5179, %v5178
      %v5235 = vpack.c.bf16 %v5181, %v5180
      %v5236 = vpack.c.bf16 %v5183, %v5182
      %v5237 = vpack.c.bf16 %v5185, %v5184
      %v5238 = vpack.c.bf16 %v5187, %v5186
      %v5239 = vpack.c.bf16 %v5189, %v5188
      %v5240 = vpack.c.bf16 %v5191, %v5190
      %v5241 = vpack.c.bf16 %v5193, %v5192
      %v5242 = vpack.c.bf16 %v5195, %v5194
      %v5243 = vpack.c.bf16 %v5197, %v5196
      %v5244 = vpack.c.bf16 %v5199, %v5198
      %v5245 = vpack.c.bf16 %v5201, %v5200
      %v5246 = vpack.c.bf16 %v5203, %v5202
      %v5247 = vpack.c.bf16 %v5205, %v5204
      %v5248 = vpack.c.bf16 %v5207, %v5206
      %v5249 = vpack.c.bf16 %v5209, %v5208
      %v5250 = vpack.c.bf16 %v5211, %v5210
      %v5251 = vpack.c.bf16 %v5213, %v5212
      %v5252 = vpack.c.bf16 %v5215, %v5214
      %v5253 = vpack.c.bf16 %v5217, %v5216
      %v5254 = vpack.c.bf16 %v5219, %v5218
      %v5255 = vpack.c.bf16 %v5221, %v5220
      %v5256 = vpack.c.bf16 %v5223, %v5222
      %v5257 = vpack.c.bf16 %v5225, %v5224
      %5258 = vst [vmem:[#allocation3 + $0x30] sm:$0xff] %v5226
      %5259 = vst [vmem:[#allocation3 + $0x78] sm:$0xff] %v5227
      %5260 = vst [vmem:[#allocation3 + $0xc0] sm:$0xff] %v5228
      %5261 = vst [vmem:[#allocation3 + $0x108] sm:$0xff] %v5229
      %5262 = vst [vmem:[#allocation3 + $0x150] sm:$0xff] %v5230
      %5263 = vst [vmem:[#allocation3 + $0x198] sm:$0xff] %v5231
      %5264 = vst [vmem:[#allocation3 + $0x1e0] sm:$0xff] %v5232
      %5265 = vst [vmem:[#allocation3 + $0x228] sm:$0xff] %v5233
      %5266 = vst [vmem:[#allocation3 + $0x270] sm:$0xff] %v5234
      %5267 = vst [vmem:[#allocation3 + $0x2b8] sm:$0xff] %v5235
      %5268 = vst [vmem:[#allocation3 + $0x300] sm:$0xff] %v5236
      %5269 = vst [vmem:[#allocation3 + $0x348] sm:$0xff] %v5237
      %5270 = vst [vmem:[#allocation3 + $0x390] sm:$0xff] %v5238
      %5271 = vst [vmem:[#allocation3 + $0x3d8] sm:$0xff] %v5239
      %5272 = vst [vmem:[#allocation3 + $0x420] sm:$0xff] %v5240
      %5273 = vst [vmem:[#allocation3 + $0x468] sm:$0xff] %v5241
      %5274 = vst [vmem:[#allocation3 + $0x4b0] sm:$0xff] %v5242
      %5275 = vst [vmem:[#allocation3 + $0x4f8] sm:$0xff] %v5243
      %5276 = vst [vmem:[#allocation3 + $0x540] sm:$0xff] %v5244
      %5277 = vst [vmem:[#allocation3 + $0x588] sm:$0xff] %v5245
      %5278 = vst [vmem:[#allocation3 + $0x5d0] sm:$0xff] %v5246
      %5279 = vst [vmem:[#allocation3 + $0x618] sm:$0xff] %v5247
      %5280 = vst [vmem:[#allocation3 + $0x660] sm:$0xff] %v5248
      %5281 = vst [vmem:[#allocation3 + $0x6a8] sm:$0xff] %v5249
      %5282 = vst [vmem:[#allocation3 + $0x6f0] sm:$0xff] %v5250
      %5283 = vst [vmem:[#allocation3 + $0x738] sm:$0xff] %v5251
      %5284 = vst [vmem:[#allocation3 + $0x780] sm:$0xff] %v5252
      %5285 = vst [vmem:[#allocation3 + $0x7c8] sm:$0xff] %v5253
      %5286 = vst [vmem:[#allocation3 + $0x810] sm:$0xff] %v5254
      %5287 = vst [vmem:[#allocation3 + $0x858] sm:$0xff] %v5255
      %5288 = vst [vmem:[#allocation3 + $0x8a0] sm:$0xff] %v5256
      %5289 = vst [vmem:[#allocation3 + $0x8e8] sm:$0xff] %v5257
      %v5290 = vld [vmem:[%s1216 + $0x1] sm:$0xff]
      %v5291 = vld [vmem:[%s1216 + $0x9] sm:$0xff]
      %v5292 = vld [vmem:[%s1216 + $0x19] sm:$0xff]
      %v5293 = vld [vmem:[%s1216 + $0x21] sm:$0xff]
      %v5294 = vld [vmem:[%s1216 + $0x31] sm:$0xff]
      %v5295 = vld [vmem:[%s1216 + $0x39] sm:$0xff]
      %v5296 = vld [vmem:[%s1216 + $0x49] sm:$0xff]
      %v5297 = vld [vmem:[%s1216 + $0x51] sm:$0xff]
      %v5298 = vld [vmem:[%s1216 + $0x61] sm:$0xff]
      %v5299 = vld [vmem:[%s1216 + $0x69] sm:$0xff]
      %v5300 = vld [vmem:[%s1216 + $0x79] sm:$0xff]
      %v5301 = vld [vmem:[%s1216 + $0x81] sm:$0xff]
      %v5302 = vld [vmem:[%s1216 + $0x91] sm:$0xff]
      %v5303 = vld [vmem:[%s1216 + $0x99] sm:$0xff]
      %v5304 = vld [vmem:[%s1216 + $0xa9] sm:$0xff]
      %v5305 = vld [vmem:[%s1216 + $0xb1] sm:$0xff]
      %v5306 = vld [vmem:[%s1216 + $0xc1] sm:$0xff]
      %v5307 = vld [vmem:[%s1216 + $0xc9] sm:$0xff]
      %v5308 = vld [vmem:[%s1216 + $0xd9] sm:$0xff]
      %v5309 = vld [vmem:[%s1216 + $0xe1] sm:$0xff]
      %v5310 = vld [vmem:[%s1216 + $0xf1] sm:$0xff]
      %v5311 = vld [vmem:[%s1216 + $0xf9] sm:$0xff]
      %v5312 = vld [vmem:[%s1216 + $0x109] sm:$0xff]
      %v5313 = vld [vmem:[%s1216 + $0x111] sm:$0xff]
      %v5314 = vld [vmem:[%s1216 + $0x121] sm:$0xff]
      %v5315 = vld [vmem:[%s1216 + $0x129] sm:$0xff]
      %v5316 = vld [vmem:[%s1216 + $0x139] sm:$0xff]
      %v5317 = vld [vmem:[%s1216 + $0x141] sm:$0xff]
      %v5318 = vld [vmem:[%s1216 + $0x151] sm:$0xff]
      %v5319 = vld [vmem:[%s1216 + $0x159] sm:$0xff]
      %v5320 = vld [vmem:[%s1216 + $0x169] sm:$0xff]
      %v5321 = vld [vmem:[%s1216 + $0x171] sm:$0xff]
      %v5322 = vld [vmem:[%s1216 + $0x1b1] sm:$0xff]
      %v5323 = vld [vmem:[%s1216 + $0x1b9] sm:$0xff]
      %v5324 = vld [vmem:[%s1216 + $0x1c9] sm:$0xff]
      %v5325 = vld [vmem:[%s1216 + $0x1d1] sm:$0xff]
      %v5326 = vld [vmem:[%s1216 + $0x1e1] sm:$0xff]
      %v5327 = vld [vmem:[%s1216 + $0x1e9] sm:$0xff]
      %v5328 = vld [vmem:[%s1216 + $0x1f9] sm:$0xff]
      %v5329 = vld [vmem:[%s1216 + $0x201] sm:$0xff]
      %v5330 = vld [vmem:[%s1216 + $0x211] sm:$0xff]
      %v5331 = vld [vmem:[%s1216 + $0x219] sm:$0xff]
      %v5332 = vld [vmem:[%s1216 + $0x229] sm:$0xff]
      %v5333 = vld [vmem:[%s1216 + $0x231] sm:$0xff]
      %v5334 = vld [vmem:[%s1216 + $0x241] sm:$0xff]
      %v5335 = vld [vmem:[%s1216 + $0x249] sm:$0xff]
      %v5336 = vld [vmem:[%s1216 + $0x259] sm:$0xff]
      %v5337 = vld [vmem:[%s1216 + $0x261] sm:$0xff]
      %v5338 = vld [vmem:[%s1216 + $0x271] sm:$0xff]
      %v5339 = vld [vmem:[%s1216 + $0x279] sm:$0xff]
      %v5340 = vld [vmem:[%s1216 + $0x289] sm:$0xff]
      %v5341 = vld [vmem:[%s1216 + $0x291] sm:$0xff]
      %v5342 = vld [vmem:[%s1216 + $0x2a1] sm:$0xff]
      %v5343 = vld [vmem:[%s1216 + $0x2a9] sm:$0xff]
      %v5344 = vld [vmem:[%s1216 + $0x2b9] sm:$0xff]
      %v5345 = vld [vmem:[%s1216 + $0x2c1] sm:$0xff]
      %v5346 = vld [vmem:[%s1216 + $0x2d1] sm:$0xff]
      %v5347 = vld [vmem:[%s1216 + $0x2d9] sm:$0xff]
      %v5348 = vld [vmem:[%s1216 + $0x2e9] sm:$0xff]
      %v5349 = vld [vmem:[%s1216 + $0x2f1] sm:$0xff]
      %v5350 = vld [vmem:[%s1216 + $0x301] sm:$0xff]
      %v5351 = vld [vmem:[%s1216 + $0x309] sm:$0xff]
      %v5352 = vld [vmem:[%s1216 + $0x319] sm:$0xff]
      %v5353 = vld [vmem:[%s1216 + $0x321] sm:$0xff]
      %v5354 = vpack.c.bf16 %v5291, %v5290
      %v5355 = vpack.c.bf16 %v5293, %v5292
      %v5356 = vpack.c.bf16 %v5295, %v5294
      %v5357 = vpack.c.bf16 %v5297, %v5296
      %v5358 = vpack.c.bf16 %v5299, %v5298
      %v5359 = vpack.c.bf16 %v5301, %v5300
      %v5360 = vpack.c.bf16 %v5303, %v5302
      %v5361 = vpack.c.bf16 %v5305, %v5304
      %v5362 = vpack.c.bf16 %v5307, %v5306
      %v5363 = vpack.c.bf16 %v5309, %v5308
      %v5364 = vpack.c.bf16 %v5311, %v5310
      %v5365 = vpack.c.bf16 %v5313, %v5312
      %v5366 = vpack.c.bf16 %v5315, %v5314
      %v5367 = vpack.c.bf16 %v5317, %v5316
      %v5368 = vpack.c.bf16 %v5319, %v5318
      %v5369 = vpack.c.bf16 %v5321, %v5320
      %v5370 = vpack.c.bf16 %v5323, %v5322
      %v5371 = vpack.c.bf16 %v5325, %v5324
      %v5372 = vpack.c.bf16 %v5327, %v5326
      %v5373 = vpack.c.bf16 %v5329, %v5328
      %v5374 = vpack.c.bf16 %v5331, %v5330
      %v5375 = vpack.c.bf16 %v5333, %v5332
      %v5376 = vpack.c.bf16 %v5335, %v5334
      %v5377 = vpack.c.bf16 %v5337, %v5336
      %v5378 = vpack.c.bf16 %v5339, %v5338
      %v5379 = vpack.c.bf16 %v5341, %v5340
      %v5380 = vpack.c.bf16 %v5343, %v5342
      %v5381 = vpack.c.bf16 %v5345, %v5344
      %v5382 = vpack.c.bf16 %v5347, %v5346
      %v5383 = vpack.c.bf16 %v5349, %v5348
      %v5384 = vpack.c.bf16 %v5351, %v5350
      %v5385 = vpack.c.bf16 %v5353, %v5352
      %5386 = vst [vmem:[#allocation3 + $0x38] sm:$0xff] %v5354
      %5387 = vst [vmem:[#allocation3 + $0x80] sm:$0xff] %v5355
      %5388 = vst [vmem:[#allocation3 + $0xc8] sm:$0xff] %v5356
      %5389 = vst [vmem:[#allocation3 + $0x110] sm:$0xff] %v5357
      %5390 = vst [vmem:[#allocation3 + $0x158] sm:$0xff] %v5358
      %5391 = vst [vmem:[#allocation3 + $0x1a0] sm:$0xff] %v5359
      %5392 = vst [vmem:[#allocation3 + $0x1e8] sm:$0xff] %v5360
      %5393 = vst [vmem:[#allocation3 + $0x230] sm:$0xff] %v5361
      %5394 = vst [vmem:[#allocation3 + $0x278] sm:$0xff] %v5362
      %5395 = vst [vmem:[#allocation3 + $0x2c0] sm:$0xff] %v5363
      %5396 = vst [vmem:[#allocation3 + $0x308] sm:$0xff] %v5364
      %5397 = vst [vmem:[#allocation3 + $0x350] sm:$0xff] %v5365
      %5398 = vst [vmem:[#allocation3 + $0x398] sm:$0xff] %v5366
      %5399 = vst [vmem:[#allocation3 + $0x3e0] sm:$0xff] %v5367
      %5400 = vst [vmem:[#allocation3 + $0x428] sm:$0xff] %v5368
      %5401 = vst [vmem:[#allocation3 + $0x470] sm:$0xff] %v5369
      %5402 = vst [vmem:[#allocation3 + $0x4b8] sm:$0xff] %v5370
      %5403 = vst [vmem:[#allocation3 + $0x500] sm:$0xff] %v5371
      %5404 = vst [vmem:[#allocation3 + $0x548] sm:$0xff] %v5372
      %5405 = vst [vmem:[#allocation3 + $0x590] sm:$0xff] %v5373
      %5406 = vst [vmem:[#allocation3 + $0x5d8] sm:$0xff] %v5374
      %5407 = vst [vmem:[#allocation3 + $0x620] sm:$0xff] %v5375
      %5408 = vst [vmem:[#allocation3 + $0x668] sm:$0xff] %v5376
      %5409 = vst [vmem:[#allocation3 + $0x6b0] sm:$0xff] %v5377
      %5410 = vst [vmem:[#allocation3 + $0x6f8] sm:$0xff] %v5378
      %5411 = vst [vmem:[#allocation3 + $0x740] sm:$0xff] %v5379
      %5412 = vst [vmem:[#allocation3 + $0x788] sm:$0xff] %v5380
      %5413 = vst [vmem:[#allocation3 + $0x7d0] sm:$0xff] %v5381
      %5414 = vst [vmem:[#allocation3 + $0x818] sm:$0xff] %v5382
      %5415 = vst [vmem:[#allocation3 + $0x860] sm:$0xff] %v5383
      %5416 = vst [vmem:[#allocation3 + $0x8a8] sm:$0xff] %v5384
      %5417 = vst [vmem:[#allocation3 + $0x8f0] sm:$0xff] %v5385
      %v5418 = vld [vmem:[%s1216 + $0x2] sm:$0xff]
      %v5419 = vld [vmem:[%s1216 + $0xa] sm:$0xff]
      %v5420 = vld [vmem:[%s1216 + $0x1a] sm:$0xff]
      %v5421 = vld [vmem:[%s1216 + $0x22] sm:$0xff]
      %v5422 = vld [vmem:[%s1216 + $0x32] sm:$0xff]
      %v5423 = vld [vmem:[%s1216 + $0x3a] sm:$0xff]
      %v5424 = vld [vmem:[%s1216 + $0x4a] sm:$0xff]
      %v5425 = vld [vmem:[%s1216 + $0x52] sm:$0xff]
      %v5426 = vld [vmem:[%s1216 + $0x62] sm:$0xff]
      %v5427 = vld [vmem:[%s1216 + $0x6a] sm:$0xff]
      %v5428 = vld [vmem:[%s1216 + $0x7a] sm:$0xff]
      %v5429 = vld [vmem:[%s1216 + $0x82] sm:$0xff]
      %v5430 = vld [vmem:[%s1216 + $0x92] sm:$0xff]
      %v5431 = vld [vmem:[%s1216 + $0x9a] sm:$0xff]
      %v5432 = vld [vmem:[%s1216 + $0xaa] sm:$0xff]
      %v5433 = vld [vmem:[%s1216 + $0xb2] sm:$0xff]
      %v5434 = vld [vmem:[%s1216 + $0xc2] sm:$0xff]
      %v5435 = vld [vmem:[%s1216 + $0xca] sm:$0xff]
      %v5436 = vld [vmem:[%s1216 + $0xda] sm:$0xff]
      %v5437 = vld [vmem:[%s1216 + $0xe2] sm:$0xff]
      %v5438 = vld [vmem:[%s1216 + $0xf2] sm:$0xff]
      %v5439 = vld [vmem:[%s1216 + $0xfa] sm:$0xff]
      %v5440 = vld [vmem:[%s1216 + $0x10a] sm:$0xff]
      %v5441 = vld [vmem:[%s1216 + $0x112] sm:$0xff]
      %v5442 = vld [vmem:[%s1216 + $0x122] sm:$0xff]
      %v5443 = vld [vmem:[%s1216 + $0x12a] sm:$0xff]
      %v5444 = vld [vmem:[%s1216 + $0x13a] sm:$0xff]
      %v5445 = vld [vmem:[%s1216 + $0x142] sm:$0xff]
      %v5446 = vld [vmem:[%s1216 + $0x152] sm:$0xff]
      %v5447 = vld [vmem:[%s1216 + $0x15a] sm:$0xff]
      %v5448 = vld [vmem:[%s1216 + $0x16a] sm:$0xff]
      %v5449 = vld [vmem:[%s1216 + $0x172] sm:$0xff]
      %v5450 = vld [vmem:[%s1216 + $0x1b2] sm:$0xff]
      %v5451 = vld [vmem:[%s1216 + $0x1ba] sm:$0xff]
      %v5452 = vld [vmem:[%s1216 + $0x1ca] sm:$0xff]
      %v5453 = vld [vmem:[%s1216 + $0x1d2] sm:$0xff]
      %v5454 = vld [vmem:[%s1216 + $0x1e2] sm:$0xff]
      %v5455 = vld [vmem:[%s1216 + $0x1ea] sm:$0xff]
      %v5456 = vld [vmem:[%s1216 + $0x1fa] sm:$0xff]
      %v5457 = vld [vmem:[%s1216 + $0x202] sm:$0xff]
      %v5458 = vld [vmem:[%s1216 + $0x212] sm:$0xff]
      %v5459 = vld [vmem:[%s1216 + $0x21a] sm:$0xff]
      %v5460 = vld [vmem:[%s1216 + $0x22a] sm:$0xff]
      %v5461 = vld [vmem:[%s1216 + $0x232] sm:$0xff]
      %v5462 = vld [vmem:[%s1216 + $0x242] sm:$0xff]
      %v5463 = vld [vmem:[%s1216 + $0x24a] sm:$0xff]
      %v5464 = vld [vmem:[%s1216 + $0x25a] sm:$0xff]
      %v5465 = vld [vmem:[%s1216 + $0x262] sm:$0xff]
      %v5466 = vld [vmem:[%s1216 + $0x272] sm:$0xff]
      %v5467 = vld [vmem:[%s1216 + $0x27a] sm:$0xff]
      %v5468 = vld [vmem:[%s1216 + $0x28a] sm:$0xff]
      %v5469 = vld [vmem:[%s1216 + $0x292] sm:$0xff]
      %v5470 = vld [vmem:[%s1216 + $0x2a2] sm:$0xff]
      %v5471 = vld [vmem:[%s1216 + $0x2aa] sm:$0xff]
      %v5472 = vld [vmem:[%s1216 + $0x2ba] sm:$0xff]
      %v5473 = vld [vmem:[%s1216 + $0x2c2] sm:$0xff]
      %v5474 = vld [vmem:[%s1216 + $0x2d2] sm:$0xff]
      %v5475 = vld [vmem:[%s1216 + $0x2da] sm:$0xff]
      %v5476 = vld [vmem:[%s1216 + $0x2ea] sm:$0xff]
      %v5477 = vld [vmem:[%s1216 + $0x2f2] sm:$0xff]
      %v5478 = vld [vmem:[%s1216 + $0x302] sm:$0xff]
      %v5479 = vld [vmem:[%s1216 + $0x30a] sm:$0xff]
      %v5480 = vld [vmem:[%s1216 + $0x31a] sm:$0xff]
      %v5481 = vld [vmem:[%s1216 + $0x322] sm:$0xff]
      %v5482 = vpack.c.bf16 %v5419, %v5418
      %v5483 = vpack.c.bf16 %v5421, %v5420
      %v5484 = vpack.c.bf16 %v5423, %v5422
      %v5485 = vpack.c.bf16 %v5425, %v5424
      %v5486 = vpack.c.bf16 %v5427, %v5426
      %v5487 = vpack.c.bf16 %v5429, %v5428
      %v5488 = vpack.c.bf16 %v5431, %v5430
      %v5489 = vpack.c.bf16 %v5433, %v5432
      %v5490 = vpack.c.bf16 %v5435, %v5434
      %v5491 = vpack.c.bf16 %v5437, %v5436
      %v5492 = vpack.c.bf16 %v5439, %v5438
      %v5493 = vpack.c.bf16 %v5441, %v5440
      %v5494 = vpack.c.bf16 %v5443, %v5442
      %v5495 = vpack.c.bf16 %v5445, %v5444
      %v5496 = vpack.c.bf16 %v5447, %v5446
      %v5497 = vpack.c.bf16 %v5449, %v5448
      %v5498 = vpack.c.bf16 %v5451, %v5450
      %v5499 = vpack.c.bf16 %v5453, %v5452
      %v5500 = vpack.c.bf16 %v5455, %v5454
      %v5501 = vpack.c.bf16 %v5457, %v5456
      %v5502 = vpack.c.bf16 %v5459, %v5458
      %v5503 = vpack.c.bf16 %v5461, %v5460
      %v5504 = vpack.c.bf16 %v5463, %v5462
      %v5505 = vpack.c.bf16 %v5465, %v5464
      %v5506 = vpack.c.bf16 %v5467, %v5466
      %v5507 = vpack.c.bf16 %v5469, %v5468
      %v5508 = vpack.c.bf16 %v5471, %v5470
      %v5509 = vpack.c.bf16 %v5473, %v5472
      %v5510 = vpack.c.bf16 %v5475, %v5474
      %v5511 = vpack.c.bf16 %v5477, %v5476
      %v5512 = vpack.c.bf16 %v5479, %v5478
      %v5513 = vpack.c.bf16 %v5481, %v5480
      %5514 = vst [vmem:[#allocation3 + $0x40] sm:$0xff] %v5482
      %5515 = vst [vmem:[#allocation3 + $0x88] sm:$0xff] %v5483
      %5516 = vst [vmem:[#allocation3 + $0xd0] sm:$0xff] %v5484
      %5517 = vst [vmem:[#allocation3 + $0x118] sm:$0xff] %v5485
      %5518 = vst [vmem:[#allocation3 + $0x160] sm:$0xff] %v5486
      %5519 = vst [vmem:[#allocation3 + $0x1a8] sm:$0xff] %v5487
      %5520 = vst [vmem:[#allocation3 + $0x1f0] sm:$0xff] %v5488
      %5521 = vst [vmem:[#allocation3 + $0x238] sm:$0xff] %v5489
      %5522 = vst [vmem:[#allocation3 + $0x280] sm:$0xff] %v5490
      %5523 = vst [vmem:[#allocation3 + $0x2c8] sm:$0xff] %v5491
      %5524 = vst [vmem:[#allocation3 + $0x310] sm:$0xff] %v5492
      %5525 = vst [vmem:[#allocation3 + $0x358] sm:$0xff] %v5493
      %5526 = vst [vmem:[#allocation3 + $0x3a0] sm:$0xff] %v5494
      %5527 = vst [vmem:[#allocation3 + $0x3e8] sm:$0xff] %v5495
      %5528 = vst [vmem:[#allocation3 + $0x430] sm:$0xff] %v5496
      %5529 = vst [vmem:[#allocation3 + $0x478] sm:$0xff] %v5497
      %5530 = vst [vmem:[#allocation3 + $0x4c0] sm:$0xff] %v5498
      %5531 = vst [vmem:[#allocation3 + $0x508] sm:$0xff] %v5499
      %5532 = vst [vmem:[#allocation3 + $0x550] sm:$0xff] %v5500
      %5533 = vst [vmem:[#allocation3 + $0x598] sm:$0xff] %v5501
      %5534 = vst [vmem:[#allocation3 + $0x5e0] sm:$0xff] %v5502
      %5535 = vst [vmem:[#allocation3 + $0x628] sm:$0xff] %v5503
      %5536 = vst [vmem:[#allocation3 + $0x670] sm:$0xff] %v5504
      %5537 = vst [vmem:[#allocation3 + $0x6b8] sm:$0xff] %v5505
      %5538 = vst [vmem:[#allocation3 + $0x700] sm:$0xff] %v5506
      %5539 = vst [vmem:[#allocation3 + $0x748] sm:$0xff] %v5507
      %5540 = vst [vmem:[#allocation3 + $0x790] sm:$0xff] %v5508
      %5541 = vst [vmem:[#allocation3 + $0x7d8] sm:$0xff] %v5509
      %5542 = vst [vmem:[#allocation3 + $0x820] sm:$0xff] %v5510
      %5543 = vst [vmem:[#allocation3 + $0x868] sm:$0xff] %v5511
      %5544 = vst [vmem:[#allocation3 + $0x8b0] sm:$0xff] %v5512
      %5545 = vst [vmem:[#allocation3 + $0x8f8] sm:$0xff] %v5513
      %v5546 = vld [vmem:[#allocation3] sm:$0xff]
      %v5547 = vld [vmem:[#allocation3 + $0x8] sm:$0xff]
      %v5548 = vld [vmem:[#allocation3 + $0x10] sm:$0xff]
      %v5549 = vld [vmem:[#allocation3 + $0x18] sm:$0xff]
      %v5550 = vld [vmem:[#allocation3 + $0x20] sm:$0xff]
      %v5551 = vld [vmem:[#allocation3 + $0x28] sm:$0xff]
      %v5552 = vld [vmem:[#allocation3 + $0x30] sm:$0xff]
      %v5553 = vld [vmem:[#allocation3 + $0x38] sm:$0xff]
      %v5554 = vld [vmem:[#allocation3 + $0x40] sm:$0xff]
      %v5555 = vld [vmem:[#allocation3 + $0x48] sm:$0xff]
      %v5556 = vld [vmem:[#allocation3 + $0x50] sm:$0xff]
      %v5557 = vld [vmem:[#allocation3 + $0x58] sm:$0xff]
      %v5558 = vld [vmem:[#allocation3 + $0x60] sm:$0xff]
      %v5559 = vld [vmem:[#allocation3 + $0x68] sm:$0xff]
      %v5560 = vld [vmem:[#allocation3 + $0x70] sm:$0xff]
      %v5561 = vld [vmem:[#allocation3 + $0x78] sm:$0xff]
      %v5562 = vld [vmem:[#allocation3 + $0x80] sm:$0xff]
      %v5563 = vld [vmem:[#allocation3 + $0x88] sm:$0xff]
      %v5564 = vld [vmem:[#allocation3 + $0x90] sm:$0xff]
      %v5565 = vld [vmem:[#allocation3 + $0x98] sm:$0xff]
      %v5566 = vld [vmem:[#allocation3 + $0xa0] sm:$0xff]
      %v5567 = vld [vmem:[#allocation3 + $0xa8] sm:$0xff]
      %v5568 = vld [vmem:[#allocation3 + $0xb0] sm:$0xff]
      %v5569 = vld [vmem:[#allocation3 + $0xb8] sm:$0xff]
      %v5570 = vld [vmem:[#allocation3 + $0xc0] sm:$0xff]
      %v5571 = vld [vmem:[#allocation3 + $0xc8] sm:$0xff]
      %v5572 = vld [vmem:[#allocation3 + $0xd0] sm:$0xff]
      %v5573 = vld [vmem:[#allocation3 + $0xd8] sm:$0xff]
      %v5574 = vld [vmem:[#allocation3 + $0xe0] sm:$0xff]
      %v5575 = vld [vmem:[#allocation3 + $0xe8] sm:$0xff]
      %v5576 = vld [vmem:[#allocation3 + $0xf0] sm:$0xff]
      %v5577 = vld [vmem:[#allocation3 + $0xf8] sm:$0xff]
      %v5578 = vld [vmem:[#allocation3 + $0x100] sm:$0xff]
      %v5579 = vld [vmem:[#allocation3 + $0x108] sm:$0xff]
      %v5580 = vld [vmem:[#allocation3 + $0x110] sm:$0xff]
      %v5581 = vld [vmem:[#allocation3 + $0x118] sm:$0xff]
      %v5582 = vld [vmem:[#allocation3 + $0x120] sm:$0xff]
      %v5583 = vld [vmem:[#allocation3 + $0x128] sm:$0xff]
      %v5584 = vld [vmem:[#allocation3 + $0x130] sm:$0xff]
      %v5585 = vld [vmem:[#allocation3 + $0x138] sm:$0xff]
      %v5586 = vld [vmem:[#allocation3 + $0x140] sm:$0xff]
      %v5587 = vld [vmem:[#allocation3 + $0x148] sm:$0xff]
      %v5588 = vld [vmem:[#allocation3 + $0x150] sm:$0xff]
      %v5589 = vld [vmem:[#allocation3 + $0x158] sm:$0xff]
      %v5590 = vld [vmem:[#allocation3 + $0x160] sm:$0xff]
      %v5591 = vld [vmem:[#allocation3 + $0x168] sm:$0xff]
      %v5592 = vld [vmem:[#allocation3 + $0x170] sm:$0xff]
      %v5593 = vld [vmem:[#allocation3 + $0x178] sm:$0xff]
      %v5594 = vld [vmem:[#allocation3 + $0x180] sm:$0xff]
      %v5595 = vld [vmem:[#allocation3 + $0x188] sm:$0xff]
      %v5596 = vld [vmem:[#allocation3 + $0x190] sm:$0xff]
      %v5597 = vld [vmem:[#allocation3 + $0x198] sm:$0xff]
      %v5598 = vld [vmem:[#allocation3 + $0x1a0] sm:$0xff]
      %v5599 = vld [vmem:[#allocation3 + $0x1a8] sm:$0xff]
      %v5600 = vld [vmem:[#allocation3 + $0x1b0] sm:$0xff]
      %v5601 = vld [vmem:[#allocation3 + $0x1b8] sm:$0xff]
      %v5602 = vld [vmem:[#allocation3 + $0x1c0] sm:$0xff]
      %v5603 = vld [vmem:[#allocation3 + $0x1c8] sm:$0xff]
      %v5604 = vld [vmem:[#allocation3 + $0x1d0] sm:$0xff]
      %v5605 = vld [vmem:[#allocation3 + $0x1d8] sm:$0xff]
      %v5606 = vld [vmem:[#allocation3 + $0x1e0] sm:$0xff]
      %v5607 = vld [vmem:[#allocation3 + $0x1e8] sm:$0xff]
      %v5608 = vld [vmem:[#allocation3 + $0x1f0] sm:$0xff]
      %v5609 = vld [vmem:[#allocation3 + $0x1f8] sm:$0xff]
      %v5610 = vld [vmem:[#allocation3 + $0x200] sm:$0xff]
      %v5611 = vld [vmem:[#allocation3 + $0x208] sm:$0xff]
      %v5612 = vld [vmem:[#allocation3 + $0x210] sm:$0xff]
      %v5613 = vld [vmem:[#allocation3 + $0x218] sm:$0xff]
      %v5614 = vld [vmem:[#allocation3 + $0x220] sm:$0xff]
      %v5615 = vld [vmem:[#allocation3 + $0x228] sm:$0xff]
      %v5616 = vld [vmem:[#allocation3 + $0x230] sm:$0xff]
      %v5617 = vld [vmem:[#allocation3 + $0x238] sm:$0xff]
      %v5618 = vld [vmem:[#allocation3 + $0x240] sm:$0xff]
      %v5619 = vld [vmem:[#allocation3 + $0x248] sm:$0xff]
      %v5620 = vld [vmem:[#allocation3 + $0x250] sm:$0xff]
      %v5621 = vld [vmem:[#allocation3 + $0x258] sm:$0xff]
      %v5622 = vld [vmem:[#allocation3 + $0x260] sm:$0xff]
      %v5623 = vld [vmem:[#allocation3 + $0x268] sm:$0xff]
      %v5624 = vld [vmem:[#allocation3 + $0x270] sm:$0xff]
      %v5625 = vld [vmem:[#allocation3 + $0x278] sm:$0xff]
      %v5626 = vld [vmem:[#allocation3 + $0x280] sm:$0xff]
      %v5627 = vld [vmem:[#allocation3 + $0x288] sm:$0xff]
      %v5628 = vld [vmem:[#allocation3 + $0x290] sm:$0xff]
      %v5629 = vld [vmem:[#allocation3 + $0x298] sm:$0xff]
      %v5630 = vld [vmem:[#allocation3 + $0x2a0] sm:$0xff]
      %v5631 = vld [vmem:[#allocation3 + $0x2a8] sm:$0xff]
      %v5632 = vld [vmem:[#allocation3 + $0x2b0] sm:$0xff]
      %v5633 = vld [vmem:[#allocation3 + $0x2b8] sm:$0xff]
      %v5634 = vld [vmem:[#allocation3 + $0x2c0] sm:$0xff]
      %v5635 = vld [vmem:[#allocation3 + $0x2c8] sm:$0xff]
      %v5636 = vld [vmem:[#allocation3 + $0x2d0] sm:$0xff]
      %v5637 = vld [vmem:[#allocation3 + $0x2d8] sm:$0xff]
      %v5638 = vld [vmem:[#allocation3 + $0x2e0] sm:$0xff]
      %v5639 = vld [vmem:[#allocation3 + $0x2e8] sm:$0xff]
      %v5640 = vld [vmem:[#allocation3 + $0x2f0] sm:$0xff]
      %v5641 = vld [vmem:[#allocation3 + $0x2f8] sm:$0xff]
      %v5642 = vld [vmem:[#allocation3 + $0x300] sm:$0xff]
      %v5643 = vld [vmem:[#allocation3 + $0x308] sm:$0xff]
      %v5644 = vld [vmem:[#allocation3 + $0x310] sm:$0xff]
      %v5645 = vld [vmem:[#allocation3 + $0x318] sm:$0xff]
      %v5646 = vld [vmem:[#allocation3 + $0x320] sm:$0xff]
      %v5647 = vld [vmem:[#allocation3 + $0x328] sm:$0xff]
      %v5648 = vld [vmem:[#allocation3 + $0x330] sm:$0xff]
      %v5649 = vld [vmem:[#allocation3 + $0x338] sm:$0xff]
      %v5650 = vld [vmem:[#allocation3 + $0x340] sm:$0xff]
      %v5651 = vld [vmem:[#allocation3 + $0x348] sm:$0xff]
      %v5652 = vld [vmem:[#allocation3 + $0x350] sm:$0xff]
      %v5653 = vld [vmem:[#allocation3 + $0x358] sm:$0xff]
      %v5654 = vld [vmem:[#allocation3 + $0x360] sm:$0xff]
      %v5655 = vld [vmem:[#allocation3 + $0x368] sm:$0xff]
      %v5656 = vld [vmem:[#allocation3 + $0x370] sm:$0xff]
      %v5657 = vld [vmem:[#allocation3 + $0x378] sm:$0xff]
      %v5658 = vld [vmem:[#allocation3 + $0x380] sm:$0xff]
      %v5659 = vld [vmem:[#allocation3 + $0x388] sm:$0xff]
      %v5660 = vld [vmem:[#allocation3 + $0x390] sm:$0xff]
      %v5661 = vld [vmem:[#allocation3 + $0x398] sm:$0xff]
      %v5662 = vld [vmem:[#allocation3 + $0x3a0] sm:$0xff]
      %v5663 = vld [vmem:[#allocation3 + $0x3a8] sm:$0xff]
      %v5664 = vld [vmem:[#allocation3 + $0x3b0] sm:$0xff]
      %v5665 = vld [vmem:[#allocation3 + $0x3b8] sm:$0xff]
      %v5666 = vld [vmem:[#allocation3 + $0x3c0] sm:$0xff]
      %v5667 = vld [vmem:[#allocation3 + $0x3c8] sm:$0xff]
      %v5668 = vld [vmem:[#allocation3 + $0x3d0] sm:$0xff]
      %v5669 = vld [vmem:[#allocation3 + $0x3d8] sm:$0xff]
      %v5670 = vld [vmem:[#allocation3 + $0x3e0] sm:$0xff]
      %v5671 = vld [vmem:[#allocation3 + $0x3e8] sm:$0xff]
      %v5672 = vld [vmem:[#allocation3 + $0x3f0] sm:$0xff]
      %v5673 = vld [vmem:[#allocation3 + $0x3f8] sm:$0xff]
      %v5674 = vld [vmem:[#allocation3 + $0x400] sm:$0xff]
      %v5675 = vld [vmem:[#allocation3 + $0x408] sm:$0xff]
      %v5676 = vld [vmem:[#allocation3 + $0x410] sm:$0xff]
      %v5677 = vld [vmem:[#allocation3 + $0x418] sm:$0xff]
      %v5678 = vld [vmem:[#allocation3 + $0x420] sm:$0xff]
      %v5679 = vld [vmem:[#allocation3 + $0x428] sm:$0xff]
      %v5680 = vld [vmem:[#allocation3 + $0x430] sm:$0xff]
      %v5681 = vld [vmem:[#allocation3 + $0x438] sm:$0xff]
      %v5682 = vld [vmem:[#allocation3 + $0x440] sm:$0xff]
      %v5683 = vld [vmem:[#allocation3 + $0x448] sm:$0xff]
      %v5684 = vld [vmem:[#allocation3 + $0x450] sm:$0xff]
      %v5685 = vld [vmem:[#allocation3 + $0x458] sm:$0xff]
      %v5686 = vld [vmem:[#allocation3 + $0x460] sm:$0xff]
      %v5687 = vld [vmem:[#allocation3 + $0x468] sm:$0xff]
      %v5688 = vld [vmem:[#allocation3 + $0x470] sm:$0xff]
      %v5689 = vld [vmem:[#allocation3 + $0x478] sm:$0xff]
      %v5690 = vld [vmem:[#allocation3 + $0x480] sm:$0xff]
      %v5691 = vld [vmem:[#allocation3 + $0x488] sm:$0xff]
      %v5692 = vld [vmem:[#allocation3 + $0x490] sm:$0xff]
      %v5693 = vld [vmem:[#allocation3 + $0x498] sm:$0xff]
      %v5694 = vld [vmem:[#allocation3 + $0x4a0] sm:$0xff]
      %v5695 = vld [vmem:[#allocation3 + $0x4a8] sm:$0xff]
      %v5696 = vld [vmem:[#allocation3 + $0x4b0] sm:$0xff]
      %v5697 = vld [vmem:[#allocation3 + $0x4b8] sm:$0xff]
      %v5698 = vld [vmem:[#allocation3 + $0x4c0] sm:$0xff]
      %v5699 = vld [vmem:[#allocation3 + $0x4c8] sm:$0xff]
      %v5700 = vld [vmem:[#allocation3 + $0x4d0] sm:$0xff]
      %v5701 = vld [vmem:[#allocation3 + $0x4d8] sm:$0xff]
      %v5702 = vld [vmem:[#allocation3 + $0x4e0] sm:$0xff]
      %v5703 = vld [vmem:[#allocation3 + $0x4e8] sm:$0xff]
      %v5704 = vld [vmem:[#allocation3 + $0x4f0] sm:$0xff]
      %v5705 = vld [vmem:[#allocation3 + $0x4f8] sm:$0xff]
      %v5706 = vld [vmem:[#allocation3 + $0x500] sm:$0xff]
      %v5707 = vld [vmem:[#allocation3 + $0x508] sm:$0xff]
      %v5708 = vld [vmem:[#allocation3 + $0x510] sm:$0xff]
      %v5709 = vld [vmem:[#allocation3 + $0x518] sm:$0xff]
      %v5710 = vld [vmem:[#allocation3 + $0x520] sm:$0xff]
      %v5711 = vld [vmem:[#allocation3 + $0x528] sm:$0xff]
      %v5712 = vld [vmem:[#allocation3 + $0x530] sm:$0xff]
      %v5713 = vld [vmem:[#allocation3 + $0x538] sm:$0xff]
      %v5714 = vld [vmem:[#allocation3 + $0x540] sm:$0xff]
      %v5715 = vld [vmem:[#allocation3 + $0x548] sm:$0xff]
      %v5716 = vld [vmem:[#allocation3 + $0x550] sm:$0xff]
      %v5717 = vld [vmem:[#allocation3 + $0x558] sm:$0xff]
      %v5718 = vld [vmem:[#allocation3 + $0x560] sm:$0xff]
      %v5719 = vld [vmem:[#allocation3 + $0x568] sm:$0xff]
      %v5720 = vld [vmem:[#allocation3 + $0x570] sm:$0xff]
      %v5721 = vld [vmem:[#allocation3 + $0x578] sm:$0xff]
      %v5722 = vld [vmem:[#allocation3 + $0x580] sm:$0xff]
      %v5723 = vld [vmem:[#allocation3 + $0x588] sm:$0xff]
      %v5724 = vld [vmem:[#allocation3 + $0x590] sm:$0xff]
      %v5725 = vld [vmem:[#allocation3 + $0x598] sm:$0xff]
      %v5726 = vld [vmem:[#allocation3 + $0x5a0] sm:$0xff]
      %v5727 = vld [vmem:[#allocation3 + $0x5a8] sm:$0xff]
      %v5728 = vld [vmem:[#allocation3 + $0x5b0] sm:$0xff]
      %v5729 = vld [vmem:[#allocation3 + $0x5b8] sm:$0xff]
      %v5730 = vld [vmem:[#allocation3 + $0x5c0] sm:$0xff]
      %v5731 = vld [vmem:[#allocation3 + $0x5c8] sm:$0xff]
      %v5732 = vld [vmem:[#allocation3 + $0x5d0] sm:$0xff]
      %v5733 = vld [vmem:[#allocation3 + $0x5d8] sm:$0xff]
      %v5734 = vld [vmem:[#allocation3 + $0x5e0] sm:$0xff]
      %v5735 = vld [vmem:[#allocation3 + $0x5e8] sm:$0xff]
      %v5736 = vld [vmem:[#allocation3 + $0x5f0] sm:$0xff]
      %v5737 = vld [vmem:[#allocation3 + $0x5f8] sm:$0xff]
      %v5738 = vld [vmem:[#allocation3 + $0x600] sm:$0xff]
      %v5739 = vld [vmem:[#allocation3 + $0x608] sm:$0xff]
      %v5740 = vld [vmem:[#allocation3 + $0x610] sm:$0xff]
      %v5741 = vld [vmem:[#allocation3 + $0x618] sm:$0xff]
      %v5742 = vld [vmem:[#allocation3 + $0x620] sm:$0xff]
      %v5743 = vld [vmem:[#allocation3 + $0x628] sm:$0xff]
      %v5744 = vld [vmem:[#allocation3 + $0x630] sm:$0xff]
      %v5745 = vld [vmem:[#allocation3 + $0x638] sm:$0xff]
      %v5746 = vld [vmem:[#allocation3 + $0x640] sm:$0xff]
      %v5747 = vld [vmem:[#allocation3 + $0x648] sm:$0xff]
      %v5748 = vld [vmem:[#allocation3 + $0x650] sm:$0xff]
      %v5749 = vld [vmem:[#allocation3 + $0x658] sm:$0xff]
      %v5750 = vld [vmem:[#allocation3 + $0x660] sm:$0xff]
      %v5751 = vld [vmem:[#allocation3 + $0x668] sm:$0xff]
      %v5752 = vld [vmem:[#allocation3 + $0x670] sm:$0xff]
      %v5753 = vld [vmem:[#allocation3 + $0x678] sm:$0xff]
      %v5754 = vld [vmem:[#allocation3 + $0x680] sm:$0xff]
      %v5755 = vld [vmem:[#allocation3 + $0x688] sm:$0xff]
      %v5756 = vld [vmem:[#allocation3 + $0x690] sm:$0xff]
      %v5757 = vld [vmem:[#allocation3 + $0x698] sm:$0xff]
      %v5758 = vld [vmem:[#allocation3 + $0x6a0] sm:$0xff]
      %v5759 = vld [vmem:[#allocation3 + $0x6a8] sm:$0xff]
      %v5760 = vld [vmem:[#allocation3 + $0x6b0] sm:$0xff]
      %v5761 = vld [vmem:[#allocation3 + $0x6b8] sm:$0xff]
      %v5762 = vld [vmem:[#allocation3 + $0x6c0] sm:$0xff]
      %v5763 = vld [vmem:[#allocation3 + $0x6c8] sm:$0xff]
      %v5764 = vld [vmem:[#allocation3 + $0x6d0] sm:$0xff]
      %v5765 = vld [vmem:[#allocation3 + $0x6d8] sm:$0xff]
      %v5766 = vld [vmem:[#allocation3 + $0x6e0] sm:$0xff]
      %v5767 = vld [vmem:[#allocation3 + $0x6e8] sm:$0xff]
      %v5768 = vld [vmem:[#allocation3 + $0x6f0] sm:$0xff]
      %v5769 = vld [vmem:[#allocation3 + $0x6f8] sm:$0xff]
      %v5770 = vld [vmem:[#allocation3 + $0x700] sm:$0xff]
      %v5771 = vld [vmem:[#allocation3 + $0x708] sm:$0xff]
      %v5772 = vld [vmem:[#allocation3 + $0x710] sm:$0xff]
      %v5773 = vld [vmem:[#allocation3 + $0x718] sm:$0xff]
      %v5774 = vld [vmem:[#allocation3 + $0x720] sm:$0xff]
      %v5775 = vld [vmem:[#allocation3 + $0x728] sm:$0xff]
      %v5776 = vld [vmem:[#allocation3 + $0x730] sm:$0xff]
      %v5777 = vld [vmem:[#allocation3 + $0x738] sm:$0xff]
      %v5778 = vld [vmem:[#allocation3 + $0x740] sm:$0xff]
      %v5779 = vld [vmem:[#allocation3 + $0x748] sm:$0xff]
      %v5780 = vld [vmem:[#allocation3 + $0x750] sm:$0xff]
      %v5781 = vld [vmem:[#allocation3 + $0x758] sm:$0xff]
      %v5782 = vld [vmem:[#allocation3 + $0x760] sm:$0xff]
      %v5783 = vld [vmem:[#allocation3 + $0x768] sm:$0xff]
      %v5784 = vld [vmem:[#allocation3 + $0x770] sm:$0xff]
      %v5785 = vld [vmem:[#allocation3 + $0x778] sm:$0xff]
      %v5786 = vld [vmem:[#allocation3 + $0x780] sm:$0xff]
      %v5787 = vld [vmem:[#allocation3 + $0x788] sm:$0xff]
      %v5788 = vld [vmem:[#allocation3 + $0x790] sm:$0xff]
      %v5789 = vld [vmem:[#allocation3 + $0x798] sm:$0xff]
      %v5790 = vld [vmem:[#allocation3 + $0x7a0] sm:$0xff]
      %v5791 = vld [vmem:[#allocation3 + $0x7a8] sm:$0xff]
      %v5792 = vld [vmem:[#allocation3 + $0x7b0] sm:$0xff]
      %v5793 = vld [vmem:[#allocation3 + $0x7b8] sm:$0xff]
      %v5794 = vld [vmem:[#allocation3 + $0x7c0] sm:$0xff]
      %v5795 = vld [vmem:[#allocation3 + $0x7c8] sm:$0xff]
      %v5796 = vld [vmem:[#allocation3 + $0x7d0] sm:$0xff]
      %v5797 = vld [vmem:[#allocation3 + $0x7d8] sm:$0xff]
      %v5798 = vld [vmem:[#allocation3 + $0x7e0] sm:$0xff]
      %v5799 = vld [vmem:[#allocation3 + $0x7e8] sm:$0xff]
      %v5800 = vld [vmem:[#allocation3 + $0x7f0] sm:$0xff]
      %v5801 = vld [vmem:[#allocation3 + $0x7f8] sm:$0xff]
      %v5802 = vld [vmem:[#allocation3 + $0x800] sm:$0xff]
      %v5803 = vld [vmem:[#allocation3 + $0x808] sm:$0xff]
      %v5804 = vld [vmem:[#allocation3 + $0x810] sm:$0xff]
      %v5805 = vld [vmem:[#allocation3 + $0x818] sm:$0xff]
      %v5806 = vld [vmem:[#allocation3 + $0x820] sm:$0xff]
      %v5807 = vld [vmem:[#allocation3 + $0x828] sm:$0xff]
      %v5808 = vld [vmem:[#allocation3 + $0x830] sm:$0xff]
      %v5809 = vld [vmem:[#allocation3 + $0x838] sm:$0xff]
      %v5810 = vld [vmem:[#allocation3 + $0x840] sm:$0xff]
      %v5811 = vld [vmem:[#allocation3 + $0x848] sm:$0xff]
      %v5812 = vld [vmem:[#allocation3 + $0x850] sm:$0xff]
      %v5813 = vld [vmem:[#allocation3 + $0x858] sm:$0xff]
      %v5814 = vld [vmem:[#allocation3 + $0x860] sm:$0xff]
      %v5815 = vld [vmem:[#allocation3 + $0x868] sm:$0xff]
      %v5816 = vld [vmem:[#allocation3 + $0x870] sm:$0xff]
      %v5817 = vld [vmem:[#allocation3 + $0x878] sm:$0xff]
      %v5818 = vld [vmem:[#allocation3 + $0x880] sm:$0xff]
      %v5819 = vld [vmem:[#allocation3 + $0x888] sm:$0xff]
      %v5820 = vld [vmem:[#allocation3 + $0x890] sm:$0xff]
      %v5821 = vld [vmem:[#allocation3 + $0x898] sm:$0xff]
      %v5822 = vld [vmem:[#allocation3 + $0x8a0] sm:$0xff]
      %v5823 = vld [vmem:[#allocation3 + $0x8a8] sm:$0xff]
      %v5824 = vld [vmem:[#allocation3 + $0x8b0] sm:$0xff]
      %v5825 = vld [vmem:[#allocation3 + $0x8b8] sm:$0xff]
      %v5826 = vld [vmem:[#allocation3 + $0x8c0] sm:$0xff]
      %v5827 = vld [vmem:[#allocation3 + $0x8c8] sm:$0xff]
      %v5828 = vld [vmem:[#allocation3 + $0x8d0] sm:$0xff]
      %v5829 = vld [vmem:[#allocation3 + $0x8d8] sm:$0xff]
      %v5830 = vld [vmem:[#allocation3 + $0x8e0] sm:$0xff]
      %v5831 = vld [vmem:[#allocation3 + $0x8e8] sm:$0xff]
      %v5832 = vld [vmem:[#allocation3 + $0x8f0] sm:$0xff]
      %v5833 = vld [vmem:[#allocation3 + $0x8f8] sm:$0xff]
      %v5834 = vld [vmem:[%s3] sm:$0xf]
      %v5835 = vld [vmem:[%s3 + $0x4] sm:$0xf]
      %v5836 = vld [vmem:[%s3 + $0x8] sm:$0xf]
      %v5837 = vld [vmem:[%s3 + $0xc] sm:$0xf]
      %v5838 = vld [vmem:[%s3 + $0x10] sm:$0xf]
      %v5839 = vld [vmem:[%s3 + $0x14] sm:$0xf]
      %v5840 = vld [vmem:[%s3 + $0x18] sm:$0xf]
      %v5841 = vld [vmem:[%s3 + $0x1c] sm:$0xf]
      %v5842 = vld [vmem:[%s3 + $0x20] sm:$0xf]
      %v5843 = vld [vmem:[%s3 + $0x24] sm:$0xf]
      %v5844 = vld [vmem:[%s3 + $0x28] sm:$0xf]
      %v5845 = vld [vmem:[%s3 + $0x2c] sm:$0xf]
      %v5846 = vld [vmem:[%s3 + $0x30] sm:$0xf]
      %v5847 = vld [vmem:[%s3 + $0x34] sm:$0xf]
      %v5848 = vld [vmem:[%s3 + $0x38] sm:$0xf]
      %v5849 = vld [vmem:[%s3 + $0x3c] sm:$0xf]
      %v5850 = vld [vmem:[%s3 + $0x40] sm:$0xf]
      %v5851 = vld [vmem:[%s3 + $0x44] sm:$0xf]
      %v5852 = vld [vmem:[%s3 + $0x48] sm:$0xf]
      %v5853 = vld [vmem:[%s3 + $0x4c] sm:$0xf]
      %v5854 = vld [vmem:[%s3 + $0x50] sm:$0xf]
      %v5855 = vld [vmem:[%s3 + $0x54] sm:$0xf]
      %v5856 = vld [vmem:[%s3 + $0x58] sm:$0xf]
      %v5857 = vld [vmem:[%s3 + $0x5c] sm:$0xf]
      %v5858 = vld [vmem:[%s3 + $0x60] sm:$0xf]
      %v5859 = vld [vmem:[%s3 + $0x64] sm:$0xf]
      %v5860 = vld [vmem:[%s3 + $0x68] sm:$0xf]
      %v5861 = vld [vmem:[%s3 + $0x6c] sm:$0xf]
      %v5862 = vld [vmem:[%s3 + $0x70] sm:$0xf]
      %v5863 = vld [vmem:[%s3 + $0x74] sm:$0xf]
      %v5864 = vld [vmem:[%s3 + $0x78] sm:$0xf]
      %v5865 = vld [vmem:[%s3 + $0x7c] sm:$0xf]
      %v5866 = vld [vmem:[%s3 + $0x80] sm:$0xf]
      %v5867 = vld [vmem:[%s3 + $0x84] sm:$0xf]
      %v5868 = vld [vmem:[%s3 + $0x88] sm:$0xf]
      %v5869 = vld [vmem:[%s3 + $0x8c] sm:$0xf]
      %v5870 = vld [vmem:[%s3 + $0x90] sm:$0xf]
      %v5871 = vld [vmem:[%s3 + $0x94] sm:$0xf]
      %v5872 = vld [vmem:[%s3 + $0x98] sm:$0xf]
      %v5873 = vld [vmem:[%s3 + $0x9c] sm:$0xf]
      %v5874 = vld [vmem:[%s3 + $0xa0] sm:$0xf]
      %v5875 = vld [vmem:[%s3 + $0xa4] sm:$0xf]
      %v5876 = vld [vmem:[%s3 + $0xa8] sm:$0xf]
      %v5877 = vld [vmem:[%s3 + $0xac] sm:$0xf]
      %v5878 = vld [vmem:[%s3 + $0xb0] sm:$0xf]
      %v5879 = vld [vmem:[%s3 + $0xb4] sm:$0xf]
      %v5880 = vld [vmem:[%s3 + $0xb8] sm:$0xf]
      %v5881 = vld [vmem:[%s3 + $0xbc] sm:$0xf]
      %v5882 = vld [vmem:[%s3 + $0xc0] sm:$0xf]
      %v5883 = vld [vmem:[%s3 + $0xc4] sm:$0xf]
      %v5884 = vld [vmem:[%s3 + $0xc8] sm:$0xf]
      %v5885 = vld [vmem:[%s3 + $0xcc] sm:$0xf]
      %v5886 = vld [vmem:[%s3 + $0xd0] sm:$0xf]
      %v5887 = vld [vmem:[%s3 + $0xd4] sm:$0xf]
      %v5888 = vld [vmem:[%s3 + $0xd8] sm:$0xf]
      %v5889 = vld [vmem:[%s3 + $0xdc] sm:$0xf]
      %v5890 = vld [vmem:[%s3 + $0xe0] sm:$0xf]
      %v5891 = vld [vmem:[%s3 + $0xe4] sm:$0xf]
      %v5892 = vld [vmem:[%s3 + $0xe8] sm:$0xf]
      %v5893 = vld [vmem:[%s3 + $0xec] sm:$0xf]
      %v5894 = vld [vmem:[%s3 + $0xf0] sm:$0xf]
      %v5895 = vld [vmem:[%s3 + $0xf4] sm:$0xf]
      %v5896 = vld [vmem:[%s3 + $0xf8] sm:$0xf]
      %v5897 = vld [vmem:[%s3 + $0xfc] sm:$0xf]
      %v5898 = vld [vmem:[%s3 + $0x100] sm:$0xf]
      %v5899 = vld [vmem:[%s3 + $0x104] sm:$0xf]
      %v5900 = vld [vmem:[%s3 + $0x108] sm:$0xf]
      %v5901 = vld [vmem:[%s3 + $0x10c] sm:$0xf]
      %v5902 = vld [vmem:[%s3 + $0x110] sm:$0xf]
      %v5903 = vld [vmem:[%s3 + $0x114] sm:$0xf]
      %v5904 = vld [vmem:[%s3 + $0x118] sm:$0xf]
      %v5905 = vld [vmem:[%s3 + $0x11c] sm:$0xf]
      %v5906 = vld [vmem:[%s3 + $0x120] sm:$0xf]
      %v5907 = vld [vmem:[%s3 + $0x124] sm:$0xf]
      %v5908 = vld [vmem:[%s3 + $0x128] sm:$0xf]
      %v5909 = vld [vmem:[%s3 + $0x12c] sm:$0xf]
      %v5910 = vld [vmem:[%s3 + $0x130] sm:$0xf]
      %v5911 = vld [vmem:[%s3 + $0x134] sm:$0xf]
      %v5912 = vld [vmem:[%s3 + $0x138] sm:$0xf]
      %v5913 = vld [vmem:[%s3 + $0x13c] sm:$0xf]
      %v5914 = vld [vmem:[%s3 + $0x140] sm:$0xf]
      %v5915 = vld [vmem:[%s3 + $0x144] sm:$0xf]
      %v5916 = vld [vmem:[%s3 + $0x148] sm:$0xf]
      %v5917 = vld [vmem:[%s3 + $0x14c] sm:$0xf]
      %v5918 = vld [vmem:[%s3 + $0x150] sm:$0xf]
      %v5919 = vld [vmem:[%s3 + $0x154] sm:$0xf]
      %v5920 = vld [vmem:[%s3 + $0x158] sm:$0xf]
      %v5921 = vld [vmem:[%s3 + $0x15c] sm:$0xf]
      %v5922 = vld [vmem:[%s3 + $0x160] sm:$0xf]
      %v5923 = vld [vmem:[%s3 + $0x164] sm:$0xf]
      %v5924 = vld [vmem:[%s3 + $0x168] sm:$0xf]
      %v5925 = vld [vmem:[%s3 + $0x16c] sm:$0xf]
      %v5926 = vld [vmem:[%s3 + $0x170] sm:$0xf]
      %v5927 = vld [vmem:[%s3 + $0x174] sm:$0xf]
      %v5928 = vld [vmem:[%s3 + $0x178] sm:$0xf]
      %v5929 = vld [vmem:[%s3 + $0x17c] sm:$0xf]
      %v5930 = vld [vmem:[%s3 + $0x180] sm:$0xf]
      %v5931 = vld [vmem:[%s3 + $0x184] sm:$0xf]
      %v5932 = vld [vmem:[%s3 + $0x188] sm:$0xf]
      %v5933 = vld [vmem:[%s3 + $0x18c] sm:$0xf]
      %v5934 = vld [vmem:[%s3 + $0x190] sm:$0xf]
      %v5935 = vld [vmem:[%s3 + $0x194] sm:$0xf]
      %v5936 = vld [vmem:[%s3 + $0x198] sm:$0xf]
      %v5937 = vld [vmem:[%s3 + $0x19c] sm:$0xf]
      %v5938 = vld [vmem:[%s3 + $0x1a0] sm:$0xf]
      %v5939 = vld [vmem:[%s3 + $0x1a4] sm:$0xf]
      %v5940 = vld [vmem:[%s3 + $0x1a8] sm:$0xf]
      %v5941 = vld [vmem:[%s3 + $0x1ac] sm:$0xf]
      %v5942 = vld [vmem:[%s3 + $0x1b0] sm:$0xf]
      %v5943 = vld [vmem:[%s3 + $0x1b4] sm:$0xf]
      %v5944 = vld [vmem:[%s3 + $0x1b8] sm:$0xf]
      %v5945 = vld [vmem:[%s3 + $0x1bc] sm:$0xf]
      %v5946 = vld [vmem:[%s3 + $0x1c0] sm:$0xf]
      %v5947 = vld [vmem:[%s3 + $0x1c4] sm:$0xf]
      %v5948 = vld [vmem:[%s3 + $0x1c8] sm:$0xf]
      %v5949 = vld [vmem:[%s3 + $0x1cc] sm:$0xf]
      %v5950 = vld [vmem:[%s3 + $0x1d0] sm:$0xf]
      %v5951 = vld [vmem:[%s3 + $0x1d4] sm:$0xf]
      %v5952 = vld [vmem:[%s3 + $0x1d8] sm:$0xf]
      %v5953 = vld [vmem:[%s3 + $0x1dc] sm:$0xf]
      %v5954 = vld [vmem:[%s3 + $0x1e0] sm:$0xf]
      %v5955 = vld [vmem:[%s3 + $0x1e4] sm:$0xf]
      %v5956 = vld [vmem:[%s3 + $0x1e8] sm:$0xf]
      %v5957 = vld [vmem:[%s3 + $0x1ec] sm:$0xf]
      %v5958 = vld [vmem:[%s3 + $0x1f0] sm:$0xf]
      %v5959 = vld [vmem:[%s3 + $0x1f4] sm:$0xf]
      %v5960 = vld [vmem:[%s3 + $0x1f8] sm:$0xf]
      %v5961 = vld [vmem:[%s3 + $0x1fc] sm:$0xf]
      %v5962 = vld [vmem:[%s3 + $0x200] sm:$0xf]
      %v5963 = vld [vmem:[%s3 + $0x204] sm:$0xf]
      %v5964 = vld [vmem:[%s3 + $0x208] sm:$0xf]
      %v5965 = vld [vmem:[%s3 + $0x20c] sm:$0xf]
      %v5966 = vld [vmem:[%s3 + $0x210] sm:$0xf]
      %v5967 = vld [vmem:[%s3 + $0x214] sm:$0xf]
      %v5968 = vld [vmem:[%s3 + $0x218] sm:$0xf]
      %v5969 = vld [vmem:[%s3 + $0x21c] sm:$0xf]
      %v5970 = vld [vmem:[%s3 + $0x220] sm:$0xf]
      %v5971 = vld [vmem:[%s3 + $0x224] sm:$0xf]
      %v5972 = vld [vmem:[%s3 + $0x228] sm:$0xf]
      %v5973 = vld [vmem:[%s3 + $0x22c] sm:$0xf]
      %v5974 = vld [vmem:[%s3 + $0x230] sm:$0xf]
      %v5975 = vld [vmem:[%s3 + $0x234] sm:$0xf]
      %v5976 = vld [vmem:[%s3 + $0x238] sm:$0xf]
      %v5977 = vld [vmem:[%s3 + $0x23c] sm:$0xf]
      %v5978 = vld [vmem:[%s4] sm:$0x1]
      %v5980 = vlaneseq
      %v5981 = vshrl.u32 %v5980, 7
      %v5982 = vsub.s32 0, %v5981
      %v5983 = vrot.slane %v5978, %v5982
      %v6129 = vunpack.c.l.b16 %v5834
      %v6130 = vunpack.c.l.b16 %v5835
      %v6131 = vunpack.c.l.b16 %v5836
      %v6132 = vunpack.c.l.b16 %v5837
      %v6133 = vunpack.c.l.b16 %v5838
      %v6134 = vunpack.c.l.b16 %v5839
      %v6135 = vunpack.c.l.b16 %v5840
      %v6136 = vunpack.c.l.b16 %v5841
      %v6137 = vunpack.c.l.b16 %v5842
      %v6138 = vunpack.c.l.b16 %v5843
      %v6139 = vunpack.c.l.b16 %v5844
      %v6140 = vunpack.c.l.b16 %v5845
      %v6141 = vunpack.c.l.b16 %v5846
      %v6142 = vunpack.c.l.b16 %v5847
      %v6143 = vunpack.c.l.b16 %v5848
      %v6144 = vunpack.c.l.b16 %v5849
      %v6145 = vunpack.c.l.b16 %v5850
      %v6146 = vunpack.c.l.b16 %v5851
      %v6147 = vunpack.c.l.b16 %v5852
      %v6148 = vunpack.c.l.b16 %v5853
      %v6149 = vunpack.c.l.b16 %v5854
      %v6150 = vunpack.c.l.b16 %v5855
      %v6151 = vunpack.c.l.b16 %v5856
      %v6152 = vunpack.c.l.b16 %v5857
      %v6153 = vunpack.c.l.b16 %v5858
      %v6154 = vunpack.c.l.b16 %v5859
      %v6155 = vunpack.c.l.b16 %v5860
      %v6156 = vunpack.c.l.b16 %v5861
      %v6157 = vunpack.c.l.b16 %v5862
      %v6158 = vunpack.c.l.b16 %v5863
      %v6159 = vunpack.c.l.b16 %v5864
      %v6160 = vunpack.c.l.b16 %v5865
      %v6161 = vunpack.c.l.b16 %v5866
      %v6162 = vunpack.c.l.b16 %v5867
      %v6163 = vunpack.c.l.b16 %v5868
      %v6164 = vunpack.c.l.b16 %v5869
      %v6165 = vunpack.c.l.b16 %v5870
      %v6166 = vunpack.c.l.b16 %v5871
      %v6167 = vunpack.c.l.b16 %v5872
      %v6168 = vunpack.c.l.b16 %v5873
      %v6169 = vunpack.c.l.b16 %v5874
      %v6170 = vunpack.c.l.b16 %v5875
      %v6171 = vunpack.c.l.b16 %v5876
      %v6172 = vunpack.c.l.b16 %v5877
      %v6173 = vunpack.c.l.b16 %v5878
      %v6174 = vunpack.c.l.b16 %v5879
      %v6175 = vunpack.c.l.b16 %v5880
      %v6176 = vunpack.c.l.b16 %v5881
      %v6177 = vunpack.c.l.b16 %v5882
      %v6178 = vunpack.c.l.b16 %v5883
      %v6179 = vunpack.c.l.b16 %v5884
      %v6180 = vunpack.c.l.b16 %v5885
      %v6181 = vunpack.c.l.b16 %v5886
      %v6182 = vunpack.c.l.b16 %v5887
      %v6183 = vunpack.c.l.b16 %v5888
      %v6184 = vunpack.c.l.b16 %v5889
      %v6185 = vunpack.c.l.b16 %v5890
      %v6186 = vunpack.c.l.b16 %v5891
      %v6187 = vunpack.c.l.b16 %v5892
      %v6188 = vunpack.c.l.b16 %v5893
      %v6189 = vunpack.c.l.b16 %v5894
      %v6190 = vunpack.c.l.b16 %v5895
      %v6191 = vunpack.c.l.b16 %v5896
      %v6192 = vunpack.c.l.b16 %v5897
      %v6193 = vunpack.c.l.b16 %v5898
      %v6194 = vunpack.c.l.b16 %v5899
      %v6195 = vunpack.c.l.b16 %v5900
      %v6196 = vunpack.c.l.b16 %v5901
      %v6197 = vunpack.c.l.b16 %v5902
      %v6198 = vunpack.c.l.b16 %v5903
      %v6199 = vunpack.c.l.b16 %v5904
      %v6200 = vunpack.c.l.b16 %v5905
      %v6201 = vunpack.c.l.b16 %v5906
      %v6202 = vunpack.c.l.b16 %v5907
      %v6203 = vunpack.c.l.b16 %v5908
      %v6204 = vunpack.c.l.b16 %v5909
      %v6205 = vunpack.c.l.b16 %v5910
      %v6206 = vunpack.c.l.b16 %v5911
      %v6207 = vunpack.c.l.b16 %v5912
      %v6208 = vunpack.c.l.b16 %v5913
      %v6209 = vunpack.c.l.b16 %v5914
      %v6210 = vunpack.c.l.b16 %v5915
      %v6211 = vunpack.c.l.b16 %v5916
      %v6212 = vunpack.c.l.b16 %v5917
      %v6213 = vunpack.c.l.b16 %v5918
      %v6214 = vunpack.c.l.b16 %v5919
      %v6215 = vunpack.c.l.b16 %v5920
      %v6216 = vunpack.c.l.b16 %v5921
      %v6217 = vunpack.c.l.b16 %v5922
      %v6218 = vunpack.c.l.b16 %v5923
      %v6219 = vunpack.c.l.b16 %v5924
      %v6220 = vunpack.c.l.b16 %v5925
      %v6221 = vunpack.c.l.b16 %v5926
      %v6222 = vunpack.c.l.b16 %v5927
      %v6223 = vunpack.c.l.b16 %v5928
      %v6224 = vunpack.c.l.b16 %v5929
      %v6225 = vunpack.c.l.b16 %v5930
      %v6226 = vunpack.c.l.b16 %v5931
      %v6227 = vunpack.c.l.b16 %v5932
      %v6228 = vunpack.c.l.b16 %v5933
      %v6229 = vunpack.c.l.b16 %v5934
      %v6230 = vunpack.c.l.b16 %v5935
      %v6231 = vunpack.c.l.b16 %v5936
      %v6232 = vunpack.c.l.b16 %v5937
      %v6233 = vunpack.c.l.b16 %v5938
      %v6234 = vunpack.c.l.b16 %v5939
      %v6235 = vunpack.c.l.b16 %v5940
      %v6236 = vunpack.c.l.b16 %v5941
      %v6237 = vunpack.c.l.b16 %v5942
      %v6238 = vunpack.c.l.b16 %v5943
      %v6239 = vunpack.c.l.b16 %v5944
      %v6240 = vunpack.c.l.b16 %v5945
      %v6241 = vunpack.c.l.b16 %v5946
      %v6242 = vunpack.c.l.b16 %v5947
      %v6243 = vunpack.c.l.b16 %v5948
      %v6244 = vunpack.c.l.b16 %v5949
      %v6245 = vunpack.c.l.b16 %v5950
      %v6246 = vunpack.c.l.b16 %v5951
      %v6247 = vunpack.c.l.b16 %v5952
      %v6248 = vunpack.c.l.b16 %v5953
      %v6249 = vunpack.c.l.b16 %v5954
      %v6250 = vunpack.c.l.b16 %v5955
      %v6251 = vunpack.c.l.b16 %v5956
      %v6252 = vunpack.c.l.b16 %v5957
      %v6253 = vunpack.c.l.b16 %v5958
      %v6254 = vunpack.c.l.b16 %v5959
      %v6255 = vunpack.c.l.b16 %v5960
      %v6256 = vunpack.c.l.b16 %v5961
      %v6257 = vunpack.c.l.b16 %v5962
      %v6258 = vunpack.c.l.b16 %v5963
      %v6259 = vunpack.c.l.b16 %v5964
      %v6260 = vunpack.c.l.b16 %v5965
      %v6261 = vunpack.c.l.b16 %v5966
      %v6262 = vunpack.c.l.b16 %v5967
      %v6263 = vunpack.c.l.b16 %v5968
      %v6264 = vunpack.c.l.b16 %v5969
      %v6265 = vunpack.c.l.b16 %v5970
      %v6266 = vunpack.c.l.b16 %v5971
      %v6267 = vunpack.c.l.b16 %v5972
      %v6268 = vunpack.c.l.b16 %v5973
      %v6269 = vunpack.c.l.b16 %v5974
      %v6270 = vunpack.c.l.b16 %v5975
      %v6271 = vunpack.c.l.b16 %v5976
      %v6272 = vunpack.c.l.b16 %v5977
      %v6273 = vpack.c.b16 %v6130, %v6129
      %v6274 = vpack.c.b16 %v6132, %v6131
      %v6275 = vpack.c.b16 %v6134, %v6133
      %v6276 = vpack.c.b16 %v6136, %v6135
      %v6277 = vpack.c.b16 %v6138, %v6137
      %v6278 = vpack.c.b16 %v6140, %v6139
      %v6279 = vpack.c.b16 %v6142, %v6141
      %v6280 = vpack.c.b16 %v6144, %v6143
      %v6281 = vpack.c.b16 %v6146, %v6145
      %v6282 = vpack.c.b16 %v6148, %v6147
      %v6283 = vpack.c.b16 %v6150, %v6149
      %v6284 = vpack.c.b16 %v6152, %v6151
      %v6285 = vpack.c.b16 %v6154, %v6153
      %v6286 = vpack.c.b16 %v6156, %v6155
      %v6287 = vpack.c.b16 %v6158, %v6157
      %v6288 = vpack.c.b16 %v6160, %v6159
      %v6289 = vpack.c.b16 %v6162, %v6161
      %v6290 = vpack.c.b16 %v6164, %v6163
      %v6291 = vpack.c.b16 %v6166, %v6165
      %v6292 = vpack.c.b16 %v6168, %v6167
      %v6293 = vpack.c.b16 %v6170, %v6169
      %v6294 = vpack.c.b16 %v6172, %v6171
      %v6295 = vpack.c.b16 %v6174, %v6173
      %v6296 = vpack.c.b16 %v6176, %v6175
      %v6297 = vpack.c.b16 %v6178, %v6177
      %v6298 = vpack.c.b16 %v6180, %v6179
      %v6299 = vpack.c.b16 %v6182, %v6181
      %v6300 = vpack.c.b16 %v6184, %v6183
      %v6301 = vpack.c.b16 %v6186, %v6185
      %v6302 = vpack.c.b16 %v6188, %v6187
      %v6303 = vpack.c.b16 %v6190, %v6189
      %v6304 = vpack.c.b16 %v6192, %v6191
      %v6305 = vpack.c.b16 %v6194, %v6193
      %v6306 = vpack.c.b16 %v6196, %v6195
      %v6307 = vpack.c.b16 %v6198, %v6197
      %v6308 = vpack.c.b16 %v6200, %v6199
      %v6309 = vpack.c.b16 %v6202, %v6201
      %v6310 = vpack.c.b16 %v6204, %v6203
      %v6311 = vpack.c.b16 %v6206, %v6205
      %v6312 = vpack.c.b16 %v6208, %v6207
      %v6313 = vpack.c.b16 %v6210, %v6209
      %v6314 = vpack.c.b16 %v6212, %v6211
      %v6315 = vpack.c.b16 %v6214, %v6213
      %v6316 = vpack.c.b16 %v6216, %v6215
      %v6317 = vpack.c.b16 %v6218, %v6217
      %v6318 = vpack.c.b16 %v6220, %v6219
      %v6319 = vpack.c.b16 %v6222, %v6221
      %v6320 = vpack.c.b16 %v6224, %v6223
      %v6321 = vpack.c.b16 %v6226, %v6225
      %v6322 = vpack.c.b16 %v6228, %v6227
      %v6323 = vpack.c.b16 %v6230, %v6229
      %v6324 = vpack.c.b16 %v6232, %v6231
      %v6325 = vpack.c.b16 %v6234, %v6233
      %v6326 = vpack.c.b16 %v6236, %v6235
      %v6327 = vpack.c.b16 %v6238, %v6237
      %v6328 = vpack.c.b16 %v6240, %v6239
      %v6329 = vpack.c.b16 %v6242, %v6241
      %v6330 = vpack.c.b16 %v6244, %v6243
      %v6331 = vpack.c.b16 %v6246, %v6245
      %v6332 = vpack.c.b16 %v6248, %v6247
      %v6333 = vpack.c.b16 %v6250, %v6249
      %v6334 = vpack.c.b16 %v6252, %v6251
      %v6335 = vpack.c.b16 %v6254, %v6253
      %v6336 = vpack.c.b16 %v6256, %v6255
      %v6337 = vpack.c.b16 %v6258, %v6257
      %v6338 = vpack.c.b16 %v6260, %v6259
      %v6339 = vpack.c.b16 %v6262, %v6261
      %v6340 = vpack.c.b16 %v6264, %v6263
      %v6341 = vpack.c.b16 %v6266, %v6265
      %v6342 = vpack.c.b16 %v6268, %v6267
      %v6343 = vpack.c.b16 %v6270, %v6269
      %v6344 = vpack.c.b16 %v6272, %v6271
      %6417 = vmatprep.subr.bf16.mxu0 0
      %6418 = vmatpush1.bf16.msra.mxu0 %v6273
      %6419 = vmatprep.subr.bf16.mxu0 0
      %6420 = vmatpush1.bf16.msra.mxu0 %v6274
      %6421 = vmatprep.subr.bf16.mxu0 0
      %6422 = vmatpush1.bf16.msra.mxu0 %v6275
      %6423 = vmatprep.subr.bf16.mxu0 0
      %6424 = vmatpush1.bf16.msra.mxu0 %v6276
      %6425 = vmatprep.subr.bf16.mxu0 0
      %6426 = vmatpush1.bf16.msra.mxu0 %v6277
      %6427 = vmatprep.subr.bf16.mxu0 0
      %6428 = vmatpush1.bf16.msra.mxu0 %v6278
      %6429 = vmatprep.subr.bf16.mxu0 0
      %6430 = vmatpush1.bf16.msra.mxu0 %v6279
      %6431 = vmatprep.subr.bf16.mxu0 0
      %6432 = vmatpush1.bf16.msra.mxu0 %v6280
      %6433 = vmatprep.subr.bf16.mxu0 0
      %6434 = vmatpush1.bf16.msra.mxu0 %v6281
      %6435 = vmatprep.subr.bf16.mxu0 0
      %6436 = vmatpush1.bf16.msra.mxu0 %v6282
      %6437 = vmatprep.subr.bf16.mxu0 0
      %6438 = vmatpush1.bf16.msra.mxu0 %v6283
      %6439 = vmatprep.subr.bf16.mxu0 0
      %6440 = vmatpush1.bf16.msra.mxu0 %v6284
      %6441 = vmatprep.subr.bf16.mxu0 0
      %6442 = vmatpush1.bf16.msra.mxu0 %v6285
      %6443 = vmatprep.subr.bf16.mxu0 0
      %6444 = vmatpush1.bf16.msra.mxu0 %v6286
      %6445 = vmatprep.subr.bf16.mxu0 0
      %6446 = vmatpush1.bf16.msra.mxu0 %v6287
      %6447 = vmatprep.subr.bf16.mxu0 0
      %6448 = vmatpush1.bf16.msra.mxu0 %v6288
      %6449 = vmatprep.mubr.bf16.mxu0 %v5547
      %6450 = vmatmul.mubr.bf16.gmra.mrb[0].mxu0 %v5546
      %v6451 = vpop.f32.mrb[0].mxu0
      %v6452 = vadd.f32 %v5983, %v6451
      %v6453 = vpop.f32.mrb[0].mxu0
      %v6454 = vpop.f32.mrb[0].mxu0
      %v6455 = vadd.f32 %v5983, %v6454
      %v6456 = vpop.f32.mrb[0].mxu0
      %6457 = vmatprep.mubr.bf16.mxu0 %v5556
      %6458 = vmatmul.mubr.bf16.gmra.mrb[0].mxu0 %v5555
      %v6459 = vpop.f32.mrb[0].mxu0
      %v6460 = vadd.f32 %v5983, %v6459
      %v6461 = vpop.f32.mrb[0].mxu0
      %v6462 = vpop.f32.mrb[0].mxu0
      %v6463 = vadd.f32 %v5983, %v6462
      %v6464 = vpop.f32.mrb[0].mxu0
      %6465 = vmatprep.mubr.bf16.mxu0 %v5565
      %6466 = vmatmul.mubr.bf16.gmra.mrb[0].mxu0 %v5564
      %v6467 = vpop.f32.mrb[0].mxu0
      %v6468 = vadd.f32 %v5983, %v6467
      %v6469 = vpop.f32.mrb[0].mxu0
      %v6470 = vpop.f32.mrb[0].mxu0
      %v6471 = vadd.f32 %v5983, %v6470
      %v6472 = vpop.f32.mrb[0].mxu0
      %6473 = vmatprep.mubr.bf16.mxu0 %v5574
      %6474 = vmatmul.mubr.bf16.gmra.mrb[0].mxu0 %v5573
      %v6475 = vpop.f32.mrb[0].mxu0
      %v6476 = vadd.f32 %v5983, %v6475
      %v6477 = vpop.f32.mrb[0].mxu0
      %v6478 = vpop.f32.mrb[0].mxu0
      %v6479 = vadd.f32 %v5983, %v6478
      %v6480 = vpop.f32.mrb[0].mxu0
      %6481 = vmatprep.mubr.bf16.mxu0 %v5583
      %6482 = vmatmul.mubr.bf16.gmra.mrb[0].mxu0 %v5582
      %v6483 = vpop.f32.mrb[0].mxu0
      %v6484 = vadd.f32 %v5983, %v6483
      %v6485 = vpop.f32.mrb[0].mxu0
      %v6486 = vpop.f32.mrb[0].mxu0
      %v6487 = vadd.f32 %v5983, %v6486
      %v6488 = vpop.f32.mrb[0].mxu0
      %6489 = vmatprep.mubr.bf16.mxu0 %v5592
      %6490 = vmatmul.mubr.bf16.gmra.mrb[0].mxu0 %v5591
      %v6491 = vpop.f32.mrb[0].mxu0
      %v6492 = vadd.f32 %v5983, %v6491
      %v6493 = vpop.f32.mrb[0].mxu0
      %v6494 = vpop.f32.mrb[0].mxu0
      %v6495 = vadd.f32 %v5983, %v6494
      %v6496 = vpop.f32.mrb[0].mxu0
      %6497 = vmatprep.mubr.bf16.mxu0 %v5601
      %6498 = vmatmul.mubr.bf16.gmra.mrb[0].mxu0 %v5600
      %v6499 = vpop.f32.mrb[0].mxu0
      %v6500 = vadd.f32 %v5983, %v6499
      %v6501 = vpop.f32.mrb[0].mxu0
      %v6502 = vpop.f32.mrb[0].mxu0
      %v6503 = vadd.f32 %v5983, %v6502
      %v6504 = vpop.f32.mrb[0].mxu0
      %6505 = vmatprep.mubr.bf16.mxu0 %v5610
      %6506 = vmatmul.mubr.bf16.gmra.mrb[0].mxu0 %v5609
      %v6507 = vpop.f32.mrb[0].mxu0
      %v6508 = vadd.f32 %v5983, %v6507
      %v6509 = vpop.f32.mrb[0].mxu0
      %v6510 = vpop.f32.mrb[0].mxu0
      %v6511 = vadd.f32 %v5983, %v6510
      %v6512 = vpop.f32.mrb[0].mxu0
      %6513 = vmatprep.mubr.bf16.mxu0 %v5619
      %6514 = vmatmul.mubr.bf16.gmra.mrb[0].mxu0 %v5618
      %v6515 = vpop.f32.mrb[0].mxu0
      %v6516 = vadd.f32 %v5983, %v6515
      %v6517 = vpop.f32.mrb[0].mxu0
      %v6518 = vpop.f32.mrb[0].mxu0
      %v6519 = vadd.f32 %v5983, %v6518
      %v6520 = vpop.f32.mrb[0].mxu0
      %6521 = vmatprep.mubr.bf16.mxu0 %v5628
      %6522 = vmatmul.mubr.bf16.gmra.mrb[0].mxu0 %v5627
      %v6523 = vpop.f32.mrb[0].mxu0
      %v6524 = vadd.f32 %v5983, %v6523
      %v6525 = vpop.f32.mrb[0].mxu0
      %v6526 = vpop.f32.mrb[0].mxu0
      %v6527 = vadd.f32 %v5983, %v6526
      %v6528 = vpop.f32.mrb[0].mxu0
      %6529 = vmatprep.mubr.bf16.mxu0 %v5637
      %6530 = vmatmul.mubr.bf16.gmra.mrb[0].mxu0 %v5636
      %v6531 = vpop.f32.mrb[0].mxu0
      %v6532 = vadd.f32 %v5983, %v6531
      %v6533 = vpop.f32.mrb[0].mxu0
      %v6534 = vpop.f32.mrb[0].mxu0
      %v6535 = vadd.f32 %v5983, %v6534
      %v6536 = vpop.f32.mrb[0].mxu0
      %6537 = vmatprep.mubr.bf16.mxu0 %v5646
      %6538 = vmatmul.mubr.bf16.gmra.mrb[0].mxu0 %v5645
      %v6539 = vpop.f32.mrb[0].mxu0
      %v6540 = vadd.f32 %v5983, %v6539
      %v6541 = vpop.f32.mrb[0].mxu0
      %v6542 = vpop.f32.mrb[0].mxu0
      %v6543 = vadd.f32 %v5983, %v6542
      %v6544 = vpop.f32.mrb[0].mxu0
      %6545 = vmatprep.mubr.bf16.mxu0 %v5655
      %6546 = vmatmul.mubr.bf16.gmra.mrb[0].mxu0 %v5654
      %v6547 = vpop.f32.mrb[0].mxu0
      %v6548 = vadd.f32 %v5983, %v6547
      %v6549 = vpop.f32.mrb[0].mxu0
      %v6550 = vpop.f32.mrb[0].mxu0
      %v6551 = vadd.f32 %v5983, %v6550
      %v6552 = vpop.f32.mrb[0].mxu0
      %6553 = vmatprep.mubr.bf16.mxu0 %v5664
      %6554 = vmatmul.mubr.bf16.gmra.mrb[0].mxu0 %v5663
      %v6555 = vpop.f32.mrb[0].mxu0
      %v6556 = vadd.f32 %v5983, %v6555
      %v6557 = vpop.f32.mrb[0].mxu0
      %v6558 = vpop.f32.mrb[0].mxu0
      %v6559 = vadd.f32 %v5983, %v6558
      %v6560 = vpop.f32.mrb[0].mxu0
      %6561 = vmatprep.mubr.bf16.mxu0 %v5673
      %6562 = vmatmul.mubr.bf16.gmra.mrb[0].mxu0 %v5672
      %v6563 = vpop.f32.mrb[0].mxu0
      %v6564 = vadd.f32 %v5983, %v6563
      %v6565 = vpop.f32.mrb[0].mxu0
      %v6566 = vpop.f32.mrb[0].mxu0
      %v6567 = vadd.f32 %v5983, %v6566
      %v6568 = vpop.f32.mrb[0].mxu0
      %6569 = vmatprep.mubr.bf16.mxu0 %v5682
      %6570 = vmatmul.mubr.bf16.gmra.mrb[0].mxu0 %v5681
      %v6571 = vpop.f32.mrb[0].mxu0
      %v6572 = vadd.f32 %v5983, %v6571
      %v6573 = vpop.f32.mrb[0].mxu0
      %v6574 = vpop.f32.mrb[0].mxu0
      %v6575 = vadd.f32 %v5983, %v6574
      %v6576 = vpop.f32.mrb[0].mxu0
      %6577 = vmatprep.mubr.bf16.mxu0 %v5691
      %6578 = vmatmul.mubr.bf16.gmra.mrb[0].mxu0 %v5690
      %v6579 = vpop.f32.mrb[0].mxu0
      %v6580 = vadd.f32 %v5983, %v6579
      %v6581 = vpop.f32.mrb[0].mxu0
      %v6582 = vpop.f32.mrb[0].mxu0
      %v6583 = vadd.f32 %v5983, %v6582
      %v6584 = vpop.f32.mrb[0].mxu0
      %6585 = vmatprep.mubr.bf16.mxu0 %v5700
      %6586 = vmatmul.mubr.bf16.gmra.mrb[0].mxu0 %v5699
      %v6587 = vpop.f32.mrb[0].mxu0
      %v6588 = vadd.f32 %v5983, %v6587
      %v6589 = vpop.f32.mrb[0].mxu0
      %v6590 = vpop.f32.mrb[0].mxu0
      %v6591 = vadd.f32 %v5983, %v6590
      %v6592 = vpop.f32.mrb[0].mxu0
      %6593 = vmatprep.mubr.bf16.mxu0 %v5709
      %6594 = vmatmul.mubr.bf16.gmra.mrb[0].mxu0 %v5708
      %v6595 = vpop.f32.mrb[0].mxu0
      %v6596 = vadd.f32 %v5983, %v6595
      %v6597 = vpop.f32.mrb[0].mxu0
      %v6598 = vpop.f32.mrb[0].mxu0
      %v6599 = vadd.f32 %v5983, %v6598
      %v6600 = vpop.f32.mrb[0].mxu0
      %6601 = vmatprep.mubr.bf16.mxu0 %v5718
      %6602 = vmatmul.mubr.bf16.gmra.mrb[0].mxu0 %v5717
      %v6603 = vpop.f32.mrb[0].mxu0
      %v6604 = vadd.f32 %v5983, %v6603
      %v6605 = vpop.f32.mrb[0].mxu0
      %v6606 = vpop.f32.mrb[0].mxu0
      %v6607 = vadd.f32 %v5983, %v6606
      %v6608 = vpop.f32.mrb[0].mxu0
      %6609 = vmatprep.mubr.bf16.mxu0 %v5727
      %6610 = vmatmul.mubr.bf16.gmra.mrb[0].mxu0 %v5726
      %v6611 = vpop.f32.mrb[0].mxu0
      %v6612 = vadd.f32 %v5983, %v6611
      %v6613 = vpop.f32.mrb[0].mxu0
      %v6614 = vpop.f32.mrb[0].mxu0
      %v6615 = vadd.f32 %v5983, %v6614
      %v6616 = vpop.f32.mrb[0].mxu0
      %6617 = vmatprep.mubr.bf16.mxu0 %v5736
      %6618 = vmatmul.mubr.bf16.gmra.mrb[0].mxu0 %v5735
      %v6619 = vpop.f32.mrb[0].mxu0
      %v6620 = vadd.f32 %v5983, %v6619
      %v6621 = vpop.f32.mrb[0].mxu0
      %v6622 = vpop.f32.mrb[0].mxu0
      %v6623 = vadd.f32 %v5983, %v6622
      %v6624 = vpop.f32.mrb[0].mxu0
      %6625 = vmatprep.mubr.bf16.mxu0 %v5745
      %6626 = vmatmul.mubr.bf16.gmra.mrb[0].mxu0 %v5744
      %v6627 = vpop.f32.mrb[0].mxu0
      %v6628 = vadd.f32 %v5983, %v6627
      %v6629 = vpop.f32.mrb[0].mxu0
      %v6630 = vpop.f32.mrb[0].mxu0
      %v6631 = vadd.f32 %v5983, %v6630
      %v6632 = vpop.f32.mrb[0].mxu0
      %6633 = vmatprep.mubr.bf16.mxu0 %v5754
      %6634 = vmatmul.mubr.bf16.gmra.mrb[0].mxu0 %v5753
      %v6635 = vpop.f32.mrb[0].mxu0
      %v6636 = vadd.f32 %v5983, %v6635
      %v6637 = vpop.f32.mrb[0].mxu0
      %v6638 = vpop.f32.mrb[0].mxu0
      %v6639 = vadd.f32 %v5983, %v6638
      %v6640 = vpop.f32.mrb[0].mxu0
      %6641 = vmatprep.mubr.bf16.mxu0 %v5763
      %6642 = vmatmul.mubr.bf16.gmra.mrb[0].mxu0 %v5762
      %v6643 = vpop.f32.mrb[0].mxu0
      %v6644 = vadd.f32 %v5983, %v6643
      %v6645 = vpop.f32.mrb[0].mxu0
      %v6646 = vpop.f32.mrb[0].mxu0
      %v6647 = vadd.f32 %v5983, %v6646
      %v6648 = vpop.f32.mrb[0].mxu0
      %6649 = vmatprep.mubr.bf16.mxu0 %v5772
      %6650 = vmatmul.mubr.bf16.gmra.mrb[0].mxu0 %v5771
      %v6651 = vpop.f32.mrb[0].mxu0
      %v6652 = vadd.f32 %v5983, %v6651
      %v6653 = vpop.f32.mrb[0].mxu0
      %v6654 = vpop.f32.mrb[0].mxu0
      %v6655 = vadd.f32 %v5983, %v6654
      %v6656 = vpop.f32.mrb[0].mxu0
      %6657 = vmatprep.mubr.bf16.mxu0 %v5781
      %6658 = vmatmul.mubr.bf16.gmra.mrb[0].mxu0 %v5780
      %v6659 = vpop.f32.mrb[0].mxu0
      %v6660 = vadd.f32 %v5983, %v6659
      %v6661 = vpop.f32.mrb[0].mxu0
      %v6662 = vpop.f32.mrb[0].mxu0
      %v6663 = vadd.f32 %v5983, %v6662
      %v6664 = vpop.f32.mrb[0].mxu0
      %6665 = vmatprep.mubr.bf16.mxu0 %v5790
      %6666 = vmatmul.mubr.bf16.gmra.mrb[0].mxu0 %v5789
      %v6667 = vpop.f32.mrb[0].mxu0
      %v6668 = vadd.f32 %v5983, %v6667
      %v6669 = vpop.f32.mrb[0].mxu0
      %v6670 = vpop.f32.mrb[0].mxu0
      %v6671 = vadd.f32 %v5983, %v6670
      %v6672 = vpop.f32.mrb[0].mxu0
      %6673 = vmatprep.mubr.bf16.mxu0 %v5799
      %6674 = vmatmul.mubr.bf16.gmra.mrb[0].mxu0 %v5798
      %v6675 = vpop.f32.mrb[0].mxu0
      %v6676 = vadd.f32 %v5983, %v6675
      %v6677 = vpop.f32.mrb[0].mxu0
      %v6678 = vpop.f32.mrb[0].mxu0
      %v6679 = vadd.f32 %v5983, %v6678
      %v6680 = vpop.f32.mrb[0].mxu0
      %6681 = vmatprep.mubr.bf16.mxu0 %v5808
      %6682 = vmatmul.mubr.bf16.gmra.mrb[0].mxu0 %v5807
      %v6683 = vpop.f32.mrb[0].mxu0
      %v6684 = vadd.f32 %v5983, %v6683
      %v6685 = vpop.f32.mrb[0].mxu0
      %v6686 = vpop.f32.mrb[0].mxu0
      %v6687 = vadd.f32 %v5983, %v6686
      %v6688 = vpop.f32.mrb[0].mxu0
      %6689 = vmatprep.mubr.bf16.mxu0 %v5817
      %6690 = vmatmul.mubr.bf16.gmra.mrb[0].mxu0 %v5816
      %v6691 = vpop.f32.mrb[0].mxu0
      %v6692 = vadd.f32 %v5983, %v6691
      %v6693 = vpop.f32.mrb[0].mxu0
      %v6694 = vpop.f32.mrb[0].mxu0
      %v6695 = vadd.f32 %v5983, %v6694
      %v6696 = vpop.f32.mrb[0].mxu0
      %6697 = vmatprep.mubr.bf16.mxu0 %v5826
      %6698 = vmatmul.mubr.bf16.gmra.mrb[0].mxu0 %v5825
      %v6699 = vpop.f32.mrb[0].mxu0
      %v6700 = vadd.f32 %v5983, %v6699
      %v6701 = vpop.f32.mrb[0].mxu0
      %v6702 = vpop.f32.mrb[0].mxu0
      %v6703 = vadd.f32 %v5983, %v6702
      %v6704 = vpop.f32.mrb[0].mxu0
      %6705 = vdwg.mxu0
      %6706 = vmatprep.subr.bf16.mxu0 0
      %6707 = vmatpush1.bf16.msra.mxu0 %v6289
      %6708 = vmatprep.subr.bf16.mxu0 0
      %6709 = vmatpush1.bf16.msra.mxu0 %v6290
      %6710 = vmatprep.subr.bf16.mxu0 0
      %6711 = vmatpush1.bf16.msra.mxu0 %v6291
      %6712 = vmatprep.subr.bf16.mxu0 0
      %6713 = vmatpush1.bf16.msra.mxu0 %v6292
      %6714 = vmatprep.subr.bf16.mxu0 0
      %6715 = vmatpush1.bf16.msra.mxu0 %v6293
      %6716 = vmatprep.subr.bf16.mxu0 0
      %6717 = vmatpush1.bf16.msra.mxu0 %v6294
      %6718 = vmatprep.subr.bf16.mxu0 0
      %6719 = vmatpush1.bf16.msra.mxu0 %v6295
      %6720 = vmatprep.subr.bf16.mxu0 0
      %6721 = vmatpush1.bf16.msra.mxu0 %v6296
      %6722 = vmatprep.subr.bf16.mxu0 0
      %6723 = vmatpush1.bf16.msra.mxu0 %v6297
      %6724 = vmatprep.subr.bf16.mxu0 0
      %6725 = vmatpush1.bf16.msra.mxu0 %v6298
      %6726 = vmatprep.subr.bf16.mxu0 0
      %6727 = vmatpush1.bf16.msra.mxu0 %v6299
      %6728 = vmatprep.subr.bf16.mxu0 0
      %6729 = vmatpush1.bf16.msra.mxu0 %v6300
      %6730 = vmatprep.subr.bf16.mxu0 0
      %6731 = vmatpush1.bf16.msra.mxu0 %v6301
      %6732 = vmatprep.subr.bf16.mxu0 0
      %6733 = vmatpush1.bf16.msra.mxu0 %v6302
      %6734 = vmatprep.subr.bf16.mxu0 0
      %6735 = vmatpush1.bf16.msra.mxu0 %v6303
      %6736 = vmatprep.subr.bf16.mxu0 0
      %6737 = vmatpush1.bf16.msra.mxu0 %v6304
      %6738 = vmatprep.mubr.bf16.mxu0 %v5549
      %6739 = vmatmul.mubr.bf16.gmra.mrb[0].mxu0 %v5548
      %v6740 = vpop.f32.mrb[0].mxu0
      %v6741 = vadd.f32 %v6452, %v6740
      %v6742 = vpop.f32.mrb[0].mxu0
      %v6743 = vpop.f32.mrb[0].mxu0
      %v6744 = vadd.f32 %v6455, %v6743
      %v6745 = vpop.f32.mrb[0].mxu0
      %6746 = vmatprep.mubr.bf16.mxu0 %v5558
      %6747 = vmatmul.mubr.bf16.gmra.mrb[0].mxu0 %v5557
      %v6748 = vpop.f32.mrb[0].mxu0
      %v6749 = vadd.f32 %v6460, %v6748
      %v6750 = vpop.f32.mrb[0].mxu0
      %v6751 = vpop.f32.mrb[0].mxu0
      %v6752 = vadd.f32 %v6463, %v6751
      %v6753 = vpop.f32.mrb[0].mxu0
      %6754 = vmatprep.mubr.bf16.mxu0 %v5567
      %6755 = vmatmul.mubr.bf16.gmra.mrb[0].mxu0 %v5566
      %v6756 = vpop.f32.mrb[0].mxu0
      %v6757 = vadd.f32 %v6468, %v6756
      %v6758 = vpop.f32.mrb[0].mxu0
      %v6759 = vpop.f32.mrb[0].mxu0
      %v6760 = vadd.f32 %v6471, %v6759
      %v6761 = vpop.f32.mrb[0].mxu0
      %6762 = vmatprep.mubr.bf16.mxu0 %v5576
      %6763 = vmatmul.mubr.bf16.gmra.mrb[0].mxu0 %v5575
      %v6764 = vpop.f32.mrb[0].mxu0
      %v6765 = vadd.f32 %v6476, %v6764
      %v6766 = vpop.f32.mrb[0].mxu0
      %v6767 = vpop.f32.mrb[0].mxu0
      %v6768 = vadd.f32 %v6479, %v6767
      %v6769 = vpop.f32.mrb[0].mxu0
      %6770 = vmatprep.mubr.bf16.mxu0 %v5585
      %6771 = vmatmul.mubr.bf16.gmra.mrb[0].mxu0 %v5584
      %v6772 = vpop.f32.mrb[0].mxu0
      %v6773 = vadd.f32 %v6484, %v6772
      %v6774 = vpop.f32.mrb[0].mxu0
      %v6775 = vpop.f32.mrb[0].mxu0
      %v6776 = vadd.f32 %v6487, %v6775
      %v6777 = vpop.f32.mrb[0].mxu0
      %6778 = vmatprep.mubr.bf16.mxu0 %v5594
      %6779 = vmatmul.mubr.bf16.gmra.mrb[0].mxu0 %v5593
      %v6780 = vpop.f32.mrb[0].mxu0
      %v6781 = vadd.f32 %v6492, %v6780
      %v6782 = vpop.f32.mrb[0].mxu0
      %v6783 = vpop.f32.mrb[0].mxu0
      %v6784 = vadd.f32 %v6495, %v6783
      %v6785 = vpop.f32.mrb[0].mxu0
      %6786 = vmatprep.mubr.bf16.mxu0 %v5603
      %6787 = vmatmul.mubr.bf16.gmra.mrb[0].mxu0 %v5602
      %v6788 = vpop.f32.mrb[0].mxu0
      %v6789 = vadd.f32 %v6500, %v6788
      %v6790 = vpop.f32.mrb[0].mxu0
      %v6791 = vpop.f32.mrb[0].mxu0
      %v6792 = vadd.f32 %v6503, %v6791
      %v6793 = vpop.f32.mrb[0].mxu0
      %6794 = vmatprep.mubr.bf16.mxu0 %v5612
      %6795 = vmatmul.mubr.bf16.gmra.mrb[0].mxu0 %v5611
      %v6796 = vpop.f32.mrb[0].mxu0
      %v6797 = vadd.f32 %v6508, %v6796
      %v6798 = vpop.f32.mrb[0].mxu0
      %v6799 = vpop.f32.mrb[0].mxu0
      %v6800 = vadd.f32 %v6511, %v6799
      %v6801 = vpop.f32.mrb[0].mxu0
      %6802 = vmatprep.mubr.bf16.mxu0 %v5621
      %6803 = vmatmul.mubr.bf16.gmra.mrb[0].mxu0 %v5620
      %v6804 = vpop.f32.mrb[0].mxu0
      %v6805 = vadd.f32 %v6516, %v6804
      %v6806 = vpop.f32.mrb[0].mxu0
      %v6807 = vpop.f32.mrb[0].mxu0
      %v6808 = vadd.f32 %v6519, %v6807
      %v6809 = vpop.f32.mrb[0].mxu0
      %6810 = vmatprep.mubr.bf16.mxu0 %v5630
      %6811 = vmatmul.mubr.bf16.gmra.mrb[0].mxu0 %v5629
      %v6812 = vpop.f32.mrb[0].mxu0
      %v6813 = vadd.f32 %v6524, %v6812
      %v6814 = vpop.f32.mrb[0].mxu0
      %v6815 = vpop.f32.mrb[0].mxu0
      %v6816 = vadd.f32 %v6527, %v6815
      %v6817 = vpop.f32.mrb[0].mxu0
      %6818 = vmatprep.mubr.bf16.mxu0 %v5639
      %6819 = vmatmul.mubr.bf16.gmra.mrb[0].mxu0 %v5638
      %v6820 = vpop.f32.mrb[0].mxu0
      %v6821 = vadd.f32 %v6532, %v6820
      %v6822 = vpop.f32.mrb[0].mxu0
      %v6823 = vpop.f32.mrb[0].mxu0
      %v6824 = vadd.f32 %v6535, %v6823
      %v6825 = vpop.f32.mrb[0].mxu0
      %6826 = vmatprep.mubr.bf16.mxu0 %v5648
      %6827 = vmatmul.mubr.bf16.gmra.mrb[0].mxu0 %v5647
      %v6828 = vpop.f32.mrb[0].mxu0
      %v6829 = vadd.f32 %v6540, %v6828
      %v6830 = vpop.f32.mrb[0].mxu0
      %v6831 = vpop.f32.mrb[0].mxu0
      %v6832 = vadd.f32 %v6543, %v6831
      %v6833 = vpop.f32.mrb[0].mxu0
      %6834 = vmatprep.mubr.bf16.mxu0 %v5657
      %6835 = vmatmul.mubr.bf16.gmra.mrb[0].mxu0 %v5656
      %v6836 = vpop.f32.mrb[0].mxu0
      %v6837 = vadd.f32 %v6548, %v6836
      %v6838 = vpop.f32.mrb[0].mxu0
      %v6839 = vpop.f32.mrb[0].mxu0
      %v6840 = vadd.f32 %v6551, %v6839
      %v6841 = vpop.f32.mrb[0].mxu0
      %6842 = vmatprep.mubr.bf16.mxu0 %v5666
      %6843 = vmatmul.mubr.bf16.gmra.mrb[0].mxu0 %v5665
      %v6844 = vpop.f32.mrb[0].mxu0
      %v6845 = vadd.f32 %v6556, %v6844
      %v6846 = vpop.f32.mrb[0].mxu0
      %v6847 = vpop.f32.mrb[0].mxu0
      %v6848 = vadd.f32 %v6559, %v6847
      %v6849 = vpop.f32.mrb[0].mxu0
      %6850 = vmatprep.mubr.bf16.mxu0 %v5675
      %6851 = vmatmul.mubr.bf16.gmra.mrb[0].mxu0 %v5674
      %v6852 = vpop.f32.mrb[0].mxu0
      %v6853 = vadd.f32 %v6564, %v6852
      %v6854 = vpop.f32.mrb[0].mxu0
      %v6855 = vpop.f32.mrb[0].mxu0
      %v6856 = vadd.f32 %v6567, %v6855
      %v6857 = vpop.f32.mrb[0].mxu0
      %6858 = vmatprep.mubr.bf16.mxu0 %v5684
      %6859 = vmatmul.mubr.bf16.gmra.mrb[0].mxu0 %v5683
      %v6860 = vpop.f32.mrb[0].mxu0
      %v6861 = vadd.f32 %v6572, %v6860
      %v6862 = vpop.f32.mrb[0].mxu0
      %v6863 = vpop.f32.mrb[0].mxu0
      %v6864 = vadd.f32 %v6575, %v6863
      %v6865 = vpop.f32.mrb[0].mxu0
      %6866 = vmatprep.mubr.bf16.mxu0 %v5693
      %6867 = vmatmul.mubr.bf16.gmra.mrb[0].mxu0 %v5692
      %v6868 = vpop.f32.mrb[0].mxu0
      %v6869 = vadd.f32 %v6580, %v6868
      %v6870 = vpop.f32.mrb[0].mxu0
      %v6871 = vpop.f32.mrb[0].mxu0
      %v6872 = vadd.f32 %v6583, %v6871
      %v6873 = vpop.f32.mrb[0].mxu0
      %6874 = vmatprep.mubr.bf16.mxu0 %v5702
      %6875 = vmatmul.mubr.bf16.gmra.mrb[0].mxu0 %v5701
      %v6876 = vpop.f32.mrb[0].mxu0
      %v6877 = vadd.f32 %v6588, %v6876
      %v6878 = vpop.f32.mrb[0].mxu0
      %v6879 = vpop.f32.mrb[0].mxu0
      %v6880 = vadd.f32 %v6591, %v6879
      %v6881 = vpop.f32.mrb[0].mxu0
      %6882 = vmatprep.mubr.bf16.mxu0 %v5711
      %6883 = vmatmul.mubr.bf16.gmra.mrb[0].mxu0 %v5710
      %v6884 = vpop.f32.mrb[0].mxu0
      %v6885 = vadd.f32 %v6596, %v6884
      %v6886 = vpop.f32.mrb[0].mxu0
      %v6887 = vpop.f32.mrb[0].mxu0
      %v6888 = vadd.f32 %v6599, %v6887
      %v6889 = vpop.f32.mrb[0].mxu0
      %6890 = vmatprep.mubr.bf16.mxu0 %v5720
      %6891 = vmatmul.mubr.bf16.gmra.mrb[0].mxu0 %v5719
      %v6892 = vpop.f32.mrb[0].mxu0
      %v6893 = vadd.f32 %v6604, %v6892
      %v6894 = vpop.f32.mrb[0].mxu0
      %v6895 = vpop.f32.mrb[0].mxu0
      %v6896 = vadd.f32 %v6607, %v6895
      %v6897 = vpop.f32.mrb[0].mxu0
      %6898 = vmatprep.mubr.bf16.mxu0 %v5729
      %6899 = vmatmul.mubr.bf16.gmra.mrb[0].mxu0 %v5728
      %v6900 = vpop.f32.mrb[0].mxu0
      %v6901 = vadd.f32 %v6612, %v6900
      %v6902 = vpop.f32.mrb[0].mxu0
      %v6903 = vpop.f32.mrb[0].mxu0
      %v6904 = vadd.f32 %v6615, %v6903
      %v6905 = vpop.f32.mrb[0].mxu0
      %6906 = vmatprep.mubr.bf16.mxu0 %v5738
      %6907 = vmatmul.mubr.bf16.gmra.mrb[0].mxu0 %v5737
      %v6908 = vpop.f32.mrb[0].mxu0
      %v6909 = vadd.f32 %v6620, %v6908
      %v6910 = vpop.f32.mrb[0].mxu0
      %v6911 = vpop.f32.mrb[0].mxu0
      %v6912 = vadd.f32 %v6623, %v6911
      %v6913 = vpop.f32.mrb[0].mxu0
      %6914 = vmatprep.mubr.bf16.mxu0 %v5747
      %6915 = vmatmul.mubr.bf16.gmra.mrb[0].mxu0 %v5746
      %v6916 = vpop.f32.mrb[0].mxu0
      %v6917 = vadd.f32 %v6628, %v6916
      %v6918 = vpop.f32.mrb[0].mxu0
      %v6919 = vpop.f32.mrb[0].mxu0
      %v6920 = vadd.f32 %v6631, %v6919
      %v6921 = vpop.f32.mrb[0].mxu0
      %6922 = vmatprep.mubr.bf16.mxu0 %v5756
      %6923 = vmatmul.mubr.bf16.gmra.mrb[0].mxu0 %v5755
      %v6924 = vpop.f32.mrb[0].mxu0
      %v6925 = vadd.f32 %v6636, %v6924
      %v6926 = vpop.f32.mrb[0].mxu0
      %v6927 = vpop.f32.mrb[0].mxu0
      %v6928 = vadd.f32 %v6639, %v6927
      %v6929 = vpop.f32.mrb[0].mxu0
      %6930 = vmatprep.mubr.bf16.mxu0 %v5765
      %6931 = vmatmul.mubr.bf16.gmra.mrb[0].mxu0 %v5764
      %v6932 = vpop.f32.mrb[0].mxu0
      %v6933 = vadd.f32 %v6644, %v6932
      %v6934 = vpop.f32.mrb[0].mxu0
      %v6935 = vpop.f32.mrb[0].mxu0
      %v6936 = vadd.f32 %v6647, %v6935
      %v6937 = vpop.f32.mrb[0].mxu0
      %6938 = vmatprep.mubr.bf16.mxu0 %v5774
      %6939 = vmatmul.mubr.bf16.gmra.mrb[0].mxu0 %v5773
      %v6940 = vpop.f32.mrb[0].mxu0
      %v6941 = vadd.f32 %v6652, %v6940
      %v6942 = vpop.f32.mrb[0].mxu0
      %v6943 = vpop.f32.mrb[0].mxu0
      %v6944 = vadd.f32 %v6655, %v6943
      %v6945 = vpop.f32.mrb[0].mxu0
      %6946 = vmatprep.mubr.bf16.mxu0 %v5783
      %6947 = vmatmul.mubr.bf16.gmra.mrb[0].mxu0 %v5782
      %v6948 = vpop.f32.mrb[0].mxu0
      %v6949 = vadd.f32 %v6660, %v6948
      %v6950 = vpop.f32.mrb[0].mxu0
      %v6951 = vpop.f32.mrb[0].mxu0
      %v6952 = vadd.f32 %v6663, %v6951
      %v6953 = vpop.f32.mrb[0].mxu0
      %6954 = vmatprep.mubr.bf16.mxu0 %v5792
      %6955 = vmatmul.mubr.bf16.gmra.mrb[0].mxu0 %v5791
      %v6956 = vpop.f32.mrb[0].mxu0
      %v6957 = vadd.f32 %v6668, %v6956
      %v6958 = vpop.f32.mrb[0].mxu0
      %v6959 = vpop.f32.mrb[0].mxu0
      %v6960 = vadd.f32 %v6671, %v6959
      %v6961 = vpop.f32.mrb[0].mxu0
      %6962 = vmatprep.mubr.bf16.mxu0 %v5801
      %6963 = vmatmul.mubr.bf16.gmra.mrb[0].mxu0 %v5800
      %v6964 = vpop.f32.mrb[0].mxu0
      %v6965 = vadd.f32 %v6676, %v6964
      %v6966 = vpop.f32.mrb[0].mxu0
      %v6967 = vpop.f32.mrb[0].mxu0
      %v6968 = vadd.f32 %v6679, %v6967
      %v6969 = vpop.f32.mrb[0].mxu0
      %6970 = vmatprep.mubr.bf16.mxu0 %v5810
      %6971 = vmatmul.mubr.bf16.gmra.mrb[0].mxu0 %v5809
      %v6972 = vpop.f32.mrb[0].mxu0
      %v6973 = vadd.f32 %v6684, %v6972
      %v6974 = vpop.f32.mrb[0].mxu0
      %v6975 = vpop.f32.mrb[0].mxu0
      %v6976 = vadd.f32 %v6687, %v6975
      %v6977 = vpop.f32.mrb[0].mxu0
      %6978 = vmatprep.mubr.bf16.mxu0 %v5819
      %6979 = vmatmul.mubr.bf16.gmra.mrb[0].mxu0 %v5818
      %v6980 = vpop.f32.mrb[0].mxu0
      %v6981 = vadd.f32 %v6692, %v6980
      %v6982 = vpop.f32.mrb[0].mxu0
      %v6983 = vpop.f32.mrb[0].mxu0
      %v6984 = vadd.f32 %v6695, %v6983
      %v6985 = vpop.f32.mrb[0].mxu0
      %6986 = vmatprep.mubr.bf16.mxu0 %v5828
      %6987 = vmatmul.mubr.bf16.gmra.mrb[0].mxu0 %v5827
      %v6988 = vpop.f32.mrb[0].mxu0
      %v6989 = vadd.f32 %v6700, %v6988
      %v6990 = vpop.f32.mrb[0].mxu0
      %v6991 = vpop.f32.mrb[0].mxu0
      %v6992 = vadd.f32 %v6703, %v6991
      %v6993 = vpop.f32.mrb[0].mxu0
      %6994 = vdwg.mxu0
      %6995 = vmatprep.subr.bf16.mxu0 0
      %6996 = vmatpush1.bf16.msra.mxu0 %v6305
      %6997 = vmatprep.subr.bf16.mxu0 0
      %6998 = vmatpush1.bf16.msra.mxu0 %v6306
      %6999 = vmatprep.subr.bf16.mxu0 0
      %7000 = vmatpush1.bf16.msra.mxu0 %v6307
      %7001 = vmatprep.subr.bf16.mxu0 0
      %7002 = vmatpush1.bf16.msra.mxu0 %v6308
      %7003 = vmatprep.subr.bf16.mxu0 0
      %7004 = vmatpush1.bf16.msra.mxu0 %v6309
      %7005 = vmatprep.subr.bf16.mxu0 0
      %7006 = vmatpush1.bf16.msra.mxu0 %v6310
      %7007 = vmatprep.subr.bf16.mxu0 0
      %7008 = vmatpush1.bf16.msra.mxu0 %v6311
      %7009 = vmatprep.subr.bf16.mxu0 0
      %7010 = vmatpush1.bf16.msra.mxu0 %v6312
      %7011 = vmatprep.subr.bf16.mxu0 0
      %7012 = vmatpush1.bf16.msra.mxu0 %v6313
      %7013 = vmatprep.subr.bf16.mxu0 0
      %7014 = vmatpush1.bf16.msra.mxu0 %v6314
      %7015 = vmatprep.subr.bf16.mxu0 0
      %7016 = vmatpush1.bf16.msra.mxu0 %v6315
      %7017 = vmatprep.subr.bf16.mxu0 0
      %7018 = vmatpush1.bf16.msra.mxu0 %v6316
      %7019 = vmatprep.subr.bf16.mxu0 0
      %7020 = vmatpush1.bf16.msra.mxu0 %v6317
      %7021 = vmatprep.subr.bf16.mxu0 0
      %7022 = vmatpush1.bf16.msra.mxu0 %v6318
      %7023 = vmatprep.subr.bf16.mxu0 0
      %7024 = vmatpush1.bf16.msra.mxu0 %v6319
      %7025 = vmatprep.subr.bf16.mxu0 0
      %7026 = vmatpush1.bf16.msra.mxu0 %v6320
      %7027 = vmatprep.mubr.bf16.mxu0 %v5551
      %7028 = vmatmul.mubr.bf16.gmra.mrb[0].mxu0 %v5550
      %v7029 = vpop.f32.mrb[0].mxu0
      %v7030 = vadd.f32 %v6741, %v7029
      %v7031 = vpop.f32.mrb[0].mxu0
      %v7032 = vpop.f32.mrb[0].mxu0
      %v7033 = vadd.f32 %v6744, %v7032
      %v7034 = vpop.f32.mrb[0].mxu0
      %7035 = vmatprep.mubr.bf16.mxu0 %v5560
      %7036 = vmatmul.mubr.bf16.gmra.mrb[0].mxu0 %v5559
      %v7037 = vpop.f32.mrb[0].mxu0
      %v7038 = vadd.f32 %v6749, %v7037
      %v7039 = vpop.f32.mrb[0].mxu0
      %v7040 = vpop.f32.mrb[0].mxu0
      %v7041 = vadd.f32 %v6752, %v7040
      %v7042 = vpop.f32.mrb[0].mxu0
      %7043 = vmatprep.mubr.bf16.mxu0 %v5569
      %7044 = vmatmul.mubr.bf16.gmra.mrb[0].mxu0 %v5568
      %v7045 = vpop.f32.mrb[0].mxu0
      %v7046 = vadd.f32 %v6757, %v7045
      %v7047 = vpop.f32.mrb[0].mxu0
      %v7048 = vpop.f32.mrb[0].mxu0
      %v7049 = vadd.f32 %v6760, %v7048
      %v7050 = vpop.f32.mrb[0].mxu0
      %7051 = vmatprep.mubr.bf16.mxu0 %v5578
      %7052 = vmatmul.mubr.bf16.gmra.mrb[0].mxu0 %v5577
      %v7053 = vpop.f32.mrb[0].mxu0
      %v7054 = vadd.f32 %v6765, %v7053
      %v7055 = vpop.f32.mrb[0].mxu0
      %v7056 = vpop.f32.mrb[0].mxu0
      %v7057 = vadd.f32 %v6768, %v7056
      %v7058 = vpop.f32.mrb[0].mxu0
      %7059 = vmatprep.mubr.bf16.mxu0 %v5587
      %7060 = vmatmul.mubr.bf16.gmra.mrb[0].mxu0 %v5586
      %v7061 = vpop.f32.mrb[0].mxu0
      %v7062 = vadd.f32 %v6773, %v7061
      %v7063 = vpop.f32.mrb[0].mxu0
      %v7064 = vpop.f32.mrb[0].mxu0
      %v7065 = vadd.f32 %v6776, %v7064
      %v7066 = vpop.f32.mrb[0].mxu0
      %7067 = vmatprep.mubr.bf16.mxu0 %v5596
      %7068 = vmatmul.mubr.bf16.gmra.mrb[0].mxu0 %v5595
      %v7069 = vpop.f32.mrb[0].mxu0
      %v7070 = vadd.f32 %v6781, %v7069
      %v7071 = vpop.f32.mrb[0].mxu0
      %v7072 = vpop.f32.mrb[0].mxu0
      %v7073 = vadd.f32 %v6784, %v7072
      %v7074 = vpop.f32.mrb[0].mxu0
      %7075 = vmatprep.mubr.bf16.mxu0 %v5605
      %7076 = vmatmul.mubr.bf16.gmra.mrb[0].mxu0 %v5604
      %v7077 = vpop.f32.mrb[0].mxu0
      %v7078 = vadd.f32 %v6789, %v7077
      %v7079 = vpop.f32.mrb[0].mxu0
      %v7080 = vpop.f32.mrb[0].mxu0
      %v7081 = vadd.f32 %v6792, %v7080
      %v7082 = vpop.f32.mrb[0].mxu0
      %7083 = vmatprep.mubr.bf16.mxu0 %v5614
      %7084 = vmatmul.mubr.bf16.gmra.mrb[0].mxu0 %v5613
      %v7085 = vpop.f32.mrb[0].mxu0
      %v7086 = vadd.f32 %v6797, %v7085
      %v7087 = vpop.f32.mrb[0].mxu0
      %v7088 = vpop.f32.mrb[0].mxu0
      %v7089 = vadd.f32 %v6800, %v7088
      %v7090 = vpop.f32.mrb[0].mxu0
      %7091 = vmatprep.mubr.bf16.mxu0 %v5623
      %7092 = vmatmul.mubr.bf16.gmra.mrb[0].mxu0 %v5622
      %v7093 = vpop.f32.mrb[0].mxu0
      %v7094 = vadd.f32 %v6805, %v7093
      %v7095 = vpop.f32.mrb[0].mxu0
      %v7096 = vpop.f32.mrb[0].mxu0
      %v7097 = vadd.f32 %v6808, %v7096
      %v7098 = vpop.f32.mrb[0].mxu0
      %7099 = vmatprep.mubr.bf16.mxu0 %v5632
      %7100 = vmatmul.mubr.bf16.gmra.mrb[0].mxu0 %v5631
      %v7101 = vpop.f32.mrb[0].mxu0
      %v7102 = vadd.f32 %v6813, %v7101
      %v7103 = vpop.f32.mrb[0].mxu0
      %v7104 = vpop.f32.mrb[0].mxu0
      %v7105 = vadd.f32 %v6816, %v7104
      %v7106 = vpop.f32.mrb[0].mxu0
      %7107 = vmatprep.mubr.bf16.mxu0 %v5641
      %7108 = vmatmul.mubr.bf16.gmra.mrb[0].mxu0 %v5640
      %v7109 = vpop.f32.mrb[0].mxu0
      %v7110 = vadd.f32 %v6821, %v7109
      %v7111 = vpop.f32.mrb[0].mxu0
      %v7112 = vpop.f32.mrb[0].mxu0
      %v7113 = vadd.f32 %v6824, %v7112
      %v7114 = vpop.f32.mrb[0].mxu0
      %7115 = vmatprep.mubr.bf16.mxu0 %v5650
      %7116 = vmatmul.mubr.bf16.gmra.mrb[0].mxu0 %v5649
      %v7117 = vpop.f32.mrb[0].mxu0
      %v7118 = vadd.f32 %v6829, %v7117
      %v7119 = vpop.f32.mrb[0].mxu0
      %v7120 = vpop.f32.mrb[0].mxu0
      %v7121 = vadd.f32 %v6832, %v7120
      %v7122 = vpop.f32.mrb[0].mxu0
      %7123 = vmatprep.mubr.bf16.mxu0 %v5659
      %7124 = vmatmul.mubr.bf16.gmra.mrb[0].mxu0 %v5658
      %v7125 = vpop.f32.mrb[0].mxu0
      %v7126 = vadd.f32 %v6837, %v7125
      %v7127 = vpop.f32.mrb[0].mxu0
      %v7128 = vpop.f32.mrb[0].mxu0
      %v7129 = vadd.f32 %v6840, %v7128
      %v7130 = vpop.f32.mrb[0].mxu0
      %7131 = vmatprep.mubr.bf16.mxu0 %v5668
      %7132 = vmatmul.mubr.bf16.gmra.mrb[0].mxu0 %v5667
      %v7133 = vpop.f32.mrb[0].mxu0
      %v7134 = vadd.f32 %v6845, %v7133
      %v7135 = vpop.f32.mrb[0].mxu0
      %v7136 = vpop.f32.mrb[0].mxu0
      %v7137 = vadd.f32 %v6848, %v7136
      %v7138 = vpop.f32.mrb[0].mxu0
      %7139 = vmatprep.mubr.bf16.mxu0 %v5677
      %7140 = vmatmul.mubr.bf16.gmra.mrb[0].mxu0 %v5676
      %v7141 = vpop.f32.mrb[0].mxu0
      %v7142 = vadd.f32 %v6853, %v7141
      %v7143 = vpop.f32.mrb[0].mxu0
      %v7144 = vpop.f32.mrb[0].mxu0
      %v7145 = vadd.f32 %v6856, %v7144
      %v7146 = vpop.f32.mrb[0].mxu0
      %7147 = vmatprep.mubr.bf16.mxu0 %v5686
      %7148 = vmatmul.mubr.bf16.gmra.mrb[0].mxu0 %v5685
      %v7149 = vpop.f32.mrb[0].mxu0
      %v7150 = vadd.f32 %v6861, %v7149
      %v7151 = vpop.f32.mrb[0].mxu0
      %v7152 = vpop.f32.mrb[0].mxu0
      %v7153 = vadd.f32 %v6864, %v7152
      %v7154 = vpop.f32.mrb[0].mxu0
      %7155 = vmatprep.mubr.bf16.mxu0 %v5695
      %7156 = vmatmul.mubr.bf16.gmra.mrb[0].mxu0 %v5694
      %v7157 = vpop.f32.mrb[0].mxu0
      %v7158 = vadd.f32 %v6869, %v7157
      %v7159 = vpop.f32.mrb[0].mxu0
      %v7160 = vpop.f32.mrb[0].mxu0
      %v7161 = vadd.f32 %v6872, %v7160
      %v7162 = vpop.f32.mrb[0].mxu0
      %7163 = vmatprep.mubr.bf16.mxu0 %v5704
      %7164 = vmatmul.mubr.bf16.gmra.mrb[0].mxu0 %v5703
      %v7165 = vpop.f32.mrb[0].mxu0
      %v7166 = vadd.f32 %v6877, %v7165
      %v7167 = vpop.f32.mrb[0].mxu0
      %v7168 = vpop.f32.mrb[0].mxu0
      %v7169 = vadd.f32 %v6880, %v7168
      %v7170 = vpop.f32.mrb[0].mxu0
      %7171 = vmatprep.mubr.bf16.mxu0 %v5713
      %7172 = vmatmul.mubr.bf16.gmra.mrb[0].mxu0 %v5712
      %v7173 = vpop.f32.mrb[0].mxu0
      %v7174 = vadd.f32 %v6885, %v7173
      %v7175 = vpop.f32.mrb[0].mxu0
      %v7176 = vpop.f32.mrb[0].mxu0
      %v7177 = vadd.f32 %v6888, %v7176
      %v7178 = vpop.f32.mrb[0].mxu0
      %7179 = vmatprep.mubr.bf16.mxu0 %v5722
      %7180 = vmatmul.mubr.bf16.gmra.mrb[0].mxu0 %v5721
      %v7181 = vpop.f32.mrb[0].mxu0
      %v7182 = vadd.f32 %v6893, %v7181
      %v7183 = vpop.f32.mrb[0].mxu0
      %v7184 = vpop.f32.mrb[0].mxu0
      %v7185 = vadd.f32 %v6896, %v7184
      %v7186 = vpop.f32.mrb[0].mxu0
      %7187 = vmatprep.mubr.bf16.mxu0 %v5731
      %7188 = vmatmul.mubr.bf16.gmra.mrb[0].mxu0 %v5730
      %v7189 = vpop.f32.mrb[0].mxu0
      %v7190 = vadd.f32 %v6901, %v7189
      %v7191 = vpop.f32.mrb[0].mxu0
      %v7192 = vpop.f32.mrb[0].mxu0
      %v7193 = vadd.f32 %v6904, %v7192
      %v7194 = vpop.f32.mrb[0].mxu0
      %7195 = vmatprep.mubr.bf16.mxu0 %v5740
      %7196 = vmatmul.mubr.bf16.gmra.mrb[0].mxu0 %v5739
      %v7197 = vpop.f32.mrb[0].mxu0
      %v7198 = vadd.f32 %v6909, %v7197
      %v7199 = vpop.f32.mrb[0].mxu0
      %v7200 = vpop.f32.mrb[0].mxu0
      %v7201 = vadd.f32 %v6912, %v7200
      %v7202 = vpop.f32.mrb[0].mxu0
      %7203 = vmatprep.mubr.bf16.mxu0 %v5749
      %7204 = vmatmul.mubr.bf16.gmra.mrb[0].mxu0 %v5748
      %v7205 = vpop.f32.mrb[0].mxu0
      %v7206 = vadd.f32 %v6917, %v7205
      %v7207 = vpop.f32.mrb[0].mxu0
      %v7208 = vpop.f32.mrb[0].mxu0
      %v7209 = vadd.f32 %v6920, %v7208
      %v7210 = vpop.f32.mrb[0].mxu0
      %7211 = vmatprep.mubr.bf16.mxu0 %v5758
      %7212 = vmatmul.mubr.bf16.gmra.mrb[0].mxu0 %v5757
      %v7213 = vpop.f32.mrb[0].mxu0
      %v7214 = vadd.f32 %v6925, %v7213
      %v7215 = vpop.f32.mrb[0].mxu0
      %v7216 = vpop.f32.mrb[0].mxu0
      %v7217 = vadd.f32 %v6928, %v7216
      %v7218 = vpop.f32.mrb[0].mxu0
      %7219 = vmatprep.mubr.bf16.mxu0 %v5767
      %7220 = vmatmul.mubr.bf16.gmra.mrb[0].mxu0 %v5766
      %v7221 = vpop.f32.mrb[0].mxu0
      %v7222 = vadd.f32 %v6933, %v7221
      %v7223 = vpop.f32.mrb[0].mxu0
      %v7224 = vpop.f32.mrb[0].mxu0
      %v7225 = vadd.f32 %v6936, %v7224
      %v7226 = vpop.f32.mrb[0].mxu0
      %7227 = vmatprep.mubr.bf16.mxu0 %v5776
      %7228 = vmatmul.mubr.bf16.gmra.mrb[0].mxu0 %v5775
      %v7229 = vpop.f32.mrb[0].mxu0
      %v7230 = vadd.f32 %v6941, %v7229
      %v7231 = vpop.f32.mrb[0].mxu0
      %v7232 = vpop.f32.mrb[0].mxu0
      %v7233 = vadd.f32 %v6944, %v7232
      %v7234 = vpop.f32.mrb[0].mxu0
      %7235 = vmatprep.mubr.bf16.mxu0 %v5785
      %7236 = vmatmul.mubr.bf16.gmra.mrb[0].mxu0 %v5784
      %v7237 = vpop.f32.mrb[0].mxu0
      %v7238 = vadd.f32 %v6949, %v7237
      %v7239 = vpop.f32.mrb[0].mxu0
      %v7240 = vpop.f32.mrb[0].mxu0
      %v7241 = vadd.f32 %v6952, %v7240
      %v7242 = vpop.f32.mrb[0].mxu0
      %7243 = vmatprep.mubr.bf16.mxu0 %v5794
      %7244 = vmatmul.mubr.bf16.gmra.mrb[0].mxu0 %v5793
      %v7245 = vpop.f32.mrb[0].mxu0
      %v7246 = vadd.f32 %v6957, %v7245
      %v7247 = vpop.f32.mrb[0].mxu0
      %v7248 = vpop.f32.mrb[0].mxu0
      %v7249 = vadd.f32 %v6960, %v7248
      %v7250 = vpop.f32.mrb[0].mxu0
      %7251 = vmatprep.mubr.bf16.mxu0 %v5803
      %7252 = vmatmul.mubr.bf16.gmra.mrb[0].mxu0 %v5802
      %v7253 = vpop.f32.mrb[0].mxu0
      %v7254 = vadd.f32 %v6965, %v7253
      %v7255 = vpop.f32.mrb[0].mxu0
      %v7256 = vpop.f32.mrb[0].mxu0
      %v7257 = vadd.f32 %v6968, %v7256
      %v7258 = vpop.f32.mrb[0].mxu0
      %7259 = vmatprep.mubr.bf16.mxu0 %v5812
      %7260 = vmatmul.mubr.bf16.gmra.mrb[0].mxu0 %v5811
      %v7261 = vpop.f32.mrb[0].mxu0
      %v7262 = vadd.f32 %v6973, %v7261
      %v7263 = vpop.f32.mrb[0].mxu0
      %v7264 = vpop.f32.mrb[0].mxu0
      %v7265 = vadd.f32 %v6976, %v7264
      %v7266 = vpop.f32.mrb[0].mxu0
      %7267 = vmatprep.mubr.bf16.mxu0 %v5821
      %7268 = vmatmul.mubr.bf16.gmra.mrb[0].mxu0 %v5820
      %v7269 = vpop.f32.mrb[0].mxu0
      %v7270 = vadd.f32 %v6981, %v7269
      %v7271 = vpop.f32.mrb[0].mxu0
      %v7272 = vpop.f32.mrb[0].mxu0
      %v7273 = vadd.f32 %v6984, %v7272
      %v7274 = vpop.f32.mrb[0].mxu0
      %7275 = vmatprep.mubr.bf16.mxu0 %v5830
      %7276 = vmatmul.mubr.bf16.gmra.mrb[0].mxu0 %v5829
      %v7277 = vpop.f32.mrb[0].mxu0
      %v7278 = vadd.f32 %v6989, %v7277
      %v7279 = vpop.f32.mrb[0].mxu0
      %v7280 = vpop.f32.mrb[0].mxu0
      %v7281 = vadd.f32 %v6992, %v7280
      %v7282 = vpop.f32.mrb[0].mxu0
      %7283 = vdwg.mxu0
      %7284 = vmatprep.subr.bf16.mxu0 0
      %7285 = vmatpush1.bf16.msra.mxu0 %v6321
      %7286 = vmatprep.subr.bf16.mxu0 0
      %7287 = vmatpush1.bf16.msra.mxu0 %v6322
      %7288 = vmatprep.subr.bf16.mxu0 0
      %7289 = vmatpush1.bf16.msra.mxu0 %v6323
      %7290 = vmatprep.subr.bf16.mxu0 0
      %7291 = vmatpush1.bf16.msra.mxu0 %v6324
      %7292 = vmatprep.subr.bf16.mxu0 0
      %7293 = vmatpush1.bf16.msra.mxu0 %v6325
      %7294 = vmatprep.subr.bf16.mxu0 0
      %7295 = vmatpush1.bf16.msra.mxu0 %v6326
      %7296 = vmatprep.subr.bf16.mxu0 0
      %7297 = vmatpush1.bf16.msra.mxu0 %v6327
      %7298 = vmatprep.subr.bf16.mxu0 0
      %7299 = vmatpush1.bf16.msra.mxu0 %v6328
      %7300 = vmatprep.subr.bf16.mxu0 0
      %7301 = vmatpush1.bf16.msra.mxu0 %v6329
      %7302 = vmatprep.subr.bf16.mxu0 0
      %7303 = vmatpush1.bf16.msra.mxu0 %v6330
      %7304 = vmatprep.subr.bf16.mxu0 0
      %7305 = vmatpush1.bf16.msra.mxu0 %v6331
      %7306 = vmatprep.subr.bf16.mxu0 0
      %7307 = vmatpush1.bf16.msra.mxu0 %v6332
      %7308 = vmatprep.subr.bf16.mxu0 0
      %7309 = vmatpush1.bf16.msra.mxu0 %v6333
      %7310 = vmatprep.subr.bf16.mxu0 0
      %7311 = vmatpush1.bf16.msra.mxu0 %v6334
      %7312 = vmatprep.subr.bf16.mxu0 0
      %7313 = vmatpush1.bf16.msra.mxu0 %v6335
      %7314 = vmatprep.subr.bf16.mxu0 0
      %7315 = vmatpush1.bf16.msra.mxu0 %v6336
      %7316 = vmatprep.mubr.bf16.mxu0 %v5553
      %7317 = vmatmul.mubr.bf16.gmra.mrb[0].mxu0 %v5552
      %v7318 = vpop.f32.mrb[0].mxu0
      %v7319 = vadd.f32 %v7030, %v7318
      %v7320 = vpop.f32.mrb[0].mxu0
      %v7321 = vpop.f32.mrb[0].mxu0
      %v7322 = vadd.f32 %v7033, %v7321
      %v7323 = vpop.f32.mrb[0].mxu0
      %7324 = vmatprep.mubr.bf16.mxu0 %v5562
      %7325 = vmatmul.mubr.bf16.gmra.mrb[0].mxu0 %v5561
      %v7326 = vpop.f32.mrb[0].mxu0
      %v7327 = vadd.f32 %v7038, %v7326
      %v7328 = vpop.f32.mrb[0].mxu0
      %v7329 = vpop.f32.mrb[0].mxu0
      %v7330 = vadd.f32 %v7041, %v7329
      %v7331 = vpop.f32.mrb[0].mxu0
      %7332 = vmatprep.mubr.bf16.mxu0 %v5571
      %7333 = vmatmul.mubr.bf16.gmra.mrb[0].mxu0 %v5570
      %v7334 = vpop.f32.mrb[0].mxu0
      %v7335 = vadd.f32 %v7046, %v7334
      %v7336 = vpop.f32.mrb[0].mxu0
      %v7337 = vpop.f32.mrb[0].mxu0
      %v7338 = vadd.f32 %v7049, %v7337
      %v7339 = vpop.f32.mrb[0].mxu0
      %7340 = vmatprep.mubr.bf16.mxu0 %v5580
      %7341 = vmatmul.mubr.bf16.gmra.mrb[0].mxu0 %v5579
      %v7342 = vpop.f32.mrb[0].mxu0
      %v7343 = vadd.f32 %v7054, %v7342
      %v7344 = vpop.f32.mrb[0].mxu0
      %v7345 = vpop.f32.mrb[0].mxu0
      %v7346 = vadd.f32 %v7057, %v7345
      %v7347 = vpop.f32.mrb[0].mxu0
      %7348 = vmatprep.mubr.bf16.mxu0 %v5589
      %7349 = vmatmul.mubr.bf16.gmra.mrb[0].mxu0 %v5588
      %v7350 = vpop.f32.mrb[0].mxu0
      %v7351 = vadd.f32 %v7062, %v7350
      %v7352 = vpop.f32.mrb[0].mxu0
      %v7353 = vpop.f32.mrb[0].mxu0
      %v7354 = vadd.f32 %v7065, %v7353
      %v7355 = vpop.f32.mrb[0].mxu0
      %7356 = vmatprep.mubr.bf16.mxu0 %v5598
      %7357 = vmatmul.mubr.bf16.gmra.mrb[0].mxu0 %v5597
      %v7358 = vpop.f32.mrb[0].mxu0
      %v7359 = vadd.f32 %v7070, %v7358
      %v7360 = vpop.f32.mrb[0].mxu0
      %v7361 = vpop.f32.mrb[0].mxu0
      %v7362 = vadd.f32 %v7073, %v7361
      %v7363 = vpop.f32.mrb[0].mxu0
      %7364 = vmatprep.mubr.bf16.mxu0 %v5607
      %7365 = vmatmul.mubr.bf16.gmra.mrb[0].mxu0 %v5606
      %v7366 = vpop.f32.mrb[0].mxu0
      %v7367 = vadd.f32 %v7078, %v7366
      %v7368 = vpop.f32.mrb[0].mxu0
      %v7369 = vpop.f32.mrb[0].mxu0
      %v7370 = vadd.f32 %v7081, %v7369
      %v7371 = vpop.f32.mrb[0].mxu0
      %7372 = vmatprep.mubr.bf16.mxu0 %v5616
      %7373 = vmatmul.mubr.bf16.gmra.mrb[0].mxu0 %v5615
      %v7374 = vpop.f32.mrb[0].mxu0
      %v7375 = vadd.f32 %v7086, %v7374
      %v7376 = vpop.f32.mrb[0].mxu0
      %v7377 = vpop.f32.mrb[0].mxu0
      %v7378 = vadd.f32 %v7089, %v7377
      %v7379 = vpop.f32.mrb[0].mxu0
      %7380 = vmatprep.mubr.bf16.mxu0 %v5625
      %7381 = vmatmul.mubr.bf16.gmra.mrb[0].mxu0 %v5624
      %v7382 = vpop.f32.mrb[0].mxu0
      %v7383 = vadd.f32 %v7094, %v7382
      %v7384 = vpop.f32.mrb[0].mxu0
      %v7385 = vpop.f32.mrb[0].mxu0
      %v7386 = vadd.f32 %v7097, %v7385
      %v7387 = vpop.f32.mrb[0].mxu0
      %7388 = vmatprep.mubr.bf16.mxu0 %v5634
      %7389 = vmatmul.mubr.bf16.gmra.mrb[0].mxu0 %v5633
      %v7390 = vpop.f32.mrb[0].mxu0
      %v7391 = vadd.f32 %v7102, %v7390
      %v7392 = vpop.f32.mrb[0].mxu0
      %v7393 = vpop.f32.mrb[0].mxu0
      %v7394 = vadd.f32 %v7105, %v7393
      %v7395 = vpop.f32.mrb[0].mxu0
      %7396 = vmatprep.mubr.bf16.mxu0 %v5643
      %7397 = vmatmul.mubr.bf16.gmra.mrb[0].mxu0 %v5642
      %v7398 = vpop.f32.mrb[0].mxu0
      %v7399 = vadd.f32 %v7110, %v7398
      %v7400 = vpop.f32.mrb[0].mxu0
      %v7401 = vpop.f32.mrb[0].mxu0
      %v7402 = vadd.f32 %v7113, %v7401
      %v7403 = vpop.f32.mrb[0].mxu0
      %7404 = vmatprep.mubr.bf16.mxu0 %v5652
      %7405 = vmatmul.mubr.bf16.gmra.mrb[0].mxu0 %v5651
      %v7406 = vpop.f32.mrb[0].mxu0
      %v7407 = vadd.f32 %v7118, %v7406
      %v7408 = vpop.f32.mrb[0].mxu0
      %v7409 = vpop.f32.mrb[0].mxu0
      %v7410 = vadd.f32 %v7121, %v7409
      %v7411 = vpop.f32.mrb[0].mxu0
      %7412 = vmatprep.mubr.bf16.mxu0 %v5661
      %7413 = vmatmul.mubr.bf16.gmra.mrb[0].mxu0 %v5660
      %v7414 = vpop.f32.mrb[0].mxu0
      %v7415 = vadd.f32 %v7126, %v7414
      %v7416 = vpop.f32.mrb[0].mxu0
      %v7417 = vpop.f32.mrb[0].mxu0
      %v7418 = vadd.f32 %v7129, %v7417
      %v7419 = vpop.f32.mrb[0].mxu0
      %7420 = vmatprep.mubr.bf16.mxu0 %v5670
      %7421 = vmatmul.mubr.bf16.gmra.mrb[0].mxu0 %v5669
      %v7422 = vpop.f32.mrb[0].mxu0
      %v7423 = vadd.f32 %v7134, %v7422
      %v7424 = vpop.f32.mrb[0].mxu0
      %v7425 = vpop.f32.mrb[0].mxu0
      %v7426 = vadd.f32 %v7137, %v7425
      %v7427 = vpop.f32.mrb[0].mxu0
      %7428 = vmatprep.mubr.bf16.mxu0 %v5679
      %7429 = vmatmul.mubr.bf16.gmra.mrb[0].mxu0 %v5678
      %v7430 = vpop.f32.mrb[0].mxu0
      %v7431 = vadd.f32 %v7142, %v7430
      %v7432 = vpop.f32.mrb[0].mxu0
      %v7433 = vpop.f32.mrb[0].mxu0
      %v7434 = vadd.f32 %v7145, %v7433
      %v7435 = vpop.f32.mrb[0].mxu0
      %7436 = vmatprep.mubr.bf16.mxu0 %v5688
      %7437 = vmatmul.mubr.bf16.gmra.mrb[0].mxu0 %v5687
      %v7438 = vpop.f32.mrb[0].mxu0
      %v7439 = vadd.f32 %v7150, %v7438
      %v7440 = vpop.f32.mrb[0].mxu0
      %v7441 = vpop.f32.mrb[0].mxu0
      %v7442 = vadd.f32 %v7153, %v7441
      %v7443 = vpop.f32.mrb[0].mxu0
      %7444 = vmatprep.mubr.bf16.mxu0 %v5697
      %7445 = vmatmul.mubr.bf16.gmra.mrb[0].mxu0 %v5696
      %v7446 = vpop.f32.mrb[0].mxu0
      %v7447 = vadd.f32 %v7158, %v7446
      %v7448 = vpop.f32.mrb[0].mxu0
      %v7449 = vpop.f32.mrb[0].mxu0
      %v7450 = vadd.f32 %v7161, %v7449
      %v7451 = vpop.f32.mrb[0].mxu0
      %7452 = vmatprep.mubr.bf16.mxu0 %v5706
      %7453 = vmatmul.mubr.bf16.gmra.mrb[0].mxu0 %v5705
      %v7454 = vpop.f32.mrb[0].mxu0
      %v7455 = vadd.f32 %v7166, %v7454
      %v7456 = vpop.f32.mrb[0].mxu0
      %v7457 = vpop.f32.mrb[0].mxu0
      %v7458 = vadd.f32 %v7169, %v7457
      %v7459 = vpop.f32.mrb[0].mxu0
      %7460 = vmatprep.mubr.bf16.mxu0 %v5715
      %7461 = vmatmul.mubr.bf16.gmra.mrb[0].mxu0 %v5714
      %v7462 = vpop.f32.mrb[0].mxu0
      %v7463 = vadd.f32 %v7174, %v7462
      %v7464 = vpop.f32.mrb[0].mxu0
      %v7465 = vpop.f32.mrb[0].mxu0
      %v7466 = vadd.f32 %v7177, %v7465
      %v7467 = vpop.f32.mrb[0].mxu0
      %7468 = vmatprep.mubr.bf16.mxu0 %v5724
      %7469 = vmatmul.mubr.bf16.gmra.mrb[0].mxu0 %v5723
      %v7470 = vpop.f32.mrb[0].mxu0
      %v7471 = vadd.f32 %v7182, %v7470
      %v7472 = vpop.f32.mrb[0].mxu0
      %v7473 = vpop.f32.mrb[0].mxu0
      %v7474 = vadd.f32 %v7185, %v7473
      %v7475 = vpop.f32.mrb[0].mxu0
      %7476 = vmatprep.mubr.bf16.mxu0 %v5733
      %7477 = vmatmul.mubr.bf16.gmra.mrb[0].mxu0 %v5732
      %v7478 = vpop.f32.mrb[0].mxu0
      %v7479 = vadd.f32 %v7190, %v7478
      %v7480 = vpop.f32.mrb[0].mxu0
      %v7481 = vpop.f32.mrb[0].mxu0
      %v7482 = vadd.f32 %v7193, %v7481
      %v7483 = vpop.f32.mrb[0].mxu0
      %7484 = vmatprep.mubr.bf16.mxu0 %v5742
      %7485 = vmatmul.mubr.bf16.gmra.mrb[0].mxu0 %v5741
      %v7486 = vpop.f32.mrb[0].mxu0
      %v7487 = vadd.f32 %v7198, %v7486
      %v7488 = vpop.f32.mrb[0].mxu0
      %v7489 = vpop.f32.mrb[0].mxu0
      %v7490 = vadd.f32 %v7201, %v7489
      %v7491 = vpop.f32.mrb[0].mxu0
      %7492 = vmatprep.mubr.bf16.mxu0 %v5751
      %7493 = vmatmul.mubr.bf16.gmra.mrb[0].mxu0 %v5750
      %v7494 = vpop.f32.mrb[0].mxu0
      %v7495 = vadd.f32 %v7206, %v7494
      %v7496 = vpop.f32.mrb[0].mxu0
      %v7497 = vpop.f32.mrb[0].mxu0
      %v7498 = vadd.f32 %v7209, %v7497
      %v7499 = vpop.f32.mrb[0].mxu0
      %7500 = vmatprep.mubr.bf16.mxu0 %v5760
      %7501 = vmatmul.mubr.bf16.gmra.mrb[0].mxu0 %v5759
      %v7502 = vpop.f32.mrb[0].mxu0
      %v7503 = vadd.f32 %v7214, %v7502
      %v7504 = vpop.f32.mrb[0].mxu0
      %v7505 = vpop.f32.mrb[0].mxu0
      %v7506 = vadd.f32 %v7217, %v7505
      %v7507 = vpop.f32.mrb[0].mxu0
      %7508 = vmatprep.mubr.bf16.mxu0 %v5769
      %7509 = vmatmul.mubr.bf16.gmra.mrb[0].mxu0 %v5768
      %v7510 = vpop.f32.mrb[0].mxu0
      %v7511 = vadd.f32 %v7222, %v7510
      %v7512 = vpop.f32.mrb[0].mxu0
      %v7513 = vpop.f32.mrb[0].mxu0
      %v7514 = vadd.f32 %v7225, %v7513
      %v7515 = vpop.f32.mrb[0].mxu0
      %7516 = vmatprep.mubr.bf16.mxu0 %v5778
      %7517 = vmatmul.mubr.bf16.gmra.mrb[0].mxu0 %v5777
      %v7518 = vpop.f32.mrb[0].mxu0
      %v7519 = vadd.f32 %v7230, %v7518
      %v7520 = vpop.f32.mrb[0].mxu0
      %v7521 = vpop.f32.mrb[0].mxu0
      %v7522 = vadd.f32 %v7233, %v7521
      %v7523 = vpop.f32.mrb[0].mxu0
      %7524 = vmatprep.mubr.bf16.mxu0 %v5787
      %7525 = vmatmul.mubr.bf16.gmra.mrb[0].mxu0 %v5786
      %v7526 = vpop.f32.mrb[0].mxu0
      %v7527 = vadd.f32 %v7238, %v7526
      %v7528 = vpop.f32.mrb[0].mxu0
      %v7529 = vpop.f32.mrb[0].mxu0
      %v7530 = vadd.f32 %v7241, %v7529
      %v7531 = vpop.f32.mrb[0].mxu0
      %7532 = vmatprep.mubr.bf16.mxu0 %v5796
      %7533 = vmatmul.mubr.bf16.gmra.mrb[0].mxu0 %v5795
      %v7534 = vpop.f32.mrb[0].mxu0
      %v7535 = vadd.f32 %v7246, %v7534
      %v7536 = vpop.f32.mrb[0].mxu0
      %v7537 = vpop.f32.mrb[0].mxu0
      %v7538 = vadd.f32 %v7249, %v7537
      %v7539 = vpop.f32.mrb[0].mxu0
      %7540 = vmatprep.mubr.bf16.mxu0 %v5805
      %7541 = vmatmul.mubr.bf16.gmra.mrb[0].mxu0 %v5804
      %v7542 = vpop.f32.mrb[0].mxu0
      %v7543 = vadd.f32 %v7254, %v7542
      %v7544 = vpop.f32.mrb[0].mxu0
      %v7545 = vpop.f32.mrb[0].mxu0
      %v7546 = vadd.f32 %v7257, %v7545
      %v7547 = vpop.f32.mrb[0].mxu0
      %7548 = vmatprep.mubr.bf16.mxu0 %v5814
      %7549 = vmatmul.mubr.bf16.gmra.mrb[0].mxu0 %v5813
      %v7550 = vpop.f32.mrb[0].mxu0
      %v7551 = vadd.f32 %v7262, %v7550
      %v7552 = vpop.f32.mrb[0].mxu0
      %v7553 = vpop.f32.mrb[0].mxu0
      %v7554 = vadd.f32 %v7265, %v7553
      %v7555 = vpop.f32.mrb[0].mxu0
      %7556 = vmatprep.mubr.bf16.mxu0 %v5823
      %7557 = vmatmul.mubr.bf16.gmra.mrb[0].mxu0 %v5822
      %v7558 = vpop.f32.mrb[0].mxu0
      %v7559 = vadd.f32 %v7270, %v7558
      %v7560 = vpop.f32.mrb[0].mxu0
      %v7561 = vpop.f32.mrb[0].mxu0
      %v7562 = vadd.f32 %v7273, %v7561
      %v7563 = vpop.f32.mrb[0].mxu0
      %7564 = vmatprep.mubr.bf16.mxu0 %v5832
      %7565 = vmatmul.mubr.bf16.gmra.mrb[0].mxu0 %v5831
      %v7566 = vpop.f32.mrb[0].mxu0
      %v7567 = vadd.f32 %v7278, %v7566
      %v7568 = vpop.f32.mrb[0].mxu0
      %v7569 = vpop.f32.mrb[0].mxu0
      %v7570 = vadd.f32 %v7281, %v7569
      %v7571 = vpop.f32.mrb[0].mxu0
      %7572 = vdwg.mxu0
      %7573 = vmatprep.subr.bf16.mxu0 0
      %7574 = vmatpush1.bf16.msra.mxu0 %v6337
      %7575 = vmatprep.subr.bf16.mxu0 0
      %7576 = vmatpush1.bf16.msra.mxu0 %v6338
      %7577 = vmatprep.subr.bf16.mxu0 0
      %7578 = vmatpush1.bf16.msra.mxu0 %v6339
      %7579 = vmatprep.subr.bf16.mxu0 0
      %7580 = vmatpush1.bf16.msra.mxu0 %v6340
      %7581 = vmatprep.subr.bf16.mxu0 0
      %7582 = vmatpush1.bf16.msra.mxu0 %v6341
      %7583 = vmatprep.subr.bf16.mxu0 0
      %7584 = vmatpush1.bf16.msra.mxu0 %v6342
      %7585 = vmatprep.subr.bf16.mxu0 0
      %7586 = vmatpush1.bf16.msra.mxu0 %v6343
      %7587 = vmatprep.subr.bf16.mxu0 0
      %7588 = vmatpush1.bf16.msra.mxu0 %v6344
      %7589 = vmatprep.subr.bf16.mxu0 0
      %7590 = vmatpush1.bf16.msra.mxu0 0
      %7591 = vmatprep.subr.bf16.mxu0 0
      %7592 = vmatpush1.bf16.msra.mxu0 0
      %7593 = vmatprep.subr.bf16.mxu0 0
      %7594 = vmatpush1.bf16.msra.mxu0 0
      %7595 = vmatprep.subr.bf16.mxu0 0
      %7596 = vmatpush1.bf16.msra.mxu0 0
      %7597 = vmatprep.subr.bf16.mxu0 0
      %7598 = vmatpush1.bf16.msra.mxu0 0
      %7599 = vmatprep.subr.bf16.mxu0 0
      %7600 = vmatpush1.bf16.msra.mxu0 0
      %7601 = vmatprep.subr.bf16.mxu0 0
      %7602 = vmatpush1.bf16.msra.mxu0 0
      %7603 = vmatprep.subr.bf16.mxu0 0
      %7604 = vmatpush1.bf16.msra.mxu0 0
      %7605 = vmatprep.mubr.bf16.mxu0 0
      %7606 = vmatmul.mubr.bf16.gmra.mrb[0].mxu0 %v5554
      %v7607 = vpop.f32.mrb[0].mxu0
      %v7608 = vadd.f32 %v7319, %v7607
      %v7609 = vpop.f32.mrb[0].mxu0
      %v7610 = vpop.f32.mrb[0].mxu0
      %v7611 = vadd.f32 %v7322, %v7610
      %v7612 = vpop.f32.mrb[0].mxu0
      %7613 = vmatprep.mubr.bf16.mxu0 0
      %7614 = vmatmul.mubr.bf16.gmra.mrb[0].mxu0 %v5563
      %v7615 = vpop.f32.mrb[0].mxu0
      %v7616 = vadd.f32 %v7327, %v7615
      %v7617 = vpop.f32.mrb[0].mxu0
      %v7618 = vpop.f32.mrb[0].mxu0
      %v7619 = vadd.f32 %v7330, %v7618
      %v7620 = vpop.f32.mrb[0].mxu0
      %7621 = vmatprep.mubr.bf16.mxu0 0
      %7622 = vmatmul.mubr.bf16.gmra.mrb[0].mxu0 %v5572
      %v7623 = vpop.f32.mrb[0].mxu0
      %v7624 = vadd.f32 %v7335, %v7623
      %v7625 = vpop.f32.mrb[0].mxu0
      %v7626 = vpop.f32.mrb[0].mxu0
      %v7627 = vadd.f32 %v7338, %v7626
      %v7628 = vpop.f32.mrb[0].mxu0
      %7629 = vmatprep.mubr.bf16.mxu0 0
      %7630 = vmatmul.mubr.bf16.gmra.mrb[0].mxu0 %v5581
      %v7631 = vpop.f32.mrb[0].mxu0
      %v7632 = vadd.f32 %v7343, %v7631
      %v7633 = vpop.f32.mrb[0].mxu0
      %v7634 = vpop.f32.mrb[0].mxu0
      %v7635 = vadd.f32 %v7346, %v7634
      %v7636 = vpop.f32.mrb[0].mxu0
      %7637 = vmatprep.mubr.bf16.mxu0 0
      %7638 = vmatmul.mubr.bf16.gmra.mrb[0].mxu0 %v5590
      %v7639 = vpop.f32.mrb[0].mxu0
      %v7640 = vadd.f32 %v7351, %v7639
      %v7641 = vpop.f32.mrb[0].mxu0
      %v7642 = vpop.f32.mrb[0].mxu0
      %v7643 = vadd.f32 %v7354, %v7642
      %v7644 = vpop.f32.mrb[0].mxu0
      %7645 = vmatprep.mubr.bf16.mxu0 0
      %7646 = vmatmul.mubr.bf16.gmra.mrb[0].mxu0 %v5599
      %v7647 = vpop.f32.mrb[0].mxu0
      %v7648 = vadd.f32 %v7359, %v7647
      %v7649 = vpop.f32.mrb[0].mxu0
      %v7650 = vpop.f32.mrb[0].mxu0
      %v7651 = vadd.f32 %v7362, %v7650
      %v7652 = vpop.f32.mrb[0].mxu0
      %7653 = vmatprep.mubr.bf16.mxu0 0
      %7654 = vmatmul.mubr.bf16.gmra.mrb[0].mxu0 %v5608
      %v7655 = vpop.f32.mrb[0].mxu0
      %v7656 = vadd.f32 %v7367, %v7655
      %v7657 = vpop.f32.mrb[0].mxu0
      %v7658 = vpop.f32.mrb[0].mxu0
      %v7659 = vadd.f32 %v7370, %v7658
      %v7660 = vpop.f32.mrb[0].mxu0
      %7661 = vmatprep.mubr.bf16.mxu0 0
      %7662 = vmatmul.mubr.bf16.gmra.mrb[0].mxu0 %v5617
      %v7663 = vpop.f32.mrb[0].mxu0
      %v7664 = vadd.f32 %v7375, %v7663
      %v7665 = vpop.f32.mrb[0].mxu0
      %v7666 = vpop.f32.mrb[0].mxu0
      %v7667 = vadd.f32 %v7378, %v7666
      %v7668 = vpop.f32.mrb[0].mxu0
      %7669 = vmatprep.mubr.bf16.mxu0 0
      %7670 = vmatmul.mubr.bf16.gmra.mrb[0].mxu0 %v5626
      %v7671 = vpop.f32.mrb[0].mxu0
      %v7672 = vadd.f32 %v7383, %v7671
      %v7673 = vpop.f32.mrb[0].mxu0
      %v7674 = vpop.f32.mrb[0].mxu0
      %v7675 = vadd.f32 %v7386, %v7674
      %v7676 = vpop.f32.mrb[0].mxu0
      %7677 = vmatprep.mubr.bf16.mxu0 0
      %7678 = vmatmul.mubr.bf16.gmra.mrb[0].mxu0 %v5635
      %v7679 = vpop.f32.mrb[0].mxu0
      %v7680 = vadd.f32 %v7391, %v7679
      %v7681 = vpop.f32.mrb[0].mxu0
      %v7682 = vpop.f32.mrb[0].mxu0
      %v7683 = vadd.f32 %v7394, %v7682
      %v7684 = vpop.f32.mrb[0].mxu0
      %7685 = vmatprep.mubr.bf16.mxu0 0
      %7686 = vmatmul.mubr.bf16.gmra.mrb[0].mxu0 %v5644
      %v7687 = vpop.f32.mrb[0].mxu0
      %v7688 = vadd.f32 %v7399, %v7687
      %v7689 = vpop.f32.mrb[0].mxu0
      %v7690 = vpop.f32.mrb[0].mxu0
      %v7691 = vadd.f32 %v7402, %v7690
      %v7692 = vpop.f32.mrb[0].mxu0
      %7693 = vmatprep.mubr.bf16.mxu0 0
      %7694 = vmatmul.mubr.bf16.gmra.mrb[0].mxu0 %v5653
      %v7695 = vpop.f32.mrb[0].mxu0
      %v7696 = vadd.f32 %v7407, %v7695
      %v7697 = vpop.f32.mrb[0].mxu0
      %v7698 = vpop.f32.mrb[0].mxu0
      %v7699 = vadd.f32 %v7410, %v7698
      %v7700 = vpop.f32.mrb[0].mxu0
      %7701 = vmatprep.mubr.bf16.mxu0 0
      %7702 = vmatmul.mubr.bf16.gmra.mrb[0].mxu0 %v5662
      %v7703 = vpop.f32.mrb[0].mxu0
      %v7704 = vadd.f32 %v7415, %v7703
      %v7705 = vpop.f32.mrb[0].mxu0
      %v7706 = vpop.f32.mrb[0].mxu0
      %v7707 = vadd.f32 %v7418, %v7706
      %v7708 = vpop.f32.mrb[0].mxu0
      %7709 = vmatprep.mubr.bf16.mxu0 0
      %7710 = vmatmul.mubr.bf16.gmra.mrb[0].mxu0 %v5671
      %v7711 = vpop.f32.mrb[0].mxu0
      %v7712 = vadd.f32 %v7423, %v7711
      %v7713 = vpop.f32.mrb[0].mxu0
      %v7714 = vpop.f32.mrb[0].mxu0
      %v7715 = vadd.f32 %v7426, %v7714
      %v7716 = vpop.f32.mrb[0].mxu0
      %7717 = vmatprep.mubr.bf16.mxu0 0
      %7718 = vmatmul.mubr.bf16.gmra.mrb[0].mxu0 %v5680
      %v7719 = vpop.f32.mrb[0].mxu0
      %v7720 = vadd.f32 %v7431, %v7719
      %v7721 = vpop.f32.mrb[0].mxu0
      %v7722 = vpop.f32.mrb[0].mxu0
      %v7723 = vadd.f32 %v7434, %v7722
      %v7724 = vpop.f32.mrb[0].mxu0
      %7725 = vmatprep.mubr.bf16.mxu0 0
      %7726 = vmatmul.mubr.bf16.gmra.mrb[0].mxu0 %v5689
      %v7727 = vpop.f32.mrb[0].mxu0
      %v7728 = vadd.f32 %v7439, %v7727
      %v7729 = vpop.f32.mrb[0].mxu0
      %v7730 = vpop.f32.mrb[0].mxu0
      %v7731 = vadd.f32 %v7442, %v7730
      %v7732 = vpop.f32.mrb[0].mxu0
      %7733 = vmatprep.mubr.bf16.mxu0 0
      %7734 = vmatmul.mubr.bf16.gmra.mrb[0].mxu0 %v5698
      %v7735 = vpop.f32.mrb[0].mxu0
      %v7736 = vadd.f32 %v7447, %v7735
      %v7737 = vpop.f32.mrb[0].mxu0
      %v7738 = vpop.f32.mrb[0].mxu0
      %v7739 = vadd.f32 %v7450, %v7738
      %v7740 = vpop.f32.mrb[0].mxu0
      %7741 = vmatprep.mubr.bf16.mxu0 0
      %7742 = vmatmul.mubr.bf16.gmra.mrb[0].mxu0 %v5707
      %v7743 = vpop.f32.mrb[0].mxu0
      %v7744 = vadd.f32 %v7455, %v7743
      %v7745 = vpop.f32.mrb[0].mxu0
      %v7746 = vpop.f32.mrb[0].mxu0
      %v7747 = vadd.f32 %v7458, %v7746
      %v7748 = vpop.f32.mrb[0].mxu0
      %7749 = vmatprep.mubr.bf16.mxu0 0
      %7750 = vmatmul.mubr.bf16.gmra.mrb[0].mxu0 %v5716
      %v7751 = vpop.f32.mrb[0].mxu0
      %v7752 = vadd.f32 %v7463, %v7751
      %v7753 = vpop.f32.mrb[0].mxu0
      %v7754 = vpop.f32.mrb[0].mxu0
      %v7755 = vadd.f32 %v7466, %v7754
      %v7756 = vpop.f32.mrb[0].mxu0
      %7757 = vmatprep.mubr.bf16.mxu0 0
      %7758 = vmatmul.mubr.bf16.gmra.mrb[0].mxu0 %v5725
      %v7759 = vpop.f32.mrb[0].mxu0
      %v7760 = vadd.f32 %v7471, %v7759
      %v7761 = vpop.f32.mrb[0].mxu0
      %v7762 = vpop.f32.mrb[0].mxu0
      %v7763 = vadd.f32 %v7474, %v7762
      %v7764 = vpop.f32.mrb[0].mxu0
      %7765 = vmatprep.mubr.bf16.mxu0 0
      %7766 = vmatmul.mubr.bf16.gmra.mrb[0].mxu0 %v5734
      %v7767 = vpop.f32.mrb[0].mxu0
      %v7768 = vadd.f32 %v7479, %v7767
      %v7769 = vpop.f32.mrb[0].mxu0
      %v7770 = vpop.f32.mrb[0].mxu0
      %v7771 = vadd.f32 %v7482, %v7770
      %v7772 = vpop.f32.mrb[0].mxu0
      %7773 = vmatprep.mubr.bf16.mxu0 0
      %7774 = vmatmul.mubr.bf16.gmra.mrb[0].mxu0 %v5743
      %v7775 = vpop.f32.mrb[0].mxu0
      %v7776 = vadd.f32 %v7487, %v7775
      %v7777 = vpop.f32.mrb[0].mxu0
      %v7778 = vpop.f32.mrb[0].mxu0
      %v7779 = vadd.f32 %v7490, %v7778
      %v7780 = vpop.f32.mrb[0].mxu0
      %7781 = vmatprep.mubr.bf16.mxu0 0
      %7782 = vmatmul.mubr.bf16.gmra.mrb[0].mxu0 %v5752
      %v7783 = vpop.f32.mrb[0].mxu0
      %v7784 = vadd.f32 %v7495, %v7783
      %v7785 = vpop.f32.mrb[0].mxu0
      %v7786 = vpop.f32.mrb[0].mxu0
      %v7787 = vadd.f32 %v7498, %v7786
      %v7788 = vpop.f32.mrb[0].mxu0
      %7789 = vmatprep.mubr.bf16.mxu0 0
      %7790 = vmatmul.mubr.bf16.gmra.mrb[0].mxu0 %v5761
      %v7791 = vpop.f32.mrb[0].mxu0
      %v7792 = vadd.f32 %v7503, %v7791
      %v7793 = vpop.f32.mrb[0].mxu0
      %v7794 = vpop.f32.mrb[0].mxu0
      %v7795 = vadd.f32 %v7506, %v7794
      %v7796 = vpop.f32.mrb[0].mxu0
      %7797 = vmatprep.mubr.bf16.mxu0 0
      %7798 = vmatmul.mubr.bf16.gmra.mrb[0].mxu0 %v5770
      %v7799 = vpop.f32.mrb[0].mxu0
      %v7800 = vadd.f32 %v7511, %v7799
      %v7801 = vpop.f32.mrb[0].mxu0
      %v7802 = vpop.f32.mrb[0].mxu0
      %v7803 = vadd.f32 %v7514, %v7802
      %v7804 = vpop.f32.mrb[0].mxu0
      %7805 = vmatprep.mubr.bf16.mxu0 0
      %7806 = vmatmul.mubr.bf16.gmra.mrb[0].mxu0 %v5779
      %v7807 = vpop.f32.mrb[0].mxu0
      %v7808 = vadd.f32 %v7519, %v7807
      %v7809 = vpop.f32.mrb[0].mxu0
      %v7810 = vpop.f32.mrb[0].mxu0
      %v7811 = vadd.f32 %v7522, %v7810
      %v7812 = vpop.f32.mrb[0].mxu0
      %7813 = vmatprep.mubr.bf16.mxu0 0
      %7814 = vmatmul.mubr.bf16.gmra.mrb[0].mxu0 %v5788
      %v7815 = vpop.f32.mrb[0].mxu0
      %v7816 = vadd.f32 %v7527, %v7815
      %v7817 = vpop.f32.mrb[0].mxu0
      %v7818 = vpop.f32.mrb[0].mxu0
      %v7819 = vadd.f32 %v7530, %v7818
      %v7820 = vpop.f32.mrb[0].mxu0
      %7821 = vmatprep.mubr.bf16.mxu0 0
      %7822 = vmatmul.mubr.bf16.gmra.mrb[0].mxu0 %v5797
      %v7823 = vpop.f32.mrb[0].mxu0
      %v7824 = vadd.f32 %v7535, %v7823
      %v7825 = vpop.f32.mrb[0].mxu0
      %v7826 = vpop.f32.mrb[0].mxu0
      %v7827 = vadd.f32 %v7538, %v7826
      %v7828 = vpop.f32.mrb[0].mxu0
      %7829 = vmatprep.mubr.bf16.mxu0 0
      %7830 = vmatmul.mubr.bf16.gmra.mrb[0].mxu0 %v5806
      %v7831 = vpop.f32.mrb[0].mxu0
      %v7832 = vadd.f32 %v7543, %v7831
      %v7833 = vpop.f32.mrb[0].mxu0
      %v7834 = vpop.f32.mrb[0].mxu0
      %v7835 = vadd.f32 %v7546, %v7834
      %v7836 = vpop.f32.mrb[0].mxu0
      %7837 = vmatprep.mubr.bf16.mxu0 0
      %7838 = vmatmul.mubr.bf16.gmra.mrb[0].mxu0 %v5815
      %v7839 = vpop.f32.mrb[0].mxu0
      %v7840 = vadd.f32 %v7551, %v7839
      %v7841 = vpop.f32.mrb[0].mxu0
      %v7842 = vpop.f32.mrb[0].mxu0
      %v7843 = vadd.f32 %v7554, %v7842
      %v7844 = vpop.f32.mrb[0].mxu0
      %7845 = vmatprep.mubr.bf16.mxu0 0
      %7846 = vmatmul.mubr.bf16.gmra.mrb[0].mxu0 %v5824
      %v7847 = vpop.f32.mrb[0].mxu0
      %v7848 = vadd.f32 %v7559, %v7847
      %v7849 = vpop.f32.mrb[0].mxu0
      %v7850 = vpop.f32.mrb[0].mxu0
      %v7851 = vadd.f32 %v7562, %v7850
      %v7852 = vpop.f32.mrb[0].mxu0
      %7853 = vmatprep.mubr.bf16.mxu0 0
      %7854 = vmatmul.mubr.bf16.gmra.mrb[0].mxu0 %v5833
      %v7855 = vpop.f32.mrb[0].mxu0
      %v7856 = vadd.f32 %v7567, %v7855
      %v7857 = vpop.f32.mrb[0].mxu0
      %v7858 = vpop.f32.mrb[0].mxu0
      %v7859 = vadd.f32 %v7570, %v7858
      %v7860 = vpop.f32.mrb[0].mxu0
      %7861 = vdwg.mxu0
      %v7862 = vadd.f32 %v7608, %v7611
      %v7863 = vadd.f32 %v7862, %v7616
      %v7864 = vadd.f32 %v7863, %v7619
      %v7865 = vadd.f32 %v7864, %v7624
      %v7866 = vadd.f32 %v7865, %v7627
      %v7867 = vadd.f32 %v7866, %v7632
      %v7868 = vadd.f32 %v7867, %v7635
      %v7869 = vadd.f32 %v7868, %v7640
      %v7870 = vadd.f32 %v7869, %v7643
      %v7871 = vadd.f32 %v7870, %v7648
      %v7872 = vadd.f32 %v7871, %v7651
      %v7873 = vadd.f32 %v7872, %v7656
      %v7874 = vadd.f32 %v7873, %v7659
      %v7875 = vadd.f32 %v7874, %v7664
      %v7876 = vadd.f32 %v7875, %v7667
      %v7877 = vadd.f32 %v7876, %v7672
      %v7878 = vadd.f32 %v7877, %v7675
      %v7879 = vadd.f32 %v7878, %v7680
      %v7880 = vadd.f32 %v7879, %v7683
      %v7881 = vadd.f32 %v7880, %v7688
      %v7882 = vadd.f32 %v7881, %v7691
      %v7883 = vadd.f32 %v7882, %v7696
      %v7884 = vadd.f32 %v7883, %v7699
      %v7885 = vadd.f32 %v7884, %v7704
      %v7886 = vadd.f32 %v7885, %v7707
      %v7887 = vadd.f32 %v7886, %v7712
      %v7888 = vadd.f32 %v7887, %v7715
      %v7889 = vadd.f32 %v7888, %v7720
      %v7890 = vadd.f32 %v7889, %v7723
      %v7891 = vadd.f32 %v7890, %v7728
      %v7892 = vadd.f32 %v7891, %v7731
      %v7893 = vrot.slane %v7892, 4
      %v7894 = vadd.f32 %v7892, %v7893
      %v7895 = vrot.slane %v7894, 2
      %v7896 = vadd.f32 %v7894, %v7895
      %v7897 = vrot.slane %v7896, 1
      %v7898 = vadd.f32 %v7896, %v7897
      %v7899 = vadd.f32 %v7736, %v7739
      %v7900 = vadd.f32 %v7899, %v7744
      %v7901 = vadd.f32 %v7900, %v7747
      %v7902 = vadd.f32 %v7901, %v7752
      %v7903 = vadd.f32 %v7902, %v7755
      %v7904 = vadd.f32 %v7903, %v7760
      %v7905 = vadd.f32 %v7904, %v7763
      %v7906 = vadd.f32 %v7905, %v7768
      %v7907 = vadd.f32 %v7906, %v7771
      %v7908 = vadd.f32 %v7907, %v7776
      %v7909 = vadd.f32 %v7908, %v7779
      %v7910 = vadd.f32 %v7909, %v7784
      %v7911 = vadd.f32 %v7910, %v7787
      %v7912 = vadd.f32 %v7911, %v7792
      %v7913 = vadd.f32 %v7912, %v7795
      %v7914 = vadd.f32 %v7913, %v7800
      %v7915 = vadd.f32 %v7914, %v7803
      %v7916 = vadd.f32 %v7915, %v7808
      %v7917 = vadd.f32 %v7916, %v7811
      %v7918 = vadd.f32 %v7917, %v7816
      %v7919 = vadd.f32 %v7918, %v7819
      %v7920 = vadd.f32 %v7919, %v7824
      %v7921 = vadd.f32 %v7920, %v7827
      %v7922 = vadd.f32 %v7921, %v7832
      %v7923 = vadd.f32 %v7922, %v7835
      %v7924 = vadd.f32 %v7923, %v7840
      %v7925 = vadd.f32 %v7924, %v7843
      %v7926 = vadd.f32 %v7925, %v7848
      %v7927 = vadd.f32 %v7926, %v7851
      %v7928 = vadd.f32 %v7927, %v7856
      %v7929 = vadd.f32 %v7928, %v7859
      %v7930 = vrot.slane %v7929, 4
      %v7931 = vadd.f32 %v7929, %v7930
      %v7932 = vrot.slane %v7931, 2
      %v7933 = vadd.f32 %v7931, %v7932
      %v7934 = vrot.slane %v7933, 1
      %v7935 = vadd.f32 %v7933, %v7934
      %v7936 = vmul.f32 %v7898, %v3991
      %v7937 = vmul.f32 %v7935, %v3991
      %v7938 = vsub.f32 %v7608, %v7936
      %v7939 = vsub.f32 %v7611, %v7936
      %v7940 = vsub.f32 %v7616, %v7936
      %v7941 = vsub.f32 %v7619, %v7936
      %v7942 = vsub.f32 %v7624, %v7936
      %v7943 = vsub.f32 %v7627, %v7936
      %v7944 = vsub.f32 %v7632, %v7936
      %v7945 = vsub.f32 %v7635, %v7936
      %v7946 = vsub.f32 %v7640, %v7936
      %v7947 = vsub.f32 %v7643, %v7936
      %v7948 = vsub.f32 %v7648, %v7936
      %v7949 = vsub.f32 %v7651, %v7936
      %v7950 = vsub.f32 %v7656, %v7936
      %v7951 = vsub.f32 %v7659, %v7936
      %v7952 = vsub.f32 %v7664, %v7936
      %v7953 = vsub.f32 %v7667, %v7936
      %v7954 = vsub.f32 %v7672, %v7936
      %v7955 = vsub.f32 %v7675, %v7936
      %v7956 = vsub.f32 %v7680, %v7936
      %v7957 = vsub.f32 %v7683, %v7936
      %v7958 = vsub.f32 %v7688, %v7936
      %v7959 = vsub.f32 %v7691, %v7936
      %v7960 = vsub.f32 %v7696, %v7936
      %v7961 = vsub.f32 %v7699, %v7936
      %v7962 = vsub.f32 %v7704, %v7936
      %v7963 = vsub.f32 %v7707, %v7936
      %v7964 = vsub.f32 %v7712, %v7936
      %v7965 = vsub.f32 %v7715, %v7936
      %v7966 = vsub.f32 %v7720, %v7936
      %v7967 = vsub.f32 %v7723, %v7936
      %v7968 = vsub.f32 %v7728, %v7936
      %v7969 = vsub.f32 %v7731, %v7936
      %v7970 = vsub.f32 %v7736, %v7937
      %v7971 = vsub.f32 %v7739, %v7937
      %v7972 = vsub.f32 %v7744, %v7937
      %v7973 = vsub.f32 %v7747, %v7937
      %v7974 = vsub.f32 %v7752, %v7937
      %v7975 = vsub.f32 %v7755, %v7937
      %v7976 = vsub.f32 %v7760, %v7937
      %v7977 = vsub.f32 %v7763, %v7937
      %v7978 = vsub.f32 %v7768, %v7937
      %v7979 = vsub.f32 %v7771, %v7937
      %v7980 = vsub.f32 %v7776, %v7937
      %v7981 = vsub.f32 %v7779, %v7937
      %v7982 = vsub.f32 %v7784, %v7937
      %v7983 = vsub.f32 %v7787, %v7937
      %v7984 = vsub.f32 %v7792, %v7937
      %v7985 = vsub.f32 %v7795, %v7937
      %v7986 = vsub.f32 %v7800, %v7937
      %v7987 = vsub.f32 %v7803, %v7937
      %v7988 = vsub.f32 %v7808, %v7937
      %v7989 = vsub.f32 %v7811, %v7937
      %v7990 = vsub.f32 %v7816, %v7937
      %v7991 = vsub.f32 %v7819, %v7937
      %v7992 = vsub.f32 %v7824, %v7937
      %v7993 = vsub.f32 %v7827, %v7937
      %v7994 = vsub.f32 %v7832, %v7937
      %v7995 = vsub.f32 %v7835, %v7937
      %v7996 = vsub.f32 %v7840, %v7937
      %v7997 = vsub.f32 %v7843, %v7937
      %v7998 = vsub.f32 %v7848, %v7937
      %v7999 = vsub.f32 %v7851, %v7937
      %v8000 = vsub.f32 %v7856, %v7937
      %v8001 = vsub.f32 %v7859, %v7937
      %v8002 = vmul.f32 %v7938, %v7938
      %v8003 = vmul.f32 %v7939, %v7939
      %v8004 = vmul.f32 %v7940, %v7940
      %v8005 = vmul.f32 %v7941, %v7941
      %v8006 = vmul.f32 %v7942, %v7942
      %v8007 = vmul.f32 %v7943, %v7943
      %v8008 = vmul.f32 %v7944, %v7944
      %v8009 = vmul.f32 %v7945, %v7945
      %v8010 = vmul.f32 %v7946, %v7946
      %v8011 = vmul.f32 %v7947, %v7947
      %v8012 = vmul.f32 %v7948, %v7948
      %v8013 = vmul.f32 %v7949, %v7949
      %v8014 = vmul.f32 %v7950, %v7950
      %v8015 = vmul.f32 %v7951, %v7951
      %v8016 = vmul.f32 %v7952, %v7952
      %v8017 = vmul.f32 %v7953, %v7953
      %v8018 = vmul.f32 %v7954, %v7954
      %v8019 = vmul.f32 %v7955, %v7955
      %v8020 = vmul.f32 %v7956, %v7956
      %v8021 = vmul.f32 %v7957, %v7957
      %v8022 = vmul.f32 %v7958, %v7958
      %v8023 = vmul.f32 %v7959, %v7959
      %v8024 = vmul.f32 %v7960, %v7960
      %v8025 = vmul.f32 %v7961, %v7961
      %v8026 = vmul.f32 %v7962, %v7962
      %v8027 = vmul.f32 %v7963, %v7963
      %v8028 = vmul.f32 %v7964, %v7964
      %v8029 = vmul.f32 %v7965, %v7965
      %v8030 = vmul.f32 %v7966, %v7966
      %v8031 = vmul.f32 %v7967, %v7967
      %v8032 = vmul.f32 %v7968, %v7968
      %v8033 = vmul.f32 %v7969, %v7969
      %v8034 = vmul.f32 %v7970, %v7970
      %v8035 = vmul.f32 %v7971, %v7971
      %v8036 = vmul.f32 %v7972, %v7972
      %v8037 = vmul.f32 %v7973, %v7973
      %v8038 = vmul.f32 %v7974, %v7974
      %v8039 = vmul.f32 %v7975, %v7975
      %v8040 = vmul.f32 %v7976, %v7976
      %v8041 = vmul.f32 %v7977, %v7977
      %v8042 = vmul.f32 %v7978, %v7978
      %v8043 = vmul.f32 %v7979, %v7979
      %v8044 = vmul.f32 %v7980, %v7980
      %v8045 = vmul.f32 %v7981, %v7981
      %v8046 = vmul.f32 %v7982, %v7982
      %v8047 = vmul.f32 %v7983, %v7983
      %v8048 = vmul.f32 %v7984, %v7984
      %v8049 = vmul.f32 %v7985, %v7985
      %v8050 = vmul.f32 %v7986, %v7986
      %v8051 = vmul.f32 %v7987, %v7987
      %v8052 = vmul.f32 %v7988, %v7988
      %v8053 = vmul.f32 %v7989, %v7989
      %v8054 = vmul.f32 %v7990, %v7990
      %v8055 = vmul.f32 %v7991, %v7991
      %v8056 = vmul.f32 %v7992, %v7992
      %v8057 = vmul.f32 %v7993, %v7993
      %v8058 = vmul.f32 %v7994, %v7994
      %v8059 = vmul.f32 %v7995, %v7995
      %v8060 = vmul.f32 %v7996, %v7996
      %v8061 = vmul.f32 %v7997, %v7997
      %v8062 = vmul.f32 %v7998, %v7998
      %v8063 = vmul.f32 %v7999, %v7999
      %v8064 = vmul.f32 %v8000, %v8000
      %v8065 = vmul.f32 %v8001, %v8001
      %v8066 = vadd.f32 %v8002, %v8003
      %v8067 = vadd.f32 %v8066, %v8004
      %v8068 = vadd.f32 %v8067, %v8005
      %v8069 = vadd.f32 %v8068, %v8006
      %v8070 = vadd.f32 %v8069, %v8007
      %v8071 = vadd.f32 %v8070, %v8008
      %v8072 = vadd.f32 %v8071, %v8009
      %v8073 = vadd.f32 %v8072, %v8010
      %v8074 = vadd.f32 %v8073, %v8011
      %v8075 = vadd.f32 %v8074, %v8012
      %v8076 = vadd.f32 %v8075, %v8013
      %v8077 = vadd.f32 %v8076, %v8014
      %v8078 = vadd.f32 %v8077, %v8015
      %v8079 = vadd.f32 %v8078, %v8016
      %v8080 = vadd.f32 %v8079, %v8017
      %v8081 = vadd.f32 %v8080, %v8018
      %v8082 = vadd.f32 %v8081, %v8019
      %v8083 = vadd.f32 %v8082, %v8020
      %v8084 = vadd.f32 %v8083, %v8021
      %v8085 = vadd.f32 %v8084, %v8022
      %v8086 = vadd.f32 %v8085, %v8023
      %v8087 = vadd.f32 %v8086, %v8024
      %v8088 = vadd.f32 %v8087, %v8025
      %v8089 = vadd.f32 %v8088, %v8026
      %v8090 = vadd.f32 %v8089, %v8027
      %v8091 = vadd.f32 %v8090, %v8028
      %v8092 = vadd.f32 %v8091, %v8029
      %v8093 = vadd.f32 %v8092, %v8030
      %v8094 = vadd.f32 %v8093, %v8031
      %v8095 = vadd.f32 %v8094, %v8032
      %v8096 = vadd.f32 %v8095, %v8033
      %v8097 = vrot.slane %v8096, 4
      %v8098 = vadd.f32 %v8096, %v8097
      %v8099 = vrot.slane %v8098, 2
      %v8100 = vadd.f32 %v8098, %v8099
      %v8101 = vrot.slane %v8100, 1
      %v8102 = vadd.f32 %v8100, %v8101
      %v8103 = vadd.f32 %v8034, %v8035
      %v8104 = vadd.f32 %v8103, %v8036
      %v8105 = vadd.f32 %v8104, %v8037
      %v8106 = vadd.f32 %v8105, %v8038
      %v8107 = vadd.f32 %v8106, %v8039
      %v8108 = vadd.f32 %v8107, %v8040
      %v8109 = vadd.f32 %v8108, %v8041
      %v8110 = vadd.f32 %v8109, %v8042
      %v8111 = vadd.f32 %v8110, %v8043
      %v8112 = vadd.f32 %v8111, %v8044
      %v8113 = vadd.f32 %v8112, %v8045
      %v8114 = vadd.f32 %v8113, %v8046
      %v8115 = vadd.f32 %v8114, %v8047
      %v8116 = vadd.f32 %v8115, %v8048
      %v8117 = vadd.f32 %v8116, %v8049
      %v8118 = vadd.f32 %v8117, %v8050
      %v8119 = vadd.f32 %v8118, %v8051
      %v8120 = vadd.f32 %v8119, %v8052
      %v8121 = vadd.f32 %v8120, %v8053
      %v8122 = vadd.f32 %v8121, %v8054
      %v8123 = vadd.f32 %v8122, %v8055
      %v8124 = vadd.f32 %v8123, %v8056
      %v8125 = vadd.f32 %v8124, %v8057
      %v8126 = vadd.f32 %v8125, %v8058
      %v8127 = vadd.f32 %v8126, %v8059
      %v8128 = vadd.f32 %v8127, %v8060
      %v8129 = vadd.f32 %v8128, %v8061
      %v8130 = vadd.f32 %v8129, %v8062
      %v8131 = vadd.f32 %v8130, %v8063
      %v8132 = vadd.f32 %v8131, %v8064
      %v8133 = vadd.f32 %v8132, %v8065
      %v8134 = vrot.slane %v8133, 4
      %v8135 = vadd.f32 %v8133, %v8134
      %v8136 = vrot.slane %v8135, 2
      %v8137 = vadd.f32 %v8135, %v8136
      %v8138 = vrot.slane %v8137, 1
      %v8139 = vadd.f32 %v8137, %v8138
      %v8140 = vmul.f32 %v8102, %v3991
      %v8141 = vmul.f32 %v8139, %v3991
      %v8142 = vadd.f32 %v8140, 1e-05
      %v8143 = vadd.f32 %v8141, 1e-05
      %v8144 = vrsqrt.pop %v8142
      %v8145 = vrsqrt.pop %v8143
      %v8146 = vmul.f32 %v7938, %v8144
      %v8147 = vmul.f32 %v7939, %v8144
      %v8148 = vmul.f32 %v7940, %v8144
      %v8149 = vmul.f32 %v7941, %v8144
      %v8150 = vmul.f32 %v7942, %v8144
      %v8151 = vmul.f32 %v7943, %v8144
      %v8152 = vmul.f32 %v7944, %v8144
      %v8153 = vmul.f32 %v7945, %v8144
      %v8154 = vmul.f32 %v7946, %v8144
      %v8155 = vmul.f32 %v7947, %v8144
      %v8156 = vmul.f32 %v7948, %v8144
      %v8157 = vmul.f32 %v7949, %v8144
      %v8158 = vmul.f32 %v7950, %v8144
      %v8159 = vmul.f32 %v7951, %v8144
      %v8160 = vmul.f32 %v7952, %v8144
      %v8161 = vmul.f32 %v7953, %v8144
      %v8162 = vmul.f32 %v7954, %v8144
      %v8163 = vmul.f32 %v7955, %v8144
      %v8164 = vmul.f32 %v7956, %v8144
      %v8165 = vmul.f32 %v7957, %v8144
      %v8166 = vmul.f32 %v7958, %v8144
      %v8167 = vmul.f32 %v7959, %v8144
      %v8168 = vmul.f32 %v7960, %v8144
      %v8169 = vmul.f32 %v7961, %v8144
      %v8170 = vmul.f32 %v7962, %v8144
      %v8171 = vmul.f32 %v7963, %v8144
      %v8172 = vmul.f32 %v7964, %v8144
      %v8173 = vmul.f32 %v7965, %v8144
      %v8174 = vmul.f32 %v7966, %v8144
      %v8175 = vmul.f32 %v7967, %v8144
      %v8176 = vmul.f32 %v7968, %v8144
      %v8177 = vmul.f32 %v7969, %v8144
      %v8178 = vmul.f32 %v7970, %v8145
      %v8179 = vmul.f32 %v7971, %v8145
      %v8180 = vmul.f32 %v7972, %v8145
      %v8181 = vmul.f32 %v7973, %v8145
      %v8182 = vmul.f32 %v7974, %v8145
      %v8183 = vmul.f32 %v7975, %v8145
      %v8184 = vmul.f32 %v7976, %v8145
      %v8185 = vmul.f32 %v7977, %v8145
      %v8186 = vmul.f32 %v7978, %v8145
      %v8187 = vmul.f32 %v7979, %v8145
      %v8188 = vmul.f32 %v7980, %v8145
      %v8189 = vmul.f32 %v7981, %v8145
      %v8190 = vmul.f32 %v7982, %v8145
      %v8191 = vmul.f32 %v7983, %v8145
      %v8192 = vmul.f32 %v7984, %v8145
      %v8193 = vmul.f32 %v7985, %v8145
      %v8194 = vmul.f32 %v7986, %v8145
      %v8195 = vmul.f32 %v7987, %v8145
      %v8196 = vmul.f32 %v7988, %v8145
      %v8197 = vmul.f32 %v7989, %v8145
      %v8198 = vmul.f32 %v7990, %v8145
      %v8199 = vmul.f32 %v7991, %v8145
      %v8200 = vmul.f32 %v7992, %v8145
      %v8201 = vmul.f32 %v7993, %v8145
      %v8202 = vmul.f32 %v7994, %v8145
      %v8203 = vmul.f32 %v7995, %v8145
      %v8204 = vmul.f32 %v7996, %v8145
      %v8205 = vmul.f32 %v7997, %v8145
      %v8206 = vmul.f32 %v7998, %v8145
      %v8207 = vmul.f32 %v7999, %v8145
      %v8208 = vmul.f32 %v8000, %v8145
      %v8209 = vmul.f32 %v8001, %v8145
      %v8210 = vld [vmem:[%s224] sm:$0xff]
      %v8211 = vld [vmem:[%s224 + $0x8] sm:$0xff]
      %v8212 = vld [vmem:[%s224 + $0x10] sm:$0xff]
      %v8213 = vld [vmem:[%s224 + $0x18] sm:$0xff]
      %v8214 = vld [vmem:[%s224 + $0x20] sm:$0xff]
      %v8215 = vld [vmem:[%s224 + $0x28] sm:$0xff]
      %v8216 = vld [vmem:[%s224 + $0x30] sm:$0xff]
      %v8217 = vld [vmem:[%s224 + $0x38] sm:$0xff]
      %v8218 = vld [vmem:[%s224 + $0x40] sm:$0xff]
      %v8219 = vld [vmem:[%s224 + $0x48] sm:$0xff]
      %v8220 = vld [vmem:[%s224 + $0x50] sm:$0xff]
      %v8221 = vld [vmem:[%s224 + $0x58] sm:$0xff]
      %v8222 = vld [vmem:[%s224 + $0x60] sm:$0xff]
      %v8223 = vld [vmem:[%s224 + $0x68] sm:$0xff]
      %v8224 = vld [vmem:[%s224 + $0x70] sm:$0xff]
      %v8225 = vld [vmem:[%s224 + $0x78] sm:$0xff]
      %v8226 = vld [vmem:[%s224 + $0x80] sm:$0xff]
      %v8227 = vld [vmem:[%s224 + $0x88] sm:$0xff]
      %v8228 = vld [vmem:[%s224 + $0x90] sm:$0xff]
      %v8229 = vld [vmem:[%s224 + $0x98] sm:$0xff]
      %v8230 = vld [vmem:[%s224 + $0xa0] sm:$0xff]
      %v8231 = vld [vmem:[%s224 + $0xa8] sm:$0xff]
      %v8232 = vld [vmem:[%s224 + $0xb0] sm:$0xff]
      %v8233 = vld [vmem:[%s224 + $0xb8] sm:$0xff]
      %v8234 = vld [vmem:[%s224 + $0xc0] sm:$0xff]
      %v8235 = vld [vmem:[%s224 + $0xc8] sm:$0xff]
      %v8236 = vld [vmem:[%s224 + $0xd0] sm:$0xff]
      %v8237 = vld [vmem:[%s224 + $0xd8] sm:$0xff]
      %v8238 = vld [vmem:[%s224 + $0xe0] sm:$0xff]
      %v8239 = vld [vmem:[%s224 + $0xe8] sm:$0xff]
      %v8240 = vld [vmem:[%s224 + $0xf0] sm:$0xff]
      %v8241 = vld [vmem:[%s224 + $0xf8] sm:$0xff]
      %v8242 = vld [vmem:[%s224 + $0x100] sm:$0xff]
      %v8243 = vld [vmem:[%s224 + $0x108] sm:$0xff]
      %v8244 = vld [vmem:[%s224 + $0x110] sm:$0xff]
      %v8245 = vld [vmem:[%s224 + $0x118] sm:$0xff]
      %v8246 = vld [vmem:[%s224 + $0x120] sm:$0xff]
      %v8247 = vld [vmem:[%s224 + $0x128] sm:$0xff]
      %v8248 = vld [vmem:[%s224 + $0x130] sm:$0xff]
      %v8249 = vld [vmem:[%s224 + $0x138] sm:$0xff]
      %v8250 = vld [vmem:[%s224 + $0x140] sm:$0xff]
      %v8251 = vld [vmem:[%s224 + $0x148] sm:$0xff]
      %v8252 = vld [vmem:[%s224 + $0x150] sm:$0xff]
      %v8253 = vld [vmem:[%s224 + $0x158] sm:$0xff]
      %v8254 = vld [vmem:[%s224 + $0x160] sm:$0xff]
      %v8255 = vld [vmem:[%s224 + $0x168] sm:$0xff]
      %v8256 = vld [vmem:[%s224 + $0x170] sm:$0xff]
      %v8257 = vld [vmem:[%s224 + $0x178] sm:$0xff]
      %v8258 = vld [vmem:[%s224 + $0x180] sm:$0xff]
      %v8259 = vld [vmem:[%s224 + $0x188] sm:$0xff]
      %v8260 = vld [vmem:[%s224 + $0x190] sm:$0xff]
      %v8261 = vld [vmem:[%s224 + $0x198] sm:$0xff]
      %v8262 = vld [vmem:[%s224 + $0x1a0] sm:$0xff]
      %v8263 = vld [vmem:[%s224 + $0x1a8] sm:$0xff]
      %v8264 = vld [vmem:[%s224 + $0x1b0] sm:$0xff]
      %v8265 = vld [vmem:[%s224 + $0x1b8] sm:$0xff]
      %v8266 = vld [vmem:[%s224 + $0x1c0] sm:$0xff]
      %v8267 = vld [vmem:[%s224 + $0x1c8] sm:$0xff]
      %v8268 = vld [vmem:[%s224 + $0x1d0] sm:$0xff]
      %v8269 = vld [vmem:[%s224 + $0x1d8] sm:$0xff]
      %v8270 = vld [vmem:[%s224 + $0x1e0] sm:$0xff]
      %v8271 = vld [vmem:[%s224 + $0x1e8] sm:$0xff]
      %v8272 = vld [vmem:[%s224 + $0x1f0] sm:$0xff]
      %v8273 = vld [vmem:[%s224 + $0x1f8] sm:$0xff]
      %v8274 = vadd.f32 %v8146, %v8210
      %v8275 = vadd.f32 %v8147, %v8211
      %v8276 = vadd.f32 %v8148, %v8212
      %v8277 = vadd.f32 %v8149, %v8213
      %v8278 = vadd.f32 %v8150, %v8214
      %v8279 = vadd.f32 %v8151, %v8215
      %v8280 = vadd.f32 %v8152, %v8216
      %v8281 = vadd.f32 %v8153, %v8217
      %v8282 = vadd.f32 %v8154, %v8218
      %v8283 = vadd.f32 %v8155, %v8219
      %v8284 = vadd.f32 %v8156, %v8220
      %v8285 = vadd.f32 %v8157, %v8221
      %v8286 = vadd.f32 %v8158, %v8222
      %v8287 = vadd.f32 %v8159, %v8223
      %v8288 = vadd.f32 %v8160, %v8224
      %v8289 = vadd.f32 %v8161, %v8225
      %v8290 = vadd.f32 %v8162, %v8226
      %v8291 = vadd.f32 %v8163, %v8227
      %v8292 = vadd.f32 %v8164, %v8228
      %v8293 = vadd.f32 %v8165, %v8229
      %v8294 = vadd.f32 %v8166, %v8230
      %v8295 = vadd.f32 %v8167, %v8231
      %v8296 = vadd.f32 %v8168, %v8232
      %v8297 = vadd.f32 %v8169, %v8233
      %v8298 = vadd.f32 %v8170, %v8234
      %v8299 = vadd.f32 %v8171, %v8235
      %v8300 = vadd.f32 %v8172, %v8236
      %v8301 = vadd.f32 %v8173, %v8237
      %v8302 = vadd.f32 %v8174, %v8238
      %v8303 = vadd.f32 %v8175, %v8239
      %v8304 = vadd.f32 %v8176, %v8240
      %v8305 = vadd.f32 %v8177, %v8241
      %v8306 = vadd.f32 %v8178, %v8242
      %v8307 = vadd.f32 %v8179, %v8243
      %v8308 = vadd.f32 %v8180, %v8244
      %v8309 = vadd.f32 %v8181, %v8245
      %v8310 = vadd.f32 %v8182, %v8246
      %v8311 = vadd.f32 %v8183, %v8247
      %v8312 = vadd.f32 %v8184, %v8248
      %v8313 = vadd.f32 %v8185, %v8249
      %v8314 = vadd.f32 %v8186, %v8250
      %v8315 = vadd.f32 %v8187, %v8251
      %v8316 = vadd.f32 %v8188, %v8252
      %v8317 = vadd.f32 %v8189, %v8253
      %v8318 = vadd.f32 %v8190, %v8254
      %v8319 = vadd.f32 %v8191, %v8255
      %v8320 = vadd.f32 %v8192, %v8256
      %v8321 = vadd.f32 %v8193, %v8257
      %v8322 = vadd.f32 %v8194, %v8258
      %v8323 = vadd.f32 %v8195, %v8259
      %v8324 = vadd.f32 %v8196, %v8260
      %v8325 = vadd.f32 %v8197, %v8261
      %v8326 = vadd.f32 %v8198, %v8262
      %v8327 = vadd.f32 %v8199, %v8263
      %v8328 = vadd.f32 %v8200, %v8264
      %v8329 = vadd.f32 %v8201, %v8265
      %v8330 = vadd.f32 %v8202, %v8266
      %v8331 = vadd.f32 %v8203, %v8267
      %v8332 = vadd.f32 %v8204, %v8268
      %v8333 = vadd.f32 %v8205, %v8269
      %v8334 = vadd.f32 %v8206, %v8270
      %v8335 = vadd.f32 %v8207, %v8271
      %v8336 = vadd.f32 %v8208, %v8272
      %v8337 = vadd.f32 %v8209, %v8273
      %8338 = vst [vmem:[%s231] sm:$0xff] %v8274
      %8339 = vst [vmem:[%s231 + $0x8] sm:$0xff] %v8275
      %8340 = vst [vmem:[%s231 + $0x10] sm:$0xff] %v8276
      %8341 = vst [vmem:[%s231 + $0x18] sm:$0xff] %v8277
      %8342 = vst [vmem:[%s231 + $0x20] sm:$0xff] %v8278
      %8343 = vst [vmem:[%s231 + $0x28] sm:$0xff] %v8279
      %8344 = vst [vmem:[%s231 + $0x30] sm:$0xff] %v8280
      %8345 = vst [vmem:[%s231 + $0x38] sm:$0xff] %v8281
      %8346 = vst [vmem:[%s231 + $0x40] sm:$0xff] %v8282
      %8347 = vst [vmem:[%s231 + $0x48] sm:$0xff] %v8283
      %8348 = vst [vmem:[%s231 + $0x50] sm:$0xff] %v8284
      %8349 = vst [vmem:[%s231 + $0x58] sm:$0xff] %v8285
      %8350 = vst [vmem:[%s231 + $0x60] sm:$0xff] %v8286
      %8351 = vst [vmem:[%s231 + $0x68] sm:$0xff] %v8287
      %8352 = vst [vmem:[%s231 + $0x70] sm:$0xff] %v8288
      %8353 = vst [vmem:[%s231 + $0x78] sm:$0xff] %v8289
      %8354 = vst [vmem:[%s231 + $0x80] sm:$0xff] %v8290
      %8355 = vst [vmem:[%s231 + $0x88] sm:$0xff] %v8291
      %8356 = vst [vmem:[%s231 + $0x90] sm:$0xff] %v8292
      %8357 = vst [vmem:[%s231 + $0x98] sm:$0xff] %v8293
      %8358 = vst [vmem:[%s231 + $0xa0] sm:$0xff] %v8294
      %8359 = vst [vmem:[%s231 + $0xa8] sm:$0xff] %v8295
      %8360 = vst [vmem:[%s231 + $0xb0] sm:$0xff] %v8296
      %8361 = vst [vmem:[%s231 + $0xb8] sm:$0xff] %v8297
      %8362 = vst [vmem:[%s231 + $0xc0] sm:$0xff] %v8298
      %8363 = vst [vmem:[%s231 + $0xc8] sm:$0xff] %v8299
      %8364 = vst [vmem:[%s231 + $0xd0] sm:$0xff] %v8300
      %8365 = vst [vmem:[%s231 + $0xd8] sm:$0xff] %v8301
      %8366 = vst [vmem:[%s231 + $0xe0] sm:$0xff] %v8302
      %8367 = vst [vmem:[%s231 + $0xe8] sm:$0xff] %v8303
      %8368 = vst [vmem:[%s231 + $0xf0] sm:$0xff] %v8304
      %8369 = vst [vmem:[%s231 + $0xf8] sm:$0xff] %v8305
      %8370 = vst [vmem:[%s231 + $0x100] sm:$0xff] %v8306
      %8371 = vst [vmem:[%s231 + $0x108] sm:$0xff] %v8307
      %8372 = vst [vmem:[%s231 + $0x110] sm:$0xff] %v8308
      %8373 = vst [vmem:[%s231 + $0x118] sm:$0xff] %v8309
      %8374 = vst [vmem:[%s231 + $0x120] sm:$0xff] %v8310
      %8375 = vst [vmem:[%s231 + $0x128] sm:$0xff] %v8311
      %8376 = vst [vmem:[%s231 + $0x130] sm:$0xff] %v8312
      %8377 = vst [vmem:[%s231 + $0x138] sm:$0xff] %v8313
      %8378 = vst [vmem:[%s231 + $0x140] sm:$0xff] %v8314
      %8379 = vst [vmem:[%s231 + $0x148] sm:$0xff] %v8315
      %8380 = vst [vmem:[%s231 + $0x150] sm:$0xff] %v8316
      %8381 = vst [vmem:[%s231 + $0x158] sm:$0xff] %v8317
      %8382 = vst [vmem:[%s231 + $0x160] sm:$0xff] %v8318
      %8383 = vst [vmem:[%s231 + $0x168] sm:$0xff] %v8319
      %8384 = vst [vmem:[%s231 + $0x170] sm:$0xff] %v8320
      %8385 = vst [vmem:[%s231 + $0x178] sm:$0xff] %v8321
      %8386 = vst [vmem:[%s231 + $0x180] sm:$0xff] %v8322
      %8387 = vst [vmem:[%s231 + $0x188] sm:$0xff] %v8323
      %8388 = vst [vmem:[%s231 + $0x190] sm:$0xff] %v8324
      %8389 = vst [vmem:[%s231 + $0x198] sm:$0xff] %v8325
      %8390 = vst [vmem:[%s231 + $0x1a0] sm:$0xff] %v8326
      %8391 = vst [vmem:[%s231 + $0x1a8] sm:$0xff] %v8327
      %8392 = vst [vmem:[%s231 + $0x1b0] sm:$0xff] %v8328
      %8393 = vst [vmem:[%s231 + $0x1b8] sm:$0xff] %v8329
      %8394 = vst [vmem:[%s231 + $0x1c0] sm:$0xff] %v8330
      %8395 = vst [vmem:[%s231 + $0x1c8] sm:$0xff] %v8331
      %8396 = vst [vmem:[%s231 + $0x1d0] sm:$0xff] %v8332
      %8397 = vst [vmem:[%s231 + $0x1d8] sm:$0xff] %v8333
      %8398 = vst [vmem:[%s231 + $0x1e0] sm:$0xff] %v8334
      %8399 = vst [vmem:[%s231 + $0x1e8] sm:$0xff] %v8335
      %8400 = vst [vmem:[%s231 + $0x1f0] sm:$0xff] %v8336
      %8401 = vst [vmem:[%s231 + $0x1f8] sm:$0xff] %v8337
      %s8402 = smul.u32 2, %s16
      %p8403 = scmp.lt.s32.totalorder %s8402, 3
      %s8404 = scalar_select %p8403, %s8402, 3
      %s8405 = smul.addr %s8404, 32
      %s8406 = smul.addr %s8405, 8
      %s8407 = scalar_lea.vmem %s5, %s8406
      // Predicated region
      $region41: #{resblock_forward.1} parent=39 // pred_check
        %p8408 = pneg %p144
      $region42: #{resblock_forward.1} parent=39 // pred_check_branch
        %8410 = sbr.rel (%p8408) target = $region44
      $region43: #{resblock_forward.1} parent=39 // pred_region
        %s8411 = smul.u32 2, %s16
      $region44: #{resblock_forward.1} parent=39 // pred_fallthru
        _
    $region40: #{resblock_forward.1} parent=5 // pred_fallthru
      _
    %p8412 = scmp.le.s32.totalorder 2, %s11
    // Predicated region
    $region45: #{resblock_forward.1} parent=5 // pred_check
      %p8413 = pneg %p8412
    $region46: #{resblock_forward.1} parent=5 // pred_check_branch
      %8415 = sbr.rel (%p8413) target = $region48
    $region47: #{resblock_forward.1} parent=5 // pred_region
      %s8416 = ssub.s32 %s11, 2
      // Predicated region
      $region49: #{resblock_forward.1} parent=47 // pred_check
        %p8417 = pneg %p150
      $region50: #{resblock_forward.1} parent=47 // pred_check_branch
        %8419 = sbr.rel (%p8417) target = $region52
      $region51: #{resblock_forward.1} parent=47 // pred_region
        %s8420 = smul.u32 2, %s17
        %p8421 = scmp.lt.s32.totalorder %s8420, 3
        %s8422 = scalar_select %p8421, %s8420, 3
        %s8423 = smul.addr %s8422, 32
        %s8424 = smul.addr %s8423, 8
        %s8425 = scalar_lea.vmem %s5, %s8424
      $region52: #{resblock_forward.1} parent=47 // pred_fallthru
        _
    $region48: #{resblock_forward.1} parent=5 // pred_fallthru
      _
  $region6: #{resblock_forward.1} parent=0 // loop_footer
    %s15 = sadd.s32 1, %s11
  $region7: #{resblock_forward.1} parent=0 // loop_footer_branch
    %10 = sbr.rel target = $region3
  $region8: #{resblock_forward.1} parent=0 // loop_exit
    _

</llo_original>
